<compile_context>
chip_gen: v5e
topology: v5e:2x2
jax: 0.10.0
libtpu: 0.0.40
codegen_flags: <defaults>
</compile_context>

<pallas_src>
import functools

import jax
import jax.numpy as jnp
from jax.experimental import pallas as pl
from jax.experimental.pallas import tpu as pltpu

_BN_EPS = 1e-5


def _round_up(v, m):
    return (v + m - 1) // m * m


# -----------------------------------------------------------------------------
# In-kernel building block: 3x3 conv (stride 1, pad 1) + folded-BN bias (+ReLU)
# Layout: x is (Cin, H*W) f32, channels in sublanes, flattened spatial in lanes.
# -----------------------------------------------------------------------------
def _conv3x3(x, w_ref, b_ref, tap_kind, taps, *, W, relu):
    HW = x.shape[1]
    pieces = []
    for oy in (-1, 0, 1):
        for ox in (-1, 0, 1):
            t = (oy + 1) * 3 + (ox + 1)
            off = oy * W + ox
            if off == 0:
                p = x
            elif tap_kind == "mask":
                # lane rotate on the XLU + precomputed (1, HW) 0/1 boundary mask
                p = pltpu.roll(x, (-off) % HW, axis=1) * taps[t]
            else:
                # tiny (8x8) maps: shift+mask via a precomputed 0/1 matrix on the MXU
                p = jnp.dot(x, taps[t], preferred_element_type=jnp.float32)
            pieces.append(p)
    # im2col: single dot per conv, bf16 operands, f32 accumulation.
    patches = jnp.concatenate(pieces, axis=0).astype(jnp.bfloat16)   # (9*Cin, HW)
    y = jnp.dot(w_ref[...], patches, preferred_element_type=jnp.float32)  # (Cout, HW)
    y = y + b_ref[...]                                                # folded BN bias
    return jnp.maximum(y, 0.0) if relu else y


# -----------------------------------------------------------------------------
# Whole-network kernel: one grid step == one batch item, activations stay in VMEM
# -----------------------------------------------------------------------------
def _cifar_resnet_kernel(*refs, increase_flags, H0, W0, tap_kinds):
    n_conv = 1 + 2 * len(increase_flags)
    n_inc = sum(1 for f in increase_flags if f)
    n_res = n_inc + 1

    x_ref = refs[0]
    i0 = 1
    wb = refs[i0:i0 + 2 * n_conv]; i0 += 2 * n_conv          # [w, b] per conv
    sel_refs = refs[i0:i0 + n_inc]; i0 += n_inc              # decimation matrices
    tap_refs = refs[i0:i0 + n_res]; i0 += n_res              # per-resolution tap consts
    raw_ref, feat_ref = refs[i0], refs[i0 + 1]

    # Hoisted: load the per-resolution tap constants once per grid step.
    taps_by_res = [(tap_kinds[r], [tap_refs[r][t] for t in range(9)])
                   for r in range(n_res)]

    H, W = H0, W0
    res = 0
    x = x_ref[0]                                             # (Cin_pad, H0*W0) f32

    # conv_1_3x3 + bn_1 + relu
    x = _conv3x3(x, wb[0], wb[1], *taps_by_res[0], W=W, relu=True)

    ci = 1
    inc_i = 0
    for inc in increase_flags:
        wa, ba = wb[2 * ci], wb[2 * ci + 1]
        wcb, bcb = wb[2 * ci + 2], wb[2 * ci + 3]
        ci += 2

        y = _conv3x3(x, wa, ba, *taps_by_res[res], W=W, relu=True)    # conv_a+bn_a+relu
        if inc:
            sel = sel_refs[inc_i][...]                       # (HW, HW//4) 0/1 f32
            inc_i += 1
            # stride-2 conv == stride-1 conv decimated [::2, ::2]; BN/ReLU are
            # per-channel so applying them before decimation is equivalent.
            y = jnp.dot(y, sel, preferred_element_type=jnp.float32)
            x_d = jnp.dot(x, sel, preferred_element_type=jnp.float32)  # DownsampleStride
            x = jnp.concatenate([x_d, jnp.zeros_like(x_d)], axis=0)    # channel zero-pad
            H, W = H // 2, W // 2
            res += 1
        y = _conv3x3(y, wcb, bcb, *taps_by_res[res], W=W, relu=False)  # conv_b+bn_b
        x = x + y                                            # residual add (no relu)

    # AvgPool2d over the full final map, both heads in one pass.
    inv = 1.0 / float(H * W)
    raw = jnp.sum(x, axis=1, keepdims=True) * inv                      # (C, 1)
    feat = jnp.sum(jnp.maximum(x, 0.0), axis=1, keepdims=True) * inv   # (C, 1)
    raw_ref[...] = raw[None]                                 # (1, C, 1)
    feat_ref[...] = feat[None]


# -----------------------------------------------------------------------------
# Host-side constants (shape-only; constant-folded under jit)
# -----------------------------------------------------------------------------
def _make_tap_consts(H, W):
    """Per-tap boundary masks (roll path) or 0/1 shift+mask matrices (matmul path)."""
    HW = H * W
    p = jnp.arange(HW, dtype=jnp.int32)
    y, x = p // W, p % W
    if HW >= 128 and HW % 128 == 0:
        masks = []
        for oy in (-1, 0, 1):
            for ox in (-1, 0, 1):
                valid = ((y + oy >= 0) & (y + oy < H) &
                         (x + ox >= 0) & (x + ox < W))
                masks.append(valid.astype(jnp.float32).reshape(1, HW))
        return "mask", jnp.stack(masks, axis=0)              # (9, 1, HW)
    mats = []
    for oy in (-1, 0, 1):
        for ox in (-1, 0, 1):
            valid = ((y + oy >= 0) & (y + oy < H) &
                     (x + ox >= 0) & (x + ox < W))
            src = p + oy * W + ox
            m = (jnp.arange(HW)[:, None] == src[None, :]) & valid[None, :]
            mats.append(m.astype(jnp.float32))
    return "mat", jnp.stack(mats, axis=0)                    # (9, HW, HW)


def _make_decimation(H, W):
    """(HW, HW//4) 0/1 matrix implementing [::2, ::2] on the flattened spatial axis."""
    Hq, Wq = H // 2, W // 2
    q = jnp.arange(Hq * Wq, dtype=jnp.int32)
    src = (q // Wq) * (2 * W) + (q % Wq) * 2
    return (jnp.arange(H * W)[:, None] == src[None, :]).astype(jnp.float32)


# -----------------------------------------------------------------------------
# Wrapper: one pallas_call for the whole network
# -----------------------------------------------------------------------------
def _const_spec(a):
    nd = a.ndim
    return pl.BlockSpec(a.shape, lambda b, _nd=nd: (0,) * _nd)


def cifar_resnet_forward(params, x_nchw):
    wb = params["wb"]
    increase_flags = tuple(bool(f) for f in params["increase_flags"])
    nf = params["nf"]

    B, C, H, W = x_nchw.shape
    HW = H * W
    Cp = _round_up(C, 8)
    x = x_nchw.reshape(B, C, HW).astype(jnp.float32)         # NCHW is already (C, HW)
    if Cp != C:
        x = jnp.pad(x, ((0, 0), (0, Cp - C), (0, 0)))

    tap_kinds, tap_arrays, sel_arrays = [], [], []
    Hr, Wr = H, W
    k0, a0 = _make_tap_consts(Hr, Wr)
    tap_kinds.append(k0); tap_arrays.append(a0)
    for inc in increase_flags:
        if inc:
            sel_arrays.append(_make_decimation(Hr, Wr))
            Hr, Wr = Hr // 2, Wr // 2
            kk, aa = _make_tap_consts(Hr, Wr)
            tap_kinds.append(kk); tap_arrays.append(aa)

    out_c = nf * (2 ** sum(1 for f in increase_flags if f))

    kernel = functools.partial(_cifar_resnet_kernel,
                               increase_flags=increase_flags,
                               H0=H, W0=W, tap_kinds=tuple(tap_kinds))

    consts = list(wb) + sel_arrays + tap_arrays
    in_specs = [pl.BlockSpec((1, Cp, HW), lambda b: (b, 0, 0))]
    in_specs += [_const_spec(a) for a in consts]             # constant blocks: no re-DMA
    out_specs = [pl.BlockSpec((1, out_c, 1), lambda b: (b, 0, 0)),
                 pl.BlockSpec((1, out_c, 1), lambda b: (b, 0, 0))]
    out_shape = [jax.ShapeDtypeStruct((B, out_c, 1), jnp.float32),
                 jax.ShapeDtypeStruct((B, out_c, 1), jnp.float32)]

    raw3, feat3 = pl.pallas_call(
        kernel,
        grid=(B,),
        in_specs=in_specs,
        out_specs=out_specs,
        out_shape=out_shape,
        compiler_params=pltpu.CompilerParams(dimension_semantics=("parallel",)),
    )(x, *consts)
    return raw3[:, :, 0], feat3[:, :, 0]                     # raw_features, features


# -----------------------------------------------------------------------------
# Deterministic parameters (shapes per CifarResNet.__init__), BN folded, bf16 weights
# -----------------------------------------------------------------------------
def _bn_affine(key, c):
    k1, k2, k3, k4 = jax.random.split(key, 4)
    gamma = 1.0 + 0.1 * jax.random.normal(k1, (c,), jnp.float32)
    beta = 0.1 * jax.random.normal(k2, (c,), jnp.float32)
    mean = 0.1 * jax.random.normal(k3, (c,), jnp.float32)
    var = 0.5 + jax.random.uniform(k4, (c,), jnp.float32)
    scale = gamma / jnp.sqrt(var + _BN_EPS)
    bias = beta - mean * scale
    return scale, bias


def _folded_conv(key, cin, cout):
    """Returns (W2, b): W2 (Cout, 9*Cin_pad) bf16 with BN scale folded, b (Cout, 1) f32."""
    kw, kb = jax.random.split(key)
    w = jax.random.normal(kw, (3, 3, cin, cout), jnp.float32) * jnp.sqrt(2.0 / (cout * 9.0))
    scale, bias = _bn_affine(kb, cout)
    cin_p = _round_up(cin, 8)
    w = jnp.pad(w.reshape(9, cin, cout), ((0, 0), (0, cin_p - cin), (0, 0)))
    w2 = jnp.transpose(w, (2, 0, 1)).reshape(cout, 9 * cin_p) * scale[:, None]
    return w2.astype(jnp.bfloat16), bias.reshape(cout, 1).astype(jnp.float32)


def build_params(key, *, n, nf, channels):
    keys = iter(jax.random.split(key, 128))
    wb = list(_folded_conv(next(keys), channels, nf))         # conv_1_3x3 + bn_1
    increase_flags = []

    def add_block(inplanes, increase):
        planes = inplanes * 2 if increase else inplanes
        wb.extend(_folded_conv(next(keys), inplanes, planes))  # conv_a + bn_a
        wb.extend(_folded_conv(next(keys), planes, planes))    # conv_b + bn_b
        increase_flags.append(increase)
        return planes

    c = nf
    for _ in range(n):                 # stage_1
        c = add_block(c, False)
    c = add_block(c, True)             # stage_2
    for _ in range(n - 1):
        c = add_block(c, False)
    c = add_block(c, True)             # stage_3
    for _ in range(n - 2):
        c = add_block(c, False)
    c = add_block(c, False)            # stage_4
    return {"wb": wb, "increase_flags": increase_flags, "nf": nf}


# -----------------------------------------------------------------------------
if __name__ == "__main__":
    key = jax.random.PRNGKey(0)
    kp, kx = jax.random.split(key)

    # Small config consistent with the module: n=2, nf=8, CIFAR-style 32x32 input
    # (spatial 32 -> 16 -> 8; AvgPool2d(8) reduces the final 8x8 map to 1x1).
    n, nf, channels, batch = 2, 8, 3, 2
    params = build_params(kp, n=n, nf=nf, channels=channels)
    x = jax.random.normal(kx, (batch, channels, 32, 32), jnp.float32)   # NCHW like torch

    fwd = jax.jit(functools.partial(cifar_resnet_forward, params))
    raw, feat = fwd(x)
    jax.block_until_ready((raw, feat))

    assert raw.shape == (batch, 4 * nf), raw.shape
    assert feat.shape == (batch, 4 * nf), feat.shape
    assert bool(jnp.all(jnp.isfinite(raw))) and bool(jnp.all(jnp.isfinite(feat)))
    print("KERNEL_OK")
</pallas_src>

<mosaic_0001>
module attributes {stable_mosaic.version = 11 : i64} {
  func.func @_cifar_resnet_kernel(%arg0: i32, %arg1: memref<1x8x1024xf32, #tpu.memory_space<vmem>>, %arg2: memref<8x72xbf16, #tpu.memory_space<vmem>>, %arg3: memref<8x1xf32, #tpu.memory_space<vmem>>, %arg4: memref<8x72xbf16, #tpu.memory_space<vmem>>, %arg5: memref<8x1xf32, #tpu.memory_space<vmem>>, %arg6: memref<8x72xbf16, #tpu.memory_space<vmem>>, %arg7: memref<8x1xf32, #tpu.memory_space<vmem>>, %arg8: memref<8x72xbf16, #tpu.memory_space<vmem>>, %arg9: memref<8x1xf32, #tpu.memory_space<vmem>>, %arg10: memref<8x72xbf16, #tpu.memory_space<vmem>>, %arg11: memref<8x1xf32, #tpu.memory_space<vmem>>, %arg12: memref<16x72xbf16, #tpu.memory_space<vmem>>, %arg13: memref<16x1xf32, #tpu.memory_space<vmem>>, %arg14: memref<16x144xbf16, #tpu.memory_space<vmem>>, %arg15: memref<16x1xf32, #tpu.memory_space<vmem>>, %arg16: memref<16x144xbf16, #tpu.memory_space<vmem>>, %arg17: memref<16x1xf32, #tpu.memory_space<vmem>>, %arg18: memref<16x144xbf16, #tpu.memory_space<vmem>>, %arg19: memref<16x1xf32, #tpu.memory_space<vmem>>, %arg20: memref<32x144xbf16, #tpu.memory_space<vmem>>, %arg21: memref<32x1xf32, #tpu.memory_space<vmem>>, %arg22: memref<32x288xbf16, #tpu.memory_space<vmem>>, %arg23: memref<32x1xf32, #tpu.memory_space<vmem>>, %arg24: memref<32x288xbf16, #tpu.memory_space<vmem>>, %arg25: memref<32x1xf32, #tpu.memory_space<vmem>>, %arg26: memref<32x288xbf16, #tpu.memory_space<vmem>>, %arg27: memref<32x1xf32, #tpu.memory_space<vmem>>, %arg28: memref<1024x256xf32, #tpu.memory_space<vmem>>, %arg29: memref<256x64xf32, #tpu.memory_space<vmem>>, %arg30: memref<9x1x1024xf32, #tpu.memory_space<vmem>>, %arg31: memref<9x1x256xf32, #tpu.memory_space<vmem>>, %arg32: memref<9x64x64xf32, #tpu.memory_space<vmem>>, %arg33: memref<1x32x1xf32, #tpu.memory_space<vmem>>, %arg34: memref<1x32x1xf32, #tpu.memory_space<vmem>>) attributes {dimension_semantics = [#tpu.dimension_semantics<parallel>], iteration_bounds = array<i64: 2>, scalar_prefetch = 0 : i64, scratch_operands = 0 : i64, tpu.core_type = #tpu.core_type<tc>, window_params = [{transform_indices = @transform_0, window_bounds = array<i64: 1, 8, 1024>}, {pipeline_mode = #tpu.pipeline_mode<synchronous>, transform_indices = @transform_1, window_bounds = array<i64: 8, 72>}, {pipeline_mode = #tpu.pipeline_mode<synchronous>, transform_indices = @transform_2, window_bounds = array<i64: 8, 1>}, {pipeline_mode = #tpu.pipeline_mode<synchronous>, transform_indices = @transform_3, window_bounds = array<i64: 8, 72>}, {pipeline_mode = #tpu.pipeline_mode<synchronous>, transform_indices = @transform_4, window_bounds = array<i64: 8, 1>}, {pipeline_mode = #tpu.pipeline_mode<synchronous>, transform_indices = @transform_5, window_bounds = array<i64: 8, 72>}, {pipeline_mode = #tpu.pipeline_mode<synchronous>, transform_indices = @transform_6, window_bounds = array<i64: 8, 1>}, {pipeline_mode = #tpu.pipeline_mode<synchronous>, transform_indices = @transform_7, window_bounds = array<i64: 8, 72>}, {pipeline_mode = #tpu.pipeline_mode<synchronous>, transform_indices = @transform_8, window_bounds = array<i64: 8, 1>}, {pipeline_mode = #tpu.pipeline_mode<synchronous>, transform_indices = @transform_9, window_bounds = array<i64: 8, 72>}, {pipeline_mode = #tpu.pipeline_mode<synchronous>, transform_indices = @transform_10, window_bounds = array<i64: 8, 1>}, {pipeline_mode = #tpu.pipeline_mode<synchronous>, transform_indices = @transform_11, window_bounds = array<i64: 16, 72>}, {pipeline_mode = #tpu.pipeline_mode<synchronous>, transform_indices = @transform_12, window_bounds = array<i64: 16, 1>}, {pipeline_mode = #tpu.pipeline_mode<synchronous>, transform_indices = @transform_13, window_bounds = array<i64: 16, 144>}, {pipeline_mode = #tpu.pipeline_mode<synchronous>, transform_indices = @transform_14, window_bounds = array<i64: 16, 1>}, {pipeline_mode = #tpu.pipeline_mode<synchronous>, transform_indices = @transform_15, window_bounds = array<i64: 16, 144>}, {pipeline_mode = #tpu.pipeline_mode<synchronous>, transform_indices = @transform_16, window_bounds = array<i64: 16, 1>}, {pipeline_mode = #tpu.pipeline_mode<synchronous>, transform_indices = @transform_17, window_bounds = array<i64: 16, 144>}, {pipeline_mode = #tpu.pipeline_mode<synchronous>, transform_indices = @transform_18, window_bounds = array<i64: 16, 1>}, {pipeline_mode = #tpu.pipeline_mode<synchronous>, transform_indices = @transform_19, window_bounds = array<i64: 32, 144>}, {pipeline_mode = #tpu.pipeline_mode<synchronous>, transform_indices = @transform_20, window_bounds = array<i64: 32, 1>}, {pipeline_mode = #tpu.pipeline_mode<synchronous>, transform_indices = @transform_21, window_bounds = array<i64: 32, 288>}, {pipeline_mode = #tpu.pipeline_mode<synchronous>, transform_indices = @transform_22, window_bounds = array<i64: 32, 1>}, {pipeline_mode = #tpu.pipeline_mode<synchronous>, transform_indices = @transform_23, window_bounds = array<i64: 32, 288>}, {pipeline_mode = #tpu.pipeline_mode<synchronous>, transform_indices = @transform_24, window_bounds = array<i64: 32, 1>}, {pipeline_mode = #tpu.pipeline_mode<synchronous>, transform_indices = @transform_25, window_bounds = array<i64: 32, 288>}, {pipeline_mode = #tpu.pipeline_mode<synchronous>, transform_indices = @transform_26, window_bounds = array<i64: 32, 1>}, {pipeline_mode = #tpu.pipeline_mode<synchronous>, transform_indices = @transform_27, window_bounds = array<i64: 1024, 256>}, {pipeline_mode = #tpu.pipeline_mode<synchronous>, transform_indices = @transform_28, window_bounds = array<i64: 256, 64>}, {pipeline_mode = #tpu.pipeline_mode<synchronous>, transform_indices = @transform_29, window_bounds = array<i64: 9, 1, 1024>}, {pipeline_mode = #tpu.pipeline_mode<synchronous>, transform_indices = @transform_30, window_bounds = array<i64: 9, 1, 256>}, {pipeline_mode = #tpu.pipeline_mode<synchronous>, transform_indices = @transform_31, window_bounds = array<i64: 9, 64, 64>}, {transform_indices = @transform_32, window_bounds = array<i64: 1, 32, 1>}, {transform_indices = @transform_33, window_bounds = array<i64: 1, 32, 1>}]} {
    %c0 = arith.constant 0 : index
    %c0_0 = arith.constant 0 : index
    %c0_1 = arith.constant 0 : index
    %0 = vector.load %arg30[%c0, %c0_0, %c0_1] : memref<9x1x1024xf32, #tpu.memory_space<vmem>>, vector<1x1x1024xf32>
    %1 = vector.shape_cast %0 : vector<1x1x1024xf32> to vector<1x1024xf32>
    %c1 = arith.constant 1 : index
    %c0_2 = arith.constant 0 : index
    %c0_3 = arith.constant 0 : index
    %2 = vector.load %arg30[%c1, %c0_2, %c0_3] : memref<9x1x1024xf32, #tpu.memory_space<vmem>>, vector<1x1x1024xf32>
    %3 = vector.shape_cast %2 : vector<1x1x1024xf32> to vector<1x1024xf32>
    %c2 = arith.constant 2 : index
    %c0_4 = arith.constant 0 : index
    %c0_5 = arith.constant 0 : index
    %4 = vector.load %arg30[%c2, %c0_4, %c0_5] : memref<9x1x1024xf32, #tpu.memory_space<vmem>>, vector<1x1x1024xf32>
    %5 = vector.shape_cast %4 : vector<1x1x1024xf32> to vector<1x1024xf32>
    %c3 = arith.constant 3 : index
    %c0_6 = arith.constant 0 : index
    %c0_7 = arith.constant 0 : index
    %6 = vector.load %arg30[%c3, %c0_6, %c0_7] : memref<9x1x1024xf32, #tpu.memory_space<vmem>>, vector<1x1x1024xf32>
    %7 = vector.shape_cast %6 : vector<1x1x1024xf32> to vector<1x1024xf32>
    %c5 = arith.constant 5 : index
    %c0_8 = arith.constant 0 : index
    %c0_9 = arith.constant 0 : index
    %8 = vector.load %arg30[%c5, %c0_8, %c0_9] : memref<9x1x1024xf32, #tpu.memory_space<vmem>>, vector<1x1x1024xf32>
    %9 = vector.shape_cast %8 : vector<1x1x1024xf32> to vector<1x1024xf32>
    %c6 = arith.constant 6 : index
    %c0_10 = arith.constant 0 : index
    %c0_11 = arith.constant 0 : index
    %10 = vector.load %arg30[%c6, %c0_10, %c0_11] : memref<9x1x1024xf32, #tpu.memory_space<vmem>>, vector<1x1x1024xf32>
    %11 = vector.shape_cast %10 : vector<1x1x1024xf32> to vector<1x1024xf32>
    %c7 = arith.constant 7 : index
    %c0_12 = arith.constant 0 : index
    %c0_13 = arith.constant 0 : index
    %12 = vector.load %arg30[%c7, %c0_12, %c0_13] : memref<9x1x1024xf32, #tpu.memory_space<vmem>>, vector<1x1x1024xf32>
    %13 = vector.shape_cast %12 : vector<1x1x1024xf32> to vector<1x1024xf32>
    %c8 = arith.constant 8 : index
    %c0_14 = arith.constant 0 : index
    %c0_15 = arith.constant 0 : index
    %14 = vector.load %arg30[%c8, %c0_14, %c0_15] : memref<9x1x1024xf32, #tpu.memory_space<vmem>>, vector<1x1x1024xf32>
    %15 = vector.shape_cast %14 : vector<1x1x1024xf32> to vector<1x1024xf32>
    %c0_16 = arith.constant 0 : index
    %c0_17 = arith.constant 0 : index
    %c0_18 = arith.constant 0 : index
    %16 = vector.load %arg31[%c0_16, %c0_17, %c0_18] : memref<9x1x256xf32, #tpu.memory_space<vmem>>, vector<1x1x256xf32>
    %17 = vector.shape_cast %16 : vector<1x1x256xf32> to vector<1x256xf32>
    %c1_19 = arith.constant 1 : index
    %c0_20 = arith.constant 0 : index
    %c0_21 = arith.constant 0 : index
    %18 = vector.load %arg31[%c1_19, %c0_20, %c0_21] : memref<9x1x256xf32, #tpu.memory_space<vmem>>, vector<1x1x256xf32>
    %19 = vector.shape_cast %18 : vector<1x1x256xf32> to vector<1x256xf32>
    %c2_22 = arith.constant 2 : index
    %c0_23 = arith.constant 0 : index
    %c0_24 = arith.constant 0 : index
    %20 = vector.load %arg31[%c2_22, %c0_23, %c0_24] : memref<9x1x256xf32, #tpu.memory_space<vmem>>, vector<1x1x256xf32>
    %21 = vector.shape_cast %20 : vector<1x1x256xf32> to vector<1x256xf32>
    %c3_25 = arith.constant 3 : index
    %c0_26 = arith.constant 0 : index
    %c0_27 = arith.constant 0 : index
    %22 = vector.load %arg31[%c3_25, %c0_26, %c0_27] : memref<9x1x256xf32, #tpu.memory_space<vmem>>, vector<1x1x256xf32>
    %23 = vector.shape_cast %22 : vector<1x1x256xf32> to vector<1x256xf32>
    %c5_28 = arith.constant 5 : index
    %c0_29 = arith.constant 0 : index
    %c0_30 = arith.constant 0 : index
    %24 = vector.load %arg31[%c5_28, %c0_29, %c0_30] : memref<9x1x256xf32, #tpu.memory_space<vmem>>, vector<1x1x256xf32>
    %25 = vector.shape_cast %24 : vector<1x1x256xf32> to vector<1x256xf32>
    %c6_31 = arith.constant 6 : index
    %c0_32 = arith.constant 0 : index
    %c0_33 = arith.constant 0 : index
    %26 = vector.load %arg31[%c6_31, %c0_32, %c0_33] : memref<9x1x256xf32, #tpu.memory_space<vmem>>, vector<1x1x256xf32>
    %27 = vector.shape_cast %26 : vector<1x1x256xf32> to vector<1x256xf32>
    %c7_34 = arith.constant 7 : index
    %c0_35 = arith.constant 0 : index
    %c0_36 = arith.constant 0 : index
    %28 = vector.load %arg31[%c7_34, %c0_35, %c0_36] : memref<9x1x256xf32, #tpu.memory_space<vmem>>, vector<1x1x256xf32>
    %29 = vector.shape_cast %28 : vector<1x1x256xf32> to vector<1x256xf32>
    %c8_37 = arith.constant 8 : index
    %c0_38 = arith.constant 0 : index
    %c0_39 = arith.constant 0 : index
    %30 = vector.load %arg31[%c8_37, %c0_38, %c0_39] : memref<9x1x256xf32, #tpu.memory_space<vmem>>, vector<1x1x256xf32>
    %31 = vector.shape_cast %30 : vector<1x1x256xf32> to vector<1x256xf32>
    %c0_40 = arith.constant 0 : index
    %c0_41 = arith.constant 0 : index
    %c0_42 = arith.constant 0 : index
    %32 = vector.load %arg32[%c0_40, %c0_41, %c0_42] : memref<9x64x64xf32, #tpu.memory_space<vmem>>, vector<1x64x64xf32>
    %33 = vector.shape_cast %32 : vector<1x64x64xf32> to vector<64x64xf32>
    %c1_43 = arith.constant 1 : index
    %c0_44 = arith.constant 0 : index
    %c0_45 = arith.constant 0 : index
    %34 = vector.load %arg32[%c1_43, %c0_44, %c0_45] : memref<9x64x64xf32, #tpu.memory_space<vmem>>, vector<1x64x64xf32>
    %35 = vector.shape_cast %34 : vector<1x64x64xf32> to vector<64x64xf32>
    %c2_46 = arith.constant 2 : index
    %c0_47 = arith.constant 0 : index
    %c0_48 = arith.constant 0 : index
    %36 = vector.load %arg32[%c2_46, %c0_47, %c0_48] : memref<9x64x64xf32, #tpu.memory_space<vmem>>, vector<1x64x64xf32>
    %37 = vector.shape_cast %36 : vector<1x64x64xf32> to vector<64x64xf32>
    %c3_49 = arith.constant 3 : index
    %c0_50 = arith.constant 0 : index
    %c0_51 = arith.constant 0 : index
    %38 = vector.load %arg32[%c3_49, %c0_50, %c0_51] : memref<9x64x64xf32, #tpu.memory_space<vmem>>, vector<1x64x64xf32>
    %39 = vector.shape_cast %38 : vector<1x64x64xf32> to vector<64x64xf32>
    %c5_52 = arith.constant 5 : index
    %c0_53 = arith.constant 0 : index
    %c0_54 = arith.constant 0 : index
    %40 = vector.load %arg32[%c5_52, %c0_53, %c0_54] : memref<9x64x64xf32, #tpu.memory_space<vmem>>, vector<1x64x64xf32>
    %41 = vector.shape_cast %40 : vector<1x64x64xf32> to vector<64x64xf32>
    %c6_55 = arith.constant 6 : index
    %c0_56 = arith.constant 0 : index
    %c0_57 = arith.constant 0 : index
    %42 = vector.load %arg32[%c6_55, %c0_56, %c0_57] : memref<9x64x64xf32, #tpu.memory_space<vmem>>, vector<1x64x64xf32>
    %43 = vector.shape_cast %42 : vector<1x64x64xf32> to vector<64x64xf32>
    %c7_58 = arith.constant 7 : index
    %c0_59 = arith.constant 0 : index
    %c0_60 = arith.constant 0 : index
    %44 = vector.load %arg32[%c7_58, %c0_59, %c0_60] : memref<9x64x64xf32, #tpu.memory_space<vmem>>, vector<1x64x64xf32>
    %45 = vector.shape_cast %44 : vector<1x64x64xf32> to vector<64x64xf32>
    %c8_61 = arith.constant 8 : index
    %c0_62 = arith.constant 0 : index
    %c0_63 = arith.constant 0 : index
    %46 = vector.load %arg32[%c8_61, %c0_62, %c0_63] : memref<9x64x64xf32, #tpu.memory_space<vmem>>, vector<1x64x64xf32>
    %47 = vector.shape_cast %46 : vector<1x64x64xf32> to vector<64x64xf32>
    %c0_64 = arith.constant 0 : index
    %c0_65 = arith.constant 0 : index
    %c0_66 = arith.constant 0 : index
    %48 = vector.load %arg1[%c0_64, %c0_65, %c0_66] : memref<1x8x1024xf32, #tpu.memory_space<vmem>>, vector<1x8x1024xf32>
    %49 = vector.shape_cast %48 : vector<1x8x1024xf32> to vector<8x1024xf32>
    %c33_i32 = arith.constant 33 : i32
    %50 = tpu.dynamic_rotate %49 by %c33_i32 dim 1 : vector<8x1024xf32>, i32 -> vector<8x1024xf32>
    %51 = vector.broadcast %1 : vector<1x1024xf32> to vector<8x1024xf32>
    %52 = arith.mulf %50, %51 : vector<8x1024xf32>
    %c32_i32 = arith.constant 32 : i32
    %53 = tpu.dynamic_rotate %49 by %c32_i32 dim 1 : vector<8x1024xf32>, i32 -> vector<8x1024xf32>
    %54 = vector.broadcast %3 : vector<1x1024xf32> to vector<8x1024xf32>
    %55 = arith.mulf %53, %54 : vector<8x1024xf32>
    %c31_i32 = arith.constant 31 : i32
    %56 = tpu.dynamic_rotate %49 by %c31_i32 dim 1 : vector<8x1024xf32>, i32 -> vector<8x1024xf32>
    %57 = vector.broadcast %5 : vector<1x1024xf32> to vector<8x1024xf32>
    %58 = arith.mulf %56, %57 : vector<8x1024xf32>
    %c1_i32 = arith.constant 1 : i32
    %59 = tpu.dynamic_rotate %49 by %c1_i32 dim 1 : vector<8x1024xf32>, i32 -> vector<8x1024xf32>
    %60 = vector.broadcast %7 : vector<1x1024xf32> to vector<8x1024xf32>
    %61 = arith.mulf %59, %60 : vector<8x1024xf32>
    %c1023_i32 = arith.constant 1023 : i32
    %62 = tpu.dynamic_rotate %49 by %c1023_i32 dim 1 : vector<8x1024xf32>, i32 -> vector<8x1024xf32>
    %63 = vector.broadcast %9 : vector<1x1024xf32> to vector<8x1024xf32>
    %64 = arith.mulf %62, %63 : vector<8x1024xf32>
    %c993_i32 = arith.constant 993 : i32
    %65 = tpu.dynamic_rotate %49 by %c993_i32 dim 1 : vector<8x1024xf32>, i32 -> vector<8x1024xf32>
    %66 = vector.broadcast %11 : vector<1x1024xf32> to vector<8x1024xf32>
    %67 = arith.mulf %65, %66 : vector<8x1024xf32>
    %c992_i32 = arith.constant 992 : i32
    %68 = tpu.dynamic_rotate %49 by %c992_i32 dim 1 : vector<8x1024xf32>, i32 -> vector<8x1024xf32>
    %69 = vector.broadcast %13 : vector<1x1024xf32> to vector<8x1024xf32>
    %70 = arith.mulf %68, %69 : vector<8x1024xf32>
    %c991_i32 = arith.constant 991 : i32
    %71 = tpu.dynamic_rotate %49 by %c991_i32 dim 1 : vector<8x1024xf32>, i32 -> vector<8x1024xf32>
    %72 = vector.broadcast %15 : vector<1x1024xf32> to vector<8x1024xf32>
    %73 = arith.mulf %71, %72 : vector<8x1024xf32>
    %74 = tpu.concatenate %52, %55, %58, %61, %49, %64, %67, %70, %73 in 0 : vector<8x1024xf32>, vector<8x1024xf32>, vector<8x1024xf32>, vector<8x1024xf32>, vector<8x1024xf32>, vector<8x1024xf32>, vector<8x1024xf32>, vector<8x1024xf32>, vector<8x1024xf32> -> vector<72x1024xf32>
    %75 = arith.truncf %74 : vector<72x1024xf32> to vector<72x1024xbf16>
    %c0_67 = arith.constant 0 : index
    %c0_68 = arith.constant 0 : index
    %76 = vector.load %arg2[%c0_67, %c0_68] : memref<8x72xbf16, #tpu.memory_space<vmem>>, vector<8x72xbf16>
    %cst = arith.constant dense<0.000000e+00> : vector<8x1024xf32>
    %77 = tpu.matmul %76, %75, %cst {dimension_numbers = #tpu.dot_dimension_numbers<[1], [0], [0], [1], [0, 0, 1, 1], [], []>} : vector<8x72xbf16>, vector<72x1024xbf16>, vector<8x1024xf32> -> vector<8x1024xf32>
    %c0_69 = arith.constant 0 : index
    %c0_70 = arith.constant 0 : index
    %78 = vector.load %arg3[%c0_69, %c0_70] : memref<8x1xf32, #tpu.memory_space<vmem>>, vector<8x1xf32>
    %79 = vector.broadcast %78 : vector<8x1xf32> to vector<8x1024xf32>
    %80 = arith.addf %77, %79 : vector<8x1024xf32>
    %cst_71 = arith.constant 0.000000e+00 : f32
    %81 = vector.broadcast %cst_71 : f32 to vector<8x1024xf32>
    %82 = arith.maximumf %80, %81 : vector<8x1024xf32>
    %c33_i32_72 = arith.constant 33 : i32
    %83 = tpu.dynamic_rotate %82 by %c33_i32_72 dim 1 : vector<8x1024xf32>, i32 -> vector<8x1024xf32>
    %84 = vector.broadcast %1 : vector<1x1024xf32> to vector<8x1024xf32>
    %85 = arith.mulf %83, %84 : vector<8x1024xf32>
    %c32_i32_73 = arith.constant 32 : i32
    %86 = tpu.dynamic_rotate %82 by %c32_i32_73 dim 1 : vector<8x1024xf32>, i32 -> vector<8x1024xf32>
    %87 = vector.broadcast %3 : vector<1x1024xf32> to vector<8x1024xf32>
    %88 = arith.mulf %86, %87 : vector<8x1024xf32>
    %c31_i32_74 = arith.constant 31 : i32
    %89 = tpu.dynamic_rotate %82 by %c31_i32_74 dim 1 : vector<8x1024xf32>, i32 -> vector<8x1024xf32>
    %90 = vector.broadcast %5 : vector<1x1024xf32> to vector<8x1024xf32>
    %91 = arith.mulf %89, %90 : vector<8x1024xf32>
    %c1_i32_75 = arith.constant 1 : i32
    %92 = tpu.dynamic_rotate %82 by %c1_i32_75 dim 1 : vector<8x1024xf32>, i32 -> vector<8x1024xf32>
    %93 = vector.broadcast %7 : vector<1x1024xf32> to vector<8x1024xf32>
    %94 = arith.mulf %92, %93 : vector<8x1024xf32>
    %c1023_i32_76 = arith.constant 1023 : i32
    %95 = tpu.dynamic_rotate %82 by %c1023_i32_76 dim 1 : vector<8x1024xf32>, i32 -> vector<8x1024xf32>
    %96 = vector.broadcast %9 : vector<1x1024xf32> to vector<8x1024xf32>
    %97 = arith.mulf %95, %96 : vector<8x1024xf32>
    %c993_i32_77 = arith.constant 993 : i32
    %98 = tpu.dynamic_rotate %82 by %c993_i32_77 dim 1 : vector<8x1024xf32>, i32 -> vector<8x1024xf32>
    %99 = vector.broadcast %11 : vector<1x1024xf32> to vector<8x1024xf32>
    %100 = arith.mulf %98, %99 : vector<8x1024xf32>
    %c992_i32_78 = arith.constant 992 : i32
    %101 = tpu.dynamic_rotate %82 by %c992_i32_78 dim 1 : vector<8x1024xf32>, i32 -> vector<8x1024xf32>
    %102 = vector.broadcast %13 : vector<1x1024xf32> to vector<8x1024xf32>
    %103 = arith.mulf %101, %102 : vector<8x1024xf32>
    %c991_i32_79 = arith.constant 991 : i32
    %104 = tpu.dynamic_rotate %82 by %c991_i32_79 dim 1 : vector<8x1024xf32>, i32 -> vector<8x1024xf32>
    %105 = vector.broadcast %15 : vector<1x1024xf32> to vector<8x1024xf32>
    %106 = arith.mulf %104, %105 : vector<8x1024xf32>
    %107 = tpu.concatenate %85, %88, %91, %94, %82, %97, %100, %103, %106 in 0 : vector<8x1024xf32>, vector<8x1024xf32>, vector<8x1024xf32>, vector<8x1024xf32>, vector<8x1024xf32>, vector<8x1024xf32>, vector<8x1024xf32>, vector<8x1024xf32>, vector<8x1024xf32> -> vector<72x1024xf32>
    %108 = arith.truncf %107 : vector<72x1024xf32> to vector<72x1024xbf16>
    %c0_80 = arith.constant 0 : index
    %c0_81 = arith.constant 0 : index
    %109 = vector.load %arg4[%c0_80, %c0_81] : memref<8x72xbf16, #tpu.memory_space<vmem>>, vector<8x72xbf16>
    %cst_82 = arith.constant dense<0.000000e+00> : vector<8x1024xf32>
    %110 = tpu.matmul %109, %108, %cst_82 {dimension_numbers = #tpu.dot_dimension_numbers<[1], [0], [0], [1], [0, 0, 1, 1], [], []>} : vector<8x72xbf16>, vector<72x1024xbf16>, vector<8x1024xf32> -> vector<8x1024xf32>
    %c0_83 = arith.constant 0 : index
    %c0_84 = arith.constant 0 : index
    %111 = vector.load %arg5[%c0_83, %c0_84] : memref<8x1xf32, #tpu.memory_space<vmem>>, vector<8x1xf32>
    %112 = vector.broadcast %111 : vector<8x1xf32> to vector<8x1024xf32>
    %113 = arith.addf %110, %112 : vector<8x1024xf32>
    %cst_85 = arith.constant 0.000000e+00 : f32
    %114 = vector.broadcast %cst_85 : f32 to vector<8x1024xf32>
    %115 = arith.maximumf %113, %114 : vector<8x1024xf32>
    %c33_i32_86 = arith.constant 33 : i32
    %116 = tpu.dynamic_rotate %115 by %c33_i32_86 dim 1 : vector<8x1024xf32>, i32 -> vector<8x1024xf32>
    %117 = vector.broadcast %1 : vector<1x1024xf32> to vector<8x1024xf32>
    %118 = arith.mulf %116, %117 : vector<8x1024xf32>
    %c32_i32_87 = arith.constant 32 : i32
    %119 = tpu.dynamic_rotate %115 by %c32_i32_87 dim 1 : vector<8x1024xf32>, i32 -> vector<8x1024xf32>
    %120 = vector.broadcast %3 : vector<1x1024xf32> to vector<8x1024xf32>
    %121 = arith.mulf %119, %120 : vector<8x1024xf32>
    %c31_i32_88 = arith.constant 31 : i32
    %122 = tpu.dynamic_rotate %115 by %c31_i32_88 dim 1 : vector<8x1024xf32>, i32 -> vector<8x1024xf32>
    %123 = vector.broadcast %5 : vector<1x1024xf32> to vector<8x1024xf32>
    %124 = arith.mulf %122, %123 : vector<8x1024xf32>
    %c1_i32_89 = arith.constant 1 : i32
    %125 = tpu.dynamic_rotate %115 by %c1_i32_89 dim 1 : vector<8x1024xf32>, i32 -> vector<8x1024xf32>
    %126 = vector.broadcast %7 : vector<1x1024xf32> to vector<8x1024xf32>
    %127 = arith.mulf %125, %126 : vector<8x1024xf32>
    %c1023_i32_90 = arith.constant 1023 : i32
    %128 = tpu.dynamic_rotate %115 by %c1023_i32_90 dim 1 : vector<8x1024xf32>, i32 -> vector<8x1024xf32>
    %129 = vector.broadcast %9 : vector<1x1024xf32> to vector<8x1024xf32>
    %130 = arith.mulf %128, %129 : vector<8x1024xf32>
    %c993_i32_91 = arith.constant 993 : i32
    %131 = tpu.dynamic_rotate %115 by %c993_i32_91 dim 1 : vector<8x1024xf32>, i32 -> vector<8x1024xf32>
    %132 = vector.broadcast %11 : vector<1x1024xf32> to vector<8x1024xf32>
    %133 = arith.mulf %131, %132 : vector<8x1024xf32>
    %c992_i32_92 = arith.constant 992 : i32
    %134 = tpu.dynamic_rotate %115 by %c992_i32_92 dim 1 : vector<8x1024xf32>, i32 -> vector<8x1024xf32>
    %135 = vector.broadcast %13 : vector<1x1024xf32> to vector<8x1024xf32>
    %136 = arith.mulf %134, %135 : vector<8x1024xf32>
    %c991_i32_93 = arith.constant 991 : i32
    %137 = tpu.dynamic_rotate %115 by %c991_i32_93 dim 1 : vector<8x1024xf32>, i32 -> vector<8x1024xf32>
    %138 = vector.broadcast %15 : vector<1x1024xf32> to vector<8x1024xf32>
    %139 = arith.mulf %137, %138 : vector<8x1024xf32>
    %140 = tpu.concatenate %118, %121, %124, %127, %115, %130, %133, %136, %139 in 0 : vector<8x1024xf32>, vector<8x1024xf32>, vector<8x1024xf32>, vector<8x1024xf32>, vector<8x1024xf32>, vector<8x1024xf32>, vector<8x1024xf32>, vector<8x1024xf32>, vector<8x1024xf32> -> vector<72x1024xf32>
    %141 = arith.truncf %140 : vector<72x1024xf32> to vector<72x1024xbf16>
    %c0_94 = arith.constant 0 : index
    %c0_95 = arith.constant 0 : index
    %142 = vector.load %arg6[%c0_94, %c0_95] : memref<8x72xbf16, #tpu.memory_space<vmem>>, vector<8x72xbf16>
    %cst_96 = arith.constant dense<0.000000e+00> : vector<8x1024xf32>
    %143 = tpu.matmul %142, %141, %cst_96 {dimension_numbers = #tpu.dot_dimension_numbers<[1], [0], [0], [1], [0, 0, 1, 1], [], []>} : vector<8x72xbf16>, vector<72x1024xbf16>, vector<8x1024xf32> -> vector<8x1024xf32>
    %c0_97 = arith.constant 0 : index
    %c0_98 = arith.constant 0 : index
    %144 = vector.load %arg7[%c0_97, %c0_98] : memref<8x1xf32, #tpu.memory_space<vmem>>, vector<8x1xf32>
    %145 = vector.broadcast %144 : vector<8x1xf32> to vector<8x1024xf32>
    %146 = arith.addf %143, %145 : vector<8x1024xf32>
    %147 = arith.addf %82, %146 : vector<8x1024xf32>
    %c33_i32_99 = arith.constant 33 : i32
    %148 = tpu.dynamic_rotate %147 by %c33_i32_99 dim 1 : vector<8x1024xf32>, i32 -> vector<8x1024xf32>
    %149 = vector.broadcast %1 : vector<1x1024xf32> to vector<8x1024xf32>
    %150 = arith.mulf %148, %149 : vector<8x1024xf32>
    %c32_i32_100 = arith.constant 32 : i32
    %151 = tpu.dynamic_rotate %147 by %c32_i32_100 dim 1 : vector<8x1024xf32>, i32 -> vector<8x1024xf32>
    %152 = vector.broadcast %3 : vector<1x1024xf32> to vector<8x1024xf32>
    %153 = arith.mulf %151, %152 : vector<8x1024xf32>
    %c31_i32_101 = arith.constant 31 : i32
    %154 = tpu.dynamic_rotate %147 by %c31_i32_101 dim 1 : vector<8x1024xf32>, i32 -> vector<8x1024xf32>
    %155 = vector.broadcast %5 : vector<1x1024xf32> to vector<8x1024xf32>
    %156 = arith.mulf %154, %155 : vector<8x1024xf32>
    %c1_i32_102 = arith.constant 1 : i32
    %157 = tpu.dynamic_rotate %147 by %c1_i32_102 dim 1 : vector<8x1024xf32>, i32 -> vector<8x1024xf32>
    %158 = vector.broadcast %7 : vector<1x1024xf32> to vector<8x1024xf32>
    %159 = arith.mulf %157, %158 : vector<8x1024xf32>
    %c1023_i32_103 = arith.constant 1023 : i32
    %160 = tpu.dynamic_rotate %147 by %c1023_i32_103 dim 1 : vector<8x1024xf32>, i32 -> vector<8x1024xf32>
    %161 = vector.broadcast %9 : vector<1x1024xf32> to vector<8x1024xf32>
    %162 = arith.mulf %160, %161 : vector<8x1024xf32>
    %c993_i32_104 = arith.constant 993 : i32
    %163 = tpu.dynamic_rotate %147 by %c993_i32_104 dim 1 : vector<8x1024xf32>, i32 -> vector<8x1024xf32>
    %164 = vector.broadcast %11 : vector<1x1024xf32> to vector<8x1024xf32>
    %165 = arith.mulf %163, %164 : vector<8x1024xf32>
    %c992_i32_105 = arith.constant 992 : i32
    %166 = tpu.dynamic_rotate %147 by %c992_i32_105 dim 1 : vector<8x1024xf32>, i32 -> vector<8x1024xf32>
    %167 = vector.broadcast %13 : vector<1x1024xf32> to vector<8x1024xf32>
    %168 = arith.mulf %166, %167 : vector<8x1024xf32>
    %c991_i32_106 = arith.constant 991 : i32
    %169 = tpu.dynamic_rotate %147 by %c991_i32_106 dim 1 : vector<8x1024xf32>, i32 -> vector<8x1024xf32>
    %170 = vector.broadcast %15 : vector<1x1024xf32> to vector<8x1024xf32>
    %171 = arith.mulf %169, %170 : vector<8x1024xf32>
    %172 = tpu.concatenate %150, %153, %156, %159, %147, %162, %165, %168, %171 in 0 : vector<8x1024xf32>, vector<8x1024xf32>, vector<8x1024xf32>, vector<8x1024xf32>, vector<8x1024xf32>, vector<8x1024xf32>, vector<8x1024xf32>, vector<8x1024xf32>, vector<8x1024xf32> -> vector<72x1024xf32>
    %173 = arith.truncf %172 : vector<72x1024xf32> to vector<72x1024xbf16>
    %c0_107 = arith.constant 0 : index
    %c0_108 = arith.constant 0 : index
    %174 = vector.load %arg8[%c0_107, %c0_108] : memref<8x72xbf16, #tpu.memory_space<vmem>>, vector<8x72xbf16>
    %cst_109 = arith.constant dense<0.000000e+00> : vector<8x1024xf32>
    %175 = tpu.matmul %174, %173, %cst_109 {dimension_numbers = #tpu.dot_dimension_numbers<[1], [0], [0], [1], [0, 0, 1, 1], [], []>} : vector<8x72xbf16>, vector<72x1024xbf16>, vector<8x1024xf32> -> vector<8x1024xf32>
    %c0_110 = arith.constant 0 : index
    %c0_111 = arith.constant 0 : index
    %176 = vector.load %arg9[%c0_110, %c0_111] : memref<8x1xf32, #tpu.memory_space<vmem>>, vector<8x1xf32>
    %177 = vector.broadcast %176 : vector<8x1xf32> to vector<8x1024xf32>
    %178 = arith.addf %175, %177 : vector<8x1024xf32>
    %cst_112 = arith.constant 0.000000e+00 : f32
    %179 = vector.broadcast %cst_112 : f32 to vector<8x1024xf32>
    %180 = arith.maximumf %178, %179 : vector<8x1024xf32>
    %c33_i32_113 = arith.constant 33 : i32
    %181 = tpu.dynamic_rotate %180 by %c33_i32_113 dim 1 : vector<8x1024xf32>, i32 -> vector<8x1024xf32>
    %182 = vector.broadcast %1 : vector<1x1024xf32> to vector<8x1024xf32>
    %183 = arith.mulf %181, %182 : vector<8x1024xf32>
    %c32_i32_114 = arith.constant 32 : i32
    %184 = tpu.dynamic_rotate %180 by %c32_i32_114 dim 1 : vector<8x1024xf32>, i32 -> vector<8x1024xf32>
    %185 = vector.broadcast %3 : vector<1x1024xf32> to vector<8x1024xf32>
    %186 = arith.mulf %184, %185 : vector<8x1024xf32>
    %c31_i32_115 = arith.constant 31 : i32
    %187 = tpu.dynamic_rotate %180 by %c31_i32_115 dim 1 : vector<8x1024xf32>, i32 -> vector<8x1024xf32>
    %188 = vector.broadcast %5 : vector<1x1024xf32> to vector<8x1024xf32>
    %189 = arith.mulf %187, %188 : vector<8x1024xf32>
    %c1_i32_116 = arith.constant 1 : i32
    %190 = tpu.dynamic_rotate %180 by %c1_i32_116 dim 1 : vector<8x1024xf32>, i32 -> vector<8x1024xf32>
    %191 = vector.broadcast %7 : vector<1x1024xf32> to vector<8x1024xf32>
    %192 = arith.mulf %190, %191 : vector<8x1024xf32>
    %c1023_i32_117 = arith.constant 1023 : i32
    %193 = tpu.dynamic_rotate %180 by %c1023_i32_117 dim 1 : vector<8x1024xf32>, i32 -> vector<8x1024xf32>
    %194 = vector.broadcast %9 : vector<1x1024xf32> to vector<8x1024xf32>
    %195 = arith.mulf %193, %194 : vector<8x1024xf32>
    %c993_i32_118 = arith.constant 993 : i32
    %196 = tpu.dynamic_rotate %180 by %c993_i32_118 dim 1 : vector<8x1024xf32>, i32 -> vector<8x1024xf32>
    %197 = vector.broadcast %11 : vector<1x1024xf32> to vector<8x1024xf32>
    %198 = arith.mulf %196, %197 : vector<8x1024xf32>
    %c992_i32_119 = arith.constant 992 : i32
    %199 = tpu.dynamic_rotate %180 by %c992_i32_119 dim 1 : vector<8x1024xf32>, i32 -> vector<8x1024xf32>
    %200 = vector.broadcast %13 : vector<1x1024xf32> to vector<8x1024xf32>
    %201 = arith.mulf %199, %200 : vector<8x1024xf32>
    %c991_i32_120 = arith.constant 991 : i32
    %202 = tpu.dynamic_rotate %180 by %c991_i32_120 dim 1 : vector<8x1024xf32>, i32 -> vector<8x1024xf32>
    %203 = vector.broadcast %15 : vector<1x1024xf32> to vector<8x1024xf32>
    %204 = arith.mulf %202, %203 : vector<8x1024xf32>
    %205 = tpu.concatenate %183, %186, %189, %192, %180, %195, %198, %201, %204 in 0 : vector<8x1024xf32>, vector<8x1024xf32>, vector<8x1024xf32>, vector<8x1024xf32>, vector<8x1024xf32>, vector<8x1024xf32>, vector<8x1024xf32>, vector<8x1024xf32>, vector<8x1024xf32> -> vector<72x1024xf32>
    %206 = arith.truncf %205 : vector<72x1024xf32> to vector<72x1024xbf16>
    %c0_121 = arith.constant 0 : index
    %c0_122 = arith.constant 0 : index
    %207 = vector.load %arg10[%c0_121, %c0_122] : memref<8x72xbf16, #tpu.memory_space<vmem>>, vector<8x72xbf16>
    %cst_123 = arith.constant dense<0.000000e+00> : vector<8x1024xf32>
    %208 = tpu.matmul %207, %206, %cst_123 {dimension_numbers = #tpu.dot_dimension_numbers<[1], [0], [0], [1], [0, 0, 1, 1], [], []>} : vector<8x72xbf16>, vector<72x1024xbf16>, vector<8x1024xf32> -> vector<8x1024xf32>
    %c0_124 = arith.constant 0 : index
    %c0_125 = arith.constant 0 : index
    %209 = vector.load %arg11[%c0_124, %c0_125] : memref<8x1xf32, #tpu.memory_space<vmem>>, vector<8x1xf32>
    %210 = vector.broadcast %209 : vector<8x1xf32> to vector<8x1024xf32>
    %211 = arith.addf %208, %210 : vector<8x1024xf32>
    %212 = arith.addf %147, %211 : vector<8x1024xf32>
    %c33_i32_126 = arith.constant 33 : i32
    %213 = tpu.dynamic_rotate %212 by %c33_i32_126 dim 1 : vector<8x1024xf32>, i32 -> vector<8x1024xf32>
    %214 = vector.broadcast %1 : vector<1x1024xf32> to vector<8x1024xf32>
    %215 = arith.mulf %213, %214 : vector<8x1024xf32>
    %c32_i32_127 = arith.constant 32 : i32
    %216 = tpu.dynamic_rotate %212 by %c32_i32_127 dim 1 : vector<8x1024xf32>, i32 -> vector<8x1024xf32>
    %217 = vector.broadcast %3 : vector<1x1024xf32> to vector<8x1024xf32>
    %218 = arith.mulf %216, %217 : vector<8x1024xf32>
    %c31_i32_128 = arith.constant 31 : i32
    %219 = tpu.dynamic_rotate %212 by %c31_i32_128 dim 1 : vector<8x1024xf32>, i32 -> vector<8x1024xf32>
    %220 = vector.broadcast %5 : vector<1x1024xf32> to vector<8x1024xf32>
    %221 = arith.mulf %219, %220 : vector<8x1024xf32>
    %c1_i32_129 = arith.constant 1 : i32
    %222 = tpu.dynamic_rotate %212 by %c1_i32_129 dim 1 : vector<8x1024xf32>, i32 -> vector<8x1024xf32>
    %223 = vector.broadcast %7 : vector<1x1024xf32> to vector<8x1024xf32>
    %224 = arith.mulf %222, %223 : vector<8x1024xf32>
    %c1023_i32_130 = arith.constant 1023 : i32
    %225 = tpu.dynamic_rotate %212 by %c1023_i32_130 dim 1 : vector<8x1024xf32>, i32 -> vector<8x1024xf32>
    %226 = vector.broadcast %9 : vector<1x1024xf32> to vector<8x1024xf32>
    %227 = arith.mulf %225, %226 : vector<8x1024xf32>
    %c993_i32_131 = arith.constant 993 : i32
    %228 = tpu.dynamic_rotate %212 by %c993_i32_131 dim 1 : vector<8x1024xf32>, i32 -> vector<8x1024xf32>
    %229 = vector.broadcast %11 : vector<1x1024xf32> to vector<8x1024xf32>
    %230 = arith.mulf %228, %229 : vector<8x1024xf32>
    %c992_i32_132 = arith.constant 992 : i32
    %231 = tpu.dynamic_rotate %212 by %c992_i32_132 dim 1 : vector<8x1024xf32>, i32 -> vector<8x1024xf32>
    %232 = vector.broadcast %13 : vector<1x1024xf32> to vector<8x1024xf32>
    %233 = arith.mulf %231, %232 : vector<8x1024xf32>
    %c991_i32_133 = arith.constant 991 : i32
    %234 = tpu.dynamic_rotate %212 by %c991_i32_133 dim 1 : vector<8x1024xf32>, i32 -> vector<8x1024xf32>
    %235 = vector.broadcast %15 : vector<1x1024xf32> to vector<8x1024xf32>
    %236 = arith.mulf %234, %235 : vector<8x1024xf32>
    %237 = tpu.concatenate %215, %218, %221, %224, %212, %227, %230, %233, %236 in 0 : vector<8x1024xf32>, vector<8x1024xf32>, vector<8x1024xf32>, vector<8x1024xf32>, vector<8x1024xf32>, vector<8x1024xf32>, vector<8x1024xf32>, vector<8x1024xf32>, vector<8x1024xf32> -> vector<72x1024xf32>
    %238 = arith.truncf %237 : vector<72x1024xf32> to vector<72x1024xbf16>
    %c0_134 = arith.constant 0 : index
    %c0_135 = arith.constant 0 : index
    %239 = vector.load %arg12[%c0_134, %c0_135] : memref<16x72xbf16, #tpu.memory_space<vmem>>, vector<16x72xbf16>
    %cst_136 = arith.constant dense<0.000000e+00> : vector<16x1024xf32>
    %240 = tpu.matmul %239, %238, %cst_136 {dimension_numbers = #tpu.dot_dimension_numbers<[1], [0], [0], [1], [0, 0, 1, 1], [], []>} : vector<16x72xbf16>, vector<72x1024xbf16>, vector<16x1024xf32> -> vector<16x1024xf32>
    %c0_137 = arith.constant 0 : index
    %c0_138 = arith.constant 0 : index
    %241 = vector.load %arg13[%c0_137, %c0_138] : memref<16x1xf32, #tpu.memory_space<vmem>>, vector<16x1xf32>
    %242 = vector.broadcast %241 : vector<16x1xf32> to vector<16x1024xf32>
    %243 = arith.addf %240, %242 : vector<16x1024xf32>
    %cst_139 = arith.constant 0.000000e+00 : f32
    %244 = vector.broadcast %cst_139 : f32 to vector<16x1024xf32>
    %245 = arith.maximumf %243, %244 : vector<16x1024xf32>
    %c0_140 = arith.constant 0 : index
    %c0_141 = arith.constant 0 : index
    %246 = vector.load %arg28[%c0_140, %c0_141] : memref<1024x256xf32, #tpu.memory_space<vmem>>, vector<1024x256xf32>
    %cst_142 = arith.constant dense<0.000000e+00> : vector<16x256xf32>
    %247 = tpu.matmul %245, %246, %cst_142 {dimension_numbers = #tpu.dot_dimension_numbers<[1], [0], [0], [1], [0, 0, 1, 1], [], []>} : vector<16x1024xf32>, vector<1024x256xf32>, vector<16x256xf32> -> vector<16x256xf32>
    %cst_143 = arith.constant dense<0.000000e+00> : vector<8x256xf32>
    %248 = tpu.matmul %212, %246, %cst_143 {dimension_numbers = #tpu.dot_dimension_numbers<[1], [0], [0], [1], [0, 0, 1, 1], [], []>} : vector<8x1024xf32>, vector<1024x256xf32>, vector<8x256xf32> -> vector<8x256xf32>
    %cst_144 = arith.constant 0.000000e+00 : f32
    %249 = vector.broadcast %cst_144 : f32 to vector<8x256xf32>
    %250 = tpu.concatenate %248, %249 in 0 : vector<8x256xf32>, vector<8x256xf32> -> vector<16x256xf32>
    %c17_i32 = arith.constant 17 : i32
    %251 = tpu.dynamic_rotate %247 by %c17_i32 dim 1 : vector<16x256xf32>, i32 -> vector<16x256xf32>
    %252 = vector.broadcast %17 : vector<1x256xf32> to vector<16x256xf32>
    %253 = arith.mulf %251, %252 : vector<16x256xf32>
    %c16_i32 = arith.constant 16 : i32
    %254 = tpu.dynamic_rotate %247 by %c16_i32 dim 1 : vector<16x256xf32>, i32 -> vector<16x256xf32>
    %255 = vector.broadcast %19 : vector<1x256xf32> to vector<16x256xf32>
    %256 = arith.mulf %254, %255 : vector<16x256xf32>
    %c15_i32 = arith.constant 15 : i32
    %257 = tpu.dynamic_rotate %247 by %c15_i32 dim 1 : vector<16x256xf32>, i32 -> vector<16x256xf32>
    %258 = vector.broadcast %21 : vector<1x256xf32> to vector<16x256xf32>
    %259 = arith.mulf %257, %258 : vector<16x256xf32>
    %c1_i32_145 = arith.constant 1 : i32
    %260 = tpu.dynamic_rotate %247 by %c1_i32_145 dim 1 : vector<16x256xf32>, i32 -> vector<16x256xf32>
    %261 = vector.broadcast %23 : vector<1x256xf32> to vector<16x256xf32>
    %262 = arith.mulf %260, %261 : vector<16x256xf32>
    %c255_i32 = arith.constant 255 : i32
    %263 = tpu.dynamic_rotate %247 by %c255_i32 dim 1 : vector<16x256xf32>, i32 -> vector<16x256xf32>
    %264 = vector.broadcast %25 : vector<1x256xf32> to vector<16x256xf32>
    %265 = arith.mulf %263, %264 : vector<16x256xf32>
    %c241_i32 = arith.constant 241 : i32
    %266 = tpu.dynamic_rotate %247 by %c241_i32 dim 1 : vector<16x256xf32>, i32 -> vector<16x256xf32>
    %267 = vector.broadcast %27 : vector<1x256xf32> to vector<16x256xf32>
    %268 = arith.mulf %266, %267 : vector<16x256xf32>
    %c240_i32 = arith.constant 240 : i32
    %269 = tpu.dynamic_rotate %247 by %c240_i32 dim 1 : vector<16x256xf32>, i32 -> vector<16x256xf32>
    %270 = vector.broadcast %29 : vector<1x256xf32> to vector<16x256xf32>
    %271 = arith.mulf %269, %270 : vector<16x256xf32>
    %c239_i32 = arith.constant 239 : i32
    %272 = tpu.dynamic_rotate %247 by %c239_i32 dim 1 : vector<16x256xf32>, i32 -> vector<16x256xf32>
    %273 = vector.broadcast %31 : vector<1x256xf32> to vector<16x256xf32>
    %274 = arith.mulf %272, %273 : vector<16x256xf32>
    %275 = tpu.concatenate %253, %256, %259, %262, %247, %265, %268, %271, %274 in 0 : vector<16x256xf32>, vector<16x256xf32>, vector<16x256xf32>, vector<16x256xf32>, vector<16x256xf32>, vector<16x256xf32>, vector<16x256xf32>, vector<16x256xf32>, vector<16x256xf32> -> vector<144x256xf32>
    %276 = arith.truncf %275 : vector<144x256xf32> to vector<144x256xbf16>
    %c0_146 = arith.constant 0 : index
    %c0_147 = arith.constant 0 : index
    %277 = vector.load %arg14[%c0_146, %c0_147] : memref<16x144xbf16, #tpu.memory_space<vmem>>, vector<16x144xbf16>
    %cst_148 = arith.constant dense<0.000000e+00> : vector<16x256xf32>
    %278 = tpu.matmul %277, %276, %cst_148 {dimension_numbers = #tpu.dot_dimension_numbers<[1], [0], [0], [1], [0, 0, 1, 1], [], []>} : vector<16x144xbf16>, vector<144x256xbf16>, vector<16x256xf32> -> vector<16x256xf32>
    %c0_149 = arith.constant 0 : index
    %c0_150 = arith.constant 0 : index
    %279 = vector.load %arg15[%c0_149, %c0_150] : memref<16x1xf32, #tpu.memory_space<vmem>>, vector<16x1xf32>
    %280 = vector.broadcast %279 : vector<16x1xf32> to vector<16x256xf32>
    %281 = arith.addf %278, %280 : vector<16x256xf32>
    %282 = arith.addf %250, %281 : vector<16x256xf32>
    %c17_i32_151 = arith.constant 17 : i32
    %283 = tpu.dynamic_rotate %282 by %c17_i32_151 dim 1 : vector<16x256xf32>, i32 -> vector<16x256xf32>
    %284 = vector.broadcast %17 : vector<1x256xf32> to vector<16x256xf32>
    %285 = arith.mulf %283, %284 : vector<16x256xf32>
    %c16_i32_152 = arith.constant 16 : i32
    %286 = tpu.dynamic_rotate %282 by %c16_i32_152 dim 1 : vector<16x256xf32>, i32 -> vector<16x256xf32>
    %287 = vector.broadcast %19 : vector<1x256xf32> to vector<16x256xf32>
    %288 = arith.mulf %286, %287 : vector<16x256xf32>
    %c15_i32_153 = arith.constant 15 : i32
    %289 = tpu.dynamic_rotate %282 by %c15_i32_153 dim 1 : vector<16x256xf32>, i32 -> vector<16x256xf32>
    %290 = vector.broadcast %21 : vector<1x256xf32> to vector<16x256xf32>
    %291 = arith.mulf %289, %290 : vector<16x256xf32>
    %c1_i32_154 = arith.constant 1 : i32
    %292 = tpu.dynamic_rotate %282 by %c1_i32_154 dim 1 : vector<16x256xf32>, i32 -> vector<16x256xf32>
    %293 = vector.broadcast %23 : vector<1x256xf32> to vector<16x256xf32>
    %294 = arith.mulf %292, %293 : vector<16x256xf32>
    %c255_i32_155 = arith.constant 255 : i32
    %295 = tpu.dynamic_rotate %282 by %c255_i32_155 dim 1 : vector<16x256xf32>, i32 -> vector<16x256xf32>
    %296 = vector.broadcast %25 : vector<1x256xf32> to vector<16x256xf32>
    %297 = arith.mulf %295, %296 : vector<16x256xf32>
    %c241_i32_156 = arith.constant 241 : i32
    %298 = tpu.dynamic_rotate %282 by %c241_i32_156 dim 1 : vector<16x256xf32>, i32 -> vector<16x256xf32>
    %299 = vector.broadcast %27 : vector<1x256xf32> to vector<16x256xf32>
    %300 = arith.mulf %298, %299 : vector<16x256xf32>
    %c240_i32_157 = arith.constant 240 : i32
    %301 = tpu.dynamic_rotate %282 by %c240_i32_157 dim 1 : vector<16x256xf32>, i32 -> vector<16x256xf32>
    %302 = vector.broadcast %29 : vector<1x256xf32> to vector<16x256xf32>
    %303 = arith.mulf %301, %302 : vector<16x256xf32>
    %c239_i32_158 = arith.constant 239 : i32
    %304 = tpu.dynamic_rotate %282 by %c239_i32_158 dim 1 : vector<16x256xf32>, i32 -> vector<16x256xf32>
    %305 = vector.broadcast %31 : vector<1x256xf32> to vector<16x256xf32>
    %306 = arith.mulf %304, %305 : vector<16x256xf32>
    %307 = tpu.concatenate %285, %288, %291, %294, %282, %297, %300, %303, %306 in 0 : vector<16x256xf32>, vector<16x256xf32>, vector<16x256xf32>, vector<16x256xf32>, vector<16x256xf32>, vector<16x256xf32>, vector<16x256xf32>, vector<16x256xf32>, vector<16x256xf32> -> vector<144x256xf32>
    %308 = arith.truncf %307 : vector<144x256xf32> to vector<144x256xbf16>
    %c0_159 = arith.constant 0 : index
    %c0_160 = arith.constant 0 : index
    %309 = vector.load %arg16[%c0_159, %c0_160] : memref<16x144xbf16, #tpu.memory_space<vmem>>, vector<16x144xbf16>
    %cst_161 = arith.constant dense<0.000000e+00> : vector<16x256xf32>
    %310 = tpu.matmul %309, %308, %cst_161 {dimension_numbers = #tpu.dot_dimension_numbers<[1], [0], [0], [1], [0, 0, 1, 1], [], []>} : vector<16x144xbf16>, vector<144x256xbf16>, vector<16x256xf32> -> vector<16x256xf32>
    %c0_162 = arith.constant 0 : index
    %c0_163 = arith.constant 0 : index
    %311 = vector.load %arg17[%c0_162, %c0_163] : memref<16x1xf32, #tpu.memory_space<vmem>>, vector<16x1xf32>
    %312 = vector.broadcast %311 : vector<16x1xf32> to vector<16x256xf32>
    %313 = arith.addf %310, %312 : vector<16x256xf32>
    %cst_164 = arith.constant 0.000000e+00 : f32
    %314 = vector.broadcast %cst_164 : f32 to vector<16x256xf32>
    %315 = arith.maximumf %313, %314 : vector<16x256xf32>
    %c17_i32_165 = arith.constant 17 : i32
    %316 = tpu.dynamic_rotate %315 by %c17_i32_165 dim 1 : vector<16x256xf32>, i32 -> vector<16x256xf32>
    %317 = vector.broadcast %17 : vector<1x256xf32> to vector<16x256xf32>
    %318 = arith.mulf %316, %317 : vector<16x256xf32>
    %c16_i32_166 = arith.constant 16 : i32
    %319 = tpu.dynamic_rotate %315 by %c16_i32_166 dim 1 : vector<16x256xf32>, i32 -> vector<16x256xf32>
    %320 = vector.broadcast %19 : vector<1x256xf32> to vector<16x256xf32>
    %321 = arith.mulf %319, %320 : vector<16x256xf32>
    %c15_i32_167 = arith.constant 15 : i32
    %322 = tpu.dynamic_rotate %315 by %c15_i32_167 dim 1 : vector<16x256xf32>, i32 -> vector<16x256xf32>
    %323 = vector.broadcast %21 : vector<1x256xf32> to vector<16x256xf32>
    %324 = arith.mulf %322, %323 : vector<16x256xf32>
    %c1_i32_168 = arith.constant 1 : i32
    %325 = tpu.dynamic_rotate %315 by %c1_i32_168 dim 1 : vector<16x256xf32>, i32 -> vector<16x256xf32>
    %326 = vector.broadcast %23 : vector<1x256xf32> to vector<16x256xf32>
    %327 = arith.mulf %325, %326 : vector<16x256xf32>
    %c255_i32_169 = arith.constant 255 : i32
    %328 = tpu.dynamic_rotate %315 by %c255_i32_169 dim 1 : vector<16x256xf32>, i32 -> vector<16x256xf32>
    %329 = vector.broadcast %25 : vector<1x256xf32> to vector<16x256xf32>
    %330 = arith.mulf %328, %329 : vector<16x256xf32>
    %c241_i32_170 = arith.constant 241 : i32
    %331 = tpu.dynamic_rotate %315 by %c241_i32_170 dim 1 : vector<16x256xf32>, i32 -> vector<16x256xf32>
    %332 = vector.broadcast %27 : vector<1x256xf32> to vector<16x256xf32>
    %333 = arith.mulf %331, %332 : vector<16x256xf32>
    %c240_i32_171 = arith.constant 240 : i32
    %334 = tpu.dynamic_rotate %315 by %c240_i32_171 dim 1 : vector<16x256xf32>, i32 -> vector<16x256xf32>
    %335 = vector.broadcast %29 : vector<1x256xf32> to vector<16x256xf32>
    %336 = arith.mulf %334, %335 : vector<16x256xf32>
    %c239_i32_172 = arith.constant 239 : i32
    %337 = tpu.dynamic_rotate %315 by %c239_i32_172 dim 1 : vector<16x256xf32>, i32 -> vector<16x256xf32>
    %338 = vector.broadcast %31 : vector<1x256xf32> to vector<16x256xf32>
    %339 = arith.mulf %337, %338 : vector<16x256xf32>
    %340 = tpu.concatenate %318, %321, %324, %327, %315, %330, %333, %336, %339 in 0 : vector<16x256xf32>, vector<16x256xf32>, vector<16x256xf32>, vector<16x256xf32>, vector<16x256xf32>, vector<16x256xf32>, vector<16x256xf32>, vector<16x256xf32>, vector<16x256xf32> -> vector<144x256xf32>
    %341 = arith.truncf %340 : vector<144x256xf32> to vector<144x256xbf16>
    %c0_173 = arith.constant 0 : index
    %c0_174 = arith.constant 0 : index
    %342 = vector.load %arg18[%c0_173, %c0_174] : memref<16x144xbf16, #tpu.memory_space<vmem>>, vector<16x144xbf16>
    %cst_175 = arith.constant dense<0.000000e+00> : vector<16x256xf32>
    %343 = tpu.matmul %342, %341, %cst_175 {dimension_numbers = #tpu.dot_dimension_numbers<[1], [0], [0], [1], [0, 0, 1, 1], [], []>} : vector<16x144xbf16>, vector<144x256xbf16>, vector<16x256xf32> -> vector<16x256xf32>
    %c0_176 = arith.constant 0 : index
    %c0_177 = arith.constant 0 : index
    %344 = vector.load %arg19[%c0_176, %c0_177] : memref<16x1xf32, #tpu.memory_space<vmem>>, vector<16x1xf32>
    %345 = vector.broadcast %344 : vector<16x1xf32> to vector<16x256xf32>
    %346 = arith.addf %343, %345 : vector<16x256xf32>
    %347 = arith.addf %282, %346 : vector<16x256xf32>
    %c17_i32_178 = arith.constant 17 : i32
    %348 = tpu.dynamic_rotate %347 by %c17_i32_178 dim 1 : vector<16x256xf32>, i32 -> vector<16x256xf32>
    %349 = vector.broadcast %17 : vector<1x256xf32> to vector<16x256xf32>
    %350 = arith.mulf %348, %349 : vector<16x256xf32>
    %c16_i32_179 = arith.constant 16 : i32
    %351 = tpu.dynamic_rotate %347 by %c16_i32_179 dim 1 : vector<16x256xf32>, i32 -> vector<16x256xf32>
    %352 = vector.broadcast %19 : vector<1x256xf32> to vector<16x256xf32>
    %353 = arith.mulf %351, %352 : vector<16x256xf32>
    %c15_i32_180 = arith.constant 15 : i32
    %354 = tpu.dynamic_rotate %347 by %c15_i32_180 dim 1 : vector<16x256xf32>, i32 -> vector<16x256xf32>
    %355 = vector.broadcast %21 : vector<1x256xf32> to vector<16x256xf32>
    %356 = arith.mulf %354, %355 : vector<16x256xf32>
    %c1_i32_181 = arith.constant 1 : i32
    %357 = tpu.dynamic_rotate %347 by %c1_i32_181 dim 1 : vector<16x256xf32>, i32 -> vector<16x256xf32>
    %358 = vector.broadcast %23 : vector<1x256xf32> to vector<16x256xf32>
    %359 = arith.mulf %357, %358 : vector<16x256xf32>
    %c255_i32_182 = arith.constant 255 : i32
    %360 = tpu.dynamic_rotate %347 by %c255_i32_182 dim 1 : vector<16x256xf32>, i32 -> vector<16x256xf32>
    %361 = vector.broadcast %25 : vector<1x256xf32> to vector<16x256xf32>
    %362 = arith.mulf %360, %361 : vector<16x256xf32>
    %c241_i32_183 = arith.constant 241 : i32
    %363 = tpu.dynamic_rotate %347 by %c241_i32_183 dim 1 : vector<16x256xf32>, i32 -> vector<16x256xf32>
    %364 = vector.broadcast %27 : vector<1x256xf32> to vector<16x256xf32>
    %365 = arith.mulf %363, %364 : vector<16x256xf32>
    %c240_i32_184 = arith.constant 240 : i32
    %366 = tpu.dynamic_rotate %347 by %c240_i32_184 dim 1 : vector<16x256xf32>, i32 -> vector<16x256xf32>
    %367 = vector.broadcast %29 : vector<1x256xf32> to vector<16x256xf32>
    %368 = arith.mulf %366, %367 : vector<16x256xf32>
    %c239_i32_185 = arith.constant 239 : i32
    %369 = tpu.dynamic_rotate %347 by %c239_i32_185 dim 1 : vector<16x256xf32>, i32 -> vector<16x256xf32>
    %370 = vector.broadcast %31 : vector<1x256xf32> to vector<16x256xf32>
    %371 = arith.mulf %369, %370 : vector<16x256xf32>
    %372 = tpu.concatenate %350, %353, %356, %359, %347, %362, %365, %368, %371 in 0 : vector<16x256xf32>, vector<16x256xf32>, vector<16x256xf32>, vector<16x256xf32>, vector<16x256xf32>, vector<16x256xf32>, vector<16x256xf32>, vector<16x256xf32>, vector<16x256xf32> -> vector<144x256xf32>
    %373 = arith.truncf %372 : vector<144x256xf32> to vector<144x256xbf16>
    %c0_186 = arith.constant 0 : index
    %c0_187 = arith.constant 0 : index
    %374 = vector.load %arg20[%c0_186, %c0_187] : memref<32x144xbf16, #tpu.memory_space<vmem>>, vector<32x144xbf16>
    %cst_188 = arith.constant dense<0.000000e+00> : vector<32x256xf32>
    %375 = tpu.matmul %374, %373, %cst_188 {dimension_numbers = #tpu.dot_dimension_numbers<[1], [0], [0], [1], [0, 0, 1, 1], [], []>} : vector<32x144xbf16>, vector<144x256xbf16>, vector<32x256xf32> -> vector<32x256xf32>
    %c0_189 = arith.constant 0 : index
    %c0_190 = arith.constant 0 : index
    %376 = vector.load %arg21[%c0_189, %c0_190] : memref<32x1xf32, #tpu.memory_space<vmem>>, vector<32x1xf32>
    %377 = vector.broadcast %376 : vector<32x1xf32> to vector<32x256xf32>
    %378 = arith.addf %375, %377 : vector<32x256xf32>
    %cst_191 = arith.constant 0.000000e+00 : f32
    %379 = vector.broadcast %cst_191 : f32 to vector<32x256xf32>
    %380 = arith.maximumf %378, %379 : vector<32x256xf32>
    %c0_192 = arith.constant 0 : index
    %c0_193 = arith.constant 0 : index
    %381 = vector.load %arg29[%c0_192, %c0_193] : memref<256x64xf32, #tpu.memory_space<vmem>>, vector<256x64xf32>
    %cst_194 = arith.constant dense<0.000000e+00> : vector<32x64xf32>
    %382 = tpu.matmul %380, %381, %cst_194 {dimension_numbers = #tpu.dot_dimension_numbers<[1], [0], [0], [1], [0, 0, 1, 1], [], []>} : vector<32x256xf32>, vector<256x64xf32>, vector<32x64xf32> -> vector<32x64xf32>
    %cst_195 = arith.constant dense<0.000000e+00> : vector<16x64xf32>
    %383 = tpu.matmul %347, %381, %cst_195 {dimension_numbers = #tpu.dot_dimension_numbers<[1], [0], [0], [1], [0, 0, 1, 1], [], []>} : vector<16x256xf32>, vector<256x64xf32>, vector<16x64xf32> -> vector<16x64xf32>
    %cst_196 = arith.constant 0.000000e+00 : f32
    %384 = vector.broadcast %cst_196 : f32 to vector<16x64xf32>
    %385 = tpu.concatenate %383, %384 in 0 : vector<16x64xf32>, vector<16x64xf32> -> vector<32x64xf32>
    %cst_197 = arith.constant dense<0.000000e+00> : vector<32x64xf32>
    %386 = tpu.matmul %382, %33, %cst_197 {dimension_numbers = #tpu.dot_dimension_numbers<[1], [0], [0], [1], [0, 0, 1, 1], [], []>} : vector<32x64xf32>, vector<64x64xf32>, vector<32x64xf32> -> vector<32x64xf32>
    %cst_198 = arith.constant dense<0.000000e+00> : vector<32x64xf32>
    %387 = tpu.matmul %382, %35, %cst_198 {dimension_numbers = #tpu.dot_dimension_numbers<[1], [0], [0], [1], [0, 0, 1, 1], [], []>} : vector<32x64xf32>, vector<64x64xf32>, vector<32x64xf32> -> vector<32x64xf32>
    %cst_199 = arith.constant dense<0.000000e+00> : vector<32x64xf32>
    %388 = tpu.matmul %382, %37, %cst_199 {dimension_numbers = #tpu.dot_dimension_numbers<[1], [0], [0], [1], [0, 0, 1, 1], [], []>} : vector<32x64xf32>, vector<64x64xf32>, vector<32x64xf32> -> vector<32x64xf32>
    %cst_200 = arith.constant dense<0.000000e+00> : vector<32x64xf32>
    %389 = tpu.matmul %382, %39, %cst_200 {dimension_numbers = #tpu.dot_dimension_numbers<[1], [0], [0], [1], [0, 0, 1, 1], [], []>} : vector<32x64xf32>, vector<64x64xf32>, vector<32x64xf32> -> vector<32x64xf32>
    %cst_201 = arith.constant dense<0.000000e+00> : vector<32x64xf32>
    %390 = tpu.matmul %382, %41, %cst_201 {dimension_numbers = #tpu.dot_dimension_numbers<[1], [0], [0], [1], [0, 0, 1, 1], [], []>} : vector<32x64xf32>, vector<64x64xf32>, vector<32x64xf32> -> vector<32x64xf32>
    %cst_202 = arith.constant dense<0.000000e+00> : vector<32x64xf32>
    %391 = tpu.matmul %382, %43, %cst_202 {dimension_numbers = #tpu.dot_dimension_numbers<[1], [0], [0], [1], [0, 0, 1, 1], [], []>} : vector<32x64xf32>, vector<64x64xf32>, vector<32x64xf32> -> vector<32x64xf32>
    %cst_203 = arith.constant dense<0.000000e+00> : vector<32x64xf32>
    %392 = tpu.matmul %382, %45, %cst_203 {dimension_numbers = #tpu.dot_dimension_numbers<[1], [0], [0], [1], [0, 0, 1, 1], [], []>} : vector<32x64xf32>, vector<64x64xf32>, vector<32x64xf32> -> vector<32x64xf32>
    %cst_204 = arith.constant dense<0.000000e+00> : vector<32x64xf32>
    %393 = tpu.matmul %382, %47, %cst_204 {dimension_numbers = #tpu.dot_dimension_numbers<[1], [0], [0], [1], [0, 0, 1, 1], [], []>} : vector<32x64xf32>, vector<64x64xf32>, vector<32x64xf32> -> vector<32x64xf32>
    %394 = tpu.concatenate %386, %387, %388, %389, %382, %390, %391, %392, %393 in 0 : vector<32x64xf32>, vector<32x64xf32>, vector<32x64xf32>, vector<32x64xf32>, vector<32x64xf32>, vector<32x64xf32>, vector<32x64xf32>, vector<32x64xf32>, vector<32x64xf32> -> vector<288x64xf32>
    %395 = arith.truncf %394 : vector<288x64xf32> to vector<288x64xbf16>
    %c0_205 = arith.constant 0 : index
    %c0_206 = arith.constant 0 : index
    %396 = vector.load %arg22[%c0_205, %c0_206] : memref<32x288xbf16, #tpu.memory_space<vmem>>, vector<32x288xbf16>
    %cst_207 = arith.constant dense<0.000000e+00> : vector<32x64xf32>
    %397 = tpu.matmul %396, %395, %cst_207 {dimension_numbers = #tpu.dot_dimension_numbers<[1], [0], [0], [1], [0, 0, 1, 1], [], []>} : vector<32x288xbf16>, vector<288x64xbf16>, vector<32x64xf32> -> vector<32x64xf32>
    %c0_208 = arith.constant 0 : index
    %c0_209 = arith.constant 0 : index
    %398 = vector.load %arg23[%c0_208, %c0_209] : memref<32x1xf32, #tpu.memory_space<vmem>>, vector<32x1xf32>
    %399 = vector.broadcast %398 : vector<32x1xf32> to vector<32x64xf32>
    %400 = arith.addf %397, %399 : vector<32x64xf32>
    %401 = arith.addf %385, %400 : vector<32x64xf32>
    %cst_210 = arith.constant dense<0.000000e+00> : vector<32x64xf32>
    %402 = tpu.matmul %401, %33, %cst_210 {dimension_numbers = #tpu.dot_dimension_numbers<[1], [0], [0], [1], [0, 0, 1, 1], [], []>} : vector<32x64xf32>, vector<64x64xf32>, vector<32x64xf32> -> vector<32x64xf32>
    %cst_211 = arith.constant dense<0.000000e+00> : vector<32x64xf32>
    %403 = tpu.matmul %401, %35, %cst_211 {dimension_numbers = #tpu.dot_dimension_numbers<[1], [0], [0], [1], [0, 0, 1, 1], [], []>} : vector<32x64xf32>, vector<64x64xf32>, vector<32x64xf32> -> vector<32x64xf32>
    %cst_212 = arith.constant dense<0.000000e+00> : vector<32x64xf32>
    %404 = tpu.matmul %401, %37, %cst_212 {dimension_numbers = #tpu.dot_dimension_numbers<[1], [0], [0], [1], [0, 0, 1, 1], [], []>} : vector<32x64xf32>, vector<64x64xf32>, vector<32x64xf32> -> vector<32x64xf32>
    %cst_213 = arith.constant dense<0.000000e+00> : vector<32x64xf32>
    %405 = tpu.matmul %401, %39, %cst_213 {dimension_numbers = #tpu.dot_dimension_numbers<[1], [0], [0], [1], [0, 0, 1, 1], [], []>} : vector<32x64xf32>, vector<64x64xf32>, vector<32x64xf32> -> vector<32x64xf32>
    %cst_214 = arith.constant dense<0.000000e+00> : vector<32x64xf32>
    %406 = tpu.matmul %401, %41, %cst_214 {dimension_numbers = #tpu.dot_dimension_numbers<[1], [0], [0], [1], [0, 0, 1, 1], [], []>} : vector<32x64xf32>, vector<64x64xf32>, vector<32x64xf32> -> vector<32x64xf32>
    %cst_215 = arith.constant dense<0.000000e+00> : vector<32x64xf32>
    %407 = tpu.matmul %401, %43, %cst_215 {dimension_numbers = #tpu.dot_dimension_numbers<[1], [0], [0], [1], [0, 0, 1, 1], [], []>} : vector<32x64xf32>, vector<64x64xf32>, vector<32x64xf32> -> vector<32x64xf32>
    %cst_216 = arith.constant dense<0.000000e+00> : vector<32x64xf32>
    %408 = tpu.matmul %401, %45, %cst_216 {dimension_numbers = #tpu.dot_dimension_numbers<[1], [0], [0], [1], [0, 0, 1, 1], [], []>} : vector<32x64xf32>, vector<64x64xf32>, vector<32x64xf32> -> vector<32x64xf32>
    %cst_217 = arith.constant dense<0.000000e+00> : vector<32x64xf32>
    %409 = tpu.matmul %401, %47, %cst_217 {dimension_numbers = #tpu.dot_dimension_numbers<[1], [0], [0], [1], [0, 0, 1, 1], [], []>} : vector<32x64xf32>, vector<64x64xf32>, vector<32x64xf32> -> vector<32x64xf32>
    %410 = tpu.concatenate %402, %403, %404, %405, %401, %406, %407, %408, %409 in 0 : vector<32x64xf32>, vector<32x64xf32>, vector<32x64xf32>, vector<32x64xf32>, vector<32x64xf32>, vector<32x64xf32>, vector<32x64xf32>, vector<32x64xf32>, vector<32x64xf32> -> vector<288x64xf32>
    %411 = arith.truncf %410 : vector<288x64xf32> to vector<288x64xbf16>
    %c0_218 = arith.constant 0 : index
    %c0_219 = arith.constant 0 : index
    %412 = vector.load %arg24[%c0_218, %c0_219] : memref<32x288xbf16, #tpu.memory_space<vmem>>, vector<32x288xbf16>
    %cst_220 = arith.constant dense<0.000000e+00> : vector<32x64xf32>
    %413 = tpu.matmul %412, %411, %cst_220 {dimension_numbers = #tpu.dot_dimension_numbers<[1], [0], [0], [1], [0, 0, 1, 1], [], []>} : vector<32x288xbf16>, vector<288x64xbf16>, vector<32x64xf32> -> vector<32x64xf32>
    %c0_221 = arith.constant 0 : index
    %c0_222 = arith.constant 0 : index
    %414 = vector.load %arg25[%c0_221, %c0_222] : memref<32x1xf32, #tpu.memory_space<vmem>>, vector<32x1xf32>
    %415 = vector.broadcast %414 : vector<32x1xf32> to vector<32x64xf32>
    %416 = arith.addf %413, %415 : vector<32x64xf32>
    %cst_223 = arith.constant 0.000000e+00 : f32
    %417 = vector.broadcast %cst_223 : f32 to vector<32x64xf32>
    %418 = arith.maximumf %416, %417 : vector<32x64xf32>
    %cst_224 = arith.constant dense<0.000000e+00> : vector<32x64xf32>
    %419 = tpu.matmul %418, %33, %cst_224 {dimension_numbers = #tpu.dot_dimension_numbers<[1], [0], [0], [1], [0, 0, 1, 1], [], []>} : vector<32x64xf32>, vector<64x64xf32>, vector<32x64xf32> -> vector<32x64xf32>
    %cst_225 = arith.constant dense<0.000000e+00> : vector<32x64xf32>
    %420 = tpu.matmul %418, %35, %cst_225 {dimension_numbers = #tpu.dot_dimension_numbers<[1], [0], [0], [1], [0, 0, 1, 1], [], []>} : vector<32x64xf32>, vector<64x64xf32>, vector<32x64xf32> -> vector<32x64xf32>
    %cst_226 = arith.constant dense<0.000000e+00> : vector<32x64xf32>
    %421 = tpu.matmul %418, %37, %cst_226 {dimension_numbers = #tpu.dot_dimension_numbers<[1], [0], [0], [1], [0, 0, 1, 1], [], []>} : vector<32x64xf32>, vector<64x64xf32>, vector<32x64xf32> -> vector<32x64xf32>
    %cst_227 = arith.constant dense<0.000000e+00> : vector<32x64xf32>
    %422 = tpu.matmul %418, %39, %cst_227 {dimension_numbers = #tpu.dot_dimension_numbers<[1], [0], [0], [1], [0, 0, 1, 1], [], []>} : vector<32x64xf32>, vector<64x64xf32>, vector<32x64xf32> -> vector<32x64xf32>
    %cst_228 = arith.constant dense<0.000000e+00> : vector<32x64xf32>
    %423 = tpu.matmul %418, %41, %cst_228 {dimension_numbers = #tpu.dot_dimension_numbers<[1], [0], [0], [1], [0, 0, 1, 1], [], []>} : vector<32x64xf32>, vector<64x64xf32>, vector<32x64xf32> -> vector<32x64xf32>
    %cst_229 = arith.constant dense<0.000000e+00> : vector<32x64xf32>
    %424 = tpu.matmul %418, %43, %cst_229 {dimension_numbers = #tpu.dot_dimension_numbers<[1], [0], [0], [1], [0, 0, 1, 1], [], []>} : vector<32x64xf32>, vector<64x64xf32>, vector<32x64xf32> -> vector<32x64xf32>
    %cst_230 = arith.constant dense<0.000000e+00> : vector<32x64xf32>
    %425 = tpu.matmul %418, %45, %cst_230 {dimension_numbers = #tpu.dot_dimension_numbers<[1], [0], [0], [1], [0, 0, 1, 1], [], []>} : vector<32x64xf32>, vector<64x64xf32>, vector<32x64xf32> -> vector<32x64xf32>
    %cst_231 = arith.constant dense<0.000000e+00> : vector<32x64xf32>
    %426 = tpu.matmul %418, %47, %cst_231 {dimension_numbers = #tpu.dot_dimension_numbers<[1], [0], [0], [1], [0, 0, 1, 1], [], []>} : vector<32x64xf32>, vector<64x64xf32>, vector<32x64xf32> -> vector<32x64xf32>
    %427 = tpu.concatenate %419, %420, %421, %422, %418, %423, %424, %425, %426 in 0 : vector<32x64xf32>, vector<32x64xf32>, vector<32x64xf32>, vector<32x64xf32>, vector<32x64xf32>, vector<32x64xf32>, vector<32x64xf32>, vector<32x64xf32>, vector<32x64xf32> -> vector<288x64xf32>
    %428 = arith.truncf %427 : vector<288x64xf32> to vector<288x64xbf16>
    %c0_232 = arith.constant 0 : index
    %c0_233 = arith.constant 0 : index
    %429 = vector.load %arg26[%c0_232, %c0_233] : memref<32x288xbf16, #tpu.memory_space<vmem>>, vector<32x288xbf16>
    %cst_234 = arith.constant dense<0.000000e+00> : vector<32x64xf32>
    %430 = tpu.matmul %429, %428, %cst_234 {dimension_numbers = #tpu.dot_dimension_numbers<[1], [0], [0], [1], [0, 0, 1, 1], [], []>} : vector<32x288xbf16>, vector<288x64xbf16>, vector<32x64xf32> -> vector<32x64xf32>
    %c0_235 = arith.constant 0 : index
    %c0_236 = arith.constant 0 : index
    %431 = vector.load %arg27[%c0_235, %c0_236] : memref<32x1xf32, #tpu.memory_space<vmem>>, vector<32x1xf32>
    %432 = vector.broadcast %431 : vector<32x1xf32> to vector<32x64xf32>
    %433 = arith.addf %430, %432 : vector<32x64xf32>
    %434 = arith.addf %401, %433 : vector<32x64xf32>
    %cst_237 = arith.constant dense<0.000000e+00> : vector<32xf32>
    %435 = vector.multi_reduction <add>, %434, %cst_237 [1] : vector<32x64xf32> to vector<32xf32>
    %436 = vector.shape_cast %435 : vector<32xf32> to vector<32x1xf32>
    %cst_238 = arith.constant 1.562500e-02 : f32
    %437 = vector.broadcast %cst_238 : f32 to vector<32x1xf32>
    %438 = arith.mulf %436, %437 : vector<32x1xf32>
    %cst_239 = arith.constant 0.000000e+00 : f32
    %439 = vector.broadcast %cst_239 : f32 to vector<32x64xf32>
    %440 = arith.maximumf %434, %439 : vector<32x64xf32>
    %cst_240 = arith.constant dense<0.000000e+00> : vector<32xf32>
    %441 = vector.multi_reduction <add>, %440, %cst_240 [1] : vector<32x64xf32> to vector<32xf32>
    %442 = vector.shape_cast %441 : vector<32xf32> to vector<32x1xf32>
    %cst_241 = arith.constant 1.562500e-02 : f32
    %443 = vector.broadcast %cst_241 : f32 to vector<32x1xf32>
    %444 = arith.mulf %442, %443 : vector<32x1xf32>
    %445 = vector.shape_cast %438 : vector<32x1xf32> to vector<1x32x1xf32>
    %c0_242 = arith.constant 0 : index
    %c0_243 = arith.constant 0 : index
    %c0_244 = arith.constant 0 : index
    %446 = vector.load %arg33[%c0_242, %c0_243, %c0_244] : memref<1x32x1xf32, #tpu.memory_space<vmem>>, vector<1x32x1xf32>
    tpu.vector_store %arg33[%c0_242, %c0_243, %c0_244], %445 {strides = array<i32>} : memref<1x32x1xf32, #tpu.memory_space<vmem>>, vector<1x32x1xf32>,
    %447 = vector.shape_cast %444 : vector<32x1xf32> to vector<1x32x1xf32>
    %c0_245 = arith.constant 0 : index
    %c0_246 = arith.constant 0 : index
    %c0_247 = arith.constant 0 : index
    %448 = vector.load %arg34[%c0_245, %c0_246, %c0_247] : memref<1x32x1xf32, #tpu.memory_space<vmem>>, vector<1x32x1xf32>
    tpu.vector_store %arg34[%c0_245, %c0_246, %c0_247], %447 {strides = array<i32>} : memref<1x32x1xf32, #tpu.memory_space<vmem>>, vector<1x32x1xf32>,
    return
  }
  func.func @transform_0(%arg0: i32) -> (i32, i32, i32) {
    %c0_i32 = arith.constant 0 : i32
    %c0_i32_0 = arith.constant 0 : i32
    %c0_i32_1 = arith.constant 0 : i32
    return %arg0, %c0_i32, %c0_i32_0 : i32, i32, i32
  }
  func.func @transform_1(%arg0: i32) -> (i32, i32) {
    %c0_i32 = arith.constant 0 : i32
    %c0_i32_0 = arith.constant 0 : i32
    %c0_i32_1 = arith.constant 0 : i32
    return %c0_i32, %c0_i32_0 : i32, i32
  }
  func.func @transform_2(%arg0: i32) -> (i32, i32) {
    %c0_i32 = arith.constant 0 : i32
    %c0_i32_0 = arith.constant 0 : i32
    %c0_i32_1 = arith.constant 0 : i32
    return %c0_i32, %c0_i32_0 : i32, i32
  }
  func.func @transform_3(%arg0: i32) -> (i32, i32) {
    %c0_i32 = arith.constant 0 : i32
    %c0_i32_0 = arith.constant 0 : i32
    %c0_i32_1 = arith.constant 0 : i32
    return %c0_i32, %c0_i32_0 : i32, i32
  }
  func.func @transform_4(%arg0: i32) -> (i32, i32) {
    %c0_i32 = arith.constant 0 : i32
    %c0_i32_0 = arith.constant 0 : i32
    %c0_i32_1 = arith.constant 0 : i32
    return %c0_i32, %c0_i32_0 : i32, i32
  }
  func.func @transform_5(%arg0: i32) -> (i32, i32) {
    %c0_i32 = arith.constant 0 : i32
    %c0_i32_0 = arith.constant 0 : i32
    %c0_i32_1 = arith.constant 0 : i32
    return %c0_i32, %c0_i32_0 : i32, i32
  }
  func.func @transform_6(%arg0: i32) -> (i32, i32) {
    %c0_i32 = arith.constant 0 : i32
    %c0_i32_0 = arith.constant 0 : i32
    %c0_i32_1 = arith.constant 0 : i32
    return %c0_i32, %c0_i32_0 : i32, i32
  }
  func.func @transform_7(%arg0: i32) -> (i32, i32) {
    %c0_i32 = arith.constant 0 : i32
    %c0_i32_0 = arith.constant 0 : i32
    %c0_i32_1 = arith.constant 0 : i32
    return %c0_i32, %c0_i32_0 : i32, i32
  }
  func.func @transform_8(%arg0: i32) -> (i32, i32) {
    %c0_i32 = arith.constant 0 : i32
    %c0_i32_0 = arith.constant 0 : i32
    %c0_i32_1 = arith.constant 0 : i32
    return %c0_i32, %c0_i32_0 : i32, i32
  }
  func.func @transform_9(%arg0: i32) -> (i32, i32) {
    %c0_i32 = arith.constant 0 : i32
    %c0_i32_0 = arith.constant 0 : i32
    %c0_i32_1 = arith.constant 0 : i32
    return %c0_i32, %c0_i32_0 : i32, i32
  }
  func.func @transform_10(%arg0: i32) -> (i32, i32) {
    %c0_i32 = arith.constant 0 : i32
    %c0_i32_0 = arith.constant 0 : i32
    %c0_i32_1 = arith.constant 0 : i32
    return %c0_i32, %c0_i32_0 : i32, i32
  }
  func.func @transform_11(%arg0: i32) -> (i32, i32) {
    %c0_i32 = arith.constant 0 : i32
    %c0_i32_0 = arith.constant 0 : i32
    %c0_i32_1 = arith.constant 0 : i32
    return %c0_i32, %c0_i32_0 : i32, i32
  }
  func.func @transform_12(%arg0: i32) -> (i32, i32) {
    %c0_i32 = arith.constant 0 : i32
    %c0_i32_0 = arith.constant 0 : i32
    %c0_i32_1 = arith.constant 0 : i32
    return %c0_i32, %c0_i32_0 : i32, i32
  }
  func.func @transform_13(%arg0: i32) -> (i32, i32) {
    %c0_i32 = arith.constant 0 : i32
    %c0_i32_0 = arith.constant 0 : i32
    %c0_i32_1 = arith.constant 0 : i32
    return %c0_i32, %c0_i32_0 : i32, i32
  }
  func.func @transform_14(%arg0: i32) -> (i32, i32) {
    %c0_i32 = arith.constant 0 : i32
    %c0_i32_0 = arith.constant 0 : i32
    %c0_i32_1 = arith.constant 0 : i32
    return %c0_i32, %c0_i32_0 : i32, i32
  }
  func.func @transform_15(%arg0: i32) -> (i32, i32) {
    %c0_i32 = arith.constant 0 : i32
    %c0_i32_0 = arith.constant 0 : i32
    %c0_i32_1 = arith.constant 0 : i32
    return %c0_i32, %c0_i32_0 : i32, i32
  }
  func.func @transform_16(%arg0: i32) -> (i32, i32) {
    %c0_i32 = arith.constant 0 : i32
    %c0_i32_0 = arith.constant 0 : i32
    %c0_i32_1 = arith.constant 0 : i32
    return %c0_i32, %c0_i32_0 : i32, i32
  }
  func.func @transform_17(%arg0: i32) -> (i32, i32) {
    %c0_i32 = arith.constant 0 : i32
    %c0_i32_0 = arith.constant 0 : i32
    %c0_i32_1 = arith.constant 0 : i32
    return %c0_i32, %c0_i32_0 : i32, i32
  }
  func.func @transform_18(%arg0: i32) -> (i32, i32) {
    %c0_i32 = arith.constant 0 : i32
    %c0_i32_0 = arith.constant 0 : i32
    %c0_i32_1 = arith.constant 0 : i32
    return %c0_i32, %c0_i32_0 : i32, i32
  }
  func.func @transform_19(%arg0: i32) -> (i32, i32) {
    %c0_i32 = arith.constant 0 : i32
    %c0_i32_0 = arith.constant 0 : i32
    %c0_i32_1 = arith.constant 0 : i32
    return %c0_i32, %c0_i32_0 : i32, i32
  }
  func.func @transform_20(%arg0: i32) -> (i32, i32) {
    %c0_i32 = arith.constant 0 : i32
    %c0_i32_0 = arith.constant 0 : i32
    %c0_i32_1 = arith.constant 0 : i32
    return %c0_i32, %c0_i32_0 : i32, i32
  }
  func.func @transform_21(%arg0: i32) -> (i32, i32) {
    %c0_i32 = arith.constant 0 : i32
    %c0_i32_0 = arith.constant 0 : i32
    %c0_i32_1 = arith.constant 0 : i32
    return %c0_i32, %c0_i32_0 : i32, i32
  }
  func.func @transform_22(%arg0: i32) -> (i32, i32) {
    %c0_i32 = arith.constant 0 : i32
    %c0_i32_0 = arith.constant 0 : i32
    %c0_i32_1 = arith.constant 0 : i32
    return %c0_i32, %c0_i32_0 : i32, i32
  }
  func.func @transform_23(%arg0: i32) -> (i32, i32) {
    %c0_i32 = arith.constant 0 : i32
    %c0_i32_0 = arith.constant 0 : i32
    %c0_i32_1 = arith.constant 0 : i32
    return %c0_i32, %c0_i32_0 : i32, i32
  }
  func.func @transform_24(%arg0: i32) -> (i32, i32) {
    %c0_i32 = arith.constant 0 : i32
    %c0_i32_0 = arith.constant 0 : i32
    %c0_i32_1 = arith.constant 0 : i32
    return %c0_i32, %c0_i32_0 : i32, i32
  }
  func.func @transform_25(%arg0: i32) -> (i32, i32) {
    %c0_i32 = arith.constant 0 : i32
    %c0_i32_0 = arith.constant 0 : i32
    %c0_i32_1 = arith.constant 0 : i32
    return %c0_i32, %c0_i32_0 : i32, i32
  }
  func.func @transform_26(%arg0: i32) -> (i32, i32) {
    %c0_i32 = arith.constant 0 : i32
    %c0_i32_0 = arith.constant 0 : i32
    %c0_i32_1 = arith.constant 0 : i32
    return %c0_i32, %c0_i32_0 : i32, i32
  }
  func.func @transform_27(%arg0: i32) -> (i32, i32) {
    %c0_i32 = arith.constant 0 : i32
    %c0_i32_0 = arith.constant 0 : i32
    %c0_i32_1 = arith.constant 0 : i32
    return %c0_i32, %c0_i32_0 : i32, i32
  }
  func.func @transform_28(%arg0: i32) -> (i32, i32) {
    %c0_i32 = arith.constant 0 : i32
    %c0_i32_0 = arith.constant 0 : i32
    %c0_i32_1 = arith.constant 0 : i32
    return %c0_i32, %c0_i32_0 : i32, i32
  }
  func.func @transform_29(%arg0: i32) -> (i32, i32, i32) {
    %c0_i32 = arith.constant 0 : i32
    %c0_i32_0 = arith.constant 0 : i32
    %c0_i32_1 = arith.constant 0 : i32
    %c0_i32_2 = arith.constant 0 : i32
    return %c0_i32, %c0_i32_0, %c0_i32_1 : i32, i32, i32
  }
  func.func @transform_30(%arg0: i32) -> (i32, i32, i32) {
    %c0_i32 = arith.constant 0 : i32
    %c0_i32_0 = arith.constant 0 : i32
    %c0_i32_1 = arith.constant 0 : i32
    %c0_i32_2 = arith.constant 0 : i32
    return %c0_i32, %c0_i32_0, %c0_i32_1 : i32, i32, i32
  }
  func.func @transform_31(%arg0: i32) -> (i32, i32, i32) {
    %c0_i32 = arith.constant 0 : i32
    %c0_i32_0 = arith.constant 0 : i32
    %c0_i32_1 = arith.constant 0 : i32
    %c0_i32_2 = arith.constant 0 : i32
    return %c0_i32, %c0_i32_0, %c0_i32_1 : i32, i32, i32
  }
  func.func @transform_32(%arg0: i32) -> (i32, i32, i32) {
    %c0_i32 = arith.constant 0 : i32
    %c0_i32_0 = arith.constant 0 : i32
    %c0_i32_1 = arith.constant 0 : i32
    return %arg0, %c0_i32, %c0_i32_0 : i32, i32, i32
  }
  func.func @transform_33(%arg0: i32) -> (i32, i32, i32) {
    %c0_i32 = arith.constant 0 : i32
    %c0_i32_0 = arith.constant 0 : i32
    %c0_i32_1 = arith.constant 0 : i32
    return %arg0, %c0_i32, %c0_i32_0 : i32, i32, i32
  }
}

</mosaic_0001>

<llo_original>
// kernel: cifar_resnet_forward.1
$region0: #{cifar_resnet_forward.1}
  #allocation0 [shape = 'u32[]', space=smem, size = 0x4, offset = 0x4, fixed_abs, tag = 'smem constant byte address 0x4 - core index']
  #allocation1 [shape = 'u32[72,128]{1,0:T(1,128)}', space=vmem, size = 0x9000, scoped, tag = 'internal scratch']
  %s0 = inlined_call_operand.smem [shape: u32[34], index: -1, kind: input, shape index: {}]
  %s1 = sld [smem:[%s0]]
  %s2 = scalar_lea.smem %s0, 1
  %s3 = sld [smem:[%s2]]
  %s4 = scalar_lea.smem %s0, 2
  %s5 = sld [smem:[%s4]]
  %s6 = scalar_lea.smem %s0, 3
  %s7 = sld [smem:[%s6]]
  %s8 = scalar_lea.smem %s0, 4
  %s9 = sld [smem:[%s8]]
  %s10 = scalar_lea.smem %s0, 5
  %s11 = sld [smem:[%s10]]
  %s12 = scalar_lea.smem %s0, 6
  %s13 = sld [smem:[%s12]]
  %s14 = scalar_lea.smem %s0, 7
  %s15 = sld [smem:[%s14]]
  %s16 = scalar_lea.smem %s0, 8
  %s17 = sld [smem:[%s16]]
  %s18 = scalar_lea.smem %s0, 9
  %s19 = sld [smem:[%s18]]
  %s20 = scalar_lea.smem %s0, 10
  %s21 = sld [smem:[%s20]]
  %s22 = scalar_lea.smem %s0, 11
  %s23 = sld [smem:[%s22]]
  %s24 = scalar_lea.smem %s0, 12
  %s25 = sld [smem:[%s24]]
  %s26 = scalar_lea.smem %s0, 13
  %s27 = sld [smem:[%s26]]
  %s28 = scalar_lea.smem %s0, 14
  %s29 = sld [smem:[%s28]]
  %s30 = scalar_lea.smem %s0, 15
  %s31 = sld [smem:[%s30]]
  %s32 = scalar_lea.smem %s0, 16
  %s33 = sld [smem:[%s32]]
  %s34 = scalar_lea.smem %s0, 17
  %s35 = sld [smem:[%s34]]
  %s36 = scalar_lea.smem %s0, 18
  %s37 = sld [smem:[%s36]]
  %s38 = scalar_lea.smem %s0, 19
  %s39 = sld [smem:[%s38]]
  %s40 = scalar_lea.smem %s0, 20
  %s41 = sld [smem:[%s40]]
  %s42 = scalar_lea.smem %s0, 21
  %s43 = sld [smem:[%s42]]
  %s44 = scalar_lea.smem %s0, 22
  %s45 = sld [smem:[%s44]]
  %s46 = scalar_lea.smem %s0, 23
  %s47 = sld [smem:[%s46]]
  %s48 = scalar_lea.smem %s0, 24
  %s49 = sld [smem:[%s48]]
  %s50 = scalar_lea.smem %s0, 25
  %s51 = sld [smem:[%s50]]
  %s52 = scalar_lea.smem %s0, 26
  %s53 = sld [smem:[%s52]]
  %s54 = scalar_lea.smem %s0, 27
  %s55 = sld [smem:[%s54]]
  %s56 = scalar_lea.smem %s0, 28
  %s57 = sld [smem:[%s56]]
  %s58 = scalar_lea.smem %s0, 29
  %s59 = sld [smem:[%s58]]
  %s60 = scalar_lea.smem %s0, 30
  %s61 = sld [smem:[%s60]]
  %s62 = scalar_lea.smem %s0, 31
  %s63 = sld [smem:[%s62]]
  %s64 = scalar_lea.smem %s0, 32
  %s65 = sld [smem:[%s64]]
  %s66 = scalar_lea.smem %s0, 33
  %s67 = sld [smem:[%s66]]
  %68 = xla_tuple %s65, %s67
  %s69 = sld [smem:[#allocation0]]
  $region169: #{cifar_resnet_forward.1} parent=0
    _
  %s71 = ssub.s32 1, %s69
  %s72 = scalar_select 0, %s71, %s69
  loop: start=0, step=1, limit=4
  $region2: #{cifar_resnet_forward.1} parent=0 // loop_pre_header
    _
  $region3: #{cifar_resnet_forward.1} parent=0 // loop_header
    %s74 = sphi 0, %s78
    %p75 = scmp.ge.s32.totalorder %s74, 4
    %s84 = sphi 0, %s86
    %s87 = sphi 0, %s84
    %s88 = sphi 0, %s87
    %s104 = sphi 0, %s88
    %s108 = sphi 0, %s108
    %s110 = sphi 0, %s108
    %s111 = sphi 0, %s110
    %s125 = sphi 0, %s111
    %s129 = sphi 0, %s129
    %s131 = sphi 0, %s129
    %s132 = sphi 0, %s131
    %s146 = sphi 0, %s132
    %s150 = sphi 0, %s150
    %s152 = sphi 0, %s150
    %s153 = sphi 0, %s152
    %s167 = sphi 0, %s153
    %s171 = sphi 0, %s171
    %s173 = sphi 0, %s171
    %s174 = sphi 0, %s173
    %s188 = sphi 0, %s174
    %s192 = sphi 0, %s192
    %s194 = sphi 0, %s192
    %s195 = sphi 0, %s194
    %s209 = sphi 0, %s195
    %s213 = sphi 0, %s213
    %s215 = sphi 0, %s213
    %s216 = sphi 0, %s215
    %s230 = sphi 0, %s216
    %s234 = sphi 0, %s234
    %s236 = sphi 0, %s234
    %s237 = sphi 0, %s236
    %s251 = sphi 0, %s237
    %s255 = sphi 0, %s255
    %s257 = sphi 0, %s255
    %s258 = sphi 0, %s257
    %s272 = sphi 0, %s258
    %s276 = sphi 0, %s276
    %s278 = sphi 0, %s276
    %s279 = sphi 0, %s278
    %s293 = sphi 0, %s279
    %s297 = sphi 0, %s297
    %s299 = sphi 0, %s297
    %s300 = sphi 0, %s299
    %s314 = sphi 0, %s300
    %s318 = sphi 0, %s318
    %s320 = sphi 0, %s318
    %s321 = sphi 0, %s320
    %s335 = sphi 0, %s321
    %s339 = sphi 0, %s339
    %s341 = sphi 0, %s339
    %s342 = sphi 0, %s341
    %s356 = sphi 0, %s342
    %s360 = sphi 0, %s360
    %s362 = sphi 0, %s360
    %s363 = sphi 0, %s362
    %s377 = sphi 0, %s363
    %s381 = sphi 0, %s381
    %s383 = sphi 0, %s381
    %s384 = sphi 0, %s383
    %s398 = sphi 0, %s384
    %s402 = sphi 0, %s402
    %s404 = sphi 0, %s402
    %s405 = sphi 0, %s404
    %s419 = sphi 0, %s405
    %s423 = sphi 0, %s423
    %s425 = sphi 0, %s423
    %s426 = sphi 0, %s425
    %s440 = sphi 0, %s426
    %s444 = sphi 0, %s444
    %s446 = sphi 0, %s444
    %s447 = sphi 0, %s446
    %s461 = sphi 0, %s447
    %s465 = sphi 0, %s465
    %s467 = sphi 0, %s465
    %s468 = sphi 0, %s467
    %s482 = sphi 0, %s468
    %s486 = sphi 0, %s486
    %s488 = sphi 0, %s486
    %s489 = sphi 0, %s488
    %s503 = sphi 0, %s489
    %s507 = sphi 0, %s507
    %s509 = sphi 0, %s507
    %s510 = sphi 0, %s509
    %s524 = sphi 0, %s510
    %s528 = sphi 0, %s528
    %s530 = sphi 0, %s528
    %s531 = sphi 0, %s530
    %s545 = sphi 0, %s531
    %s549 = sphi 0, %s549
    %s551 = sphi 0, %s549
    %s552 = sphi 0, %s551
    %s566 = sphi 0, %s552
    %s570 = sphi 0, %s570
    %s572 = sphi 0, %s570
    %s573 = sphi 0, %s572
    %s587 = sphi 0, %s573
    %s591 = sphi 0, %s591
    %s593 = sphi 0, %s591
    %s594 = sphi 0, %s593
    %s608 = sphi 0, %s594
    %s612 = sphi 0, %s612
    %s614 = sphi 0, %s612
    %s615 = sphi 0, %s614
    %s629 = sphi 0, %s615
    %s633 = sphi 0, %s633
    %s635 = sphi 0, %s633
    %s636 = sphi 0, %s635
    %s650 = sphi 0, %s636
    %s654 = sphi 0, %s654
    %s656 = sphi 0, %s654
    %s657 = sphi 0, %s656
    %s671 = sphi 0, %s657
    %s675 = sphi 0, %s675
    %s677 = sphi 0, %s675
    %s678 = sphi 0, %s677
    %s692 = sphi 0, %s678
    %s696 = sphi 0, %s696
    %s698 = sphi 0, %s696
    %s699 = sphi 0, %s698
    %s713 = sphi 0, %s699
    %s717 = sphi 0, %s717
    %s719 = sphi 0, %s717
    %s720 = sphi 0, %s719
    %s734 = sphi 0, %s720
    %s738 = sphi 0, %s738
    %s740 = sphi 0, %s738
    %s741 = sphi 0, %s740
    %s755 = sphi 0, %s741
    %s761 = sphi 0, %s763
    %s764 = sphi 0, %s761
    %s765 = sphi 0, %s764
    %s781 = sphi 0, %s765
    %s787 = sphi 0, %s789
    %s790 = sphi 0, %s787
    %s791 = sphi 0, %s790
    %s807 = sphi 0, %s791
  $region4: #{cifar_resnet_forward.1} parent=0 // loop_header_branch
    %77 = sbr.rel (%p75) target = $region8
  $region5: #{cifar_resnet_forward.1} parent=0 // loop_body
    %s79 = ssub.s32 %s74, 1
    %s80 = ssub.s32 %s74, 2
    %s81 = sadd.s32 %s74, 1
    %s82 = ssub.s32 %s74, %s81
    %p83 = scmp.eq.s32.totalorder %s82, 0
    %s85 = sadd.s32 %s84, 1
    %s86 = scalar_select %p83, %s84, %s85
    %p89 = pneg %p83
    %p90 = scmp.eq.s32.totalorder %s74, 1
    %p91 = por %p89, %p90
    %p92 = scmp.ne.s32.totalorder %s84, %s87
    %p93 = scmp.eq.s32.totalorder %s74, 0
    %p94 = por %p92, %p93
    %p95 = scmp.ne.s32.totalorder %s84, %s87
    %p96 = scmp.eq.s32.totalorder %s79, 1
    %p97 = por %p95, %p96
    %p98 = scmp.ne.s32.totalorder %s87, %s88
    %p99 = scmp.eq.s32.totalorder %s79, 0
    %p100 = por %p98, %p99
    %p101 = scmp.ne.s32.totalorder %s87, %s88
    %p102 = scmp.eq.s32.totalorder %s80, 1
    %p103 = por %p101, %p102
    %p105 = scmp.ne.s32.totalorder %s88, %s104
    %p106 = scmp.eq.s32.totalorder %s80, 0
    %p107 = por %p105, %p106
    %s109 = sadd.s32 %s108, 1
    %p112 = scmp.eq.s32.totalorder %s74, 1
    %p113 = scmp.ne.s32.totalorder %s108, %s110
    %p114 = scmp.eq.s32.totalorder %s74, 0
    %p115 = por %p113, %p114
    %p116 = scmp.ne.s32.totalorder %s108, %s110
    %p117 = scmp.eq.s32.totalorder %s79, 1
    %p118 = por %p116, %p117
    %p119 = scmp.ne.s32.totalorder %s110, %s111
    %p120 = scmp.eq.s32.totalorder %s79, 0
    %p121 = por %p119, %p120
    %p122 = scmp.ne.s32.totalorder %s110, %s111
    %p123 = scmp.eq.s32.totalorder %s80, 1
    %p124 = por %p122, %p123
    %p126 = scmp.ne.s32.totalorder %s111, %s125
    %p127 = scmp.eq.s32.totalorder %s80, 0
    %p128 = por %p126, %p127
    %s130 = sadd.s32 %s129, 1
    %p133 = scmp.eq.s32.totalorder %s74, 1
    %p134 = scmp.ne.s32.totalorder %s129, %s131
    %p135 = scmp.eq.s32.totalorder %s74, 0
    %p136 = por %p134, %p135
    %p137 = scmp.ne.s32.totalorder %s129, %s131
    %p138 = scmp.eq.s32.totalorder %s79, 1
    %p139 = por %p137, %p138
    %p140 = scmp.ne.s32.totalorder %s131, %s132
    %p141 = scmp.eq.s32.totalorder %s79, 0
    %p142 = por %p140, %p141
    %p143 = scmp.ne.s32.totalorder %s131, %s132
    %p144 = scmp.eq.s32.totalorder %s80, 1
    %p145 = por %p143, %p144
    %p147 = scmp.ne.s32.totalorder %s132, %s146
    %p148 = scmp.eq.s32.totalorder %s80, 0
    %p149 = por %p147, %p148
    %s151 = sadd.s32 %s150, 1
    %p154 = scmp.eq.s32.totalorder %s74, 1
    %p155 = scmp.ne.s32.totalorder %s150, %s152
    %p156 = scmp.eq.s32.totalorder %s74, 0
    %p157 = por %p155, %p156
    %p158 = scmp.ne.s32.totalorder %s150, %s152
    %p159 = scmp.eq.s32.totalorder %s79, 1
    %p160 = por %p158, %p159
    %p161 = scmp.ne.s32.totalorder %s152, %s153
    %p162 = scmp.eq.s32.totalorder %s79, 0
    %p163 = por %p161, %p162
    %p164 = scmp.ne.s32.totalorder %s152, %s153
    %p165 = scmp.eq.s32.totalorder %s80, 1
    %p166 = por %p164, %p165
    %p168 = scmp.ne.s32.totalorder %s153, %s167
    %p169 = scmp.eq.s32.totalorder %s80, 0
    %p170 = por %p168, %p169
    %s172 = sadd.s32 %s171, 1
    %p175 = scmp.eq.s32.totalorder %s74, 1
    %p176 = scmp.ne.s32.totalorder %s171, %s173
    %p177 = scmp.eq.s32.totalorder %s74, 0
    %p178 = por %p176, %p177
    %p179 = scmp.ne.s32.totalorder %s171, %s173
    %p180 = scmp.eq.s32.totalorder %s79, 1
    %p181 = por %p179, %p180
    %p182 = scmp.ne.s32.totalorder %s173, %s174
    %p183 = scmp.eq.s32.totalorder %s79, 0
    %p184 = por %p182, %p183
    %p185 = scmp.ne.s32.totalorder %s173, %s174
    %p186 = scmp.eq.s32.totalorder %s80, 1
    %p187 = por %p185, %p186
    %p189 = scmp.ne.s32.totalorder %s174, %s188
    %p190 = scmp.eq.s32.totalorder %s80, 0
    %p191 = por %p189, %p190
    %s193 = sadd.s32 %s192, 1
    %p196 = scmp.eq.s32.totalorder %s74, 1
    %p197 = scmp.ne.s32.totalorder %s192, %s194
    %p198 = scmp.eq.s32.totalorder %s74, 0
    %p199 = por %p197, %p198
    %p200 = scmp.ne.s32.totalorder %s192, %s194
    %p201 = scmp.eq.s32.totalorder %s79, 1
    %p202 = por %p200, %p201
    %p203 = scmp.ne.s32.totalorder %s194, %s195
    %p204 = scmp.eq.s32.totalorder %s79, 0
    %p205 = por %p203, %p204
    %p206 = scmp.ne.s32.totalorder %s194, %s195
    %p207 = scmp.eq.s32.totalorder %s80, 1
    %p208 = por %p206, %p207
    %p210 = scmp.ne.s32.totalorder %s195, %s209
    %p211 = scmp.eq.s32.totalorder %s80, 0
    %p212 = por %p210, %p211
    %s214 = sadd.s32 %s213, 1
    %p217 = scmp.eq.s32.totalorder %s74, 1
    %p218 = scmp.ne.s32.totalorder %s213, %s215
    %p219 = scmp.eq.s32.totalorder %s74, 0
    %p220 = por %p218, %p219
    %p221 = scmp.ne.s32.totalorder %s213, %s215
    %p222 = scmp.eq.s32.totalorder %s79, 1
    %p223 = por %p221, %p222
    %p224 = scmp.ne.s32.totalorder %s215, %s216
    %p225 = scmp.eq.s32.totalorder %s79, 0
    %p226 = por %p224, %p225
    %p227 = scmp.ne.s32.totalorder %s215, %s216
    %p228 = scmp.eq.s32.totalorder %s80, 1
    %p229 = por %p227, %p228
    %p231 = scmp.ne.s32.totalorder %s216, %s230
    %p232 = scmp.eq.s32.totalorder %s80, 0
    %p233 = por %p231, %p232
    %s235 = sadd.s32 %s234, 1
    %p238 = scmp.eq.s32.totalorder %s74, 1
    %p239 = scmp.ne.s32.totalorder %s234, %s236
    %p240 = scmp.eq.s32.totalorder %s74, 0
    %p241 = por %p239, %p240
    %p242 = scmp.ne.s32.totalorder %s234, %s236
    %p243 = scmp.eq.s32.totalorder %s79, 1
    %p244 = por %p242, %p243
    %p245 = scmp.ne.s32.totalorder %s236, %s237
    %p246 = scmp.eq.s32.totalorder %s79, 0
    %p247 = por %p245, %p246
    %p248 = scmp.ne.s32.totalorder %s236, %s237
    %p249 = scmp.eq.s32.totalorder %s80, 1
    %p250 = por %p248, %p249
    %p252 = scmp.ne.s32.totalorder %s237, %s251
    %p253 = scmp.eq.s32.totalorder %s80, 0
    %p254 = por %p252, %p253
    %s256 = sadd.s32 %s255, 1
    %p259 = scmp.eq.s32.totalorder %s74, 1
    %p260 = scmp.ne.s32.totalorder %s255, %s257
    %p261 = scmp.eq.s32.totalorder %s74, 0
    %p262 = por %p260, %p261
    %p263 = scmp.ne.s32.totalorder %s255, %s257
    %p264 = scmp.eq.s32.totalorder %s79, 1
    %p265 = por %p263, %p264
    %p266 = scmp.ne.s32.totalorder %s257, %s258
    %p267 = scmp.eq.s32.totalorder %s79, 0
    %p268 = por %p266, %p267
    %p269 = scmp.ne.s32.totalorder %s257, %s258
    %p270 = scmp.eq.s32.totalorder %s80, 1
    %p271 = por %p269, %p270
    %p273 = scmp.ne.s32.totalorder %s258, %s272
    %p274 = scmp.eq.s32.totalorder %s80, 0
    %p275 = por %p273, %p274
    %s277 = sadd.s32 %s276, 1
    %p280 = scmp.eq.s32.totalorder %s74, 1
    %p281 = scmp.ne.s32.totalorder %s276, %s278
    %p282 = scmp.eq.s32.totalorder %s74, 0
    %p283 = por %p281, %p282
    %p284 = scmp.ne.s32.totalorder %s276, %s278
    %p285 = scmp.eq.s32.totalorder %s79, 1
    %p286 = por %p284, %p285
    %p287 = scmp.ne.s32.totalorder %s278, %s279
    %p288 = scmp.eq.s32.totalorder %s79, 0
    %p289 = por %p287, %p288
    %p290 = scmp.ne.s32.totalorder %s278, %s279
    %p291 = scmp.eq.s32.totalorder %s80, 1
    %p292 = por %p290, %p291
    %p294 = scmp.ne.s32.totalorder %s279, %s293
    %p295 = scmp.eq.s32.totalorder %s80, 0
    %p296 = por %p294, %p295
    %s298 = sadd.s32 %s297, 1
    %p301 = scmp.eq.s32.totalorder %s74, 1
    %p302 = scmp.ne.s32.totalorder %s297, %s299
    %p303 = scmp.eq.s32.totalorder %s74, 0
    %p304 = por %p302, %p303
    %p305 = scmp.ne.s32.totalorder %s297, %s299
    %p306 = scmp.eq.s32.totalorder %s79, 1
    %p307 = por %p305, %p306
    %p308 = scmp.ne.s32.totalorder %s299, %s300
    %p309 = scmp.eq.s32.totalorder %s79, 0
    %p310 = por %p308, %p309
    %p311 = scmp.ne.s32.totalorder %s299, %s300
    %p312 = scmp.eq.s32.totalorder %s80, 1
    %p313 = por %p311, %p312
    %p315 = scmp.ne.s32.totalorder %s300, %s314
    %p316 = scmp.eq.s32.totalorder %s80, 0
    %p317 = por %p315, %p316
    %s319 = sadd.s32 %s318, 1
    %p322 = scmp.eq.s32.totalorder %s74, 1
    %p323 = scmp.ne.s32.totalorder %s318, %s320
    %p324 = scmp.eq.s32.totalorder %s74, 0
    %p325 = por %p323, %p324
    %p326 = scmp.ne.s32.totalorder %s318, %s320
    %p327 = scmp.eq.s32.totalorder %s79, 1
    %p328 = por %p326, %p327
    %p329 = scmp.ne.s32.totalorder %s320, %s321
    %p330 = scmp.eq.s32.totalorder %s79, 0
    %p331 = por %p329, %p330
    %p332 = scmp.ne.s32.totalorder %s320, %s321
    %p333 = scmp.eq.s32.totalorder %s80, 1
    %p334 = por %p332, %p333
    %p336 = scmp.ne.s32.totalorder %s321, %s335
    %p337 = scmp.eq.s32.totalorder %s80, 0
    %p338 = por %p336, %p337
    %s340 = sadd.s32 %s339, 1
    %p343 = scmp.eq.s32.totalorder %s74, 1
    %p344 = scmp.ne.s32.totalorder %s339, %s341
    %p345 = scmp.eq.s32.totalorder %s74, 0
    %p346 = por %p344, %p345
    %p347 = scmp.ne.s32.totalorder %s339, %s341
    %p348 = scmp.eq.s32.totalorder %s79, 1
    %p349 = por %p347, %p348
    %p350 = scmp.ne.s32.totalorder %s341, %s342
    %p351 = scmp.eq.s32.totalorder %s79, 0
    %p352 = por %p350, %p351
    %p353 = scmp.ne.s32.totalorder %s341, %s342
    %p354 = scmp.eq.s32.totalorder %s80, 1
    %p355 = por %p353, %p354
    %p357 = scmp.ne.s32.totalorder %s342, %s356
    %p358 = scmp.eq.s32.totalorder %s80, 0
    %p359 = por %p357, %p358
    %s361 = sadd.s32 %s360, 1
    %p364 = scmp.eq.s32.totalorder %s74, 1
    %p365 = scmp.ne.s32.totalorder %s360, %s362
    %p366 = scmp.eq.s32.totalorder %s74, 0
    %p367 = por %p365, %p366
    %p368 = scmp.ne.s32.totalorder %s360, %s362
    %p369 = scmp.eq.s32.totalorder %s79, 1
    %p370 = por %p368, %p369
    %p371 = scmp.ne.s32.totalorder %s362, %s363
    %p372 = scmp.eq.s32.totalorder %s79, 0
    %p373 = por %p371, %p372
    %p374 = scmp.ne.s32.totalorder %s362, %s363
    %p375 = scmp.eq.s32.totalorder %s80, 1
    %p376 = por %p374, %p375
    %p378 = scmp.ne.s32.totalorder %s363, %s377
    %p379 = scmp.eq.s32.totalorder %s80, 0
    %p380 = por %p378, %p379
    %s382 = sadd.s32 %s381, 1
    %p385 = scmp.eq.s32.totalorder %s74, 1
    %p386 = scmp.ne.s32.totalorder %s381, %s383
    %p387 = scmp.eq.s32.totalorder %s74, 0
    %p388 = por %p386, %p387
    %p389 = scmp.ne.s32.totalorder %s381, %s383
    %p390 = scmp.eq.s32.totalorder %s79, 1
    %p391 = por %p389, %p390
    %p392 = scmp.ne.s32.totalorder %s383, %s384
    %p393 = scmp.eq.s32.totalorder %s79, 0
    %p394 = por %p392, %p393
    %p395 = scmp.ne.s32.totalorder %s383, %s384
    %p396 = scmp.eq.s32.totalorder %s80, 1
    %p397 = por %p395, %p396
    %p399 = scmp.ne.s32.totalorder %s384, %s398
    %p400 = scmp.eq.s32.totalorder %s80, 0
    %p401 = por %p399, %p400
    %s403 = sadd.s32 %s402, 1
    %p406 = scmp.eq.s32.totalorder %s74, 1
    %p407 = scmp.ne.s32.totalorder %s402, %s404
    %p408 = scmp.eq.s32.totalorder %s74, 0
    %p409 = por %p407, %p408
    %p410 = scmp.ne.s32.totalorder %s402, %s404
    %p411 = scmp.eq.s32.totalorder %s79, 1
    %p412 = por %p410, %p411
    %p413 = scmp.ne.s32.totalorder %s404, %s405
    %p414 = scmp.eq.s32.totalorder %s79, 0
    %p415 = por %p413, %p414
    %p416 = scmp.ne.s32.totalorder %s404, %s405
    %p417 = scmp.eq.s32.totalorder %s80, 1
    %p418 = por %p416, %p417
    %p420 = scmp.ne.s32.totalorder %s405, %s419
    %p421 = scmp.eq.s32.totalorder %s80, 0
    %p422 = por %p420, %p421
    %s424 = sadd.s32 %s423, 1
    %p427 = scmp.eq.s32.totalorder %s74, 1
    %p428 = scmp.ne.s32.totalorder %s423, %s425
    %p429 = scmp.eq.s32.totalorder %s74, 0
    %p430 = por %p428, %p429
    %p431 = scmp.ne.s32.totalorder %s423, %s425
    %p432 = scmp.eq.s32.totalorder %s79, 1
    %p433 = por %p431, %p432
    %p434 = scmp.ne.s32.totalorder %s425, %s426
    %p435 = scmp.eq.s32.totalorder %s79, 0
    %p436 = por %p434, %p435
    %p437 = scmp.ne.s32.totalorder %s425, %s426
    %p438 = scmp.eq.s32.totalorder %s80, 1
    %p439 = por %p437, %p438
    %p441 = scmp.ne.s32.totalorder %s426, %s440
    %p442 = scmp.eq.s32.totalorder %s80, 0
    %p443 = por %p441, %p442
    %s445 = sadd.s32 %s444, 1
    %p448 = scmp.eq.s32.totalorder %s74, 1
    %p449 = scmp.ne.s32.totalorder %s444, %s446
    %p450 = scmp.eq.s32.totalorder %s74, 0
    %p451 = por %p449, %p450
    %p452 = scmp.ne.s32.totalorder %s444, %s446
    %p453 = scmp.eq.s32.totalorder %s79, 1
    %p454 = por %p452, %p453
    %p455 = scmp.ne.s32.totalorder %s446, %s447
    %p456 = scmp.eq.s32.totalorder %s79, 0
    %p457 = por %p455, %p456
    %p458 = scmp.ne.s32.totalorder %s446, %s447
    %p459 = scmp.eq.s32.totalorder %s80, 1
    %p460 = por %p458, %p459
    %p462 = scmp.ne.s32.totalorder %s447, %s461
    %p463 = scmp.eq.s32.totalorder %s80, 0
    %p464 = por %p462, %p463
    %s466 = sadd.s32 %s465, 1
    %p469 = scmp.eq.s32.totalorder %s74, 1
    %p470 = scmp.ne.s32.totalorder %s465, %s467
    %p471 = scmp.eq.s32.totalorder %s74, 0
    %p472 = por %p470, %p471
    %p473 = scmp.ne.s32.totalorder %s465, %s467
    %p474 = scmp.eq.s32.totalorder %s79, 1
    %p475 = por %p473, %p474
    %p476 = scmp.ne.s32.totalorder %s467, %s468
    %p477 = scmp.eq.s32.totalorder %s79, 0
    %p478 = por %p476, %p477
    %p479 = scmp.ne.s32.totalorder %s467, %s468
    %p480 = scmp.eq.s32.totalorder %s80, 1
    %p481 = por %p479, %p480
    %p483 = scmp.ne.s32.totalorder %s468, %s482
    %p484 = scmp.eq.s32.totalorder %s80, 0
    %p485 = por %p483, %p484
    %s487 = sadd.s32 %s486, 1
    %p490 = scmp.eq.s32.totalorder %s74, 1
    %p491 = scmp.ne.s32.totalorder %s486, %s488
    %p492 = scmp.eq.s32.totalorder %s74, 0
    %p493 = por %p491, %p492
    %p494 = scmp.ne.s32.totalorder %s486, %s488
    %p495 = scmp.eq.s32.totalorder %s79, 1
    %p496 = por %p494, %p495
    %p497 = scmp.ne.s32.totalorder %s488, %s489
    %p498 = scmp.eq.s32.totalorder %s79, 0
    %p499 = por %p497, %p498
    %p500 = scmp.ne.s32.totalorder %s488, %s489
    %p501 = scmp.eq.s32.totalorder %s80, 1
    %p502 = por %p500, %p501
    %p504 = scmp.ne.s32.totalorder %s489, %s503
    %p505 = scmp.eq.s32.totalorder %s80, 0
    %p506 = por %p504, %p505
    %s508 = sadd.s32 %s507, 1
    %p511 = scmp.eq.s32.totalorder %s74, 1
    %p512 = scmp.ne.s32.totalorder %s507, %s509
    %p513 = scmp.eq.s32.totalorder %s74, 0
    %p514 = por %p512, %p513
    %p515 = scmp.ne.s32.totalorder %s507, %s509
    %p516 = scmp.eq.s32.totalorder %s79, 1
    %p517 = por %p515, %p516
    %p518 = scmp.ne.s32.totalorder %s509, %s510
    %p519 = scmp.eq.s32.totalorder %s79, 0
    %p520 = por %p518, %p519
    %p521 = scmp.ne.s32.totalorder %s509, %s510
    %p522 = scmp.eq.s32.totalorder %s80, 1
    %p523 = por %p521, %p522
    %p525 = scmp.ne.s32.totalorder %s510, %s524
    %p526 = scmp.eq.s32.totalorder %s80, 0
    %p527 = por %p525, %p526
    %s529 = sadd.s32 %s528, 1
    %p532 = scmp.eq.s32.totalorder %s74, 1
    %p533 = scmp.ne.s32.totalorder %s528, %s530
    %p534 = scmp.eq.s32.totalorder %s74, 0
    %p535 = por %p533, %p534
    %p536 = scmp.ne.s32.totalorder %s528, %s530
    %p537 = scmp.eq.s32.totalorder %s79, 1
    %p538 = por %p536, %p537
    %p539 = scmp.ne.s32.totalorder %s530, %s531
    %p540 = scmp.eq.s32.totalorder %s79, 0
    %p541 = por %p539, %p540
    %p542 = scmp.ne.s32.totalorder %s530, %s531
    %p543 = scmp.eq.s32.totalorder %s80, 1
    %p544 = por %p542, %p543
    %p546 = scmp.ne.s32.totalorder %s531, %s545
    %p547 = scmp.eq.s32.totalorder %s80, 0
    %p548 = por %p546, %p547
    %s550 = sadd.s32 %s549, 1
    %p553 = scmp.eq.s32.totalorder %s74, 1
    %p554 = scmp.ne.s32.totalorder %s549, %s551
    %p555 = scmp.eq.s32.totalorder %s74, 0
    %p556 = por %p554, %p555
    %p557 = scmp.ne.s32.totalorder %s549, %s551
    %p558 = scmp.eq.s32.totalorder %s79, 1
    %p559 = por %p557, %p558
    %p560 = scmp.ne.s32.totalorder %s551, %s552
    %p561 = scmp.eq.s32.totalorder %s79, 0
    %p562 = por %p560, %p561
    %p563 = scmp.ne.s32.totalorder %s551, %s552
    %p564 = scmp.eq.s32.totalorder %s80, 1
    %p565 = por %p563, %p564
    %p567 = scmp.ne.s32.totalorder %s552, %s566
    %p568 = scmp.eq.s32.totalorder %s80, 0
    %p569 = por %p567, %p568
    %s571 = sadd.s32 %s570, 1
    %p574 = scmp.eq.s32.totalorder %s74, 1
    %p575 = scmp.ne.s32.totalorder %s570, %s572
    %p576 = scmp.eq.s32.totalorder %s74, 0
    %p577 = por %p575, %p576
    %p578 = scmp.ne.s32.totalorder %s570, %s572
    %p579 = scmp.eq.s32.totalorder %s79, 1
    %p580 = por %p578, %p579
    %p581 = scmp.ne.s32.totalorder %s572, %s573
    %p582 = scmp.eq.s32.totalorder %s79, 0
    %p583 = por %p581, %p582
    %p584 = scmp.ne.s32.totalorder %s572, %s573
    %p585 = scmp.eq.s32.totalorder %s80, 1
    %p586 = por %p584, %p585
    %p588 = scmp.ne.s32.totalorder %s573, %s587
    %p589 = scmp.eq.s32.totalorder %s80, 0
    %p590 = por %p588, %p589
    %s592 = sadd.s32 %s591, 1
    %p595 = scmp.eq.s32.totalorder %s74, 1
    %p596 = scmp.ne.s32.totalorder %s591, %s593
    %p597 = scmp.eq.s32.totalorder %s74, 0
    %p598 = por %p596, %p597
    %p599 = scmp.ne.s32.totalorder %s591, %s593
    %p600 = scmp.eq.s32.totalorder %s79, 1
    %p601 = por %p599, %p600
    %p602 = scmp.ne.s32.totalorder %s593, %s594
    %p603 = scmp.eq.s32.totalorder %s79, 0
    %p604 = por %p602, %p603
    %p605 = scmp.ne.s32.totalorder %s593, %s594
    %p606 = scmp.eq.s32.totalorder %s80, 1
    %p607 = por %p605, %p606
    %p609 = scmp.ne.s32.totalorder %s594, %s608
    %p610 = scmp.eq.s32.totalorder %s80, 0
    %p611 = por %p609, %p610
    %s613 = sadd.s32 %s612, 1
    %p616 = scmp.eq.s32.totalorder %s74, 1
    %p617 = scmp.ne.s32.totalorder %s612, %s614
    %p618 = scmp.eq.s32.totalorder %s74, 0
    %p619 = por %p617, %p618
    %p620 = scmp.ne.s32.totalorder %s612, %s614
    %p621 = scmp.eq.s32.totalorder %s79, 1
    %p622 = por %p620, %p621
    %p623 = scmp.ne.s32.totalorder %s614, %s615
    %p624 = scmp.eq.s32.totalorder %s79, 0
    %p625 = por %p623, %p624
    %p626 = scmp.ne.s32.totalorder %s614, %s615
    %p627 = scmp.eq.s32.totalorder %s80, 1
    %p628 = por %p626, %p627
    %p630 = scmp.ne.s32.totalorder %s615, %s629
    %p631 = scmp.eq.s32.totalorder %s80, 0
    %p632 = por %p630, %p631
    %s634 = sadd.s32 %s633, 1
    %p637 = scmp.eq.s32.totalorder %s74, 1
    %p638 = scmp.ne.s32.totalorder %s633, %s635
    %p639 = scmp.eq.s32.totalorder %s74, 0
    %p640 = por %p638, %p639
    %p641 = scmp.ne.s32.totalorder %s633, %s635
    %p642 = scmp.eq.s32.totalorder %s79, 1
    %p643 = por %p641, %p642
    %p644 = scmp.ne.s32.totalorder %s635, %s636
    %p645 = scmp.eq.s32.totalorder %s79, 0
    %p646 = por %p644, %p645
    %p647 = scmp.ne.s32.totalorder %s635, %s636
    %p648 = scmp.eq.s32.totalorder %s80, 1
    %p649 = por %p647, %p648
    %p651 = scmp.ne.s32.totalorder %s636, %s650
    %p652 = scmp.eq.s32.totalorder %s80, 0
    %p653 = por %p651, %p652
    %s655 = sadd.s32 %s654, 1
    %p658 = scmp.eq.s32.totalorder %s74, 1
    %p659 = scmp.ne.s32.totalorder %s654, %s656
    %p660 = scmp.eq.s32.totalorder %s74, 0
    %p661 = por %p659, %p660
    %p662 = scmp.ne.s32.totalorder %s654, %s656
    %p663 = scmp.eq.s32.totalorder %s79, 1
    %p664 = por %p662, %p663
    %p665 = scmp.ne.s32.totalorder %s656, %s657
    %p666 = scmp.eq.s32.totalorder %s79, 0
    %p667 = por %p665, %p666
    %p668 = scmp.ne.s32.totalorder %s656, %s657
    %p669 = scmp.eq.s32.totalorder %s80, 1
    %p670 = por %p668, %p669
    %p672 = scmp.ne.s32.totalorder %s657, %s671
    %p673 = scmp.eq.s32.totalorder %s80, 0
    %p674 = por %p672, %p673
    %s676 = sadd.s32 %s675, 1
    %p679 = scmp.eq.s32.totalorder %s74, 1
    %p680 = scmp.ne.s32.totalorder %s675, %s677
    %p681 = scmp.eq.s32.totalorder %s74, 0
    %p682 = por %p680, %p681
    %p683 = scmp.ne.s32.totalorder %s675, %s677
    %p684 = scmp.eq.s32.totalorder %s79, 1
    %p685 = por %p683, %p684
    %p686 = scmp.ne.s32.totalorder %s677, %s678
    %p687 = scmp.eq.s32.totalorder %s79, 0
    %p688 = por %p686, %p687
    %p689 = scmp.ne.s32.totalorder %s677, %s678
    %p690 = scmp.eq.s32.totalorder %s80, 1
    %p691 = por %p689, %p690
    %p693 = scmp.ne.s32.totalorder %s678, %s692
    %p694 = scmp.eq.s32.totalorder %s80, 0
    %p695 = por %p693, %p694
    %s697 = sadd.s32 %s696, 1
    %p700 = scmp.eq.s32.totalorder %s74, 1
    %p701 = scmp.ne.s32.totalorder %s696, %s698
    %p702 = scmp.eq.s32.totalorder %s74, 0
    %p703 = por %p701, %p702
    %p704 = scmp.ne.s32.totalorder %s696, %s698
    %p705 = scmp.eq.s32.totalorder %s79, 1
    %p706 = por %p704, %p705
    %p707 = scmp.ne.s32.totalorder %s698, %s699
    %p708 = scmp.eq.s32.totalorder %s79, 0
    %p709 = por %p707, %p708
    %p710 = scmp.ne.s32.totalorder %s698, %s699
    %p711 = scmp.eq.s32.totalorder %s80, 1
    %p712 = por %p710, %p711
    %p714 = scmp.ne.s32.totalorder %s699, %s713
    %p715 = scmp.eq.s32.totalorder %s80, 0
    %p716 = por %p714, %p715
    %s718 = sadd.s32 %s717, 1
    %p721 = scmp.eq.s32.totalorder %s74, 1
    %p722 = scmp.ne.s32.totalorder %s717, %s719
    %p723 = scmp.eq.s32.totalorder %s74, 0
    %p724 = por %p722, %p723
    %p725 = scmp.ne.s32.totalorder %s717, %s719
    %p726 = scmp.eq.s32.totalorder %s79, 1
    %p727 = por %p725, %p726
    %p728 = scmp.ne.s32.totalorder %s719, %s720
    %p729 = scmp.eq.s32.totalorder %s79, 0
    %p730 = por %p728, %p729
    %p731 = scmp.ne.s32.totalorder %s719, %s720
    %p732 = scmp.eq.s32.totalorder %s80, 1
    %p733 = por %p731, %p732
    %p735 = scmp.ne.s32.totalorder %s720, %s734
    %p736 = scmp.eq.s32.totalorder %s80, 0
    %p737 = por %p735, %p736
    %s739 = sadd.s32 %s738, 1
    %p742 = scmp.eq.s32.totalorder %s74, 1
    %p743 = scmp.ne.s32.totalorder %s738, %s740
    %p744 = scmp.eq.s32.totalorder %s74, 0
    %p745 = por %p743, %p744
    %p746 = scmp.ne.s32.totalorder %s738, %s740
    %p747 = scmp.eq.s32.totalorder %s79, 1
    %p748 = por %p746, %p747
    %p749 = scmp.ne.s32.totalorder %s740, %s741
    %p750 = scmp.eq.s32.totalorder %s79, 0
    %p751 = por %p749, %p750
    %p752 = scmp.ne.s32.totalorder %s740, %s741
    %p753 = scmp.eq.s32.totalorder %s80, 1
    %p754 = por %p752, %p753
    %p756 = scmp.ne.s32.totalorder %s741, %s755
    %p757 = scmp.eq.s32.totalorder %s80, 0
    %p758 = por %p756, %p757
    %s759 = ssub.s32 %s74, %s81
    %p760 = scmp.eq.s32.totalorder %s759, 0
    %s762 = sadd.s32 %s761, 1
    %s763 = scalar_select %p760, %s761, %s762
    %p766 = pneg %p760
    %p767 = scmp.eq.s32.totalorder %s74, 1
    %p768 = por %p766, %p767
    %p769 = scmp.ne.s32.totalorder %s761, %s764
    %p770 = scmp.eq.s32.totalorder %s74, 0
    %p771 = por %p769, %p770
    %p772 = scmp.ne.s32.totalorder %s761, %s764
    %p773 = scmp.eq.s32.totalorder %s79, 1
    %p774 = por %p772, %p773
    %p775 = scmp.ne.s32.totalorder %s764, %s765
    %p776 = scmp.eq.s32.totalorder %s79, 0
    %p777 = por %p775, %p776
    %p778 = scmp.ne.s32.totalorder %s764, %s765
    %p779 = scmp.eq.s32.totalorder %s80, 1
    %p780 = por %p778, %p779
    %p782 = scmp.ne.s32.totalorder %s765, %s781
    %p783 = scmp.eq.s32.totalorder %s80, 0
    %p784 = por %p782, %p783
    %s785 = ssub.s32 %s74, %s81
    %p786 = scmp.eq.s32.totalorder %s785, 0
    %s788 = sadd.s32 %s787, 1
    %s789 = scalar_select %p786, %s787, %s788
    %p792 = pneg %p786
    %p793 = scmp.eq.s32.totalorder %s74, 1
    %p794 = por %p792, %p793
    %p795 = scmp.ne.s32.totalorder %s787, %s790
    %p796 = scmp.eq.s32.totalorder %s74, 0
    %p797 = por %p795, %p796
    %p798 = scmp.ne.s32.totalorder %s787, %s790
    %p799 = scmp.eq.s32.totalorder %s79, 1
    %p800 = por %p798, %p799
    %p801 = scmp.ne.s32.totalorder %s790, %s791
    %p802 = scmp.eq.s32.totalorder %s79, 0
    %p803 = por %p801, %p802
    %p804 = scmp.ne.s32.totalorder %s790, %s791
    %p805 = scmp.eq.s32.totalorder %s80, 1
    %p806 = por %p804, %p805
    %p808 = scmp.ne.s32.totalorder %s791, %s807
    %p809 = scmp.eq.s32.totalorder %s80, 0
    %p810 = por %p808, %p809
    %p811 = scmp.le.s32.totalorder 1, %s74
    %p812 = scmp.lt.s32.totalorder %s74, 3
    %p813 = pnand %p811, %p812
    %p814 = pneg %p813
    // Predicated region
    $region9: #{cifar_resnet_forward.1} parent=5 // pred_check
      _
    $region10: #{cifar_resnet_forward.1} parent=5 // pred_check_branch
      %816 = sbr.rel (%p813) target = $region12
    $region11: #{cifar_resnet_forward.1} parent=5 // pred_region
      %s817 = ssub.s32 %s74, 1
      // Predicated region
      $region13: #{cifar_resnet_forward.1} parent=11 // pred_check
        %p818 = pneg %p121
      $region14: #{cifar_resnet_forward.1} parent=11 // pred_check_branch
        %820 = sbr.rel (%p818) target = $region16
      $region15: #{cifar_resnet_forward.1} parent=11 // pred_region
        _
      $region16: #{cifar_resnet_forward.1} parent=11 // pred_fallthru
        _
      // Predicated region
      $region17: #{cifar_resnet_forward.1} parent=11 // pred_check
        %p821 = pneg %p142
      $region18: #{cifar_resnet_forward.1} parent=11 // pred_check_branch
        %823 = sbr.rel (%p821) target = $region20
      $region19: #{cifar_resnet_forward.1} parent=11 // pred_region
        _
      $region20: #{cifar_resnet_forward.1} parent=11 // pred_fallthru
        _
      // Predicated region
      $region21: #{cifar_resnet_forward.1} parent=11 // pred_check
        %p824 = pneg %p163
      $region22: #{cifar_resnet_forward.1} parent=11 // pred_check_branch
        %826 = sbr.rel (%p824) target = $region24
      $region23: #{cifar_resnet_forward.1} parent=11 // pred_region
        _
      $region24: #{cifar_resnet_forward.1} parent=11 // pred_fallthru
        _
      // Predicated region
      $region25: #{cifar_resnet_forward.1} parent=11 // pred_check
        %p827 = pneg %p184
      $region26: #{cifar_resnet_forward.1} parent=11 // pred_check_branch
        %829 = sbr.rel (%p827) target = $region28
      $region27: #{cifar_resnet_forward.1} parent=11 // pred_region
        _
      $region28: #{cifar_resnet_forward.1} parent=11 // pred_fallthru
        _
      // Predicated region
      $region29: #{cifar_resnet_forward.1} parent=11 // pred_check
        %p830 = pneg %p205
      $region30: #{cifar_resnet_forward.1} parent=11 // pred_check_branch
        %832 = sbr.rel (%p830) target = $region32
      $region31: #{cifar_resnet_forward.1} parent=11 // pred_region
        _
      $region32: #{cifar_resnet_forward.1} parent=11 // pred_fallthru
        _
      // Predicated region
      $region33: #{cifar_resnet_forward.1} parent=11 // pred_check
        %p833 = pneg %p226
      $region34: #{cifar_resnet_forward.1} parent=11 // pred_check_branch
        %835 = sbr.rel (%p833) target = $region36
      $region35: #{cifar_resnet_forward.1} parent=11 // pred_region
        _
      $region36: #{cifar_resnet_forward.1} parent=11 // pred_fallthru
        _
      // Predicated region
      $region37: #{cifar_resnet_forward.1} parent=11 // pred_check
        %p836 = pneg %p247
      $region38: #{cifar_resnet_forward.1} parent=11 // pred_check_branch
        %838 = sbr.rel (%p836) target = $region40
      $region39: #{cifar_resnet_forward.1} parent=11 // pred_region
        _
      $region40: #{cifar_resnet_forward.1} parent=11 // pred_fallthru
        _
      // Predicated region
      $region41: #{cifar_resnet_forward.1} parent=11 // pred_check
        %p839 = pneg %p268
      $region42: #{cifar_resnet_forward.1} parent=11 // pred_check_branch
        %841 = sbr.rel (%p839) target = $region44
      $region43: #{cifar_resnet_forward.1} parent=11 // pred_region
        _
      $region44: #{cifar_resnet_forward.1} parent=11 // pred_fallthru
        _
      // Predicated region
      $region45: #{cifar_resnet_forward.1} parent=11 // pred_check
        %p842 = pneg %p289
      $region46: #{cifar_resnet_forward.1} parent=11 // pred_check_branch
        %844 = sbr.rel (%p842) target = $region48
      $region47: #{cifar_resnet_forward.1} parent=11 // pred_region
        _
      $region48: #{cifar_resnet_forward.1} parent=11 // pred_fallthru
        _
      // Predicated region
      $region49: #{cifar_resnet_forward.1} parent=11 // pred_check
        %p845 = pneg %p310
      $region50: #{cifar_resnet_forward.1} parent=11 // pred_check_branch
        %847 = sbr.rel (%p845) target = $region52
      $region51: #{cifar_resnet_forward.1} parent=11 // pred_region
        _
      $region52: #{cifar_resnet_forward.1} parent=11 // pred_fallthru
        _
      // Predicated region
      $region53: #{cifar_resnet_forward.1} parent=11 // pred_check
        %p848 = pneg %p331
      $region54: #{cifar_resnet_forward.1} parent=11 // pred_check_branch
        %850 = sbr.rel (%p848) target = $region56
      $region55: #{cifar_resnet_forward.1} parent=11 // pred_region
        _
      $region56: #{cifar_resnet_forward.1} parent=11 // pred_fallthru
        _
      // Predicated region
      $region57: #{cifar_resnet_forward.1} parent=11 // pred_check
        %p851 = pneg %p352
      $region58: #{cifar_resnet_forward.1} parent=11 // pred_check_branch
        %853 = sbr.rel (%p851) target = $region60
      $region59: #{cifar_resnet_forward.1} parent=11 // pred_region
        _
      $region60: #{cifar_resnet_forward.1} parent=11 // pred_fallthru
        _
      // Predicated region
      $region61: #{cifar_resnet_forward.1} parent=11 // pred_check
        %p854 = pneg %p373
      $region62: #{cifar_resnet_forward.1} parent=11 // pred_check_branch
        %856 = sbr.rel (%p854) target = $region64
      $region63: #{cifar_resnet_forward.1} parent=11 // pred_region
        _
      $region64: #{cifar_resnet_forward.1} parent=11 // pred_fallthru
        _
      // Predicated region
      $region65: #{cifar_resnet_forward.1} parent=11 // pred_check
        %p857 = pneg %p394
      $region66: #{cifar_resnet_forward.1} parent=11 // pred_check_branch
        %859 = sbr.rel (%p857) target = $region68
      $region67: #{cifar_resnet_forward.1} parent=11 // pred_region
        _
      $region68: #{cifar_resnet_forward.1} parent=11 // pred_fallthru
        _
      // Predicated region
      $region69: #{cifar_resnet_forward.1} parent=11 // pred_check
        %p860 = pneg %p415
      $region70: #{cifar_resnet_forward.1} parent=11 // pred_check_branch
        %862 = sbr.rel (%p860) target = $region72
      $region71: #{cifar_resnet_forward.1} parent=11 // pred_region
        _
      $region72: #{cifar_resnet_forward.1} parent=11 // pred_fallthru
        _
      // Predicated region
      $region73: #{cifar_resnet_forward.1} parent=11 // pred_check
        %p863 = pneg %p436
      $region74: #{cifar_resnet_forward.1} parent=11 // pred_check_branch
        %865 = sbr.rel (%p863) target = $region76
      $region75: #{cifar_resnet_forward.1} parent=11 // pred_region
        _
      $region76: #{cifar_resnet_forward.1} parent=11 // pred_fallthru
        _
      // Predicated region
      $region77: #{cifar_resnet_forward.1} parent=11 // pred_check
        %p866 = pneg %p457
      $region78: #{cifar_resnet_forward.1} parent=11 // pred_check_branch
        %868 = sbr.rel (%p866) target = $region80
      $region79: #{cifar_resnet_forward.1} parent=11 // pred_region
        _
      $region80: #{cifar_resnet_forward.1} parent=11 // pred_fallthru
        _
      // Predicated region
      $region81: #{cifar_resnet_forward.1} parent=11 // pred_check
        %p869 = pneg %p478
      $region82: #{cifar_resnet_forward.1} parent=11 // pred_check_branch
        %871 = sbr.rel (%p869) target = $region84
      $region83: #{cifar_resnet_forward.1} parent=11 // pred_region
        _
      $region84: #{cifar_resnet_forward.1} parent=11 // pred_fallthru
        _
      // Predicated region
      $region85: #{cifar_resnet_forward.1} parent=11 // pred_check
        %p872 = pneg %p499
      $region86: #{cifar_resnet_forward.1} parent=11 // pred_check_branch
        %874 = sbr.rel (%p872) target = $region88
      $region87: #{cifar_resnet_forward.1} parent=11 // pred_region
        _
      $region88: #{cifar_resnet_forward.1} parent=11 // pred_fallthru
        _
      // Predicated region
      $region89: #{cifar_resnet_forward.1} parent=11 // pred_check
        %p875 = pneg %p520
      $region90: #{cifar_resnet_forward.1} parent=11 // pred_check_branch
        %877 = sbr.rel (%p875) target = $region92
      $region91: #{cifar_resnet_forward.1} parent=11 // pred_region
        _
      $region92: #{cifar_resnet_forward.1} parent=11 // pred_fallthru
        _
      // Predicated region
      $region93: #{cifar_resnet_forward.1} parent=11 // pred_check
        %p878 = pneg %p541
      $region94: #{cifar_resnet_forward.1} parent=11 // pred_check_branch
        %880 = sbr.rel (%p878) target = $region96
      $region95: #{cifar_resnet_forward.1} parent=11 // pred_region
        _
      $region96: #{cifar_resnet_forward.1} parent=11 // pred_fallthru
        _
      // Predicated region
      $region97: #{cifar_resnet_forward.1} parent=11 // pred_check
        %p881 = pneg %p562
      $region98: #{cifar_resnet_forward.1} parent=11 // pred_check_branch
        %883 = sbr.rel (%p881) target = $region100
      $region99: #{cifar_resnet_forward.1} parent=11 // pred_region
        _
      $region100: #{cifar_resnet_forward.1} parent=11 // pred_fallthru
        _
      // Predicated region
      $region101: #{cifar_resnet_forward.1} parent=11 // pred_check
        %p884 = pneg %p583
      $region102: #{cifar_resnet_forward.1} parent=11 // pred_check_branch
        %886 = sbr.rel (%p884) target = $region104
      $region103: #{cifar_resnet_forward.1} parent=11 // pred_region
        _
      $region104: #{cifar_resnet_forward.1} parent=11 // pred_fallthru
        _
      // Predicated region
      $region105: #{cifar_resnet_forward.1} parent=11 // pred_check
        %p887 = pneg %p604
      $region106: #{cifar_resnet_forward.1} parent=11 // pred_check_branch
        %889 = sbr.rel (%p887) target = $region108
      $region107: #{cifar_resnet_forward.1} parent=11 // pred_region
        _
      $region108: #{cifar_resnet_forward.1} parent=11 // pred_fallthru
        _
      // Predicated region
      $region109: #{cifar_resnet_forward.1} parent=11 // pred_check
        %p890 = pneg %p625
      $region110: #{cifar_resnet_forward.1} parent=11 // pred_check_branch
        %892 = sbr.rel (%p890) target = $region112
      $region111: #{cifar_resnet_forward.1} parent=11 // pred_region
        _
      $region112: #{cifar_resnet_forward.1} parent=11 // pred_fallthru
        _
      // Predicated region
      $region113: #{cifar_resnet_forward.1} parent=11 // pred_check
        %p893 = pneg %p646
      $region114: #{cifar_resnet_forward.1} parent=11 // pred_check_branch
        %895 = sbr.rel (%p893) target = $region116
      $region115: #{cifar_resnet_forward.1} parent=11 // pred_region
        _
      $region116: #{cifar_resnet_forward.1} parent=11 // pred_fallthru
        _
      // Predicated region
      $region117: #{cifar_resnet_forward.1} parent=11 // pred_check
        %p896 = pneg %p667
      $region118: #{cifar_resnet_forward.1} parent=11 // pred_check_branch
        %898 = sbr.rel (%p896) target = $region120
      $region119: #{cifar_resnet_forward.1} parent=11 // pred_region
        _
      $region120: #{cifar_resnet_forward.1} parent=11 // pred_fallthru
        _
      // Predicated region
      $region121: #{cifar_resnet_forward.1} parent=11 // pred_check
        %p899 = pneg %p688
      $region122: #{cifar_resnet_forward.1} parent=11 // pred_check_branch
        %901 = sbr.rel (%p899) target = $region124
      $region123: #{cifar_resnet_forward.1} parent=11 // pred_region
        _
      $region124: #{cifar_resnet_forward.1} parent=11 // pred_fallthru
        _
      // Predicated region
      $region125: #{cifar_resnet_forward.1} parent=11 // pred_check
        %p902 = pneg %p709
      $region126: #{cifar_resnet_forward.1} parent=11 // pred_check_branch
        %904 = sbr.rel (%p902) target = $region128
      $region127: #{cifar_resnet_forward.1} parent=11 // pred_region
        _
      $region128: #{cifar_resnet_forward.1} parent=11 // pred_fallthru
        _
      // Predicated region
      $region129: #{cifar_resnet_forward.1} parent=11 // pred_check
        %p905 = pneg %p730
      $region130: #{cifar_resnet_forward.1} parent=11 // pred_check_branch
        %907 = sbr.rel (%p905) target = $region132
      $region131: #{cifar_resnet_forward.1} parent=11 // pred_region
        _
      $region132: #{cifar_resnet_forward.1} parent=11 // pred_fallthru
        _
      // Predicated region
      $region133: #{cifar_resnet_forward.1} parent=11 // pred_check
        %p908 = pneg %p751
      $region134: #{cifar_resnet_forward.1} parent=11 // pred_check_branch
        %910 = sbr.rel (%p908) target = $region136
      $region135: #{cifar_resnet_forward.1} parent=11 // pred_region
        _
      $region136: #{cifar_resnet_forward.1} parent=11 // pred_fallthru
        _
    $region12: #{cifar_resnet_forward.1} parent=5 // pred_fallthru
      _
    %p911 = scmp.lt.s32.totalorder %s74, 2
    // Predicated region
    $region137: #{cifar_resnet_forward.1} parent=5 // pred_check
      %p912 = pneg %p911
    $region138: #{cifar_resnet_forward.1} parent=5 // pred_check_branch
      %914 = sbr.rel (%p912) target = $region140
    $region139: #{cifar_resnet_forward.1} parent=5 // pred_region
      // Predicated region
      $region141: #{cifar_resnet_forward.1} parent=139 // pred_check
        %p915 = pneg %p94
      $region142: #{cifar_resnet_forward.1} parent=139 // pred_check_branch
        %917 = sbr.rel (%p915) target = $region144
      $region143: #{cifar_resnet_forward.1} parent=139 // pred_region
        %p918 = scmp.lt.s32.totalorder %s74, 1
        %s919 = scalar_select %p918, %s74, 1
        %s920 = smul.addr %s919, 8
        %s921 = smul.addr %s920, 8
        %s922 = scalar_lea.vmem %s1, %s921
      $region144: #{cifar_resnet_forward.1} parent=139 // pred_fallthru
        _
    $region140: #{cifar_resnet_forward.1} parent=5 // pred_fallthru
      _
    %p923 = scmp.le.s32.totalorder 1, %s74
    %p924 = scmp.lt.s32.totalorder %s74, 3
    %p925 = pnand %p923, %p924
    %p926 = pneg %p925
    // Predicated region
    $region145: #{cifar_resnet_forward.1} parent=5 // pred_check
      _
    $region146: #{cifar_resnet_forward.1} parent=5 // pred_check_branch
      %928 = sbr.rel (%p925) target = $region148
    $region147: #{cifar_resnet_forward.1} parent=5 // pred_region
      %s929 = ssub.s32 %s74, 1
      %p930 = scmp.lt.s32.totalorder %s79, 1
      %s931 = scalar_select %p930, %s79, 1
      %s932 = smul.addr %s931, 8
      %s933 = smul.addr %s932, 8
      %s934 = scalar_lea.vmem %s1, %s933
      %p935 = pneg %p100
      %p936 = pneg %p97
      %p937 = pneg %p121
      %p938 = pneg %p118
      %p939 = pneg %p142
      %p940 = pneg %p139
      %p941 = pneg %p163
      %p942 = pneg %p160
      %p943 = pneg %p184
      %p944 = pneg %p181
      %p945 = pneg %p205
      %p946 = pneg %p202
      %p947 = pneg %p226
      %p948 = pneg %p223
      %p949 = pneg %p247
      %p950 = pneg %p244
      %p951 = pneg %p268
      %p952 = pneg %p265
      %p953 = pneg %p289
      %p954 = pneg %p286
      %p955 = pneg %p310
      %p956 = pneg %p307
      %p957 = pneg %p331
      %p958 = pneg %p328
      %p959 = pneg %p352
      %p960 = pneg %p349
      %p961 = pneg %p373
      %p962 = pneg %p370
      %p963 = pneg %p394
      %p964 = pneg %p391
      %p965 = pneg %p415
      %p966 = pneg %p412
      %p967 = pneg %p436
      %p968 = pneg %p433
      %p969 = pneg %p457
      %p970 = pneg %p454
      %p971 = pneg %p478
      %p972 = pneg %p475
      %p973 = pneg %p499
      %p974 = pneg %p496
      %p975 = pneg %p520
      %p976 = pneg %p517
      %p977 = pneg %p541
      %p978 = pneg %p538
      %p979 = pneg %p562
      %p980 = pneg %p559
      %p981 = pneg %p583
      %p982 = pneg %p580
      %p983 = pneg %p604
      %p984 = pneg %p601
      %p985 = pneg %p625
      %p986 = pneg %p622
      %p987 = pneg %p646
      %p988 = pneg %p643
      %p989 = pneg %p667
      %p990 = pneg %p664
      %p991 = pneg %p688
      %p992 = pneg %p685
      %p993 = pneg %p709
      %p994 = pneg %p706
      %p995 = pneg %p730
      %p996 = pneg %p727
      %p997 = pneg %p751
      %p998 = pneg %p748
      %p999 = pneg %p777
      %p1000 = pneg %p774
      %p1001 = scmp.lt.s32.totalorder %s79, 1
      %s1002 = scalar_select %p1001, %s79, 1
      %s1003 = smul.addr %s1002, 4
      %s1004 = smul.addr %s1003, 8
      %s1005 = scalar_lea.vmem %s65, %s1004
      %p1006 = pneg %p803
      %p1007 = pneg %p800
      %p1008 = scmp.lt.s32.totalorder %s79, 1
      %s1009 = scalar_select %p1008, %s79, 1
      %s1010 = smul.addr %s1009, 4
      %s1011 = smul.addr %s1010, 8
      %s1012 = scalar_lea.vmem %s67, %s1011
      %p1013 = scmp.lt.s32.totalorder %s79, 1
      %s1014 = scalar_select %p1013, %s79, 1
      %s1015 = smul.addr %s1014, 8
      %s1016 = smul.addr %s1015, 8
      %s1017 = scalar_lea.vmem %s1, %s1016
      %p1018 = scmp.lt.s32.totalorder %s79, 1
      %s1019 = scalar_select %p1018, %s79, 1
      %s1020 = smul.addr %s1019, 4
      %s1021 = smul.addr %s1020, 8
      %s1022 = scalar_lea.vmem %s65, %s1021
      %p1023 = scmp.lt.s32.totalorder %s79, 1
      %s1024 = scalar_select %p1023, %s79, 1
      %s1025 = smul.addr %s1024, 4
      %s1026 = smul.addr %s1025, 8
      %s1027 = scalar_lea.vmem %s67, %s1026
      %v1029 = vld [vmem:[%s59] sm:$0xff]
      %s1030 = scalar_lea.vmem %s59, 8
      %v1031 = vld [vmem:[%s1030] sm:$0xff]
      %s1032 = scalar_lea.vmem %s59, 16
      %v1033 = vld [vmem:[%s1032] sm:$0xff]
      %s1034 = scalar_lea.vmem %s59, 24
      %v1035 = vld [vmem:[%s1034] sm:$0xff]
      %s1036 = scalar_lea.vmem %s59, 40
      %v1037 = vld [vmem:[%s1036] sm:$0xff]
      %s1038 = scalar_lea.vmem %s59, 48
      %v1039 = vld [vmem:[%s1038] sm:$0xff]
      %s1040 = scalar_lea.vmem %s59, 56
      %v1041 = vld [vmem:[%s1040] sm:$0xff]
      %s1042 = scalar_lea.vmem %s59, 64
      %v1043 = vld [vmem:[%s1042] sm:$0xff]
      %v1044 = vld [vmem:[%s61] sm:$0x3]
      %s1045 = scalar_lea.vmem %s61, 2
      %v1046 = vld [vmem:[%s1045] sm:$0x3]
      %s1047 = scalar_lea.vmem %s61, 4
      %v1048 = vld [vmem:[%s1047] sm:$0x3]
      %s1049 = scalar_lea.vmem %s61, 6
      %v1050 = vld [vmem:[%s1049] sm:$0x3]
      %s1051 = scalar_lea.vmem %s61, 10
      %v1052 = vld [vmem:[%s1051] sm:$0x3]
      %s1053 = scalar_lea.vmem %s61, 12
      %v1054 = vld [vmem:[%s1053] sm:$0x3]
      %s1055 = scalar_lea.vmem %s61, 14
      %v1056 = vld [vmem:[%s1055] sm:$0x3]
      %s1057 = scalar_lea.vmem %s61, 16
      %v1058 = vld [vmem:[%s1057] sm:$0x3]
      %v1059 = vld [vmem:[%s63] sm:$0xff]
      %v1060 = vld [vmem:[%s63 + $0x8] sm:$0xff]
      %v1061 = vld [vmem:[%s63 + $0x10] sm:$0xff]
      %v1062 = vld [vmem:[%s63 + $0x18] sm:$0xff]
      %v1063 = vld [vmem:[%s63 + $0x20] sm:$0xff]
      %v1064 = vld [vmem:[%s63 + $0x28] sm:$0xff]
      %v1065 = vld [vmem:[%s63 + $0x30] sm:$0xff]
      %v1066 = vld [vmem:[%s63 + $0x38] sm:$0xff]
      %s1067 = scalar_lea.vmem %s63, 64
      %v1068 = vld [vmem:[%s1067] sm:$0xff]
      %v1069 = vld [vmem:[%s1067 + $0x8] sm:$0xff]
      %v1070 = vld [vmem:[%s1067 + $0x10] sm:$0xff]
      %v1071 = vld [vmem:[%s1067 + $0x18] sm:$0xff]
      %v1072 = vld [vmem:[%s1067 + $0x20] sm:$0xff]
      %v1073 = vld [vmem:[%s1067 + $0x28] sm:$0xff]
      %v1074 = vld [vmem:[%s1067 + $0x30] sm:$0xff]
      %v1075 = vld [vmem:[%s1067 + $0x38] sm:$0xff]
      %s1076 = scalar_lea.vmem %s63, 128
      %v1077 = vld [vmem:[%s1076] sm:$0xff]
      %v1078 = vld [vmem:[%s1076 + $0x8] sm:$0xff]
      %v1079 = vld [vmem:[%s1076 + $0x10] sm:$0xff]
      %v1080 = vld [vmem:[%s1076 + $0x18] sm:$0xff]
      %v1081 = vld [vmem:[%s1076 + $0x20] sm:$0xff]
      %v1082 = vld [vmem:[%s1076 + $0x28] sm:$0xff]
      %v1083 = vld [vmem:[%s1076 + $0x30] sm:$0xff]
      %v1084 = vld [vmem:[%s1076 + $0x38] sm:$0xff]
      %s1085 = scalar_lea.vmem %s63, 192
      %v1086 = vld [vmem:[%s1085] sm:$0xff]
      %v1087 = vld [vmem:[%s1085 + $0x8] sm:$0xff]
      %v1088 = vld [vmem:[%s1085 + $0x10] sm:$0xff]
      %v1089 = vld [vmem:[%s1085 + $0x18] sm:$0xff]
      %v1090 = vld [vmem:[%s1085 + $0x20] sm:$0xff]
      %v1091 = vld [vmem:[%s1085 + $0x28] sm:$0xff]
      %v1092 = vld [vmem:[%s1085 + $0x30] sm:$0xff]
      %v1093 = vld [vmem:[%s1085 + $0x38] sm:$0xff]
      %s1094 = scalar_lea.vmem %s63, 320
      %v1095 = vld [vmem:[%s1094] sm:$0xff]
      %v1096 = vld [vmem:[%s1094 + $0x8] sm:$0xff]
      %v1097 = vld [vmem:[%s1094 + $0x10] sm:$0xff]
      %v1098 = vld [vmem:[%s1094 + $0x18] sm:$0xff]
      %v1099 = vld [vmem:[%s1094 + $0x20] sm:$0xff]
      %v1100 = vld [vmem:[%s1094 + $0x28] sm:$0xff]
      %v1101 = vld [vmem:[%s1094 + $0x30] sm:$0xff]
      %v1102 = vld [vmem:[%s1094 + $0x38] sm:$0xff]
      %s1103 = scalar_lea.vmem %s63, 384
      %v1104 = vld [vmem:[%s1103] sm:$0xff]
      %v1105 = vld [vmem:[%s1103 + $0x8] sm:$0xff]
      %v1106 = vld [vmem:[%s1103 + $0x10] sm:$0xff]
      %v1107 = vld [vmem:[%s1103 + $0x18] sm:$0xff]
      %v1108 = vld [vmem:[%s1103 + $0x20] sm:$0xff]
      %v1109 = vld [vmem:[%s1103 + $0x28] sm:$0xff]
      %v1110 = vld [vmem:[%s1103 + $0x30] sm:$0xff]
      %v1111 = vld [vmem:[%s1103 + $0x38] sm:$0xff]
      %s1112 = scalar_lea.vmem %s63, 448
      %v1113 = vld [vmem:[%s1112] sm:$0xff]
      %v1114 = vld [vmem:[%s1112 + $0x8] sm:$0xff]
      %v1115 = vld [vmem:[%s1112 + $0x10] sm:$0xff]
      %v1116 = vld [vmem:[%s1112 + $0x18] sm:$0xff]
      %v1117 = vld [vmem:[%s1112 + $0x20] sm:$0xff]
      %v1118 = vld [vmem:[%s1112 + $0x28] sm:$0xff]
      %v1119 = vld [vmem:[%s1112 + $0x30] sm:$0xff]
      %v1120 = vld [vmem:[%s1112 + $0x38] sm:$0xff]
      %s1121 = scalar_lea.vmem %s63, 512
      %v1122 = vld [vmem:[%s1121] sm:$0xff]
      %v1123 = vld [vmem:[%s1121 + $0x8] sm:$0xff]
      %v1124 = vld [vmem:[%s1121 + $0x10] sm:$0xff]
      %v1125 = vld [vmem:[%s1121 + $0x18] sm:$0xff]
      %v1126 = vld [vmem:[%s1121 + $0x20] sm:$0xff]
      %v1127 = vld [vmem:[%s1121 + $0x28] sm:$0xff]
      %v1128 = vld [vmem:[%s1121 + $0x30] sm:$0xff]
      %v1129 = vld [vmem:[%s1121 + $0x38] sm:$0xff]
      %v1130 = vld [vmem:[%s1017] sm:$0xff]
      %v1131 = vld [vmem:[%s1017 + $0x8] sm:$0xff]
      %v1132 = vld [vmem:[%s1017 + $0x10] sm:$0xff]
      %v1133 = vld [vmem:[%s1017 + $0x18] sm:$0xff]
      %v1134 = vld [vmem:[%s1017 + $0x20] sm:$0xff]
      %v1135 = vld [vmem:[%s1017 + $0x28] sm:$0xff]
      %v1136 = vld [vmem:[%s1017 + $0x30] sm:$0xff]
      %v1137 = vld [vmem:[%s1017 + $0x38] sm:$0xff]
      %1138 = vrot.lane.b32.xlu0 %v1130, 33
      %v1139 = vpop.permute.xlu0 %1138
      %1140 = vrot.lane.b32.xlu0 %v1131, 33
      %v1141 = vpop.permute.xlu0 %1140
      %1142 = vrot.lane.b32.xlu0 %v1132, 33
      %v1143 = vpop.permute.xlu0 %1142
      %1144 = vrot.lane.b32.xlu0 %v1133, 33
      %v1145 = vpop.permute.xlu0 %1144
      %1146 = vrot.lane.b32.xlu0 %v1134, 33
      %v1147 = vpop.permute.xlu0 %1146
      %1148 = vrot.lane.b32.xlu0 %v1135, 33
      %v1149 = vpop.permute.xlu0 %1148
      %1150 = vrot.lane.b32.xlu0 %v1136, 33
      %v1151 = vpop.permute.xlu0 %1150
      %1152 = vrot.lane.b32.xlu0 %v1137, 33
      %v1153 = vpop.permute.xlu0 %1152
      %v1154 = vlaneseq
      %v1155 = vand.u32 %v1154, 127
      %vm1156 = vcmp.lt.s32.totalorder %v1155, 33
      %v1157 = vsel %vm1156, %v1151, %v1153
      %v1158 = vsel %vm1156, %v1149, %v1151
      %v1159 = vsel %vm1156, %v1147, %v1149
      %v1160 = vsel %vm1156, %v1145, %v1147
      %v1161 = vsel %vm1156, %v1143, %v1145
      %v1162 = vsel %vm1156, %v1141, %v1143
      %v1163 = vsel %vm1156, %v1139, %v1141
      %v1164 = vsel %vm1156, %v1153, %v1139
      %v1166 = vperm.slane %v1029, 0
      %v1167 = vperm.slane %v1029, 1
      %v1168 = vperm.slane %v1029, 2
      %v1169 = vperm.slane %v1029, 3
      %v1170 = vperm.slane %v1029, 4
      %v1171 = vperm.slane %v1029, 5
      %v1172 = vperm.slane %v1029, 6
      %v1173 = vperm.slane %v1029, 7
      %v1182 = vmul.f32 %v1164, %v1166
      %v1183 = vmul.f32 %v1163, %v1167
      %v1184 = vmul.f32 %v1162, %v1168
      %v1185 = vmul.f32 %v1161, %v1169
      %v1186 = vmul.f32 %v1160, %v1170
      %v1187 = vmul.f32 %v1159, %v1171
      %v1188 = vmul.f32 %v1158, %v1172
      %v1189 = vmul.f32 %v1157, %v1173
      %1190 = vrot.lane.b32.xlu0 %v1130, 32
      %v1191 = vpop.permute.xlu0 %1190
      %1192 = vrot.lane.b32.xlu0 %v1131, 32
      %v1193 = vpop.permute.xlu0 %1192
      %1194 = vrot.lane.b32.xlu0 %v1132, 32
      %v1195 = vpop.permute.xlu0 %1194
      %1196 = vrot.lane.b32.xlu0 %v1133, 32
      %v1197 = vpop.permute.xlu0 %1196
      %1198 = vrot.lane.b32.xlu0 %v1134, 32
      %v1199 = vpop.permute.xlu0 %1198
      %1200 = vrot.lane.b32.xlu0 %v1135, 32
      %v1201 = vpop.permute.xlu0 %1200
      %1202 = vrot.lane.b32.xlu0 %v1136, 32
      %v1203 = vpop.permute.xlu0 %1202
      %1204 = vrot.lane.b32.xlu0 %v1137, 32
      %v1205 = vpop.permute.xlu0 %1204
      %vm1206 = vcmp.lt.s32.totalorder %v1155, 32
      %v1207 = vsel %vm1206, %v1203, %v1205
      %v1208 = vsel %vm1206, %v1201, %v1203
      %v1209 = vsel %vm1206, %v1199, %v1201
      %v1210 = vsel %vm1206, %v1197, %v1199
      %v1211 = vsel %vm1206, %v1195, %v1197
      %v1212 = vsel %vm1206, %v1193, %v1195
      %v1213 = vsel %vm1206, %v1191, %v1193
      %v1214 = vsel %vm1206, %v1205, %v1191
      %v1216 = vperm.slane %v1031, 0
      %v1217 = vperm.slane %v1031, 1
      %v1218 = vperm.slane %v1031, 2
      %v1219 = vperm.slane %v1031, 3
      %v1220 = vperm.slane %v1031, 4
      %v1221 = vperm.slane %v1031, 5
      %v1222 = vperm.slane %v1031, 6
      %v1223 = vperm.slane %v1031, 7
      %v1232 = vmul.f32 %v1214, %v1216
      %v1233 = vmul.f32 %v1213, %v1217
      %v1234 = vmul.f32 %v1212, %v1218
      %v1235 = vmul.f32 %v1211, %v1219
      %v1236 = vmul.f32 %v1210, %v1220
      %v1237 = vmul.f32 %v1209, %v1221
      %v1238 = vmul.f32 %v1208, %v1222
      %v1239 = vmul.f32 %v1207, %v1223
      %1240 = vrot.lane.b32.xlu0 %v1130, 31
      %v1241 = vpop.permute.xlu0 %1240
      %1242 = vrot.lane.b32.xlu0 %v1131, 31
      %v1243 = vpop.permute.xlu0 %1242
      %1244 = vrot.lane.b32.xlu0 %v1132, 31
      %v1245 = vpop.permute.xlu0 %1244
      %1246 = vrot.lane.b32.xlu0 %v1133, 31
      %v1247 = vpop.permute.xlu0 %1246
      %1248 = vrot.lane.b32.xlu0 %v1134, 31
      %v1249 = vpop.permute.xlu0 %1248
      %1250 = vrot.lane.b32.xlu0 %v1135, 31
      %v1251 = vpop.permute.xlu0 %1250
      %1252 = vrot.lane.b32.xlu0 %v1136, 31
      %v1253 = vpop.permute.xlu0 %1252
      %1254 = vrot.lane.b32.xlu0 %v1137, 31
      %v1255 = vpop.permute.xlu0 %1254
      %vm1256 = vcmp.lt.s32.totalorder %v1155, 31
      %v1257 = vsel %vm1256, %v1253, %v1255
      %v1258 = vsel %vm1256, %v1251, %v1253
      %v1259 = vsel %vm1256, %v1249, %v1251
      %v1260 = vsel %vm1256, %v1247, %v1249
      %v1261 = vsel %vm1256, %v1245, %v1247
      %v1262 = vsel %vm1256, %v1243, %v1245
      %v1263 = vsel %vm1256, %v1241, %v1243
      %v1264 = vsel %vm1256, %v1255, %v1241
      %v1266 = vperm.slane %v1033, 0
      %v1267 = vperm.slane %v1033, 1
      %v1268 = vperm.slane %v1033, 2
      %v1269 = vperm.slane %v1033, 3
      %v1270 = vperm.slane %v1033, 4
      %v1271 = vperm.slane %v1033, 5
      %v1272 = vperm.slane %v1033, 6
      %v1273 = vperm.slane %v1033, 7
      %v1282 = vmul.f32 %v1264, %v1266
      %v1283 = vmul.f32 %v1263, %v1267
      %v1284 = vmul.f32 %v1262, %v1268
      %v1285 = vmul.f32 %v1261, %v1269
      %v1286 = vmul.f32 %v1260, %v1270
      %v1287 = vmul.f32 %v1259, %v1271
      %v1288 = vmul.f32 %v1258, %v1272
      %v1289 = vmul.f32 %v1257, %v1273
      %1290 = vrot.lane.b32.xlu0 %v1130, 1
      %v1291 = vpop.permute.xlu0 %1290
      %1292 = vrot.lane.b32.xlu0 %v1131, 1
      %v1293 = vpop.permute.xlu0 %1292
      %1294 = vrot.lane.b32.xlu0 %v1132, 1
      %v1295 = vpop.permute.xlu0 %1294
      %1296 = vrot.lane.b32.xlu0 %v1133, 1
      %v1297 = vpop.permute.xlu0 %1296
      %1298 = vrot.lane.b32.xlu0 %v1134, 1
      %v1299 = vpop.permute.xlu0 %1298
      %1300 = vrot.lane.b32.xlu0 %v1135, 1
      %v1301 = vpop.permute.xlu0 %1300
      %1302 = vrot.lane.b32.xlu0 %v1136, 1
      %v1303 = vpop.permute.xlu0 %1302
      %1304 = vrot.lane.b32.xlu0 %v1137, 1
      %v1305 = vpop.permute.xlu0 %1304
      %vm1306 = vcmp.lt.s32.totalorder %v1155, 1
      %v1307 = vsel %vm1306, %v1303, %v1305
      %v1308 = vsel %vm1306, %v1301, %v1303
      %v1309 = vsel %vm1306, %v1299, %v1301
      %v1310 = vsel %vm1306, %v1297, %v1299
      %v1311 = vsel %vm1306, %v1295, %v1297
      %v1312 = vsel %vm1306, %v1293, %v1295
      %v1313 = vsel %vm1306, %v1291, %v1293
      %v1314 = vsel %vm1306, %v1305, %v1291
      %v1316 = vperm.slane %v1035, 0
      %v1317 = vperm.slane %v1035, 1
      %v1318 = vperm.slane %v1035, 2
      %v1319 = vperm.slane %v1035, 3
      %v1320 = vperm.slane %v1035, 4
      %v1321 = vperm.slane %v1035, 5
      %v1322 = vperm.slane %v1035, 6
      %v1323 = vperm.slane %v1035, 7
      %v1332 = vmul.f32 %v1314, %v1316
      %v1333 = vmul.f32 %v1313, %v1317
      %v1334 = vmul.f32 %v1312, %v1318
      %v1335 = vmul.f32 %v1311, %v1319
      %v1336 = vmul.f32 %v1310, %v1320
      %v1337 = vmul.f32 %v1309, %v1321
      %v1338 = vmul.f32 %v1308, %v1322
      %v1339 = vmul.f32 %v1307, %v1323
      %1340 = vrot.lane.b32.xlu0 %v1130, 127
      %v1341 = vpop.permute.xlu0 %1340
      %1342 = vrot.lane.b32.xlu0 %v1131, 127
      %v1343 = vpop.permute.xlu0 %1342
      %1344 = vrot.lane.b32.xlu0 %v1132, 127
      %v1345 = vpop.permute.xlu0 %1344
      %1346 = vrot.lane.b32.xlu0 %v1133, 127
      %v1347 = vpop.permute.xlu0 %1346
      %1348 = vrot.lane.b32.xlu0 %v1134, 127
      %v1349 = vpop.permute.xlu0 %1348
      %1350 = vrot.lane.b32.xlu0 %v1135, 127
      %v1351 = vpop.permute.xlu0 %1350
      %1352 = vrot.lane.b32.xlu0 %v1136, 127
      %v1353 = vpop.permute.xlu0 %1352
      %1354 = vrot.lane.b32.xlu0 %v1137, 127
      %v1355 = vpop.permute.xlu0 %1354
      %vm1356 = vcmp.lt.s32.totalorder %v1155, 127
      %v1357 = vsel %vm1356, %v1353, %v1355
      %v1358 = vsel %vm1356, %v1351, %v1353
      %v1359 = vsel %vm1356, %v1349, %v1351
      %v1360 = vsel %vm1356, %v1347, %v1349
      %v1361 = vsel %vm1356, %v1345, %v1347
      %v1362 = vsel %vm1356, %v1343, %v1345
      %v1363 = vsel %vm1356, %v1341, %v1343
      %v1364 = vsel %vm1356, %v1355, %v1341
      %v1366 = vperm.slane %v1037, 0
      %v1367 = vperm.slane %v1037, 1
      %v1368 = vperm.slane %v1037, 2
      %v1369 = vperm.slane %v1037, 3
      %v1370 = vperm.slane %v1037, 4
      %v1371 = vperm.slane %v1037, 5
      %v1372 = vperm.slane %v1037, 6
      %v1373 = vperm.slane %v1037, 7
      %v1382 = vmul.f32 %v1363, %v1366
      %v1383 = vmul.f32 %v1362, %v1367
      %v1384 = vmul.f32 %v1361, %v1368
      %v1385 = vmul.f32 %v1360, %v1369
      %v1386 = vmul.f32 %v1359, %v1370
      %v1387 = vmul.f32 %v1358, %v1371
      %v1388 = vmul.f32 %v1357, %v1372
      %v1389 = vmul.f32 %v1364, %v1373
      %1390 = vrot.lane.b32.xlu0 %v1130, 97
      %v1391 = vpop.permute.xlu0 %1390
      %1392 = vrot.lane.b32.xlu0 %v1131, 97
      %v1393 = vpop.permute.xlu0 %1392
      %1394 = vrot.lane.b32.xlu0 %v1132, 97
      %v1395 = vpop.permute.xlu0 %1394
      %1396 = vrot.lane.b32.xlu0 %v1133, 97
      %v1397 = vpop.permute.xlu0 %1396
      %1398 = vrot.lane.b32.xlu0 %v1134, 97
      %v1399 = vpop.permute.xlu0 %1398
      %1400 = vrot.lane.b32.xlu0 %v1135, 97
      %v1401 = vpop.permute.xlu0 %1400
      %1402 = vrot.lane.b32.xlu0 %v1136, 97
      %v1403 = vpop.permute.xlu0 %1402
      %1404 = vrot.lane.b32.xlu0 %v1137, 97
      %v1405 = vpop.permute.xlu0 %1404
      %vm1406 = vcmp.lt.s32.totalorder %v1155, 97
      %v1407 = vsel %vm1406, %v1403, %v1405
      %v1408 = vsel %vm1406, %v1401, %v1403
      %v1409 = vsel %vm1406, %v1399, %v1401
      %v1410 = vsel %vm1406, %v1397, %v1399
      %v1411 = vsel %vm1406, %v1395, %v1397
      %v1412 = vsel %vm1406, %v1393, %v1395
      %v1413 = vsel %vm1406, %v1391, %v1393
      %v1414 = vsel %vm1406, %v1405, %v1391
      %v1416 = vperm.slane %v1039, 0
      %v1417 = vperm.slane %v1039, 1
      %v1418 = vperm.slane %v1039, 2
      %v1419 = vperm.slane %v1039, 3
      %v1420 = vperm.slane %v1039, 4
      %v1421 = vperm.slane %v1039, 5
      %v1422 = vperm.slane %v1039, 6
      %v1423 = vperm.slane %v1039, 7
      %v1432 = vmul.f32 %v1413, %v1416
      %v1433 = vmul.f32 %v1412, %v1417
      %v1434 = vmul.f32 %v1411, %v1418
      %v1435 = vmul.f32 %v1410, %v1419
      %v1436 = vmul.f32 %v1409, %v1420
      %v1437 = vmul.f32 %v1408, %v1421
      %v1438 = vmul.f32 %v1407, %v1422
      %v1439 = vmul.f32 %v1414, %v1423
      %1440 = vrot.lane.b32.xlu0 %v1130, 96
      %v1441 = vpop.permute.xlu0 %1440
      %1442 = vrot.lane.b32.xlu0 %v1131, 96
      %v1443 = vpop.permute.xlu0 %1442
      %1444 = vrot.lane.b32.xlu0 %v1132, 96
      %v1445 = vpop.permute.xlu0 %1444
      %1446 = vrot.lane.b32.xlu0 %v1133, 96
      %v1447 = vpop.permute.xlu0 %1446
      %1448 = vrot.lane.b32.xlu0 %v1134, 96
      %v1449 = vpop.permute.xlu0 %1448
      %1450 = vrot.lane.b32.xlu0 %v1135, 96
      %v1451 = vpop.permute.xlu0 %1450
      %1452 = vrot.lane.b32.xlu0 %v1136, 96
      %v1453 = vpop.permute.xlu0 %1452
      %1454 = vrot.lane.b32.xlu0 %v1137, 96
      %v1455 = vpop.permute.xlu0 %1454
      %vm1456 = vcmp.lt.s32.totalorder %v1155, 96
      %v1457 = vsel %vm1456, %v1453, %v1455
      %v1458 = vsel %vm1456, %v1451, %v1453
      %v1459 = vsel %vm1456, %v1449, %v1451
      %v1460 = vsel %vm1456, %v1447, %v1449
      %v1461 = vsel %vm1456, %v1445, %v1447
      %v1462 = vsel %vm1456, %v1443, %v1445
      %v1463 = vsel %vm1456, %v1441, %v1443
      %v1464 = vsel %vm1456, %v1455, %v1441
      %v1466 = vperm.slane %v1041, 0
      %v1467 = vperm.slane %v1041, 1
      %v1468 = vperm.slane %v1041, 2
      %v1469 = vperm.slane %v1041, 3
      %v1470 = vperm.slane %v1041, 4
      %v1471 = vperm.slane %v1041, 5
      %v1472 = vperm.slane %v1041, 6
      %v1473 = vperm.slane %v1041, 7
      %v1482 = vmul.f32 %v1463, %v1466
      %v1483 = vmul.f32 %v1462, %v1467
      %v1484 = vmul.f32 %v1461, %v1468
      %v1485 = vmul.f32 %v1460, %v1469
      %v1486 = vmul.f32 %v1459, %v1470
      %v1487 = vmul.f32 %v1458, %v1471
      %v1488 = vmul.f32 %v1457, %v1472
      %v1489 = vmul.f32 %v1464, %v1473
      %1490 = vrot.lane.b32.xlu0 %v1130, 95
      %v1491 = vpop.permute.xlu0 %1490
      %1492 = vrot.lane.b32.xlu0 %v1131, 95
      %v1493 = vpop.permute.xlu0 %1492
      %1494 = vrot.lane.b32.xlu0 %v1132, 95
      %v1495 = vpop.permute.xlu0 %1494
      %1496 = vrot.lane.b32.xlu0 %v1133, 95
      %v1497 = vpop.permute.xlu0 %1496
      %1498 = vrot.lane.b32.xlu0 %v1134, 95
      %v1499 = vpop.permute.xlu0 %1498
      %1500 = vrot.lane.b32.xlu0 %v1135, 95
      %v1501 = vpop.permute.xlu0 %1500
      %1502 = vrot.lane.b32.xlu0 %v1136, 95
      %v1503 = vpop.permute.xlu0 %1502
      %1504 = vrot.lane.b32.xlu0 %v1137, 95
      %v1505 = vpop.permute.xlu0 %1504
      %vm1506 = vcmp.lt.s32.totalorder %v1155, 95
      %v1507 = vsel %vm1506, %v1503, %v1505
      %v1508 = vsel %vm1506, %v1501, %v1503
      %v1509 = vsel %vm1506, %v1499, %v1501
      %v1510 = vsel %vm1506, %v1497, %v1499
      %v1511 = vsel %vm1506, %v1495, %v1497
      %v1512 = vsel %vm1506, %v1493, %v1495
      %v1513 = vsel %vm1506, %v1491, %v1493
      %v1514 = vsel %vm1506, %v1505, %v1491
      %v1516 = vperm.slane %v1043, 0
      %v1517 = vperm.slane %v1043, 1
      %v1518 = vperm.slane %v1043, 2
      %v1519 = vperm.slane %v1043, 3
      %v1520 = vperm.slane %v1043, 4
      %v1521 = vperm.slane %v1043, 5
      %v1522 = vperm.slane %v1043, 6
      %v1523 = vperm.slane %v1043, 7
      %v1532 = vmul.f32 %v1513, %v1516
      %v1533 = vmul.f32 %v1512, %v1517
      %v1534 = vmul.f32 %v1511, %v1518
      %v1535 = vmul.f32 %v1510, %v1519
      %v1536 = vmul.f32 %v1509, %v1520
      %v1537 = vmul.f32 %v1508, %v1521
      %v1538 = vmul.f32 %v1507, %v1522
      %v1539 = vmul.f32 %v1514, %v1523
      %v1540 = vpack.c.bf16 %v1232, %v1182
      %v1541 = vpack.c.bf16 %v1233, %v1183
      %v1542 = vpack.c.bf16 %v1234, %v1184
      %v1543 = vpack.c.bf16 %v1235, %v1185
      %v1544 = vpack.c.bf16 %v1236, %v1186
      %v1545 = vpack.c.bf16 %v1237, %v1187
      %v1546 = vpack.c.bf16 %v1238, %v1188
      %v1547 = vpack.c.bf16 %v1239, %v1189
      %v1548 = vpack.c.bf16 %v1332, %v1282
      %v1549 = vpack.c.bf16 %v1333, %v1283
      %v1550 = vpack.c.bf16 %v1334, %v1284
      %v1551 = vpack.c.bf16 %v1335, %v1285
      %v1552 = vpack.c.bf16 %v1336, %v1286
      %v1553 = vpack.c.bf16 %v1337, %v1287
      %v1554 = vpack.c.bf16 %v1338, %v1288
      %v1555 = vpack.c.bf16 %v1339, %v1289
      %v1556 = vpack.c.bf16 %v1382, %v1130
      %v1557 = vpack.c.bf16 %v1383, %v1131
      %v1558 = vpack.c.bf16 %v1384, %v1132
      %v1559 = vpack.c.bf16 %v1385, %v1133
      %v1560 = vpack.c.bf16 %v1386, %v1134
      %v1561 = vpack.c.bf16 %v1387, %v1135
      %v1562 = vpack.c.bf16 %v1388, %v1136
      %v1563 = vpack.c.bf16 %v1389, %v1137
      %v1564 = vpack.c.bf16 %v1482, %v1432
      %v1565 = vpack.c.bf16 %v1483, %v1433
      %v1566 = vpack.c.bf16 %v1484, %v1434
      %v1567 = vpack.c.bf16 %v1485, %v1435
      %v1568 = vpack.c.bf16 %v1486, %v1436
      %v1569 = vpack.c.bf16 %v1487, %v1437
      %v1570 = vpack.c.bf16 %v1488, %v1438
      %v1571 = vpack.c.bf16 %v1489, %v1439
      %v1572 = vpack.c.bf16 %v1532, %v1532
      %v1573 = vpack.c.bf16 %v1533, %v1533
      %v1574 = vpack.c.bf16 %v1534, %v1534
      %v1575 = vpack.c.bf16 %v1535, %v1535
      %v1576 = vpack.c.bf16 %v1536, %v1536
      %v1577 = vpack.c.bf16 %v1537, %v1537
      %v1578 = vpack.c.bf16 %v1538, %v1538
      %v1579 = vpack.c.bf16 %v1539, %v1539
      %v1580 = vld [vmem:[%s3] sm:$0xf]
      %v1581 = vld [vmem:[%s5] sm:$0xff]
      %1583 = vset.pattern.permute.xlu0 0
      %1584 = vperm.xlu0 %1583, %v1581
      %v1585 = vpop.permute.xlu0 %1584
      %vm1587 = vcmask 588800
      %v1589 = vsel %vm1587, %v1580, 0
      %vm1591 = vcmask 1043456
      %v1593 = vsel %vm1591, %v1572, 0
      %v1596 = vsel %vm1591, %v1573, 0
      %v1599 = vsel %vm1591, %v1574, 0
      %v1602 = vsel %vm1591, %v1575, 0
      %v1605 = vsel %vm1591, %v1576, 0
      %v1608 = vsel %vm1591, %v1577, 0
      %v1611 = vsel %vm1591, %v1578, 0
      %v1614 = vsel %vm1591, %v1579, 0
      %1616 = vmatpush.bf16.msra.mxu0 0
      %1617 = vmatpush.bf16.msra.mxu0 0
      %1618 = vmatpush.bf16.msra.mxu0 0
      %1619 = vmatpush.bf16.msra.mxu0 %v1593
      %1620 = vmatpush.bf16.msra.mxu0 %v1564
      %1621 = vmatpush.bf16.msra.mxu0 %v1556
      %1622 = vmatpush.bf16.msra.mxu0 %v1548
      %1623 = vmatpush.bf16.msra.mxu0 %v1540
      %1624 = vmatmul.bf16.gmra.mxu0 %v1589
      %v1625 = vpop.f32.mrf.mxu0
      %v1626 = vadd.f32 %v1585, %v1625
      %v1627 = vpop.f32.mrf.mxu0
      %1628 = vdwg.mxu0
      %1629 = vmatpush.bf16.msra.mxu0 0
      %1630 = vmatpush.bf16.msra.mxu0 0
      %1631 = vmatpush.bf16.msra.mxu0 0
      %1632 = vmatpush.bf16.msra.mxu0 %v1596
      %1633 = vmatpush.bf16.msra.mxu0 %v1565
      %1634 = vmatpush.bf16.msra.mxu0 %v1557
      %1635 = vmatpush.bf16.msra.mxu0 %v1549
      %1636 = vmatpush.bf16.msra.mxu0 %v1541
      %1637 = vmatmul.bf16.gmra.mxu0 %v1589
      %v1638 = vpop.f32.mrf.mxu0
      %v1639 = vadd.f32 %v1585, %v1638
      %v1640 = vpop.f32.mrf.mxu0
      %1641 = vdwg.mxu0
      %1642 = vmatpush.bf16.msra.mxu0 0
      %1643 = vmatpush.bf16.msra.mxu0 0
      %1644 = vmatpush.bf16.msra.mxu0 0
      %1645 = vmatpush.bf16.msra.mxu0 %v1599
      %1646 = vmatpush.bf16.msra.mxu0 %v1566
      %1647 = vmatpush.bf16.msra.mxu0 %v1558
      %1648 = vmatpush.bf16.msra.mxu0 %v1550
      %1649 = vmatpush.bf16.msra.mxu0 %v1542
      %1650 = vmatmul.bf16.gmra.mxu0 %v1589
      %v1651 = vpop.f32.mrf.mxu0
      %v1652 = vadd.f32 %v1585, %v1651
      %v1653 = vpop.f32.mrf.mxu0
      %1654 = vdwg.mxu0
      %1655 = vmatpush.bf16.msra.mxu0 0
      %1656 = vmatpush.bf16.msra.mxu0 0
      %1657 = vmatpush.bf16.msra.mxu0 0
      %1658 = vmatpush.bf16.msra.mxu0 %v1602
      %1659 = vmatpush.bf16.msra.mxu0 %v1567
      %1660 = vmatpush.bf16.msra.mxu0 %v1559
      %1661 = vmatpush.bf16.msra.mxu0 %v1551
      %1662 = vmatpush.bf16.msra.mxu0 %v1543
      %1663 = vmatmul.bf16.gmra.mxu0 %v1589
      %v1664 = vpop.f32.mrf.mxu0
      %v1665 = vadd.f32 %v1585, %v1664
      %v1666 = vpop.f32.mrf.mxu0
      %1667 = vdwg.mxu0
      %1668 = vmatpush.bf16.msra.mxu0 0
      %1669 = vmatpush.bf16.msra.mxu0 0
      %1670 = vmatpush.bf16.msra.mxu0 0
      %1671 = vmatpush.bf16.msra.mxu0 %v1605
      %1672 = vmatpush.bf16.msra.mxu0 %v1568
      %1673 = vmatpush.bf16.msra.mxu0 %v1560
      %1674 = vmatpush.bf16.msra.mxu0 %v1552
      %1675 = vmatpush.bf16.msra.mxu0 %v1544
      %1676 = vmatmul.bf16.gmra.mxu0 %v1589
      %v1677 = vpop.f32.mrf.mxu0
      %v1678 = vadd.f32 %v1585, %v1677
      %v1679 = vpop.f32.mrf.mxu0
      %1680 = vdwg.mxu0
      %1681 = vmatpush.bf16.msra.mxu0 0
      %1682 = vmatpush.bf16.msra.mxu0 0
      %1683 = vmatpush.bf16.msra.mxu0 0
      %1684 = vmatpush.bf16.msra.mxu0 %v1608
      %1685 = vmatpush.bf16.msra.mxu0 %v1569
      %1686 = vmatpush.bf16.msra.mxu0 %v1561
      %1687 = vmatpush.bf16.msra.mxu0 %v1553
      %1688 = vmatpush.bf16.msra.mxu0 %v1545
      %1689 = vmatmul.bf16.gmra.mxu0 %v1589
      %v1690 = vpop.f32.mrf.mxu0
      %v1691 = vadd.f32 %v1585, %v1690
      %v1692 = vpop.f32.mrf.mxu0
      %1693 = vdwg.mxu0
      %1694 = vmatpush.bf16.msra.mxu0 0
      %1695 = vmatpush.bf16.msra.mxu0 0
      %1696 = vmatpush.bf16.msra.mxu0 0
      %1697 = vmatpush.bf16.msra.mxu0 %v1611
      %1698 = vmatpush.bf16.msra.mxu0 %v1570
      %1699 = vmatpush.bf16.msra.mxu0 %v1562
      %1700 = vmatpush.bf16.msra.mxu0 %v1554
      %1701 = vmatpush.bf16.msra.mxu0 %v1546
      %1702 = vmatmul.bf16.gmra.mxu0 %v1589
      %v1703 = vpop.f32.mrf.mxu0
      %v1704 = vadd.f32 %v1585, %v1703
      %v1705 = vpop.f32.mrf.mxu0
      %1706 = vdwg.mxu0
      %1707 = vmatpush.bf16.msra.mxu0 0
      %1708 = vmatpush.bf16.msra.mxu0 0
      %1709 = vmatpush.bf16.msra.mxu0 0
      %1710 = vmatpush.bf16.msra.mxu0 %v1614
      %1711 = vmatpush.bf16.msra.mxu0 %v1571
      %1712 = vmatpush.bf16.msra.mxu0 %v1563
      %1713 = vmatpush.bf16.msra.mxu0 %v1555
      %1714 = vmatpush.bf16.msra.mxu0 %v1547
      %1715 = vmatmul.bf16.gmra.mxu0 %v1589
      %v1716 = vpop.f32.mrf.mxu0
      %v1717 = vadd.f32 %v1585, %v1716
      %v1718 = vpop.f32.mrf.mxu0
      %1719 = vdwg.mxu0
      %v1720 = vmax.f32 %v1626, 0.0
      %v1721 = vmax.f32 %v1639, 0.0
      %v1722 = vmax.f32 %v1652, 0.0
      %v1723 = vmax.f32 %v1665, 0.0
      %v1724 = vmax.f32 %v1678, 0.0
      %v1725 = vmax.f32 %v1691, 0.0
      %v1726 = vmax.f32 %v1704, 0.0
      %v1727 = vmax.f32 %v1717, 0.0
      %1728 = vrot.lane.b32.xlu0 %v1720, 33
      %v1729 = vpop.permute.xlu0 %1728
      %1730 = vrot.lane.b32.xlu0 %v1721, 33
      %v1731 = vpop.permute.xlu0 %1730
      %1732 = vrot.lane.b32.xlu0 %v1722, 33
      %v1733 = vpop.permute.xlu0 %1732
      %1734 = vrot.lane.b32.xlu0 %v1723, 33
      %v1735 = vpop.permute.xlu0 %1734
      %1736 = vrot.lane.b32.xlu0 %v1724, 33
      %v1737 = vpop.permute.xlu0 %1736
      %1738 = vrot.lane.b32.xlu0 %v1725, 33
      %v1739 = vpop.permute.xlu0 %1738
      %1740 = vrot.lane.b32.xlu0 %v1726, 33
      %v1741 = vpop.permute.xlu0 %1740
      %1742 = vrot.lane.b32.xlu0 %v1727, 33
      %v1743 = vpop.permute.xlu0 %1742
      %v1744 = vsel %vm1156, %v1741, %v1743
      %v1745 = vsel %vm1156, %v1739, %v1741
      %v1746 = vsel %vm1156, %v1737, %v1739
      %v1747 = vsel %vm1156, %v1735, %v1737
      %v1748 = vsel %vm1156, %v1733, %v1735
      %v1749 = vsel %vm1156, %v1731, %v1733
      %v1750 = vsel %vm1156, %v1729, %v1731
      %v1751 = vsel %vm1156, %v1743, %v1729
      %v1752 = vmul.f32 %v1751, %v1166
      %v1753 = vmul.f32 %v1750, %v1167
      %v1754 = vmul.f32 %v1749, %v1168
      %v1755 = vmul.f32 %v1748, %v1169
      %v1756 = vmul.f32 %v1747, %v1170
      %v1757 = vmul.f32 %v1746, %v1171
      %v1758 = vmul.f32 %v1745, %v1172
      %v1759 = vmul.f32 %v1744, %v1173
      %1760 = vrot.lane.b32.xlu0 %v1720, 32
      %v1761 = vpop.permute.xlu0 %1760
      %1762 = vrot.lane.b32.xlu0 %v1721, 32
      %v1763 = vpop.permute.xlu0 %1762
      %1764 = vrot.lane.b32.xlu0 %v1722, 32
      %v1765 = vpop.permute.xlu0 %1764
      %1766 = vrot.lane.b32.xlu0 %v1723, 32
      %v1767 = vpop.permute.xlu0 %1766
      %1768 = vrot.lane.b32.xlu0 %v1724, 32
      %v1769 = vpop.permute.xlu0 %1768
      %1770 = vrot.lane.b32.xlu0 %v1725, 32
      %v1771 = vpop.permute.xlu0 %1770
      %1772 = vrot.lane.b32.xlu0 %v1726, 32
      %v1773 = vpop.permute.xlu0 %1772
      %1774 = vrot.lane.b32.xlu0 %v1727, 32
      %v1775 = vpop.permute.xlu0 %1774
      %v1776 = vsel %vm1206, %v1773, %v1775
      %v1777 = vsel %vm1206, %v1771, %v1773
      %v1778 = vsel %vm1206, %v1769, %v1771
      %v1779 = vsel %vm1206, %v1767, %v1769
      %v1780 = vsel %vm1206, %v1765, %v1767
      %v1781 = vsel %vm1206, %v1763, %v1765
      %v1782 = vsel %vm1206, %v1761, %v1763
      %v1783 = vsel %vm1206, %v1775, %v1761
      %v1784 = vmul.f32 %v1783, %v1216
      %v1785 = vmul.f32 %v1782, %v1217
      %v1786 = vmul.f32 %v1781, %v1218
      %v1787 = vmul.f32 %v1780, %v1219
      %v1788 = vmul.f32 %v1779, %v1220
      %v1789 = vmul.f32 %v1778, %v1221
      %v1790 = vmul.f32 %v1777, %v1222
      %v1791 = vmul.f32 %v1776, %v1223
      %1792 = vrot.lane.b32.xlu0 %v1720, 31
      %v1793 = vpop.permute.xlu0 %1792
      %1794 = vrot.lane.b32.xlu0 %v1721, 31
      %v1795 = vpop.permute.xlu0 %1794
      %1796 = vrot.lane.b32.xlu0 %v1722, 31
      %v1797 = vpop.permute.xlu0 %1796
      %1798 = vrot.lane.b32.xlu0 %v1723, 31
      %v1799 = vpop.permute.xlu0 %1798
      %1800 = vrot.lane.b32.xlu0 %v1724, 31
      %v1801 = vpop.permute.xlu0 %1800
      %1802 = vrot.lane.b32.xlu0 %v1725, 31
      %v1803 = vpop.permute.xlu0 %1802
      %1804 = vrot.lane.b32.xlu0 %v1726, 31
      %v1805 = vpop.permute.xlu0 %1804
      %1806 = vrot.lane.b32.xlu0 %v1727, 31
      %v1807 = vpop.permute.xlu0 %1806
      %v1808 = vsel %vm1256, %v1805, %v1807
      %v1809 = vsel %vm1256, %v1803, %v1805
      %v1810 = vsel %vm1256, %v1801, %v1803
      %v1811 = vsel %vm1256, %v1799, %v1801
      %v1812 = vsel %vm1256, %v1797, %v1799
      %v1813 = vsel %vm1256, %v1795, %v1797
      %v1814 = vsel %vm1256, %v1793, %v1795
      %v1815 = vsel %vm1256, %v1807, %v1793
      %v1816 = vmul.f32 %v1815, %v1266
      %v1817 = vmul.f32 %v1814, %v1267
      %v1818 = vmul.f32 %v1813, %v1268
      %v1819 = vmul.f32 %v1812, %v1269
      %v1820 = vmul.f32 %v1811, %v1270
      %v1821 = vmul.f32 %v1810, %v1271
      %v1822 = vmul.f32 %v1809, %v1272
      %v1823 = vmul.f32 %v1808, %v1273
      %1824 = vrot.lane.b32.xlu0 %v1720, 1
      %v1825 = vpop.permute.xlu0 %1824
      %1826 = vrot.lane.b32.xlu0 %v1721, 1
      %v1827 = vpop.permute.xlu0 %1826
      %1828 = vrot.lane.b32.xlu0 %v1722, 1
      %v1829 = vpop.permute.xlu0 %1828
      %1830 = vrot.lane.b32.xlu0 %v1723, 1
      %v1831 = vpop.permute.xlu0 %1830
      %1832 = vrot.lane.b32.xlu0 %v1724, 1
      %v1833 = vpop.permute.xlu0 %1832
      %1834 = vrot.lane.b32.xlu0 %v1725, 1
      %v1835 = vpop.permute.xlu0 %1834
      %1836 = vrot.lane.b32.xlu0 %v1726, 1
      %v1837 = vpop.permute.xlu0 %1836
      %1838 = vrot.lane.b32.xlu0 %v1727, 1
      %v1839 = vpop.permute.xlu0 %1838
      %v1840 = vsel %vm1306, %v1837, %v1839
      %v1841 = vsel %vm1306, %v1835, %v1837
      %v1842 = vsel %vm1306, %v1833, %v1835
      %v1843 = vsel %vm1306, %v1831, %v1833
      %v1844 = vsel %vm1306, %v1829, %v1831
      %v1845 = vsel %vm1306, %v1827, %v1829
      %v1846 = vsel %vm1306, %v1825, %v1827
      %v1847 = vsel %vm1306, %v1839, %v1825
      %v1848 = vmul.f32 %v1847, %v1316
      %v1849 = vmul.f32 %v1846, %v1317
      %v1850 = vmul.f32 %v1845, %v1318
      %v1851 = vmul.f32 %v1844, %v1319
      %v1852 = vmul.f32 %v1843, %v1320
      %v1853 = vmul.f32 %v1842, %v1321
      %v1854 = vmul.f32 %v1841, %v1322
      %v1855 = vmul.f32 %v1840, %v1323
      %1856 = vrot.lane.b32.xlu0 %v1720, 127
      %v1857 = vpop.permute.xlu0 %1856
      %1858 = vrot.lane.b32.xlu0 %v1721, 127
      %v1859 = vpop.permute.xlu0 %1858
      %1860 = vrot.lane.b32.xlu0 %v1722, 127
      %v1861 = vpop.permute.xlu0 %1860
      %1862 = vrot.lane.b32.xlu0 %v1723, 127
      %v1863 = vpop.permute.xlu0 %1862
      %1864 = vrot.lane.b32.xlu0 %v1724, 127
      %v1865 = vpop.permute.xlu0 %1864
      %1866 = vrot.lane.b32.xlu0 %v1725, 127
      %v1867 = vpop.permute.xlu0 %1866
      %1868 = vrot.lane.b32.xlu0 %v1726, 127
      %v1869 = vpop.permute.xlu0 %1868
      %1870 = vrot.lane.b32.xlu0 %v1727, 127
      %v1871 = vpop.permute.xlu0 %1870
      %v1872 = vsel %vm1356, %v1869, %v1871
      %v1873 = vsel %vm1356, %v1867, %v1869
      %v1874 = vsel %vm1356, %v1865, %v1867
      %v1875 = vsel %vm1356, %v1863, %v1865
      %v1876 = vsel %vm1356, %v1861, %v1863
      %v1877 = vsel %vm1356, %v1859, %v1861
      %v1878 = vsel %vm1356, %v1857, %v1859
      %v1879 = vsel %vm1356, %v1871, %v1857
      %v1880 = vmul.f32 %v1878, %v1366
      %v1881 = vmul.f32 %v1877, %v1367
      %v1882 = vmul.f32 %v1876, %v1368
      %v1883 = vmul.f32 %v1875, %v1369
      %v1884 = vmul.f32 %v1874, %v1370
      %v1885 = vmul.f32 %v1873, %v1371
      %v1886 = vmul.f32 %v1872, %v1372
      %v1887 = vmul.f32 %v1879, %v1373
      %1888 = vrot.lane.b32.xlu0 %v1720, 97
      %v1889 = vpop.permute.xlu0 %1888
      %1890 = vrot.lane.b32.xlu0 %v1721, 97
      %v1891 = vpop.permute.xlu0 %1890
      %1892 = vrot.lane.b32.xlu0 %v1722, 97
      %v1893 = vpop.permute.xlu0 %1892
      %1894 = vrot.lane.b32.xlu0 %v1723, 97
      %v1895 = vpop.permute.xlu0 %1894
      %1896 = vrot.lane.b32.xlu0 %v1724, 97
      %v1897 = vpop.permute.xlu0 %1896
      %1898 = vrot.lane.b32.xlu0 %v1725, 97
      %v1899 = vpop.permute.xlu0 %1898
      %1900 = vrot.lane.b32.xlu0 %v1726, 97
      %v1901 = vpop.permute.xlu0 %1900
      %1902 = vrot.lane.b32.xlu0 %v1727, 97
      %v1903 = vpop.permute.xlu0 %1902
      %v1904 = vsel %vm1406, %v1901, %v1903
      %v1905 = vsel %vm1406, %v1899, %v1901
      %v1906 = vsel %vm1406, %v1897, %v1899
      %v1907 = vsel %vm1406, %v1895, %v1897
      %v1908 = vsel %vm1406, %v1893, %v1895
      %v1909 = vsel %vm1406, %v1891, %v1893
      %v1910 = vsel %vm1406, %v1889, %v1891
      %v1911 = vsel %vm1406, %v1903, %v1889
      %v1912 = vmul.f32 %v1910, %v1416
      %v1913 = vmul.f32 %v1909, %v1417
      %v1914 = vmul.f32 %v1908, %v1418
      %v1915 = vmul.f32 %v1907, %v1419
      %v1916 = vmul.f32 %v1906, %v1420
      %v1917 = vmul.f32 %v1905, %v1421
      %v1918 = vmul.f32 %v1904, %v1422
      %v1919 = vmul.f32 %v1911, %v1423
      %1920 = vrot.lane.b32.xlu0 %v1720, 96
      %v1921 = vpop.permute.xlu0 %1920
      %1922 = vrot.lane.b32.xlu0 %v1721, 96
      %v1923 = vpop.permute.xlu0 %1922
      %1924 = vrot.lane.b32.xlu0 %v1722, 96
      %v1925 = vpop.permute.xlu0 %1924
      %1926 = vrot.lane.b32.xlu0 %v1723, 96
      %v1927 = vpop.permute.xlu0 %1926
      %1928 = vrot.lane.b32.xlu0 %v1724, 96
      %v1929 = vpop.permute.xlu0 %1928
      %1930 = vrot.lane.b32.xlu0 %v1725, 96
      %v1931 = vpop.permute.xlu0 %1930
      %1932 = vrot.lane.b32.xlu0 %v1726, 96
      %v1933 = vpop.permute.xlu0 %1932
      %1934 = vrot.lane.b32.xlu0 %v1727, 96
      %v1935 = vpop.permute.xlu0 %1934
      %v1936 = vsel %vm1456, %v1933, %v1935
      %v1937 = vsel %vm1456, %v1931, %v1933
      %v1938 = vsel %vm1456, %v1929, %v1931
      %v1939 = vsel %vm1456, %v1927, %v1929
      %v1940 = vsel %vm1456, %v1925, %v1927
      %v1941 = vsel %vm1456, %v1923, %v1925
      %v1942 = vsel %vm1456, %v1921, %v1923
      %v1943 = vsel %vm1456, %v1935, %v1921
      %v1944 = vmul.f32 %v1942, %v1466
      %v1945 = vmul.f32 %v1941, %v1467
      %v1946 = vmul.f32 %v1940, %v1468
      %v1947 = vmul.f32 %v1939, %v1469
      %v1948 = vmul.f32 %v1938, %v1470
      %v1949 = vmul.f32 %v1937, %v1471
      %v1950 = vmul.f32 %v1936, %v1472
      %v1951 = vmul.f32 %v1943, %v1473
      %1952 = vrot.lane.b32.xlu0 %v1720, 95
      %v1953 = vpop.permute.xlu0 %1952
      %1954 = vrot.lane.b32.xlu0 %v1721, 95
      %v1955 = vpop.permute.xlu0 %1954
      %1956 = vrot.lane.b32.xlu0 %v1722, 95
      %v1957 = vpop.permute.xlu0 %1956
      %1958 = vrot.lane.b32.xlu0 %v1723, 95
      %v1959 = vpop.permute.xlu0 %1958
      %1960 = vrot.lane.b32.xlu0 %v1724, 95
      %v1961 = vpop.permute.xlu0 %1960
      %1962 = vrot.lane.b32.xlu0 %v1725, 95
      %v1963 = vpop.permute.xlu0 %1962
      %1964 = vrot.lane.b32.xlu0 %v1726, 95
      %v1965 = vpop.permute.xlu0 %1964
      %1966 = vrot.lane.b32.xlu0 %v1727, 95
      %v1967 = vpop.permute.xlu0 %1966
      %v1968 = vsel %vm1506, %v1965, %v1967
      %v1969 = vsel %vm1506, %v1963, %v1965
      %v1970 = vsel %vm1506, %v1961, %v1963
      %v1971 = vsel %vm1506, %v1959, %v1961
      %v1972 = vsel %vm1506, %v1957, %v1959
      %v1973 = vsel %vm1506, %v1955, %v1957
      %v1974 = vsel %vm1506, %v1953, %v1955
      %v1975 = vsel %vm1506, %v1967, %v1953
      %v1976 = vmul.f32 %v1974, %v1516
      %v1977 = vmul.f32 %v1973, %v1517
      %v1978 = vmul.f32 %v1972, %v1518
      %v1979 = vmul.f32 %v1971, %v1519
      %v1980 = vmul.f32 %v1970, %v1520
      %v1981 = vmul.f32 %v1969, %v1521
      %v1982 = vmul.f32 %v1968, %v1522
      %v1983 = vmul.f32 %v1975, %v1523
      %v1984 = vpack.c.bf16 %v1784, %v1752
      %v1985 = vpack.c.bf16 %v1785, %v1753
      %v1986 = vpack.c.bf16 %v1786, %v1754
      %v1987 = vpack.c.bf16 %v1787, %v1755
      %v1988 = vpack.c.bf16 %v1788, %v1756
      %v1989 = vpack.c.bf16 %v1789, %v1757
      %v1990 = vpack.c.bf16 %v1790, %v1758
      %v1991 = vpack.c.bf16 %v1791, %v1759
      %v1992 = vpack.c.bf16 %v1848, %v1816
      %v1993 = vpack.c.bf16 %v1849, %v1817
      %v1994 = vpack.c.bf16 %v1850, %v1818
      %v1995 = vpack.c.bf16 %v1851, %v1819
      %v1996 = vpack.c.bf16 %v1852, %v1820
      %v1997 = vpack.c.bf16 %v1853, %v1821
      %v1998 = vpack.c.bf16 %v1854, %v1822
      %v1999 = vpack.c.bf16 %v1855, %v1823
      %v2000 = vpack.c.bf16 %v1880, %v1720
      %v2001 = vpack.c.bf16 %v1881, %v1721
      %v2002 = vpack.c.bf16 %v1882, %v1722
      %v2003 = vpack.c.bf16 %v1883, %v1723
      %v2004 = vpack.c.bf16 %v1884, %v1724
      %v2005 = vpack.c.bf16 %v1885, %v1725
      %v2006 = vpack.c.bf16 %v1886, %v1726
      %v2007 = vpack.c.bf16 %v1887, %v1727
      %v2008 = vpack.c.bf16 %v1944, %v1912
      %v2009 = vpack.c.bf16 %v1945, %v1913
      %v2010 = vpack.c.bf16 %v1946, %v1914
      %v2011 = vpack.c.bf16 %v1947, %v1915
      %v2012 = vpack.c.bf16 %v1948, %v1916
      %v2013 = vpack.c.bf16 %v1949, %v1917
      %v2014 = vpack.c.bf16 %v1950, %v1918
      %v2015 = vpack.c.bf16 %v1951, %v1919
      %v2016 = vpack.c.bf16 %v1976, %v1976
      %v2017 = vpack.c.bf16 %v1977, %v1977
      %v2018 = vpack.c.bf16 %v1978, %v1978
      %v2019 = vpack.c.bf16 %v1979, %v1979
      %v2020 = vpack.c.bf16 %v1980, %v1980
      %v2021 = vpack.c.bf16 %v1981, %v1981
      %v2022 = vpack.c.bf16 %v1982, %v1982
      %v2023 = vpack.c.bf16 %v1983, %v1983
      %v2024 = vld [vmem:[%s7] sm:$0xf]
      %v2025 = vld [vmem:[%s9] sm:$0xff]
      %2027 = vset.pattern.permute.xlu0 0
      %2028 = vperm.xlu0 %2027, %v2025
      %v2029 = vpop.permute.xlu0 %2028
      %v2032 = vsel %vm1587, %v2024, 0
      %v2035 = vsel %vm1591, %v2016, 0
      %v2038 = vsel %vm1591, %v2017, 0
      %v2041 = vsel %vm1591, %v2018, 0
      %v2044 = vsel %vm1591, %v2019, 0
      %v2047 = vsel %vm1591, %v2020, 0
      %v2050 = vsel %vm1591, %v2021, 0
      %v2053 = vsel %vm1591, %v2022, 0
      %v2056 = vsel %vm1591, %v2023, 0
      %2058 = vmatpush.bf16.msra.mxu0 0
      %2059 = vmatpush.bf16.msra.mxu0 0
      %2060 = vmatpush.bf16.msra.mxu0 0
      %2061 = vmatpush.bf16.msra.mxu0 %v2035
      %2062 = vmatpush.bf16.msra.mxu0 %v2008
      %2063 = vmatpush.bf16.msra.mxu0 %v2000
      %2064 = vmatpush.bf16.msra.mxu0 %v1992
      %2065 = vmatpush.bf16.msra.mxu0 %v1984
      %2066 = vmatmul.bf16.gmra.mxu0 %v2032
      %v2067 = vpop.f32.mrf.mxu0
      %v2068 = vadd.f32 %v2029, %v2067
      %v2069 = vpop.f32.mrf.mxu0
      %2070 = vdwg.mxu0
      %2071 = vmatpush.bf16.msra.mxu0 0
      %2072 = vmatpush.bf16.msra.mxu0 0
      %2073 = vmatpush.bf16.msra.mxu0 0
      %2074 = vmatpush.bf16.msra.mxu0 %v2038
      %2075 = vmatpush.bf16.msra.mxu0 %v2009
      %2076 = vmatpush.bf16.msra.mxu0 %v2001
      %2077 = vmatpush.bf16.msra.mxu0 %v1993
      %2078 = vmatpush.bf16.msra.mxu0 %v1985
      %2079 = vmatmul.bf16.gmra.mxu0 %v2032
      %v2080 = vpop.f32.mrf.mxu0
      %v2081 = vadd.f32 %v2029, %v2080
      %v2082 = vpop.f32.mrf.mxu0
      %2083 = vdwg.mxu0
      %2084 = vmatpush.bf16.msra.mxu0 0
      %2085 = vmatpush.bf16.msra.mxu0 0
      %2086 = vmatpush.bf16.msra.mxu0 0
      %2087 = vmatpush.bf16.msra.mxu0 %v2041
      %2088 = vmatpush.bf16.msra.mxu0 %v2010
      %2089 = vmatpush.bf16.msra.mxu0 %v2002
      %2090 = vmatpush.bf16.msra.mxu0 %v1994
      %2091 = vmatpush.bf16.msra.mxu0 %v1986
      %2092 = vmatmul.bf16.gmra.mxu0 %v2032
      %v2093 = vpop.f32.mrf.mxu0
      %v2094 = vadd.f32 %v2029, %v2093
      %v2095 = vpop.f32.mrf.mxu0
      %2096 = vdwg.mxu0
      %2097 = vmatpush.bf16.msra.mxu0 0
      %2098 = vmatpush.bf16.msra.mxu0 0
      %2099 = vmatpush.bf16.msra.mxu0 0
      %2100 = vmatpush.bf16.msra.mxu0 %v2044
      %2101 = vmatpush.bf16.msra.mxu0 %v2011
      %2102 = vmatpush.bf16.msra.mxu0 %v2003
      %2103 = vmatpush.bf16.msra.mxu0 %v1995
      %2104 = vmatpush.bf16.msra.mxu0 %v1987
      %2105 = vmatmul.bf16.gmra.mxu0 %v2032
      %v2106 = vpop.f32.mrf.mxu0
      %v2107 = vadd.f32 %v2029, %v2106
      %v2108 = vpop.f32.mrf.mxu0
      %2109 = vdwg.mxu0
      %2110 = vmatpush.bf16.msra.mxu0 0
      %2111 = vmatpush.bf16.msra.mxu0 0
      %2112 = vmatpush.bf16.msra.mxu0 0
      %2113 = vmatpush.bf16.msra.mxu0 %v2047
      %2114 = vmatpush.bf16.msra.mxu0 %v2012
      %2115 = vmatpush.bf16.msra.mxu0 %v2004
      %2116 = vmatpush.bf16.msra.mxu0 %v1996
      %2117 = vmatpush.bf16.msra.mxu0 %v1988
      %2118 = vmatmul.bf16.gmra.mxu0 %v2032
      %v2119 = vpop.f32.mrf.mxu0
      %v2120 = vadd.f32 %v2029, %v2119
      %v2121 = vpop.f32.mrf.mxu0
      %2122 = vdwg.mxu0
      %2123 = vmatpush.bf16.msra.mxu0 0
      %2124 = vmatpush.bf16.msra.mxu0 0
      %2125 = vmatpush.bf16.msra.mxu0 0
      %2126 = vmatpush.bf16.msra.mxu0 %v2050
      %2127 = vmatpush.bf16.msra.mxu0 %v2013
      %2128 = vmatpush.bf16.msra.mxu0 %v2005
      %2129 = vmatpush.bf16.msra.mxu0 %v1997
      %2130 = vmatpush.bf16.msra.mxu0 %v1989
      %2131 = vmatmul.bf16.gmra.mxu0 %v2032
      %v2132 = vpop.f32.mrf.mxu0
      %v2133 = vadd.f32 %v2029, %v2132
      %v2134 = vpop.f32.mrf.mxu0
      %2135 = vdwg.mxu0
      %2136 = vmatpush.bf16.msra.mxu0 0
      %2137 = vmatpush.bf16.msra.mxu0 0
      %2138 = vmatpush.bf16.msra.mxu0 0
      %2139 = vmatpush.bf16.msra.mxu0 %v2053
      %2140 = vmatpush.bf16.msra.mxu0 %v2014
      %2141 = vmatpush.bf16.msra.mxu0 %v2006
      %2142 = vmatpush.bf16.msra.mxu0 %v1998
      %2143 = vmatpush.bf16.msra.mxu0 %v1990
      %2144 = vmatmul.bf16.gmra.mxu0 %v2032
      %v2145 = vpop.f32.mrf.mxu0
      %v2146 = vadd.f32 %v2029, %v2145
      %v2147 = vpop.f32.mrf.mxu0
      %2148 = vdwg.mxu0
      %2149 = vmatpush.bf16.msra.mxu0 0
      %2150 = vmatpush.bf16.msra.mxu0 0
      %2151 = vmatpush.bf16.msra.mxu0 0
      %2152 = vmatpush.bf16.msra.mxu0 %v2056
      %2153 = vmatpush.bf16.msra.mxu0 %v2015
      %2154 = vmatpush.bf16.msra.mxu0 %v2007
      %2155 = vmatpush.bf16.msra.mxu0 %v1999
      %2156 = vmatpush.bf16.msra.mxu0 %v1991
      %2157 = vmatmul.bf16.gmra.mxu0 %v2032
      %v2158 = vpop.f32.mrf.mxu0
      %v2159 = vadd.f32 %v2029, %v2158
      %v2160 = vpop.f32.mrf.mxu0
      %2161 = vdwg.mxu0
      %v2162 = vmax.f32 %v2068, 0.0
      %v2163 = vmax.f32 %v2081, 0.0
      %v2164 = vmax.f32 %v2094, 0.0
      %v2165 = vmax.f32 %v2107, 0.0
      %v2166 = vmax.f32 %v2120, 0.0
      %v2167 = vmax.f32 %v2133, 0.0
      %v2168 = vmax.f32 %v2146, 0.0
      %v2169 = vmax.f32 %v2159, 0.0
      %2170 = vrot.lane.b32.xlu0 %v2162, 33
      %v2171 = vpop.permute.xlu0 %2170
      %2172 = vrot.lane.b32.xlu0 %v2163, 33
      %v2173 = vpop.permute.xlu0 %2172
      %2174 = vrot.lane.b32.xlu0 %v2164, 33
      %v2175 = vpop.permute.xlu0 %2174
      %2176 = vrot.lane.b32.xlu0 %v2165, 33
      %v2177 = vpop.permute.xlu0 %2176
      %2178 = vrot.lane.b32.xlu0 %v2166, 33
      %v2179 = vpop.permute.xlu0 %2178
      %2180 = vrot.lane.b32.xlu0 %v2167, 33
      %v2181 = vpop.permute.xlu0 %2180
      %2182 = vrot.lane.b32.xlu0 %v2168, 33
      %v2183 = vpop.permute.xlu0 %2182
      %2184 = vrot.lane.b32.xlu0 %v2169, 33
      %v2185 = vpop.permute.xlu0 %2184
      %v2186 = vsel %vm1156, %v2183, %v2185
      %v2187 = vsel %vm1156, %v2181, %v2183
      %v2188 = vsel %vm1156, %v2179, %v2181
      %v2189 = vsel %vm1156, %v2177, %v2179
      %v2190 = vsel %vm1156, %v2175, %v2177
      %v2191 = vsel %vm1156, %v2173, %v2175
      %v2192 = vsel %vm1156, %v2171, %v2173
      %v2193 = vsel %vm1156, %v2185, %v2171
      %v2194 = vmul.f32 %v2193, %v1166
      %v2195 = vmul.f32 %v2192, %v1167
      %v2196 = vmul.f32 %v2191, %v1168
      %v2197 = vmul.f32 %v2190, %v1169
      %v2198 = vmul.f32 %v2189, %v1170
      %v2199 = vmul.f32 %v2188, %v1171
      %v2200 = vmul.f32 %v2187, %v1172
      %v2201 = vmul.f32 %v2186, %v1173
      %2202 = vrot.lane.b32.xlu0 %v2162, 32
      %v2203 = vpop.permute.xlu0 %2202
      %2204 = vrot.lane.b32.xlu0 %v2163, 32
      %v2205 = vpop.permute.xlu0 %2204
      %2206 = vrot.lane.b32.xlu0 %v2164, 32
      %v2207 = vpop.permute.xlu0 %2206
      %2208 = vrot.lane.b32.xlu0 %v2165, 32
      %v2209 = vpop.permute.xlu0 %2208
      %2210 = vrot.lane.b32.xlu0 %v2166, 32
      %v2211 = vpop.permute.xlu0 %2210
      %2212 = vrot.lane.b32.xlu0 %v2167, 32
      %v2213 = vpop.permute.xlu0 %2212
      %2214 = vrot.lane.b32.xlu0 %v2168, 32
      %v2215 = vpop.permute.xlu0 %2214
      %2216 = vrot.lane.b32.xlu0 %v2169, 32
      %v2217 = vpop.permute.xlu0 %2216
      %v2218 = vsel %vm1206, %v2215, %v2217
      %v2219 = vsel %vm1206, %v2213, %v2215
      %v2220 = vsel %vm1206, %v2211, %v2213
      %v2221 = vsel %vm1206, %v2209, %v2211
      %v2222 = vsel %vm1206, %v2207, %v2209
      %v2223 = vsel %vm1206, %v2205, %v2207
      %v2224 = vsel %vm1206, %v2203, %v2205
      %v2225 = vsel %vm1206, %v2217, %v2203
      %v2226 = vmul.f32 %v2225, %v1216
      %v2227 = vmul.f32 %v2224, %v1217
      %v2228 = vmul.f32 %v2223, %v1218
      %v2229 = vmul.f32 %v2222, %v1219
      %v2230 = vmul.f32 %v2221, %v1220
      %v2231 = vmul.f32 %v2220, %v1221
      %v2232 = vmul.f32 %v2219, %v1222
      %v2233 = vmul.f32 %v2218, %v1223
      %2234 = vrot.lane.b32.xlu0 %v2162, 31
      %v2235 = vpop.permute.xlu0 %2234
      %2236 = vrot.lane.b32.xlu0 %v2163, 31
      %v2237 = vpop.permute.xlu0 %2236
      %2238 = vrot.lane.b32.xlu0 %v2164, 31
      %v2239 = vpop.permute.xlu0 %2238
      %2240 = vrot.lane.b32.xlu0 %v2165, 31
      %v2241 = vpop.permute.xlu0 %2240
      %2242 = vrot.lane.b32.xlu0 %v2166, 31
      %v2243 = vpop.permute.xlu0 %2242
      %2244 = vrot.lane.b32.xlu0 %v2167, 31
      %v2245 = vpop.permute.xlu0 %2244
      %2246 = vrot.lane.b32.xlu0 %v2168, 31
      %v2247 = vpop.permute.xlu0 %2246
      %2248 = vrot.lane.b32.xlu0 %v2169, 31
      %v2249 = vpop.permute.xlu0 %2248
      %v2250 = vsel %vm1256, %v2247, %v2249
      %v2251 = vsel %vm1256, %v2245, %v2247
      %v2252 = vsel %vm1256, %v2243, %v2245
      %v2253 = vsel %vm1256, %v2241, %v2243
      %v2254 = vsel %vm1256, %v2239, %v2241
      %v2255 = vsel %vm1256, %v2237, %v2239
      %v2256 = vsel %vm1256, %v2235, %v2237
      %v2257 = vsel %vm1256, %v2249, %v2235
      %v2258 = vmul.f32 %v2257, %v1266
      %v2259 = vmul.f32 %v2256, %v1267
      %v2260 = vmul.f32 %v2255, %v1268
      %v2261 = vmul.f32 %v2254, %v1269
      %v2262 = vmul.f32 %v2253, %v1270
      %v2263 = vmul.f32 %v2252, %v1271
      %v2264 = vmul.f32 %v2251, %v1272
      %v2265 = vmul.f32 %v2250, %v1273
      %2266 = vrot.lane.b32.xlu0 %v2162, 1
      %v2267 = vpop.permute.xlu0 %2266
      %2268 = vrot.lane.b32.xlu0 %v2163, 1
      %v2269 = vpop.permute.xlu0 %2268
      %2270 = vrot.lane.b32.xlu0 %v2164, 1
      %v2271 = vpop.permute.xlu0 %2270
      %2272 = vrot.lane.b32.xlu0 %v2165, 1
      %v2273 = vpop.permute.xlu0 %2272
      %2274 = vrot.lane.b32.xlu0 %v2166, 1
      %v2275 = vpop.permute.xlu0 %2274
      %2276 = vrot.lane.b32.xlu0 %v2167, 1
      %v2277 = vpop.permute.xlu0 %2276
      %2278 = vrot.lane.b32.xlu0 %v2168, 1
      %v2279 = vpop.permute.xlu0 %2278
      %2280 = vrot.lane.b32.xlu0 %v2169, 1
      %v2281 = vpop.permute.xlu0 %2280
      %v2282 = vsel %vm1306, %v2279, %v2281
      %v2283 = vsel %vm1306, %v2277, %v2279
      %v2284 = vsel %vm1306, %v2275, %v2277
      %v2285 = vsel %vm1306, %v2273, %v2275
      %v2286 = vsel %vm1306, %v2271, %v2273
      %v2287 = vsel %vm1306, %v2269, %v2271
      %v2288 = vsel %vm1306, %v2267, %v2269
      %v2289 = vsel %vm1306, %v2281, %v2267
      %v2290 = vmul.f32 %v2289, %v1316
      %v2291 = vmul.f32 %v2288, %v1317
      %v2292 = vmul.f32 %v2287, %v1318
      %v2293 = vmul.f32 %v2286, %v1319
      %v2294 = vmul.f32 %v2285, %v1320
      %v2295 = vmul.f32 %v2284, %v1321
      %v2296 = vmul.f32 %v2283, %v1322
      %v2297 = vmul.f32 %v2282, %v1323
      %2298 = vrot.lane.b32.xlu0 %v2162, 127
      %v2299 = vpop.permute.xlu0 %2298
      %2300 = vrot.lane.b32.xlu0 %v2163, 127
      %v2301 = vpop.permute.xlu0 %2300
      %2302 = vrot.lane.b32.xlu0 %v2164, 127
      %v2303 = vpop.permute.xlu0 %2302
      %2304 = vrot.lane.b32.xlu0 %v2165, 127
      %v2305 = vpop.permute.xlu0 %2304
      %2306 = vrot.lane.b32.xlu0 %v2166, 127
      %v2307 = vpop.permute.xlu0 %2306
      %2308 = vrot.lane.b32.xlu0 %v2167, 127
      %v2309 = vpop.permute.xlu0 %2308
      %2310 = vrot.lane.b32.xlu0 %v2168, 127
      %v2311 = vpop.permute.xlu0 %2310
      %2312 = vrot.lane.b32.xlu0 %v2169, 127
      %v2313 = vpop.permute.xlu0 %2312
      %v2314 = vsel %vm1356, %v2311, %v2313
      %v2315 = vsel %vm1356, %v2309, %v2311
      %v2316 = vsel %vm1356, %v2307, %v2309
      %v2317 = vsel %vm1356, %v2305, %v2307
      %v2318 = vsel %vm1356, %v2303, %v2305
      %v2319 = vsel %vm1356, %v2301, %v2303
      %v2320 = vsel %vm1356, %v2299, %v2301
      %v2321 = vsel %vm1356, %v2313, %v2299
      %v2322 = vmul.f32 %v2320, %v1366
      %v2323 = vmul.f32 %v2319, %v1367
      %v2324 = vmul.f32 %v2318, %v1368
      %v2325 = vmul.f32 %v2317, %v1369
      %v2326 = vmul.f32 %v2316, %v1370
      %v2327 = vmul.f32 %v2315, %v1371
      %v2328 = vmul.f32 %v2314, %v1372
      %v2329 = vmul.f32 %v2321, %v1373
      %2330 = vrot.lane.b32.xlu0 %v2162, 97
      %v2331 = vpop.permute.xlu0 %2330
      %2332 = vrot.lane.b32.xlu0 %v2163, 97
      %v2333 = vpop.permute.xlu0 %2332
      %2334 = vrot.lane.b32.xlu0 %v2164, 97
      %v2335 = vpop.permute.xlu0 %2334
      %2336 = vrot.lane.b32.xlu0 %v2165, 97
      %v2337 = vpop.permute.xlu0 %2336
      %2338 = vrot.lane.b32.xlu0 %v2166, 97
      %v2339 = vpop.permute.xlu0 %2338
      %2340 = vrot.lane.b32.xlu0 %v2167, 97
      %v2341 = vpop.permute.xlu0 %2340
      %2342 = vrot.lane.b32.xlu0 %v2168, 97
      %v2343 = vpop.permute.xlu0 %2342
      %2344 = vrot.lane.b32.xlu0 %v2169, 97
      %v2345 = vpop.permute.xlu0 %2344
      %v2346 = vsel %vm1406, %v2343, %v2345
      %v2347 = vsel %vm1406, %v2341, %v2343
      %v2348 = vsel %vm1406, %v2339, %v2341
      %v2349 = vsel %vm1406, %v2337, %v2339
      %v2350 = vsel %vm1406, %v2335, %v2337
      %v2351 = vsel %vm1406, %v2333, %v2335
      %v2352 = vsel %vm1406, %v2331, %v2333
      %v2353 = vsel %vm1406, %v2345, %v2331
      %v2354 = vmul.f32 %v2352, %v1416
      %v2355 = vmul.f32 %v2351, %v1417
      %v2356 = vmul.f32 %v2350, %v1418
      %v2357 = vmul.f32 %v2349, %v1419
      %v2358 = vmul.f32 %v2348, %v1420
      %v2359 = vmul.f32 %v2347, %v1421
      %v2360 = vmul.f32 %v2346, %v1422
      %v2361 = vmul.f32 %v2353, %v1423
      %2362 = vrot.lane.b32.xlu0 %v2162, 96
      %v2363 = vpop.permute.xlu0 %2362
      %2364 = vrot.lane.b32.xlu0 %v2163, 96
      %v2365 = vpop.permute.xlu0 %2364
      %2366 = vrot.lane.b32.xlu0 %v2164, 96
      %v2367 = vpop.permute.xlu0 %2366
      %2368 = vrot.lane.b32.xlu0 %v2165, 96
      %v2369 = vpop.permute.xlu0 %2368
      %2370 = vrot.lane.b32.xlu0 %v2166, 96
      %v2371 = vpop.permute.xlu0 %2370
      %2372 = vrot.lane.b32.xlu0 %v2167, 96
      %v2373 = vpop.permute.xlu0 %2372
      %2374 = vrot.lane.b32.xlu0 %v2168, 96
      %v2375 = vpop.permute.xlu0 %2374
      %2376 = vrot.lane.b32.xlu0 %v2169, 96
      %v2377 = vpop.permute.xlu0 %2376
      %v2378 = vsel %vm1456, %v2375, %v2377
      %v2379 = vsel %vm1456, %v2373, %v2375
      %v2380 = vsel %vm1456, %v2371, %v2373
      %v2381 = vsel %vm1456, %v2369, %v2371
      %v2382 = vsel %vm1456, %v2367, %v2369
      %v2383 = vsel %vm1456, %v2365, %v2367
      %v2384 = vsel %vm1456, %v2363, %v2365
      %v2385 = vsel %vm1456, %v2377, %v2363
      %v2386 = vmul.f32 %v2384, %v1466
      %v2387 = vmul.f32 %v2383, %v1467
      %v2388 = vmul.f32 %v2382, %v1468
      %v2389 = vmul.f32 %v2381, %v1469
      %v2390 = vmul.f32 %v2380, %v1470
      %v2391 = vmul.f32 %v2379, %v1471
      %v2392 = vmul.f32 %v2378, %v1472
      %v2393 = vmul.f32 %v2385, %v1473
      %2394 = vrot.lane.b32.xlu0 %v2162, 95
      %v2395 = vpop.permute.xlu0 %2394
      %2396 = vrot.lane.b32.xlu0 %v2163, 95
      %v2397 = vpop.permute.xlu0 %2396
      %2398 = vrot.lane.b32.xlu0 %v2164, 95
      %v2399 = vpop.permute.xlu0 %2398
      %2400 = vrot.lane.b32.xlu0 %v2165, 95
      %v2401 = vpop.permute.xlu0 %2400
      %2402 = vrot.lane.b32.xlu0 %v2166, 95
      %v2403 = vpop.permute.xlu0 %2402
      %2404 = vrot.lane.b32.xlu0 %v2167, 95
      %v2405 = vpop.permute.xlu0 %2404
      %2406 = vrot.lane.b32.xlu0 %v2168, 95
      %v2407 = vpop.permute.xlu0 %2406
      %2408 = vrot.lane.b32.xlu0 %v2169, 95
      %v2409 = vpop.permute.xlu0 %2408
      %v2410 = vsel %vm1506, %v2407, %v2409
      %v2411 = vsel %vm1506, %v2405, %v2407
      %v2412 = vsel %vm1506, %v2403, %v2405
      %v2413 = vsel %vm1506, %v2401, %v2403
      %v2414 = vsel %vm1506, %v2399, %v2401
      %v2415 = vsel %vm1506, %v2397, %v2399
      %v2416 = vsel %vm1506, %v2395, %v2397
      %v2417 = vsel %vm1506, %v2409, %v2395
      %v2418 = vmul.f32 %v2416, %v1516
      %v2419 = vmul.f32 %v2415, %v1517
      %v2420 = vmul.f32 %v2414, %v1518
      %v2421 = vmul.f32 %v2413, %v1519
      %v2422 = vmul.f32 %v2412, %v1520
      %v2423 = vmul.f32 %v2411, %v1521
      %v2424 = vmul.f32 %v2410, %v1522
      %v2425 = vmul.f32 %v2417, %v1523
      %v2426 = vpack.c.bf16 %v2226, %v2194
      %v2427 = vpack.c.bf16 %v2227, %v2195
      %v2428 = vpack.c.bf16 %v2228, %v2196
      %v2429 = vpack.c.bf16 %v2229, %v2197
      %v2430 = vpack.c.bf16 %v2230, %v2198
      %v2431 = vpack.c.bf16 %v2231, %v2199
      %v2432 = vpack.c.bf16 %v2232, %v2200
      %v2433 = vpack.c.bf16 %v2233, %v2201
      %v2434 = vpack.c.bf16 %v2290, %v2258
      %v2435 = vpack.c.bf16 %v2291, %v2259
      %v2436 = vpack.c.bf16 %v2292, %v2260
      %v2437 = vpack.c.bf16 %v2293, %v2261
      %v2438 = vpack.c.bf16 %v2294, %v2262
      %v2439 = vpack.c.bf16 %v2295, %v2263
      %v2440 = vpack.c.bf16 %v2296, %v2264
      %v2441 = vpack.c.bf16 %v2297, %v2265
      %v2442 = vpack.c.bf16 %v2322, %v2162
      %v2443 = vpack.c.bf16 %v2323, %v2163
      %v2444 = vpack.c.bf16 %v2324, %v2164
      %v2445 = vpack.c.bf16 %v2325, %v2165
      %v2446 = vpack.c.bf16 %v2326, %v2166
      %v2447 = vpack.c.bf16 %v2327, %v2167
      %v2448 = vpack.c.bf16 %v2328, %v2168
      %v2449 = vpack.c.bf16 %v2329, %v2169
      %v2450 = vpack.c.bf16 %v2386, %v2354
      %v2451 = vpack.c.bf16 %v2387, %v2355
      %v2452 = vpack.c.bf16 %v2388, %v2356
      %v2453 = vpack.c.bf16 %v2389, %v2357
      %v2454 = vpack.c.bf16 %v2390, %v2358
      %v2455 = vpack.c.bf16 %v2391, %v2359
      %v2456 = vpack.c.bf16 %v2392, %v2360
      %v2457 = vpack.c.bf16 %v2393, %v2361
      %v2458 = vpack.c.bf16 %v2418, %v2418
      %v2459 = vpack.c.bf16 %v2419, %v2419
      %v2460 = vpack.c.bf16 %v2420, %v2420
      %v2461 = vpack.c.bf16 %v2421, %v2421
      %v2462 = vpack.c.bf16 %v2422, %v2422
      %v2463 = vpack.c.bf16 %v2423, %v2423
      %v2464 = vpack.c.bf16 %v2424, %v2424
      %v2465 = vpack.c.bf16 %v2425, %v2425
      %v2466 = vld [vmem:[%s11] sm:$0xf]
      %v2467 = vld [vmem:[%s13] sm:$0xff]
      %2469 = vset.pattern.permute.xlu0 0
      %2470 = vperm.xlu0 %2469, %v2467
      %v2471 = vpop.permute.xlu0 %2470
      %v2474 = vsel %vm1587, %v2466, 0
      %v2477 = vsel %vm1591, %v2458, 0
      %v2480 = vsel %vm1591, %v2459, 0
      %v2483 = vsel %vm1591, %v2460, 0
      %v2486 = vsel %vm1591, %v2461, 0
      %v2489 = vsel %vm1591, %v2462, 0
      %v2492 = vsel %vm1591, %v2463, 0
      %v2495 = vsel %vm1591, %v2464, 0
      %v2498 = vsel %vm1591, %v2465, 0
      %2500 = vmatpush.bf16.msra.mxu0 0
      %2501 = vmatpush.bf16.msra.mxu0 0
      %2502 = vmatpush.bf16.msra.mxu0 0
      %2503 = vmatpush.bf16.msra.mxu0 %v2477
      %2504 = vmatpush.bf16.msra.mxu0 %v2450
      %2505 = vmatpush.bf16.msra.mxu0 %v2442
      %2506 = vmatpush.bf16.msra.mxu0 %v2434
      %2507 = vmatpush.bf16.msra.mxu0 %v2426
      %2508 = vmatmul.bf16.gmra.mxu0 %v2474
      %v2509 = vpop.f32.mrf.mxu0
      %v2510 = vadd.f32 %v2471, %v2509
      %v2511 = vpop.f32.mrf.mxu0
      %2512 = vdwg.mxu0
      %2513 = vmatpush.bf16.msra.mxu0 0
      %2514 = vmatpush.bf16.msra.mxu0 0
      %2515 = vmatpush.bf16.msra.mxu0 0
      %2516 = vmatpush.bf16.msra.mxu0 %v2480
      %2517 = vmatpush.bf16.msra.mxu0 %v2451
      %2518 = vmatpush.bf16.msra.mxu0 %v2443
      %2519 = vmatpush.bf16.msra.mxu0 %v2435
      %2520 = vmatpush.bf16.msra.mxu0 %v2427
      %2521 = vmatmul.bf16.gmra.mxu0 %v2474
      %v2522 = vpop.f32.mrf.mxu0
      %v2523 = vadd.f32 %v2471, %v2522
      %v2524 = vpop.f32.mrf.mxu0
      %2525 = vdwg.mxu0
      %2526 = vmatpush.bf16.msra.mxu0 0
      %2527 = vmatpush.bf16.msra.mxu0 0
      %2528 = vmatpush.bf16.msra.mxu0 0
      %2529 = vmatpush.bf16.msra.mxu0 %v2483
      %2530 = vmatpush.bf16.msra.mxu0 %v2452
      %2531 = vmatpush.bf16.msra.mxu0 %v2444
      %2532 = vmatpush.bf16.msra.mxu0 %v2436
      %2533 = vmatpush.bf16.msra.mxu0 %v2428
      %2534 = vmatmul.bf16.gmra.mxu0 %v2474
      %v2535 = vpop.f32.mrf.mxu0
      %v2536 = vadd.f32 %v2471, %v2535
      %v2537 = vpop.f32.mrf.mxu0
      %2538 = vdwg.mxu0
      %2539 = vmatpush.bf16.msra.mxu0 0
      %2540 = vmatpush.bf16.msra.mxu0 0
      %2541 = vmatpush.bf16.msra.mxu0 0
      %2542 = vmatpush.bf16.msra.mxu0 %v2486
      %2543 = vmatpush.bf16.msra.mxu0 %v2453
      %2544 = vmatpush.bf16.msra.mxu0 %v2445
      %2545 = vmatpush.bf16.msra.mxu0 %v2437
      %2546 = vmatpush.bf16.msra.mxu0 %v2429
      %2547 = vmatmul.bf16.gmra.mxu0 %v2474
      %v2548 = vpop.f32.mrf.mxu0
      %v2549 = vadd.f32 %v2471, %v2548
      %v2550 = vpop.f32.mrf.mxu0
      %2551 = vdwg.mxu0
      %2552 = vmatpush.bf16.msra.mxu0 0
      %2553 = vmatpush.bf16.msra.mxu0 0
      %2554 = vmatpush.bf16.msra.mxu0 0
      %2555 = vmatpush.bf16.msra.mxu0 %v2489
      %2556 = vmatpush.bf16.msra.mxu0 %v2454
      %2557 = vmatpush.bf16.msra.mxu0 %v2446
      %2558 = vmatpush.bf16.msra.mxu0 %v2438
      %2559 = vmatpush.bf16.msra.mxu0 %v2430
      %2560 = vmatmul.bf16.gmra.mxu0 %v2474
      %v2561 = vpop.f32.mrf.mxu0
      %v2562 = vadd.f32 %v2471, %v2561
      %v2563 = vpop.f32.mrf.mxu0
      %2564 = vdwg.mxu0
      %2565 = vmatpush.bf16.msra.mxu0 0
      %2566 = vmatpush.bf16.msra.mxu0 0
      %2567 = vmatpush.bf16.msra.mxu0 0
      %2568 = vmatpush.bf16.msra.mxu0 %v2492
      %2569 = vmatpush.bf16.msra.mxu0 %v2455
      %2570 = vmatpush.bf16.msra.mxu0 %v2447
      %2571 = vmatpush.bf16.msra.mxu0 %v2439
      %2572 = vmatpush.bf16.msra.mxu0 %v2431
      %2573 = vmatmul.bf16.gmra.mxu0 %v2474
      %v2574 = vpop.f32.mrf.mxu0
      %v2575 = vadd.f32 %v2471, %v2574
      %v2576 = vpop.f32.mrf.mxu0
      %2577 = vdwg.mxu0
      %2578 = vmatpush.bf16.msra.mxu0 0
      %2579 = vmatpush.bf16.msra.mxu0 0
      %2580 = vmatpush.bf16.msra.mxu0 0
      %2581 = vmatpush.bf16.msra.mxu0 %v2495
      %2582 = vmatpush.bf16.msra.mxu0 %v2456
      %2583 = vmatpush.bf16.msra.mxu0 %v2448
      %2584 = vmatpush.bf16.msra.mxu0 %v2440
      %2585 = vmatpush.bf16.msra.mxu0 %v2432
      %2586 = vmatmul.bf16.gmra.mxu0 %v2474
      %v2587 = vpop.f32.mrf.mxu0
      %v2588 = vadd.f32 %v2471, %v2587
      %v2589 = vpop.f32.mrf.mxu0
      %2590 = vdwg.mxu0
      %2591 = vmatpush.bf16.msra.mxu0 0
      %2592 = vmatpush.bf16.msra.mxu0 0
      %2593 = vmatpush.bf16.msra.mxu0 0
      %2594 = vmatpush.bf16.msra.mxu0 %v2498
      %2595 = vmatpush.bf16.msra.mxu0 %v2457
      %2596 = vmatpush.bf16.msra.mxu0 %v2449
      %2597 = vmatpush.bf16.msra.mxu0 %v2441
      %2598 = vmatpush.bf16.msra.mxu0 %v2433
      %2599 = vmatmul.bf16.gmra.mxu0 %v2474
      %v2600 = vpop.f32.mrf.mxu0
      %v2601 = vadd.f32 %v2471, %v2600
      %v2602 = vpop.f32.mrf.mxu0
      %2603 = vdwg.mxu0
      %v2604 = vadd.f32 %v1720, %v2510
      %v2605 = vadd.f32 %v1721, %v2523
      %v2606 = vadd.f32 %v1722, %v2536
      %v2607 = vadd.f32 %v1723, %v2549
      %v2608 = vadd.f32 %v1724, %v2562
      %v2609 = vadd.f32 %v1725, %v2575
      %v2610 = vadd.f32 %v1726, %v2588
      %v2611 = vadd.f32 %v1727, %v2601
      %2612 = vrot.lane.b32.xlu0 %v2604, 33
      %v2613 = vpop.permute.xlu0 %2612
      %2614 = vrot.lane.b32.xlu0 %v2605, 33
      %v2615 = vpop.permute.xlu0 %2614
      %2616 = vrot.lane.b32.xlu0 %v2606, 33
      %v2617 = vpop.permute.xlu0 %2616
      %2618 = vrot.lane.b32.xlu0 %v2607, 33
      %v2619 = vpop.permute.xlu0 %2618
      %2620 = vrot.lane.b32.xlu0 %v2608, 33
      %v2621 = vpop.permute.xlu0 %2620
      %2622 = vrot.lane.b32.xlu0 %v2609, 33
      %v2623 = vpop.permute.xlu0 %2622
      %2624 = vrot.lane.b32.xlu0 %v2610, 33
      %v2625 = vpop.permute.xlu0 %2624
      %2626 = vrot.lane.b32.xlu0 %v2611, 33
      %v2627 = vpop.permute.xlu0 %2626
      %v2628 = vsel %vm1156, %v2625, %v2627
      %v2629 = vsel %vm1156, %v2623, %v2625
      %v2630 = vsel %vm1156, %v2621, %v2623
      %v2631 = vsel %vm1156, %v2619, %v2621
      %v2632 = vsel %vm1156, %v2617, %v2619
      %v2633 = vsel %vm1156, %v2615, %v2617
      %v2634 = vsel %vm1156, %v2613, %v2615
      %v2635 = vsel %vm1156, %v2627, %v2613
      %v2636 = vmul.f32 %v2635, %v1166
      %v2637 = vmul.f32 %v2634, %v1167
      %v2638 = vmul.f32 %v2633, %v1168
      %v2639 = vmul.f32 %v2632, %v1169
      %v2640 = vmul.f32 %v2631, %v1170
      %v2641 = vmul.f32 %v2630, %v1171
      %v2642 = vmul.f32 %v2629, %v1172
      %v2643 = vmul.f32 %v2628, %v1173
      %2644 = vrot.lane.b32.xlu0 %v2604, 32
      %v2645 = vpop.permute.xlu0 %2644
      %2646 = vrot.lane.b32.xlu0 %v2605, 32
      %v2647 = vpop.permute.xlu0 %2646
      %2648 = vrot.lane.b32.xlu0 %v2606, 32
      %v2649 = vpop.permute.xlu0 %2648
      %2650 = vrot.lane.b32.xlu0 %v2607, 32
      %v2651 = vpop.permute.xlu0 %2650
      %2652 = vrot.lane.b32.xlu0 %v2608, 32
      %v2653 = vpop.permute.xlu0 %2652
      %2654 = vrot.lane.b32.xlu0 %v2609, 32
      %v2655 = vpop.permute.xlu0 %2654
      %2656 = vrot.lane.b32.xlu0 %v2610, 32
      %v2657 = vpop.permute.xlu0 %2656
      %2658 = vrot.lane.b32.xlu0 %v2611, 32
      %v2659 = vpop.permute.xlu0 %2658
      %v2660 = vsel %vm1206, %v2657, %v2659
      %v2661 = vsel %vm1206, %v2655, %v2657
      %v2662 = vsel %vm1206, %v2653, %v2655
      %v2663 = vsel %vm1206, %v2651, %v2653
      %v2664 = vsel %vm1206, %v2649, %v2651
      %v2665 = vsel %vm1206, %v2647, %v2649
      %v2666 = vsel %vm1206, %v2645, %v2647
      %v2667 = vsel %vm1206, %v2659, %v2645
      %v2668 = vmul.f32 %v2667, %v1216
      %v2669 = vmul.f32 %v2666, %v1217
      %v2670 = vmul.f32 %v2665, %v1218
      %v2671 = vmul.f32 %v2664, %v1219
      %v2672 = vmul.f32 %v2663, %v1220
      %v2673 = vmul.f32 %v2662, %v1221
      %v2674 = vmul.f32 %v2661, %v1222
      %v2675 = vmul.f32 %v2660, %v1223
      %2676 = vrot.lane.b32.xlu0 %v2604, 31
      %v2677 = vpop.permute.xlu0 %2676
      %2678 = vrot.lane.b32.xlu0 %v2605, 31
      %v2679 = vpop.permute.xlu0 %2678
      %2680 = vrot.lane.b32.xlu0 %v2606, 31
      %v2681 = vpop.permute.xlu0 %2680
      %2682 = vrot.lane.b32.xlu0 %v2607, 31
      %v2683 = vpop.permute.xlu0 %2682
      %2684 = vrot.lane.b32.xlu0 %v2608, 31
      %v2685 = vpop.permute.xlu0 %2684
      %2686 = vrot.lane.b32.xlu0 %v2609, 31
      %v2687 = vpop.permute.xlu0 %2686
      %2688 = vrot.lane.b32.xlu0 %v2610, 31
      %v2689 = vpop.permute.xlu0 %2688
      %2690 = vrot.lane.b32.xlu0 %v2611, 31
      %v2691 = vpop.permute.xlu0 %2690
      %v2692 = vsel %vm1256, %v2689, %v2691
      %v2693 = vsel %vm1256, %v2687, %v2689
      %v2694 = vsel %vm1256, %v2685, %v2687
      %v2695 = vsel %vm1256, %v2683, %v2685
      %v2696 = vsel %vm1256, %v2681, %v2683
      %v2697 = vsel %vm1256, %v2679, %v2681
      %v2698 = vsel %vm1256, %v2677, %v2679
      %v2699 = vsel %vm1256, %v2691, %v2677
      %v2700 = vmul.f32 %v2699, %v1266
      %v2701 = vmul.f32 %v2698, %v1267
      %v2702 = vmul.f32 %v2697, %v1268
      %v2703 = vmul.f32 %v2696, %v1269
      %v2704 = vmul.f32 %v2695, %v1270
      %v2705 = vmul.f32 %v2694, %v1271
      %v2706 = vmul.f32 %v2693, %v1272
      %v2707 = vmul.f32 %v2692, %v1273
      %2708 = vrot.lane.b32.xlu0 %v2604, 1
      %v2709 = vpop.permute.xlu0 %2708
      %2710 = vrot.lane.b32.xlu0 %v2605, 1
      %v2711 = vpop.permute.xlu0 %2710
      %2712 = vrot.lane.b32.xlu0 %v2606, 1
      %v2713 = vpop.permute.xlu0 %2712
      %2714 = vrot.lane.b32.xlu0 %v2607, 1
      %v2715 = vpop.permute.xlu0 %2714
      %2716 = vrot.lane.b32.xlu0 %v2608, 1
      %v2717 = vpop.permute.xlu0 %2716
      %2718 = vrot.lane.b32.xlu0 %v2609, 1
      %v2719 = vpop.permute.xlu0 %2718
      %2720 = vrot.lane.b32.xlu0 %v2610, 1
      %v2721 = vpop.permute.xlu0 %2720
      %2722 = vrot.lane.b32.xlu0 %v2611, 1
      %v2723 = vpop.permute.xlu0 %2722
      %v2724 = vsel %vm1306, %v2721, %v2723
      %v2725 = vsel %vm1306, %v2719, %v2721
      %v2726 = vsel %vm1306, %v2717, %v2719
      %v2727 = vsel %vm1306, %v2715, %v2717
      %v2728 = vsel %vm1306, %v2713, %v2715
      %v2729 = vsel %vm1306, %v2711, %v2713
      %v2730 = vsel %vm1306, %v2709, %v2711
      %v2731 = vsel %vm1306, %v2723, %v2709
      %v2732 = vmul.f32 %v2731, %v1316
      %v2733 = vmul.f32 %v2730, %v1317
      %v2734 = vmul.f32 %v2729, %v1318
      %v2735 = vmul.f32 %v2728, %v1319
      %v2736 = vmul.f32 %v2727, %v1320
      %v2737 = vmul.f32 %v2726, %v1321
      %v2738 = vmul.f32 %v2725, %v1322
      %v2739 = vmul.f32 %v2724, %v1323
      %2740 = vrot.lane.b32.xlu0 %v2604, 127
      %v2741 = vpop.permute.xlu0 %2740
      %2742 = vrot.lane.b32.xlu0 %v2605, 127
      %v2743 = vpop.permute.xlu0 %2742
      %2744 = vrot.lane.b32.xlu0 %v2606, 127
      %v2745 = vpop.permute.xlu0 %2744
      %2746 = vrot.lane.b32.xlu0 %v2607, 127
      %v2747 = vpop.permute.xlu0 %2746
      %2748 = vrot.lane.b32.xlu0 %v2608, 127
      %v2749 = vpop.permute.xlu0 %2748
      %2750 = vrot.lane.b32.xlu0 %v2609, 127
      %v2751 = vpop.permute.xlu0 %2750
      %2752 = vrot.lane.b32.xlu0 %v2610, 127
      %v2753 = vpop.permute.xlu0 %2752
      %2754 = vrot.lane.b32.xlu0 %v2611, 127
      %v2755 = vpop.permute.xlu0 %2754
      %v2756 = vsel %vm1356, %v2753, %v2755
      %v2757 = vsel %vm1356, %v2751, %v2753
      %v2758 = vsel %vm1356, %v2749, %v2751
      %v2759 = vsel %vm1356, %v2747, %v2749
      %v2760 = vsel %vm1356, %v2745, %v2747
      %v2761 = vsel %vm1356, %v2743, %v2745
      %v2762 = vsel %vm1356, %v2741, %v2743
      %v2763 = vsel %vm1356, %v2755, %v2741
      %v2764 = vmul.f32 %v2762, %v1366
      %v2765 = vmul.f32 %v2761, %v1367
      %v2766 = vmul.f32 %v2760, %v1368
      %v2767 = vmul.f32 %v2759, %v1369
      %v2768 = vmul.f32 %v2758, %v1370
      %v2769 = vmul.f32 %v2757, %v1371
      %v2770 = vmul.f32 %v2756, %v1372
      %v2771 = vmul.f32 %v2763, %v1373
      %2772 = vrot.lane.b32.xlu0 %v2604, 97
      %v2773 = vpop.permute.xlu0 %2772
      %2774 = vrot.lane.b32.xlu0 %v2605, 97
      %v2775 = vpop.permute.xlu0 %2774
      %2776 = vrot.lane.b32.xlu0 %v2606, 97
      %v2777 = vpop.permute.xlu0 %2776
      %2778 = vrot.lane.b32.xlu0 %v2607, 97
      %v2779 = vpop.permute.xlu0 %2778
      %2780 = vrot.lane.b32.xlu0 %v2608, 97
      %v2781 = vpop.permute.xlu0 %2780
      %2782 = vrot.lane.b32.xlu0 %v2609, 97
      %v2783 = vpop.permute.xlu0 %2782
      %2784 = vrot.lane.b32.xlu0 %v2610, 97
      %v2785 = vpop.permute.xlu0 %2784
      %2786 = vrot.lane.b32.xlu0 %v2611, 97
      %v2787 = vpop.permute.xlu0 %2786
      %v2788 = vsel %vm1406, %v2785, %v2787
      %v2789 = vsel %vm1406, %v2783, %v2785
      %v2790 = vsel %vm1406, %v2781, %v2783
      %v2791 = vsel %vm1406, %v2779, %v2781
      %v2792 = vsel %vm1406, %v2777, %v2779
      %v2793 = vsel %vm1406, %v2775, %v2777
      %v2794 = vsel %vm1406, %v2773, %v2775
      %v2795 = vsel %vm1406, %v2787, %v2773
      %v2796 = vmul.f32 %v2794, %v1416
      %v2797 = vmul.f32 %v2793, %v1417
      %v2798 = vmul.f32 %v2792, %v1418
      %v2799 = vmul.f32 %v2791, %v1419
      %v2800 = vmul.f32 %v2790, %v1420
      %v2801 = vmul.f32 %v2789, %v1421
      %v2802 = vmul.f32 %v2788, %v1422
      %v2803 = vmul.f32 %v2795, %v1423
      %2804 = vrot.lane.b32.xlu0 %v2604, 96
      %v2805 = vpop.permute.xlu0 %2804
      %2806 = vrot.lane.b32.xlu0 %v2605, 96
      %v2807 = vpop.permute.xlu0 %2806
      %2808 = vrot.lane.b32.xlu0 %v2606, 96
      %v2809 = vpop.permute.xlu0 %2808
      %2810 = vrot.lane.b32.xlu0 %v2607, 96
      %v2811 = vpop.permute.xlu0 %2810
      %2812 = vrot.lane.b32.xlu0 %v2608, 96
      %v2813 = vpop.permute.xlu0 %2812
      %2814 = vrot.lane.b32.xlu0 %v2609, 96
      %v2815 = vpop.permute.xlu0 %2814
      %2816 = vrot.lane.b32.xlu0 %v2610, 96
      %v2817 = vpop.permute.xlu0 %2816
      %2818 = vrot.lane.b32.xlu0 %v2611, 96
      %v2819 = vpop.permute.xlu0 %2818
      %v2820 = vsel %vm1456, %v2817, %v2819
      %v2821 = vsel %vm1456, %v2815, %v2817
      %v2822 = vsel %vm1456, %v2813, %v2815
      %v2823 = vsel %vm1456, %v2811, %v2813
      %v2824 = vsel %vm1456, %v2809, %v2811
      %v2825 = vsel %vm1456, %v2807, %v2809
      %v2826 = vsel %vm1456, %v2805, %v2807
      %v2827 = vsel %vm1456, %v2819, %v2805
      %v2828 = vmul.f32 %v2826, %v1466
      %v2829 = vmul.f32 %v2825, %v1467
      %v2830 = vmul.f32 %v2824, %v1468
      %v2831 = vmul.f32 %v2823, %v1469
      %v2832 = vmul.f32 %v2822, %v1470
      %v2833 = vmul.f32 %v2821, %v1471
      %v2834 = vmul.f32 %v2820, %v1472
      %v2835 = vmul.f32 %v2827, %v1473
      %2836 = vrot.lane.b32.xlu0 %v2604, 95
      %v2837 = vpop.permute.xlu0 %2836
      %2838 = vrot.lane.b32.xlu0 %v2605, 95
      %v2839 = vpop.permute.xlu0 %2838
      %2840 = vrot.lane.b32.xlu0 %v2606, 95
      %v2841 = vpop.permute.xlu0 %2840
      %2842 = vrot.lane.b32.xlu0 %v2607, 95
      %v2843 = vpop.permute.xlu0 %2842
      %2844 = vrot.lane.b32.xlu0 %v2608, 95
      %v2845 = vpop.permute.xlu0 %2844
      %2846 = vrot.lane.b32.xlu0 %v2609, 95
      %v2847 = vpop.permute.xlu0 %2846
      %2848 = vrot.lane.b32.xlu0 %v2610, 95
      %v2849 = vpop.permute.xlu0 %2848
      %2850 = vrot.lane.b32.xlu0 %v2611, 95
      %v2851 = vpop.permute.xlu0 %2850
      %v2852 = vsel %vm1506, %v2849, %v2851
      %v2853 = vsel %vm1506, %v2847, %v2849
      %v2854 = vsel %vm1506, %v2845, %v2847
      %v2855 = vsel %vm1506, %v2843, %v2845
      %v2856 = vsel %vm1506, %v2841, %v2843
      %v2857 = vsel %vm1506, %v2839, %v2841
      %v2858 = vsel %vm1506, %v2837, %v2839
      %v2859 = vsel %vm1506, %v2851, %v2837
      %v2860 = vmul.f32 %v2858, %v1516
      %v2861 = vmul.f32 %v2857, %v1517
      %v2862 = vmul.f32 %v2856, %v1518
      %v2863 = vmul.f32 %v2855, %v1519
      %v2864 = vmul.f32 %v2854, %v1520
      %v2865 = vmul.f32 %v2853, %v1521
      %v2866 = vmul.f32 %v2852, %v1522
      %v2867 = vmul.f32 %v2859, %v1523
      %v2868 = vpack.c.bf16 %v2668, %v2636
      %v2869 = vpack.c.bf16 %v2669, %v2637
      %v2870 = vpack.c.bf16 %v2670, %v2638
      %v2871 = vpack.c.bf16 %v2671, %v2639
      %v2872 = vpack.c.bf16 %v2672, %v2640
      %v2873 = vpack.c.bf16 %v2673, %v2641
      %v2874 = vpack.c.bf16 %v2674, %v2642
      %v2875 = vpack.c.bf16 %v2675, %v2643
      %v2876 = vpack.c.bf16 %v2732, %v2700
      %v2877 = vpack.c.bf16 %v2733, %v2701
      %v2878 = vpack.c.bf16 %v2734, %v2702
      %v2879 = vpack.c.bf16 %v2735, %v2703
      %v2880 = vpack.c.bf16 %v2736, %v2704
      %v2881 = vpack.c.bf16 %v2737, %v2705
      %v2882 = vpack.c.bf16 %v2738, %v2706
      %v2883 = vpack.c.bf16 %v2739, %v2707
      %v2884 = vpack.c.bf16 %v2764, %v2604
      %v2885 = vpack.c.bf16 %v2765, %v2605
      %v2886 = vpack.c.bf16 %v2766, %v2606
      %v2887 = vpack.c.bf16 %v2767, %v2607
      %v2888 = vpack.c.bf16 %v2768, %v2608
      %v2889 = vpack.c.bf16 %v2769, %v2609
      %v2890 = vpack.c.bf16 %v2770, %v2610
      %v2891 = vpack.c.bf16 %v2771, %v2611
      %v2892 = vpack.c.bf16 %v2828, %v2796
      %v2893 = vpack.c.bf16 %v2829, %v2797
      %v2894 = vpack.c.bf16 %v2830, %v2798
      %v2895 = vpack.c.bf16 %v2831, %v2799
      %v2896 = vpack.c.bf16 %v2832, %v2800
      %v2897 = vpack.c.bf16 %v2833, %v2801
      %v2898 = vpack.c.bf16 %v2834, %v2802
      %v2899 = vpack.c.bf16 %v2835, %v2803
      %v2900 = vpack.c.bf16 %v2860, %v2860
      %v2901 = vpack.c.bf16 %v2861, %v2861
      %v2902 = vpack.c.bf16 %v2862, %v2862
      %v2903 = vpack.c.bf16 %v2863, %v2863
      %v2904 = vpack.c.bf16 %v2864, %v2864
      %v2905 = vpack.c.bf16 %v2865, %v2865
      %v2906 = vpack.c.bf16 %v2866, %v2866
      %v2907 = vpack.c.bf16 %v2867, %v2867
      %v2908 = vld [vmem:[%s15] sm:$0xf]
      %v2909 = vld [vmem:[%s17] sm:$0xff]
      %2911 = vset.pattern.permute.xlu0 0
      %2912 = vperm.xlu0 %2911, %v2909
      %v2913 = vpop.permute.xlu0 %2912
      %v2916 = vsel %vm1587, %v2908, 0
      %v2919 = vsel %vm1591, %v2900, 0
      %v2922 = vsel %vm1591, %v2901, 0
      %v2925 = vsel %vm1591, %v2902, 0
      %v2928 = vsel %vm1591, %v2903, 0
      %v2931 = vsel %vm1591, %v2904, 0
      %v2934 = vsel %vm1591, %v2905, 0
      %v2937 = vsel %vm1591, %v2906, 0
      %v2940 = vsel %vm1591, %v2907, 0
      %2942 = vmatpush.bf16.msra.mxu0 0
      %2943 = vmatpush.bf16.msra.mxu0 0
      %2944 = vmatpush.bf16.msra.mxu0 0
      %2945 = vmatpush.bf16.msra.mxu0 %v2919
      %2946 = vmatpush.bf16.msra.mxu0 %v2892
      %2947 = vmatpush.bf16.msra.mxu0 %v2884
      %2948 = vmatpush.bf16.msra.mxu0 %v2876
      %2949 = vmatpush.bf16.msra.mxu0 %v2868
      %2950 = vmatmul.bf16.gmra.mxu0 %v2916
      %v2951 = vpop.f32.mrf.mxu0
      %v2952 = vadd.f32 %v2913, %v2951
      %v2953 = vpop.f32.mrf.mxu0
      %2954 = vdwg.mxu0
      %2955 = vmatpush.bf16.msra.mxu0 0
      %2956 = vmatpush.bf16.msra.mxu0 0
      %2957 = vmatpush.bf16.msra.mxu0 0
      %2958 = vmatpush.bf16.msra.mxu0 %v2922
      %2959 = vmatpush.bf16.msra.mxu0 %v2893
      %2960 = vmatpush.bf16.msra.mxu0 %v2885
      %2961 = vmatpush.bf16.msra.mxu0 %v2877
      %2962 = vmatpush.bf16.msra.mxu0 %v2869
      %2963 = vmatmul.bf16.gmra.mxu0 %v2916
      %v2964 = vpop.f32.mrf.mxu0
      %v2965 = vadd.f32 %v2913, %v2964
      %v2966 = vpop.f32.mrf.mxu0
      %2967 = vdwg.mxu0
      %2968 = vmatpush.bf16.msra.mxu0 0
      %2969 = vmatpush.bf16.msra.mxu0 0
      %2970 = vmatpush.bf16.msra.mxu0 0
      %2971 = vmatpush.bf16.msra.mxu0 %v2925
      %2972 = vmatpush.bf16.msra.mxu0 %v2894
      %2973 = vmatpush.bf16.msra.mxu0 %v2886
      %2974 = vmatpush.bf16.msra.mxu0 %v2878
      %2975 = vmatpush.bf16.msra.mxu0 %v2870
      %2976 = vmatmul.bf16.gmra.mxu0 %v2916
      %v2977 = vpop.f32.mrf.mxu0
      %v2978 = vadd.f32 %v2913, %v2977
      %v2979 = vpop.f32.mrf.mxu0
      %2980 = vdwg.mxu0
      %2981 = vmatpush.bf16.msra.mxu0 0
      %2982 = vmatpush.bf16.msra.mxu0 0
      %2983 = vmatpush.bf16.msra.mxu0 0
      %2984 = vmatpush.bf16.msra.mxu0 %v2928
      %2985 = vmatpush.bf16.msra.mxu0 %v2895
      %2986 = vmatpush.bf16.msra.mxu0 %v2887
      %2987 = vmatpush.bf16.msra.mxu0 %v2879
      %2988 = vmatpush.bf16.msra.mxu0 %v2871
      %2989 = vmatmul.bf16.gmra.mxu0 %v2916
      %v2990 = vpop.f32.mrf.mxu0
      %v2991 = vadd.f32 %v2913, %v2990
      %v2992 = vpop.f32.mrf.mxu0
      %2993 = vdwg.mxu0
      %2994 = vmatpush.bf16.msra.mxu0 0
      %2995 = vmatpush.bf16.msra.mxu0 0
      %2996 = vmatpush.bf16.msra.mxu0 0
      %2997 = vmatpush.bf16.msra.mxu0 %v2931
      %2998 = vmatpush.bf16.msra.mxu0 %v2896
      %2999 = vmatpush.bf16.msra.mxu0 %v2888
      %3000 = vmatpush.bf16.msra.mxu0 %v2880
      %3001 = vmatpush.bf16.msra.mxu0 %v2872
      %3002 = vmatmul.bf16.gmra.mxu0 %v2916
      %v3003 = vpop.f32.mrf.mxu0
      %v3004 = vadd.f32 %v2913, %v3003
      %v3005 = vpop.f32.mrf.mxu0
      %3006 = vdwg.mxu0
      %3007 = vmatpush.bf16.msra.mxu0 0
      %3008 = vmatpush.bf16.msra.mxu0 0
      %3009 = vmatpush.bf16.msra.mxu0 0
      %3010 = vmatpush.bf16.msra.mxu0 %v2934
      %3011 = vmatpush.bf16.msra.mxu0 %v2897
      %3012 = vmatpush.bf16.msra.mxu0 %v2889
      %3013 = vmatpush.bf16.msra.mxu0 %v2881
      %3014 = vmatpush.bf16.msra.mxu0 %v2873
      %3015 = vmatmul.bf16.gmra.mxu0 %v2916
      %v3016 = vpop.f32.mrf.mxu0
      %v3017 = vadd.f32 %v2913, %v3016
      %v3018 = vpop.f32.mrf.mxu0
      %3019 = vdwg.mxu0
      %3020 = vmatpush.bf16.msra.mxu0 0
      %3021 = vmatpush.bf16.msra.mxu0 0
      %3022 = vmatpush.bf16.msra.mxu0 0
      %3023 = vmatpush.bf16.msra.mxu0 %v2937
      %3024 = vmatpush.bf16.msra.mxu0 %v2898
      %3025 = vmatpush.bf16.msra.mxu0 %v2890
      %3026 = vmatpush.bf16.msra.mxu0 %v2882
      %3027 = vmatpush.bf16.msra.mxu0 %v2874
      %3028 = vmatmul.bf16.gmra.mxu0 %v2916
      %v3029 = vpop.f32.mrf.mxu0
      %v3030 = vadd.f32 %v2913, %v3029
      %v3031 = vpop.f32.mrf.mxu0
      %3032 = vdwg.mxu0
      %3033 = vmatpush.bf16.msra.mxu0 0
      %3034 = vmatpush.bf16.msra.mxu0 0
      %3035 = vmatpush.bf16.msra.mxu0 0
      %3036 = vmatpush.bf16.msra.mxu0 %v2940
      %3037 = vmatpush.bf16.msra.mxu0 %v2899
      %3038 = vmatpush.bf16.msra.mxu0 %v2891
      %3039 = vmatpush.bf16.msra.mxu0 %v2883
      %3040 = vmatpush.bf16.msra.mxu0 %v2875
      %3041 = vmatmul.bf16.gmra.mxu0 %v2916
      %v3042 = vpop.f32.mrf.mxu0
      %v3043 = vadd.f32 %v2913, %v3042
      %v3044 = vpop.f32.mrf.mxu0
      %3045 = vdwg.mxu0
      %v3046 = vmax.f32 %v2952, 0.0
      %v3047 = vmax.f32 %v2965, 0.0
      %v3048 = vmax.f32 %v2978, 0.0
      %v3049 = vmax.f32 %v2991, 0.0
      %v3050 = vmax.f32 %v3004, 0.0
      %v3051 = vmax.f32 %v3017, 0.0
      %v3052 = vmax.f32 %v3030, 0.0
      %v3053 = vmax.f32 %v3043, 0.0
      %3054 = vrot.lane.b32.xlu0 %v3046, 33
      %v3055 = vpop.permute.xlu0 %3054
      %3056 = vrot.lane.b32.xlu0 %v3047, 33
      %v3057 = vpop.permute.xlu0 %3056
      %3058 = vrot.lane.b32.xlu0 %v3048, 33
      %v3059 = vpop.permute.xlu0 %3058
      %3060 = vrot.lane.b32.xlu0 %v3049, 33
      %v3061 = vpop.permute.xlu0 %3060
      %3062 = vrot.lane.b32.xlu0 %v3050, 33
      %v3063 = vpop.permute.xlu0 %3062
      %3064 = vrot.lane.b32.xlu0 %v3051, 33
      %v3065 = vpop.permute.xlu0 %3064
      %3066 = vrot.lane.b32.xlu0 %v3052, 33
      %v3067 = vpop.permute.xlu0 %3066
      %3068 = vrot.lane.b32.xlu0 %v3053, 33
      %v3069 = vpop.permute.xlu0 %3068
      %v3070 = vsel %vm1156, %v3067, %v3069
      %v3071 = vsel %vm1156, %v3065, %v3067
      %v3072 = vsel %vm1156, %v3063, %v3065
      %v3073 = vsel %vm1156, %v3061, %v3063
      %v3074 = vsel %vm1156, %v3059, %v3061
      %v3075 = vsel %vm1156, %v3057, %v3059
      %v3076 = vsel %vm1156, %v3055, %v3057
      %v3077 = vsel %vm1156, %v3069, %v3055
      %v3078 = vmul.f32 %v3077, %v1166
      %v3079 = vmul.f32 %v3076, %v1167
      %v3080 = vmul.f32 %v3075, %v1168
      %v3081 = vmul.f32 %v3074, %v1169
      %v3082 = vmul.f32 %v3073, %v1170
      %v3083 = vmul.f32 %v3072, %v1171
      %v3084 = vmul.f32 %v3071, %v1172
      %v3085 = vmul.f32 %v3070, %v1173
      %3086 = vrot.lane.b32.xlu0 %v3046, 32
      %v3087 = vpop.permute.xlu0 %3086
      %3088 = vrot.lane.b32.xlu0 %v3047, 32
      %v3089 = vpop.permute.xlu0 %3088
      %3090 = vrot.lane.b32.xlu0 %v3048, 32
      %v3091 = vpop.permute.xlu0 %3090
      %3092 = vrot.lane.b32.xlu0 %v3049, 32
      %v3093 = vpop.permute.xlu0 %3092
      %3094 = vrot.lane.b32.xlu0 %v3050, 32
      %v3095 = vpop.permute.xlu0 %3094
      %3096 = vrot.lane.b32.xlu0 %v3051, 32
      %v3097 = vpop.permute.xlu0 %3096
      %3098 = vrot.lane.b32.xlu0 %v3052, 32
      %v3099 = vpop.permute.xlu0 %3098
      %3100 = vrot.lane.b32.xlu0 %v3053, 32
      %v3101 = vpop.permute.xlu0 %3100
      %v3102 = vsel %vm1206, %v3099, %v3101
      %v3103 = vsel %vm1206, %v3097, %v3099
      %v3104 = vsel %vm1206, %v3095, %v3097
      %v3105 = vsel %vm1206, %v3093, %v3095
      %v3106 = vsel %vm1206, %v3091, %v3093
      %v3107 = vsel %vm1206, %v3089, %v3091
      %v3108 = vsel %vm1206, %v3087, %v3089
      %v3109 = vsel %vm1206, %v3101, %v3087
      %v3110 = vmul.f32 %v3109, %v1216
      %v3111 = vmul.f32 %v3108, %v1217
      %v3112 = vmul.f32 %v3107, %v1218
      %v3113 = vmul.f32 %v3106, %v1219
      %v3114 = vmul.f32 %v3105, %v1220
      %v3115 = vmul.f32 %v3104, %v1221
      %v3116 = vmul.f32 %v3103, %v1222
      %v3117 = vmul.f32 %v3102, %v1223
      %3118 = vrot.lane.b32.xlu0 %v3046, 31
      %v3119 = vpop.permute.xlu0 %3118
      %3120 = vrot.lane.b32.xlu0 %v3047, 31
      %v3121 = vpop.permute.xlu0 %3120
      %3122 = vrot.lane.b32.xlu0 %v3048, 31
      %v3123 = vpop.permute.xlu0 %3122
      %3124 = vrot.lane.b32.xlu0 %v3049, 31
      %v3125 = vpop.permute.xlu0 %3124
      %3126 = vrot.lane.b32.xlu0 %v3050, 31
      %v3127 = vpop.permute.xlu0 %3126
      %3128 = vrot.lane.b32.xlu0 %v3051, 31
      %v3129 = vpop.permute.xlu0 %3128
      %3130 = vrot.lane.b32.xlu0 %v3052, 31
      %v3131 = vpop.permute.xlu0 %3130
      %3132 = vrot.lane.b32.xlu0 %v3053, 31
      %v3133 = vpop.permute.xlu0 %3132
      %v3134 = vsel %vm1256, %v3131, %v3133
      %v3135 = vsel %vm1256, %v3129, %v3131
      %v3136 = vsel %vm1256, %v3127, %v3129
      %v3137 = vsel %vm1256, %v3125, %v3127
      %v3138 = vsel %vm1256, %v3123, %v3125
      %v3139 = vsel %vm1256, %v3121, %v3123
      %v3140 = vsel %vm1256, %v3119, %v3121
      %v3141 = vsel %vm1256, %v3133, %v3119
      %v3142 = vmul.f32 %v3141, %v1266
      %v3143 = vmul.f32 %v3140, %v1267
      %v3144 = vmul.f32 %v3139, %v1268
      %v3145 = vmul.f32 %v3138, %v1269
      %v3146 = vmul.f32 %v3137, %v1270
      %v3147 = vmul.f32 %v3136, %v1271
      %v3148 = vmul.f32 %v3135, %v1272
      %v3149 = vmul.f32 %v3134, %v1273
      %3150 = vrot.lane.b32.xlu0 %v3046, 1
      %v3151 = vpop.permute.xlu0 %3150
      %3152 = vrot.lane.b32.xlu0 %v3047, 1
      %v3153 = vpop.permute.xlu0 %3152
      %3154 = vrot.lane.b32.xlu0 %v3048, 1
      %v3155 = vpop.permute.xlu0 %3154
      %3156 = vrot.lane.b32.xlu0 %v3049, 1
      %v3157 = vpop.permute.xlu0 %3156
      %3158 = vrot.lane.b32.xlu0 %v3050, 1
      %v3159 = vpop.permute.xlu0 %3158
      %3160 = vrot.lane.b32.xlu0 %v3051, 1
      %v3161 = vpop.permute.xlu0 %3160
      %3162 = vrot.lane.b32.xlu0 %v3052, 1
      %v3163 = vpop.permute.xlu0 %3162
      %3164 = vrot.lane.b32.xlu0 %v3053, 1
      %v3165 = vpop.permute.xlu0 %3164
      %v3166 = vsel %vm1306, %v3163, %v3165
      %v3167 = vsel %vm1306, %v3161, %v3163
      %v3168 = vsel %vm1306, %v3159, %v3161
      %v3169 = vsel %vm1306, %v3157, %v3159
      %v3170 = vsel %vm1306, %v3155, %v3157
      %v3171 = vsel %vm1306, %v3153, %v3155
      %v3172 = vsel %vm1306, %v3151, %v3153
      %v3173 = vsel %vm1306, %v3165, %v3151
      %v3174 = vmul.f32 %v3173, %v1316
      %v3175 = vmul.f32 %v3172, %v1317
      %v3176 = vmul.f32 %v3171, %v1318
      %v3177 = vmul.f32 %v3170, %v1319
      %v3178 = vmul.f32 %v3169, %v1320
      %v3179 = vmul.f32 %v3168, %v1321
      %v3180 = vmul.f32 %v3167, %v1322
      %v3181 = vmul.f32 %v3166, %v1323
      %3182 = vrot.lane.b32.xlu0 %v3046, 127
      %v3183 = vpop.permute.xlu0 %3182
      %3184 = vrot.lane.b32.xlu0 %v3047, 127
      %v3185 = vpop.permute.xlu0 %3184
      %3186 = vrot.lane.b32.xlu0 %v3048, 127
      %v3187 = vpop.permute.xlu0 %3186
      %3188 = vrot.lane.b32.xlu0 %v3049, 127
      %v3189 = vpop.permute.xlu0 %3188
      %3190 = vrot.lane.b32.xlu0 %v3050, 127
      %v3191 = vpop.permute.xlu0 %3190
      %3192 = vrot.lane.b32.xlu0 %v3051, 127
      %v3193 = vpop.permute.xlu0 %3192
      %3194 = vrot.lane.b32.xlu0 %v3052, 127
      %v3195 = vpop.permute.xlu0 %3194
      %3196 = vrot.lane.b32.xlu0 %v3053, 127
      %v3197 = vpop.permute.xlu0 %3196
      %v3198 = vsel %vm1356, %v3195, %v3197
      %v3199 = vsel %vm1356, %v3193, %v3195
      %v3200 = vsel %vm1356, %v3191, %v3193
      %v3201 = vsel %vm1356, %v3189, %v3191
      %v3202 = vsel %vm1356, %v3187, %v3189
      %v3203 = vsel %vm1356, %v3185, %v3187
      %v3204 = vsel %vm1356, %v3183, %v3185
      %v3205 = vsel %vm1356, %v3197, %v3183
      %v3206 = vmul.f32 %v3204, %v1366
      %v3207 = vmul.f32 %v3203, %v1367
      %v3208 = vmul.f32 %v3202, %v1368
      %v3209 = vmul.f32 %v3201, %v1369
      %v3210 = vmul.f32 %v3200, %v1370
      %v3211 = vmul.f32 %v3199, %v1371
      %v3212 = vmul.f32 %v3198, %v1372
      %v3213 = vmul.f32 %v3205, %v1373
      %3214 = vrot.lane.b32.xlu0 %v3046, 97
      %v3215 = vpop.permute.xlu0 %3214
      %3216 = vrot.lane.b32.xlu0 %v3047, 97
      %v3217 = vpop.permute.xlu0 %3216
      %3218 = vrot.lane.b32.xlu0 %v3048, 97
      %v3219 = vpop.permute.xlu0 %3218
      %3220 = vrot.lane.b32.xlu0 %v3049, 97
      %v3221 = vpop.permute.xlu0 %3220
      %3222 = vrot.lane.b32.xlu0 %v3050, 97
      %v3223 = vpop.permute.xlu0 %3222
      %3224 = vrot.lane.b32.xlu0 %v3051, 97
      %v3225 = vpop.permute.xlu0 %3224
      %3226 = vrot.lane.b32.xlu0 %v3052, 97
      %v3227 = vpop.permute.xlu0 %3226
      %3228 = vrot.lane.b32.xlu0 %v3053, 97
      %v3229 = vpop.permute.xlu0 %3228
      %v3230 = vsel %vm1406, %v3227, %v3229
      %v3231 = vsel %vm1406, %v3225, %v3227
      %v3232 = vsel %vm1406, %v3223, %v3225
      %v3233 = vsel %vm1406, %v3221, %v3223
      %v3234 = vsel %vm1406, %v3219, %v3221
      %v3235 = vsel %vm1406, %v3217, %v3219
      %v3236 = vsel %vm1406, %v3215, %v3217
      %v3237 = vsel %vm1406, %v3229, %v3215
      %v3238 = vmul.f32 %v3236, %v1416
      %v3239 = vmul.f32 %v3235, %v1417
      %v3240 = vmul.f32 %v3234, %v1418
      %v3241 = vmul.f32 %v3233, %v1419
      %v3242 = vmul.f32 %v3232, %v1420
      %v3243 = vmul.f32 %v3231, %v1421
      %v3244 = vmul.f32 %v3230, %v1422
      %v3245 = vmul.f32 %v3237, %v1423
      %3246 = vrot.lane.b32.xlu0 %v3046, 96
      %v3247 = vpop.permute.xlu0 %3246
      %3248 = vrot.lane.b32.xlu0 %v3047, 96
      %v3249 = vpop.permute.xlu0 %3248
      %3250 = vrot.lane.b32.xlu0 %v3048, 96
      %v3251 = vpop.permute.xlu0 %3250
      %3252 = vrot.lane.b32.xlu0 %v3049, 96
      %v3253 = vpop.permute.xlu0 %3252
      %3254 = vrot.lane.b32.xlu0 %v3050, 96
      %v3255 = vpop.permute.xlu0 %3254
      %3256 = vrot.lane.b32.xlu0 %v3051, 96
      %v3257 = vpop.permute.xlu0 %3256
      %3258 = vrot.lane.b32.xlu0 %v3052, 96
      %v3259 = vpop.permute.xlu0 %3258
      %3260 = vrot.lane.b32.xlu0 %v3053, 96
      %v3261 = vpop.permute.xlu0 %3260
      %v3262 = vsel %vm1456, %v3259, %v3261
      %v3263 = vsel %vm1456, %v3257, %v3259
      %v3264 = vsel %vm1456, %v3255, %v3257
      %v3265 = vsel %vm1456, %v3253, %v3255
      %v3266 = vsel %vm1456, %v3251, %v3253
      %v3267 = vsel %vm1456, %v3249, %v3251
      %v3268 = vsel %vm1456, %v3247, %v3249
      %v3269 = vsel %vm1456, %v3261, %v3247
      %v3270 = vmul.f32 %v3268, %v1466
      %v3271 = vmul.f32 %v3267, %v1467
      %v3272 = vmul.f32 %v3266, %v1468
      %v3273 = vmul.f32 %v3265, %v1469
      %v3274 = vmul.f32 %v3264, %v1470
      %v3275 = vmul.f32 %v3263, %v1471
      %v3276 = vmul.f32 %v3262, %v1472
      %v3277 = vmul.f32 %v3269, %v1473
      %3278 = vrot.lane.b32.xlu0 %v3046, 95
      %v3279 = vpop.permute.xlu0 %3278
      %3280 = vrot.lane.b32.xlu0 %v3047, 95
      %v3281 = vpop.permute.xlu0 %3280
      %3282 = vrot.lane.b32.xlu0 %v3048, 95
      %v3283 = vpop.permute.xlu0 %3282
      %3284 = vrot.lane.b32.xlu0 %v3049, 95
      %v3285 = vpop.permute.xlu0 %3284
      %3286 = vrot.lane.b32.xlu0 %v3050, 95
      %v3287 = vpop.permute.xlu0 %3286
      %3288 = vrot.lane.b32.xlu0 %v3051, 95
      %v3289 = vpop.permute.xlu0 %3288
      %3290 = vrot.lane.b32.xlu0 %v3052, 95
      %v3291 = vpop.permute.xlu0 %3290
      %3292 = vrot.lane.b32.xlu0 %v3053, 95
      %v3293 = vpop.permute.xlu0 %3292
      %v3294 = vsel %vm1506, %v3291, %v3293
      %v3295 = vsel %vm1506, %v3289, %v3291
      %v3296 = vsel %vm1506, %v3287, %v3289
      %v3297 = vsel %vm1506, %v3285, %v3287
      %v3298 = vsel %vm1506, %v3283, %v3285
      %v3299 = vsel %vm1506, %v3281, %v3283
      %v3300 = vsel %vm1506, %v3279, %v3281
      %v3301 = vsel %vm1506, %v3293, %v3279
      %v3302 = vmul.f32 %v3300, %v1516
      %v3303 = vmul.f32 %v3299, %v1517
      %v3304 = vmul.f32 %v3298, %v1518
      %v3305 = vmul.f32 %v3297, %v1519
      %v3306 = vmul.f32 %v3296, %v1520
      %v3307 = vmul.f32 %v3295, %v1521
      %v3308 = vmul.f32 %v3294, %v1522
      %v3309 = vmul.f32 %v3301, %v1523
      %v3310 = vpack.c.bf16 %v3110, %v3078
      %v3311 = vpack.c.bf16 %v3111, %v3079
      %v3312 = vpack.c.bf16 %v3112, %v3080
      %v3313 = vpack.c.bf16 %v3113, %v3081
      %v3314 = vpack.c.bf16 %v3114, %v3082
      %v3315 = vpack.c.bf16 %v3115, %v3083
      %v3316 = vpack.c.bf16 %v3116, %v3084
      %v3317 = vpack.c.bf16 %v3117, %v3085
      %v3318 = vpack.c.bf16 %v3174, %v3142
      %v3319 = vpack.c.bf16 %v3175, %v3143
      %v3320 = vpack.c.bf16 %v3176, %v3144
      %v3321 = vpack.c.bf16 %v3177, %v3145
      %v3322 = vpack.c.bf16 %v3178, %v3146
      %v3323 = vpack.c.bf16 %v3179, %v3147
      %v3324 = vpack.c.bf16 %v3180, %v3148
      %v3325 = vpack.c.bf16 %v3181, %v3149
      %v3326 = vpack.c.bf16 %v3206, %v3046
      %v3327 = vpack.c.bf16 %v3207, %v3047
      %v3328 = vpack.c.bf16 %v3208, %v3048
      %v3329 = vpack.c.bf16 %v3209, %v3049
      %v3330 = vpack.c.bf16 %v3210, %v3050
      %v3331 = vpack.c.bf16 %v3211, %v3051
      %v3332 = vpack.c.bf16 %v3212, %v3052
      %v3333 = vpack.c.bf16 %v3213, %v3053
      %v3334 = vpack.c.bf16 %v3270, %v3238
      %v3335 = vpack.c.bf16 %v3271, %v3239
      %v3336 = vpack.c.bf16 %v3272, %v3240
      %v3337 = vpack.c.bf16 %v3273, %v3241
      %v3338 = vpack.c.bf16 %v3274, %v3242
      %v3339 = vpack.c.bf16 %v3275, %v3243
      %v3340 = vpack.c.bf16 %v3276, %v3244
      %v3341 = vpack.c.bf16 %v3277, %v3245
      %v3342 = vpack.c.bf16 %v3302, %v3302
      %v3343 = vpack.c.bf16 %v3303, %v3303
      %v3344 = vpack.c.bf16 %v3304, %v3304
      %v3345 = vpack.c.bf16 %v3305, %v3305
      %v3346 = vpack.c.bf16 %v3306, %v3306
      %v3347 = vpack.c.bf16 %v3307, %v3307
      %v3348 = vpack.c.bf16 %v3308, %v3308
      %v3349 = vpack.c.bf16 %v3309, %v3309
      %v3350 = vld [vmem:[%s19] sm:$0xf]
      %v3351 = vld [vmem:[%s21] sm:$0xff]
      %3353 = vset.pattern.permute.xlu0 0
      %3354 = vperm.xlu0 %3353, %v3351
      %v3355 = vpop.permute.xlu0 %3354
      %v3358 = vsel %vm1587, %v3350, 0
      %v3361 = vsel %vm1591, %v3342, 0
      %v3364 = vsel %vm1591, %v3343, 0
      %v3367 = vsel %vm1591, %v3344, 0
      %v3370 = vsel %vm1591, %v3345, 0
      %v3373 = vsel %vm1591, %v3346, 0
      %v3376 = vsel %vm1591, %v3347, 0
      %v3379 = vsel %vm1591, %v3348, 0
      %v3382 = vsel %vm1591, %v3349, 0
      %3384 = vmatpush.bf16.msra.mxu0 0
      %3385 = vmatpush.bf16.msra.mxu0 0
      %3386 = vmatpush.bf16.msra.mxu0 0
      %3387 = vmatpush.bf16.msra.mxu0 %v3361
      %3388 = vmatpush.bf16.msra.mxu0 %v3334
      %3389 = vmatpush.bf16.msra.mxu0 %v3326
      %3390 = vmatpush.bf16.msra.mxu0 %v3318
      %3391 = vmatpush.bf16.msra.mxu0 %v3310
      %3392 = vmatmul.bf16.gmra.mxu0 %v3358
      %v3393 = vpop.f32.mrf.mxu0
      %v3394 = vadd.f32 %v3355, %v3393
      %v3395 = vpop.f32.mrf.mxu0
      %3396 = vdwg.mxu0
      %3397 = vmatpush.bf16.msra.mxu0 0
      %3398 = vmatpush.bf16.msra.mxu0 0
      %3399 = vmatpush.bf16.msra.mxu0 0
      %3400 = vmatpush.bf16.msra.mxu0 %v3364
      %3401 = vmatpush.bf16.msra.mxu0 %v3335
      %3402 = vmatpush.bf16.msra.mxu0 %v3327
      %3403 = vmatpush.bf16.msra.mxu0 %v3319
      %3404 = vmatpush.bf16.msra.mxu0 %v3311
      %3405 = vmatmul.bf16.gmra.mxu0 %v3358
      %v3406 = vpop.f32.mrf.mxu0
      %v3407 = vadd.f32 %v3355, %v3406
      %v3408 = vpop.f32.mrf.mxu0
      %3409 = vdwg.mxu0
      %3410 = vmatpush.bf16.msra.mxu0 0
      %3411 = vmatpush.bf16.msra.mxu0 0
      %3412 = vmatpush.bf16.msra.mxu0 0
      %3413 = vmatpush.bf16.msra.mxu0 %v3367
      %3414 = vmatpush.bf16.msra.mxu0 %v3336
      %3415 = vmatpush.bf16.msra.mxu0 %v3328
      %3416 = vmatpush.bf16.msra.mxu0 %v3320
      %3417 = vmatpush.bf16.msra.mxu0 %v3312
      %3418 = vmatmul.bf16.gmra.mxu0 %v3358
      %v3419 = vpop.f32.mrf.mxu0
      %v3420 = vadd.f32 %v3355, %v3419
      %v3421 = vpop.f32.mrf.mxu0
      %3422 = vdwg.mxu0
      %3423 = vmatpush.bf16.msra.mxu0 0
      %3424 = vmatpush.bf16.msra.mxu0 0
      %3425 = vmatpush.bf16.msra.mxu0 0
      %3426 = vmatpush.bf16.msra.mxu0 %v3370
      %3427 = vmatpush.bf16.msra.mxu0 %v3337
      %3428 = vmatpush.bf16.msra.mxu0 %v3329
      %3429 = vmatpush.bf16.msra.mxu0 %v3321
      %3430 = vmatpush.bf16.msra.mxu0 %v3313
      %3431 = vmatmul.bf16.gmra.mxu0 %v3358
      %v3432 = vpop.f32.mrf.mxu0
      %v3433 = vadd.f32 %v3355, %v3432
      %v3434 = vpop.f32.mrf.mxu0
      %3435 = vdwg.mxu0
      %3436 = vmatpush.bf16.msra.mxu0 0
      %3437 = vmatpush.bf16.msra.mxu0 0
      %3438 = vmatpush.bf16.msra.mxu0 0
      %3439 = vmatpush.bf16.msra.mxu0 %v3373
      %3440 = vmatpush.bf16.msra.mxu0 %v3338
      %3441 = vmatpush.bf16.msra.mxu0 %v3330
      %3442 = vmatpush.bf16.msra.mxu0 %v3322
      %3443 = vmatpush.bf16.msra.mxu0 %v3314
      %3444 = vmatmul.bf16.gmra.mxu0 %v3358
      %v3445 = vpop.f32.mrf.mxu0
      %v3446 = vadd.f32 %v3355, %v3445
      %v3447 = vpop.f32.mrf.mxu0
      %3448 = vdwg.mxu0
      %3449 = vmatpush.bf16.msra.mxu0 0
      %3450 = vmatpush.bf16.msra.mxu0 0
      %3451 = vmatpush.bf16.msra.mxu0 0
      %3452 = vmatpush.bf16.msra.mxu0 %v3376
      %3453 = vmatpush.bf16.msra.mxu0 %v3339
      %3454 = vmatpush.bf16.msra.mxu0 %v3331
      %3455 = vmatpush.bf16.msra.mxu0 %v3323
      %3456 = vmatpush.bf16.msra.mxu0 %v3315
      %3457 = vmatmul.bf16.gmra.mxu0 %v3358
      %v3458 = vpop.f32.mrf.mxu0
      %v3459 = vadd.f32 %v3355, %v3458
      %v3460 = vpop.f32.mrf.mxu0
      %3461 = vdwg.mxu0
      %3462 = vmatpush.bf16.msra.mxu0 0
      %3463 = vmatpush.bf16.msra.mxu0 0
      %3464 = vmatpush.bf16.msra.mxu0 0
      %3465 = vmatpush.bf16.msra.mxu0 %v3379
      %3466 = vmatpush.bf16.msra.mxu0 %v3340
      %3467 = vmatpush.bf16.msra.mxu0 %v3332
      %3468 = vmatpush.bf16.msra.mxu0 %v3324
      %3469 = vmatpush.bf16.msra.mxu0 %v3316
      %3470 = vmatmul.bf16.gmra.mxu0 %v3358
      %v3471 = vpop.f32.mrf.mxu0
      %v3472 = vadd.f32 %v3355, %v3471
      %v3473 = vpop.f32.mrf.mxu0
      %3474 = vdwg.mxu0
      %3475 = vmatpush.bf16.msra.mxu0 0
      %3476 = vmatpush.bf16.msra.mxu0 0
      %3477 = vmatpush.bf16.msra.mxu0 0
      %3478 = vmatpush.bf16.msra.mxu0 %v3382
      %3479 = vmatpush.bf16.msra.mxu0 %v3341
      %3480 = vmatpush.bf16.msra.mxu0 %v3333
      %3481 = vmatpush.bf16.msra.mxu0 %v3325
      %3482 = vmatpush.bf16.msra.mxu0 %v3317
      %3483 = vmatmul.bf16.gmra.mxu0 %v3358
      %v3484 = vpop.f32.mrf.mxu0
      %v3485 = vadd.f32 %v3355, %v3484
      %v3486 = vpop.f32.mrf.mxu0
      %3487 = vdwg.mxu0
      %v3488 = vadd.f32 %v2604, %v3394
      %v3489 = vadd.f32 %v2605, %v3407
      %v3490 = vadd.f32 %v2606, %v3420
      %v3491 = vadd.f32 %v2607, %v3433
      %v3492 = vadd.f32 %v2608, %v3446
      %v3493 = vadd.f32 %v2609, %v3459
      %v3494 = vadd.f32 %v2610, %v3472
      %v3495 = vadd.f32 %v2611, %v3485
      %3496 = vrot.lane.b32.xlu0 %v3488, 33
      %v3497 = vpop.permute.xlu0 %3496
      %3498 = vrot.lane.b32.xlu0 %v3489, 33
      %v3499 = vpop.permute.xlu0 %3498
      %3500 = vrot.lane.b32.xlu0 %v3490, 33
      %v3501 = vpop.permute.xlu0 %3500
      %3502 = vrot.lane.b32.xlu0 %v3491, 33
      %v3503 = vpop.permute.xlu0 %3502
      %3504 = vrot.lane.b32.xlu0 %v3492, 33
      %v3505 = vpop.permute.xlu0 %3504
      %3506 = vrot.lane.b32.xlu0 %v3493, 33
      %v3507 = vpop.permute.xlu0 %3506
      %3508 = vrot.lane.b32.xlu0 %v3494, 33
      %v3509 = vpop.permute.xlu0 %3508
      %3510 = vrot.lane.b32.xlu0 %v3495, 33
      %v3511 = vpop.permute.xlu0 %3510
      %v3512 = vsel %vm1156, %v3509, %v3511
      %v3513 = vsel %vm1156, %v3507, %v3509
      %v3514 = vsel %vm1156, %v3505, %v3507
      %v3515 = vsel %vm1156, %v3503, %v3505
      %v3516 = vsel %vm1156, %v3501, %v3503
      %v3517 = vsel %vm1156, %v3499, %v3501
      %v3518 = vsel %vm1156, %v3497, %v3499
      %v3519 = vsel %vm1156, %v3511, %v3497
      %v3520 = vmul.f32 %v3519, %v1166
      %v3521 = vmul.f32 %v3518, %v1167
      %v3522 = vmul.f32 %v3517, %v1168
      %v3523 = vmul.f32 %v3516, %v1169
      %v3524 = vmul.f32 %v3515, %v1170
      %v3525 = vmul.f32 %v3514, %v1171
      %v3526 = vmul.f32 %v3513, %v1172
      %v3527 = vmul.f32 %v3512, %v1173
      %3528 = vrot.lane.b32.xlu0 %v3488, 32
      %v3529 = vpop.permute.xlu0 %3528
      %3530 = vrot.lane.b32.xlu0 %v3489, 32
      %v3531 = vpop.permute.xlu0 %3530
      %3532 = vrot.lane.b32.xlu0 %v3490, 32
      %v3533 = vpop.permute.xlu0 %3532
      %3534 = vrot.lane.b32.xlu0 %v3491, 32
      %v3535 = vpop.permute.xlu0 %3534
      %3536 = vrot.lane.b32.xlu0 %v3492, 32
      %v3537 = vpop.permute.xlu0 %3536
      %3538 = vrot.lane.b32.xlu0 %v3493, 32
      %v3539 = vpop.permute.xlu0 %3538
      %3540 = vrot.lane.b32.xlu0 %v3494, 32
      %v3541 = vpop.permute.xlu0 %3540
      %3542 = vrot.lane.b32.xlu0 %v3495, 32
      %v3543 = vpop.permute.xlu0 %3542
      %v3544 = vsel %vm1206, %v3541, %v3543
      %v3545 = vsel %vm1206, %v3539, %v3541
      %v3546 = vsel %vm1206, %v3537, %v3539
      %v3547 = vsel %vm1206, %v3535, %v3537
      %v3548 = vsel %vm1206, %v3533, %v3535
      %v3549 = vsel %vm1206, %v3531, %v3533
      %v3550 = vsel %vm1206, %v3529, %v3531
      %v3551 = vsel %vm1206, %v3543, %v3529
      %v3552 = vmul.f32 %v3551, %v1216
      %v3553 = vmul.f32 %v3550, %v1217
      %v3554 = vmul.f32 %v3549, %v1218
      %v3555 = vmul.f32 %v3548, %v1219
      %v3556 = vmul.f32 %v3547, %v1220
      %v3557 = vmul.f32 %v3546, %v1221
      %v3558 = vmul.f32 %v3545, %v1222
      %v3559 = vmul.f32 %v3544, %v1223
      %3560 = vrot.lane.b32.xlu0 %v3488, 31
      %v3561 = vpop.permute.xlu0 %3560
      %3562 = vrot.lane.b32.xlu0 %v3489, 31
      %v3563 = vpop.permute.xlu0 %3562
      %3564 = vrot.lane.b32.xlu0 %v3490, 31
      %v3565 = vpop.permute.xlu0 %3564
      %3566 = vrot.lane.b32.xlu0 %v3491, 31
      %v3567 = vpop.permute.xlu0 %3566
      %3568 = vrot.lane.b32.xlu0 %v3492, 31
      %v3569 = vpop.permute.xlu0 %3568
      %3570 = vrot.lane.b32.xlu0 %v3493, 31
      %v3571 = vpop.permute.xlu0 %3570
      %3572 = vrot.lane.b32.xlu0 %v3494, 31
      %v3573 = vpop.permute.xlu0 %3572
      %3574 = vrot.lane.b32.xlu0 %v3495, 31
      %v3575 = vpop.permute.xlu0 %3574
      %v3576 = vsel %vm1256, %v3573, %v3575
      %v3577 = vsel %vm1256, %v3571, %v3573
      %v3578 = vsel %vm1256, %v3569, %v3571
      %v3579 = vsel %vm1256, %v3567, %v3569
      %v3580 = vsel %vm1256, %v3565, %v3567
      %v3581 = vsel %vm1256, %v3563, %v3565
      %v3582 = vsel %vm1256, %v3561, %v3563
      %v3583 = vsel %vm1256, %v3575, %v3561
      %v3584 = vmul.f32 %v3583, %v1266
      %v3585 = vmul.f32 %v3582, %v1267
      %v3586 = vmul.f32 %v3581, %v1268
      %v3587 = vmul.f32 %v3580, %v1269
      %v3588 = vmul.f32 %v3579, %v1270
      %v3589 = vmul.f32 %v3578, %v1271
      %v3590 = vmul.f32 %v3577, %v1272
      %v3591 = vmul.f32 %v3576, %v1273
      %3592 = vrot.lane.b32.xlu0 %v3488, 1
      %v3593 = vpop.permute.xlu0 %3592
      %3594 = vrot.lane.b32.xlu0 %v3489, 1
      %v3595 = vpop.permute.xlu0 %3594
      %3596 = vrot.lane.b32.xlu0 %v3490, 1
      %v3597 = vpop.permute.xlu0 %3596
      %3598 = vrot.lane.b32.xlu0 %v3491, 1
      %v3599 = vpop.permute.xlu0 %3598
      %3600 = vrot.lane.b32.xlu0 %v3492, 1
      %v3601 = vpop.permute.xlu0 %3600
      %3602 = vrot.lane.b32.xlu0 %v3493, 1
      %v3603 = vpop.permute.xlu0 %3602
      %3604 = vrot.lane.b32.xlu0 %v3494, 1
      %v3605 = vpop.permute.xlu0 %3604
      %3606 = vrot.lane.b32.xlu0 %v3495, 1
      %v3607 = vpop.permute.xlu0 %3606
      %v3608 = vsel %vm1306, %v3605, %v3607
      %v3609 = vsel %vm1306, %v3603, %v3605
      %v3610 = vsel %vm1306, %v3601, %v3603
      %v3611 = vsel %vm1306, %v3599, %v3601
      %v3612 = vsel %vm1306, %v3597, %v3599
      %v3613 = vsel %vm1306, %v3595, %v3597
      %v3614 = vsel %vm1306, %v3593, %v3595
      %v3615 = vsel %vm1306, %v3607, %v3593
      %v3616 = vmul.f32 %v3615, %v1316
      %v3617 = vmul.f32 %v3614, %v1317
      %v3618 = vmul.f32 %v3613, %v1318
      %v3619 = vmul.f32 %v3612, %v1319
      %v3620 = vmul.f32 %v3611, %v1320
      %v3621 = vmul.f32 %v3610, %v1321
      %v3622 = vmul.f32 %v3609, %v1322
      %v3623 = vmul.f32 %v3608, %v1323
      %3624 = vrot.lane.b32.xlu0 %v3488, 127
      %v3625 = vpop.permute.xlu0 %3624
      %3626 = vrot.lane.b32.xlu0 %v3489, 127
      %v3627 = vpop.permute.xlu0 %3626
      %3628 = vrot.lane.b32.xlu0 %v3490, 127
      %v3629 = vpop.permute.xlu0 %3628
      %3630 = vrot.lane.b32.xlu0 %v3491, 127
      %v3631 = vpop.permute.xlu0 %3630
      %3632 = vrot.lane.b32.xlu0 %v3492, 127
      %v3633 = vpop.permute.xlu0 %3632
      %3634 = vrot.lane.b32.xlu0 %v3493, 127
      %v3635 = vpop.permute.xlu0 %3634
      %3636 = vrot.lane.b32.xlu0 %v3494, 127
      %v3637 = vpop.permute.xlu0 %3636
      %3638 = vrot.lane.b32.xlu0 %v3495, 127
      %v3639 = vpop.permute.xlu0 %3638
      %v3640 = vsel %vm1356, %v3637, %v3639
      %v3641 = vsel %vm1356, %v3635, %v3637
      %v3642 = vsel %vm1356, %v3633, %v3635
      %v3643 = vsel %vm1356, %v3631, %v3633
      %v3644 = vsel %vm1356, %v3629, %v3631
      %v3645 = vsel %vm1356, %v3627, %v3629
      %v3646 = vsel %vm1356, %v3625, %v3627
      %v3647 = vsel %vm1356, %v3639, %v3625
      %v3648 = vmul.f32 %v3646, %v1366
      %v3649 = vmul.f32 %v3645, %v1367
      %v3650 = vmul.f32 %v3644, %v1368
      %v3651 = vmul.f32 %v3643, %v1369
      %v3652 = vmul.f32 %v3642, %v1370
      %v3653 = vmul.f32 %v3641, %v1371
      %v3654 = vmul.f32 %v3640, %v1372
      %v3655 = vmul.f32 %v3647, %v1373
      %3656 = vrot.lane.b32.xlu0 %v3488, 97
      %v3657 = vpop.permute.xlu0 %3656
      %3658 = vrot.lane.b32.xlu0 %v3489, 97
      %v3659 = vpop.permute.xlu0 %3658
      %3660 = vrot.lane.b32.xlu0 %v3490, 97
      %v3661 = vpop.permute.xlu0 %3660
      %3662 = vrot.lane.b32.xlu0 %v3491, 97
      %v3663 = vpop.permute.xlu0 %3662
      %3664 = vrot.lane.b32.xlu0 %v3492, 97
      %v3665 = vpop.permute.xlu0 %3664
      %3666 = vrot.lane.b32.xlu0 %v3493, 97
      %v3667 = vpop.permute.xlu0 %3666
      %3668 = vrot.lane.b32.xlu0 %v3494, 97
      %v3669 = vpop.permute.xlu0 %3668
      %3670 = vrot.lane.b32.xlu0 %v3495, 97
      %v3671 = vpop.permute.xlu0 %3670
      %v3672 = vsel %vm1406, %v3669, %v3671
      %v3673 = vsel %vm1406, %v3667, %v3669
      %v3674 = vsel %vm1406, %v3665, %v3667
      %v3675 = vsel %vm1406, %v3663, %v3665
      %v3676 = vsel %vm1406, %v3661, %v3663
      %v3677 = vsel %vm1406, %v3659, %v3661
      %v3678 = vsel %vm1406, %v3657, %v3659
      %v3679 = vsel %vm1406, %v3671, %v3657
      %v3680 = vmul.f32 %v3678, %v1416
      %v3681 = vmul.f32 %v3677, %v1417
      %v3682 = vmul.f32 %v3676, %v1418
      %v3683 = vmul.f32 %v3675, %v1419
      %v3684 = vmul.f32 %v3674, %v1420
      %v3685 = vmul.f32 %v3673, %v1421
      %v3686 = vmul.f32 %v3672, %v1422
      %v3687 = vmul.f32 %v3679, %v1423
      %3688 = vrot.lane.b32.xlu0 %v3488, 96
      %v3689 = vpop.permute.xlu0 %3688
      %3690 = vrot.lane.b32.xlu0 %v3489, 96
      %v3691 = vpop.permute.xlu0 %3690
      %3692 = vrot.lane.b32.xlu0 %v3490, 96
      %v3693 = vpop.permute.xlu0 %3692
      %3694 = vrot.lane.b32.xlu0 %v3491, 96
      %v3695 = vpop.permute.xlu0 %3694
      %3696 = vrot.lane.b32.xlu0 %v3492, 96
      %v3697 = vpop.permute.xlu0 %3696
      %3698 = vrot.lane.b32.xlu0 %v3493, 96
      %v3699 = vpop.permute.xlu0 %3698
      %3700 = vrot.lane.b32.xlu0 %v3494, 96
      %v3701 = vpop.permute.xlu0 %3700
      %3702 = vrot.lane.b32.xlu0 %v3495, 96
      %v3703 = vpop.permute.xlu0 %3702
      %v3704 = vsel %vm1456, %v3701, %v3703
      %v3705 = vsel %vm1456, %v3699, %v3701
      %v3706 = vsel %vm1456, %v3697, %v3699
      %v3707 = vsel %vm1456, %v3695, %v3697
      %v3708 = vsel %vm1456, %v3693, %v3695
      %v3709 = vsel %vm1456, %v3691, %v3693
      %v3710 = vsel %vm1456, %v3689, %v3691
      %v3711 = vsel %vm1456, %v3703, %v3689
      %v3712 = vmul.f32 %v3710, %v1466
      %v3713 = vmul.f32 %v3709, %v1467
      %v3714 = vmul.f32 %v3708, %v1468
      %v3715 = vmul.f32 %v3707, %v1469
      %v3716 = vmul.f32 %v3706, %v1470
      %v3717 = vmul.f32 %v3705, %v1471
      %v3718 = vmul.f32 %v3704, %v1472
      %v3719 = vmul.f32 %v3711, %v1473
      %3720 = vrot.lane.b32.xlu0 %v3488, 95
      %v3721 = vpop.permute.xlu0 %3720
      %3722 = vrot.lane.b32.xlu0 %v3489, 95
      %v3723 = vpop.permute.xlu0 %3722
      %3724 = vrot.lane.b32.xlu0 %v3490, 95
      %v3725 = vpop.permute.xlu0 %3724
      %3726 = vrot.lane.b32.xlu0 %v3491, 95
      %v3727 = vpop.permute.xlu0 %3726
      %3728 = vrot.lane.b32.xlu0 %v3492, 95
      %v3729 = vpop.permute.xlu0 %3728
      %3730 = vrot.lane.b32.xlu0 %v3493, 95
      %v3731 = vpop.permute.xlu0 %3730
      %3732 = vrot.lane.b32.xlu0 %v3494, 95
      %v3733 = vpop.permute.xlu0 %3732
      %3734 = vrot.lane.b32.xlu0 %v3495, 95
      %v3735 = vpop.permute.xlu0 %3734
      %v3736 = vsel %vm1506, %v3733, %v3735
      %v3737 = vsel %vm1506, %v3731, %v3733
      %v3738 = vsel %vm1506, %v3729, %v3731
      %v3739 = vsel %vm1506, %v3727, %v3729
      %v3740 = vsel %vm1506, %v3725, %v3727
      %v3741 = vsel %vm1506, %v3723, %v3725
      %v3742 = vsel %vm1506, %v3721, %v3723
      %v3743 = vsel %vm1506, %v3735, %v3721
      %v3744 = vmul.f32 %v3742, %v1516
      %v3745 = vmul.f32 %v3741, %v1517
      %v3746 = vmul.f32 %v3740, %v1518
      %v3747 = vmul.f32 %v3739, %v1519
      %v3748 = vmul.f32 %v3738, %v1520
      %v3749 = vmul.f32 %v3737, %v1521
      %v3750 = vmul.f32 %v3736, %v1522
      %v3751 = vmul.f32 %v3743, %v1523
      %v3752 = vpack.c.bf16 %v3552, %v3520
      %v3753 = vpack.c.bf16 %v3553, %v3521
      %v3754 = vpack.c.bf16 %v3554, %v3522
      %v3755 = vpack.c.bf16 %v3555, %v3523
      %v3756 = vpack.c.bf16 %v3556, %v3524
      %v3757 = vpack.c.bf16 %v3557, %v3525
      %v3758 = vpack.c.bf16 %v3558, %v3526
      %v3759 = vpack.c.bf16 %v3559, %v3527
      %v3760 = vpack.c.bf16 %v3616, %v3584
      %v3761 = vpack.c.bf16 %v3617, %v3585
      %v3762 = vpack.c.bf16 %v3618, %v3586
      %v3763 = vpack.c.bf16 %v3619, %v3587
      %v3764 = vpack.c.bf16 %v3620, %v3588
      %v3765 = vpack.c.bf16 %v3621, %v3589
      %v3766 = vpack.c.bf16 %v3622, %v3590
      %v3767 = vpack.c.bf16 %v3623, %v3591
      %v3768 = vpack.c.bf16 %v3648, %v3488
      %v3769 = vpack.c.bf16 %v3649, %v3489
      %v3770 = vpack.c.bf16 %v3650, %v3490
      %v3771 = vpack.c.bf16 %v3651, %v3491
      %v3772 = vpack.c.bf16 %v3652, %v3492
      %v3773 = vpack.c.bf16 %v3653, %v3493
      %v3774 = vpack.c.bf16 %v3654, %v3494
      %v3775 = vpack.c.bf16 %v3655, %v3495
      %v3776 = vpack.c.bf16 %v3712, %v3680
      %v3777 = vpack.c.bf16 %v3713, %v3681
      %v3778 = vpack.c.bf16 %v3714, %v3682
      %v3779 = vpack.c.bf16 %v3715, %v3683
      %v3780 = vpack.c.bf16 %v3716, %v3684
      %v3781 = vpack.c.bf16 %v3717, %v3685
      %v3782 = vpack.c.bf16 %v3718, %v3686
      %v3783 = vpack.c.bf16 %v3719, %v3687
      %v3784 = vpack.c.bf16 %v3744, %v3744
      %v3785 = vpack.c.bf16 %v3745, %v3745
      %v3786 = vpack.c.bf16 %v3746, %v3746
      %v3787 = vpack.c.bf16 %v3747, %v3747
      %v3788 = vpack.c.bf16 %v3748, %v3748
      %v3789 = vpack.c.bf16 %v3749, %v3749
      %v3790 = vpack.c.bf16 %v3750, %v3750
      %v3791 = vpack.c.bf16 %v3751, %v3751
      %v3792 = vld [vmem:[%s23] sm:$0xf]
      %v3793 = vld [vmem:[%s23 + $0x4] sm:$0xf]
      %v3794 = vld [vmem:[%s25] sm:$0xff]
      %v3795 = vld [vmem:[%s25 + $0x8] sm:$0xff]
      %3797 = vset.pattern.permute.xlu0 0
      %3798 = vperm.xlu0 %3797, %v3794
      %v3799 = vpop.permute.xlu0 %3798
      %3802 = vset.pattern.permute.xlu0 0
      %3803 = vperm.xlu0 %3802, %v3795
      %v3804 = vpop.permute.xlu0 %3803
      %v3808 = vunpack.c.l.b16 %v3792
      %v3809 = vunpack.c.l.b16 %v3793
      %v3810 = vpack.c.b16 %v3809, %v3808
      %v3812 = vsel %vm1587, %v3810, 0
      %v3815 = vsel %vm1591, %v3784, 0
      %v3818 = vsel %vm1591, %v3785, 0
      %v3821 = vsel %vm1591, %v3786, 0
      %v3824 = vsel %vm1591, %v3787, 0
      %v3827 = vsel %vm1591, %v3788, 0
      %v3830 = vsel %vm1591, %v3789, 0
      %v3833 = vsel %vm1591, %v3790, 0
      %v3836 = vsel %vm1591, %v3791, 0
      %3838 = vmatpush.bf16.msra.mxu0 0
      %3839 = vmatpush.bf16.msra.mxu0 0
      %3840 = vmatpush.bf16.msra.mxu0 0
      %3841 = vmatpush.bf16.msra.mxu0 %v3815
      %3842 = vmatpush.bf16.msra.mxu0 %v3776
      %3843 = vmatpush.bf16.msra.mxu0 %v3768
      %3844 = vmatpush.bf16.msra.mxu0 %v3760
      %3845 = vmatpush.bf16.msra.mxu0 %v3752
      %3846 = vmatmul.bf16.gmra.mxu0 %v3812
      %v3847 = vpop.f32.mrf.mxu0
      %v3848 = vadd.f32 %v3799, %v3847
      %v3849 = vpop.f32.mrf.mxu0
      %v3850 = vadd.f32 %v3804, %v3849
      %3851 = vdwg.mxu0
      %3852 = vmatpush.bf16.msra.mxu0 0
      %3853 = vmatpush.bf16.msra.mxu0 0
      %3854 = vmatpush.bf16.msra.mxu0 0
      %3855 = vmatpush.bf16.msra.mxu0 %v3818
      %3856 = vmatpush.bf16.msra.mxu0 %v3777
      %3857 = vmatpush.bf16.msra.mxu0 %v3769
      %3858 = vmatpush.bf16.msra.mxu0 %v3761
      %3859 = vmatpush.bf16.msra.mxu0 %v3753
      %3860 = vmatmul.bf16.gmra.mxu0 %v3812
      %v3861 = vpop.f32.mrf.mxu0
      %v3862 = vadd.f32 %v3799, %v3861
      %v3863 = vpop.f32.mrf.mxu0
      %v3864 = vadd.f32 %v3804, %v3863
      %3865 = vdwg.mxu0
      %3866 = vmatpush.bf16.msra.mxu0 0
      %3867 = vmatpush.bf16.msra.mxu0 0
      %3868 = vmatpush.bf16.msra.mxu0 0
      %3869 = vmatpush.bf16.msra.mxu0 %v3821
      %3870 = vmatpush.bf16.msra.mxu0 %v3778
      %3871 = vmatpush.bf16.msra.mxu0 %v3770
      %3872 = vmatpush.bf16.msra.mxu0 %v3762
      %3873 = vmatpush.bf16.msra.mxu0 %v3754
      %3874 = vmatmul.bf16.gmra.mxu0 %v3812
      %v3875 = vpop.f32.mrf.mxu0
      %v3876 = vadd.f32 %v3799, %v3875
      %v3877 = vpop.f32.mrf.mxu0
      %v3878 = vadd.f32 %v3804, %v3877
      %3879 = vdwg.mxu0
      %3880 = vmatpush.bf16.msra.mxu0 0
      %3881 = vmatpush.bf16.msra.mxu0 0
      %3882 = vmatpush.bf16.msra.mxu0 0
      %3883 = vmatpush.bf16.msra.mxu0 %v3824
      %3884 = vmatpush.bf16.msra.mxu0 %v3779
      %3885 = vmatpush.bf16.msra.mxu0 %v3771
      %3886 = vmatpush.bf16.msra.mxu0 %v3763
      %3887 = vmatpush.bf16.msra.mxu0 %v3755
      %3888 = vmatmul.bf16.gmra.mxu0 %v3812
      %v3889 = vpop.f32.mrf.mxu0
      %v3890 = vadd.f32 %v3799, %v3889
      %v3891 = vpop.f32.mrf.mxu0
      %v3892 = vadd.f32 %v3804, %v3891
      %3893 = vdwg.mxu0
      %3894 = vmatpush.bf16.msra.mxu0 0
      %3895 = vmatpush.bf16.msra.mxu0 0
      %3896 = vmatpush.bf16.msra.mxu0 0
      %3897 = vmatpush.bf16.msra.mxu0 %v3827
      %3898 = vmatpush.bf16.msra.mxu0 %v3780
      %3899 = vmatpush.bf16.msra.mxu0 %v3772
      %3900 = vmatpush.bf16.msra.mxu0 %v3764
      %3901 = vmatpush.bf16.msra.mxu0 %v3756
      %3902 = vmatmul.bf16.gmra.mxu0 %v3812
      %v3903 = vpop.f32.mrf.mxu0
      %v3904 = vadd.f32 %v3799, %v3903
      %v3905 = vpop.f32.mrf.mxu0
      %v3906 = vadd.f32 %v3804, %v3905
      %3907 = vdwg.mxu0
      %3908 = vmatpush.bf16.msra.mxu0 0
      %3909 = vmatpush.bf16.msra.mxu0 0
      %3910 = vmatpush.bf16.msra.mxu0 0
      %3911 = vmatpush.bf16.msra.mxu0 %v3830
      %3912 = vmatpush.bf16.msra.mxu0 %v3781
      %3913 = vmatpush.bf16.msra.mxu0 %v3773
      %3914 = vmatpush.bf16.msra.mxu0 %v3765
      %3915 = vmatpush.bf16.msra.mxu0 %v3757
      %3916 = vmatmul.bf16.gmra.mxu0 %v3812
      %v3917 = vpop.f32.mrf.mxu0
      %v3918 = vadd.f32 %v3799, %v3917
      %v3919 = vpop.f32.mrf.mxu0
      %v3920 = vadd.f32 %v3804, %v3919
      %3921 = vdwg.mxu0
      %3922 = vmatpush.bf16.msra.mxu0 0
      %3923 = vmatpush.bf16.msra.mxu0 0
      %3924 = vmatpush.bf16.msra.mxu0 0
      %3925 = vmatpush.bf16.msra.mxu0 %v3833
      %3926 = vmatpush.bf16.msra.mxu0 %v3782
      %3927 = vmatpush.bf16.msra.mxu0 %v3774
      %3928 = vmatpush.bf16.msra.mxu0 %v3766
      %3929 = vmatpush.bf16.msra.mxu0 %v3758
      %3930 = vmatmul.bf16.gmra.mxu0 %v3812
      %v3931 = vpop.f32.mrf.mxu0
      %v3932 = vadd.f32 %v3799, %v3931
      %v3933 = vpop.f32.mrf.mxu0
      %v3934 = vadd.f32 %v3804, %v3933
      %3935 = vdwg.mxu0
      %3936 = vmatpush.bf16.msra.mxu0 0
      %3937 = vmatpush.bf16.msra.mxu0 0
      %3938 = vmatpush.bf16.msra.mxu0 0
      %3939 = vmatpush.bf16.msra.mxu0 %v3836
      %3940 = vmatpush.bf16.msra.mxu0 %v3783
      %3941 = vmatpush.bf16.msra.mxu0 %v3775
      %3942 = vmatpush.bf16.msra.mxu0 %v3767
      %3943 = vmatpush.bf16.msra.mxu0 %v3759
      %3944 = vmatmul.bf16.gmra.mxu0 %v3812
      %v3945 = vpop.f32.mrf.mxu0
      %v3946 = vadd.f32 %v3799, %v3945
      %v3947 = vpop.f32.mrf.mxu0
      %v3948 = vadd.f32 %v3804, %v3947
      %3949 = vdwg.mxu0
      %v3950 = vmax.f32 %v3848, 0.0
      %v3951 = vmax.f32 %v3862, 0.0
      %v3952 = vmax.f32 %v3876, 0.0
      %v3953 = vmax.f32 %v3890, 0.0
      %v3954 = vmax.f32 %v3904, 0.0
      %v3955 = vmax.f32 %v3918, 0.0
      %v3956 = vmax.f32 %v3932, 0.0
      %v3957 = vmax.f32 %v3946, 0.0
      %v3958 = vmax.f32 %v3850, 0.0
      %v3959 = vmax.f32 %v3864, 0.0
      %v3960 = vmax.f32 %v3878, 0.0
      %v3961 = vmax.f32 %v3892, 0.0
      %v3962 = vmax.f32 %v3906, 0.0
      %v3963 = vmax.f32 %v3920, 0.0
      %v3964 = vmax.f32 %v3934, 0.0
      %v3965 = vmax.f32 %v3948, 0.0
      %v3966 = vld [vmem:[%s55] sm:$0xff]
      %v3967 = vld [vmem:[%s55 + $0x8] sm:$0xff]
      %v3968 = vld [vmem:[%s55 + $0x10] sm:$0xff]
      %v3969 = vld [vmem:[%s55 + $0x18] sm:$0xff]
      %v3970 = vld [vmem:[%s55 + $0x20] sm:$0xff]
      %v3971 = vld [vmem:[%s55 + $0x28] sm:$0xff]
      %v3972 = vld [vmem:[%s55 + $0x30] sm:$0xff]
      %v3973 = vld [vmem:[%s55 + $0x38] sm:$0xff]
      %v3974 = vld [vmem:[%s55 + $0x40] sm:$0xff]
      %v3975 = vld [vmem:[%s55 + $0x48] sm:$0xff]
      %v3976 = vld [vmem:[%s55 + $0x50] sm:$0xff]
      %v3977 = vld [vmem:[%s55 + $0x58] sm:$0xff]
      %v3978 = vld [vmem:[%s55 + $0x60] sm:$0xff]
      %v3979 = vld [vmem:[%s55 + $0x68] sm:$0xff]
      %v3980 = vld [vmem:[%s55 + $0x70] sm:$0xff]
      %v3981 = vld [vmem:[%s55 + $0x78] sm:$0xff]
      %v3982 = vld [vmem:[%s55 + $0x80] sm:$0xff]
      %v3983 = vld [vmem:[%s55 + $0x88] sm:$0xff]
      %v3984 = vld [vmem:[%s55 + $0x90] sm:$0xff]
      %v3985 = vld [vmem:[%s55 + $0x98] sm:$0xff]
      %v3986 = vld [vmem:[%s55 + $0xa0] sm:$0xff]
      %v3987 = vld [vmem:[%s55 + $0xa8] sm:$0xff]
      %v3988 = vld [vmem:[%s55 + $0xb0] sm:$0xff]
      %v3989 = vld [vmem:[%s55 + $0xb8] sm:$0xff]
      %v3990 = vld [vmem:[%s55 + $0xc0] sm:$0xff]
      %v3991 = vld [vmem:[%s55 + $0xc8] sm:$0xff]
      %v3992 = vld [vmem:[%s55 + $0xd0] sm:$0xff]
      %v3993 = vld [vmem:[%s55 + $0xd8] sm:$0xff]
      %v3994 = vld [vmem:[%s55 + $0xe0] sm:$0xff]
      %v3995 = vld [vmem:[%s55 + $0xe8] sm:$0xff]
      %v3996 = vld [vmem:[%s55 + $0xf0] sm:$0xff]
      %v3997 = vld [vmem:[%s55 + $0xf8] sm:$0xff]
      %v3998 = vld [vmem:[%s55 + $0x100] sm:$0xff]
      %v3999 = vld [vmem:[%s55 + $0x108] sm:$0xff]
      %v4000 = vld [vmem:[%s55 + $0x110] sm:$0xff]
      %v4001 = vld [vmem:[%s55 + $0x118] sm:$0xff]
      %v4002 = vld [vmem:[%s55 + $0x120] sm:$0xff]
      %v4003 = vld [vmem:[%s55 + $0x128] sm:$0xff]
      %v4004 = vld [vmem:[%s55 + $0x130] sm:$0xff]
      %v4005 = vld [vmem:[%s55 + $0x138] sm:$0xff]
      %v4006 = vld [vmem:[%s55 + $0x140] sm:$0xff]
      %v4007 = vld [vmem:[%s55 + $0x148] sm:$0xff]
      %v4008 = vld [vmem:[%s55 + $0x150] sm:$0xff]
      %v4009 = vld [vmem:[%s55 + $0x158] sm:$0xff]
      %v4010 = vld [vmem:[%s55 + $0x160] sm:$0xff]
      %v4011 = vld [vmem:[%s55 + $0x168] sm:$0xff]
      %v4012 = vld [vmem:[%s55 + $0x170] sm:$0xff]
      %v4013 = vld [vmem:[%s55 + $0x178] sm:$0xff]
      %v4014 = vld [vmem:[%s55 + $0x180] sm:$0xff]
      %v4015 = vld [vmem:[%s55 + $0x188] sm:$0xff]
      %v4016 = vld [vmem:[%s55 + $0x190] sm:$0xff]
      %v4017 = vld [vmem:[%s55 + $0x198] sm:$0xff]
      %v4018 = vld [vmem:[%s55 + $0x1a0] sm:$0xff]
      %v4019 = vld [vmem:[%s55 + $0x1a8] sm:$0xff]
      %v4020 = vld [vmem:[%s55 + $0x1b0] sm:$0xff]
      %v4021 = vld [vmem:[%s55 + $0x1b8] sm:$0xff]
      %v4022 = vld [vmem:[%s55 + $0x1c0] sm:$0xff]
      %v4023 = vld [vmem:[%s55 + $0x1c8] sm:$0xff]
      %v4024 = vld [vmem:[%s55 + $0x1d0] sm:$0xff]
      %v4025 = vld [vmem:[%s55 + $0x1d8] sm:$0xff]
      %v4026 = vld [vmem:[%s55 + $0x1e0] sm:$0xff]
      %v4027 = vld [vmem:[%s55 + $0x1e8] sm:$0xff]
      %v4028 = vld [vmem:[%s55 + $0x1f0] sm:$0xff]
      %v4029 = vld [vmem:[%s55 + $0x1f8] sm:$0xff]
      %v4030 = vld [vmem:[%s55 + $0x200] sm:$0xff]
      %v4031 = vld [vmem:[%s55 + $0x208] sm:$0xff]
      %v4032 = vld [vmem:[%s55 + $0x210] sm:$0xff]
      %v4033 = vld [vmem:[%s55 + $0x218] sm:$0xff]
      %v4034 = vld [vmem:[%s55 + $0x220] sm:$0xff]
      %v4035 = vld [vmem:[%s55 + $0x228] sm:$0xff]
      %v4036 = vld [vmem:[%s55 + $0x230] sm:$0xff]
      %v4037 = vld [vmem:[%s55 + $0x238] sm:$0xff]
      %v4038 = vld [vmem:[%s55 + $0x240] sm:$0xff]
      %v4039 = vld [vmem:[%s55 + $0x248] sm:$0xff]
      %v4040 = vld [vmem:[%s55 + $0x250] sm:$0xff]
      %v4041 = vld [vmem:[%s55 + $0x258] sm:$0xff]
      %v4042 = vld [vmem:[%s55 + $0x260] sm:$0xff]
      %v4043 = vld [vmem:[%s55 + $0x268] sm:$0xff]
      %v4044 = vld [vmem:[%s55 + $0x270] sm:$0xff]
      %v4045 = vld [vmem:[%s55 + $0x278] sm:$0xff]
      %v4046 = vld [vmem:[%s55 + $0x280] sm:$0xff]
      %v4047 = vld [vmem:[%s55 + $0x288] sm:$0xff]
      %v4048 = vld [vmem:[%s55 + $0x290] sm:$0xff]
      %v4049 = vld [vmem:[%s55 + $0x298] sm:$0xff]
      %v4050 = vld [vmem:[%s55 + $0x2a0] sm:$0xff]
      %v4051 = vld [vmem:[%s55 + $0x2a8] sm:$0xff]
      %v4052 = vld [vmem:[%s55 + $0x2b0] sm:$0xff]
      %v4053 = vld [vmem:[%s55 + $0x2b8] sm:$0xff]
      %v4054 = vld [vmem:[%s55 + $0x2c0] sm:$0xff]
      %v4055 = vld [vmem:[%s55 + $0x2c8] sm:$0xff]
      %v4056 = vld [vmem:[%s55 + $0x2d0] sm:$0xff]
      %v4057 = vld [vmem:[%s55 + $0x2d8] sm:$0xff]
      %v4058 = vld [vmem:[%s55 + $0x2e0] sm:$0xff]
      %v4059 = vld [vmem:[%s55 + $0x2e8] sm:$0xff]
      %v4060 = vld [vmem:[%s55 + $0x2f0] sm:$0xff]
      %v4061 = vld [vmem:[%s55 + $0x2f8] sm:$0xff]
      %v4062 = vld [vmem:[%s55 + $0x300] sm:$0xff]
      %v4063 = vld [vmem:[%s55 + $0x308] sm:$0xff]
      %v4064 = vld [vmem:[%s55 + $0x310] sm:$0xff]
      %v4065 = vld [vmem:[%s55 + $0x318] sm:$0xff]
      %v4066 = vld [vmem:[%s55 + $0x320] sm:$0xff]
      %v4067 = vld [vmem:[%s55 + $0x328] sm:$0xff]
      %v4068 = vld [vmem:[%s55 + $0x330] sm:$0xff]
      %v4069 = vld [vmem:[%s55 + $0x338] sm:$0xff]
      %v4070 = vld [vmem:[%s55 + $0x340] sm:$0xff]
      %v4071 = vld [vmem:[%s55 + $0x348] sm:$0xff]
      %v4072 = vld [vmem:[%s55 + $0x350] sm:$0xff]
      %v4073 = vld [vmem:[%s55 + $0x358] sm:$0xff]
      %v4074 = vld [vmem:[%s55 + $0x360] sm:$0xff]
      %v4075 = vld [vmem:[%s55 + $0x368] sm:$0xff]
      %v4076 = vld [vmem:[%s55 + $0x370] sm:$0xff]
      %v4077 = vld [vmem:[%s55 + $0x378] sm:$0xff]
      %v4078 = vld [vmem:[%s55 + $0x380] sm:$0xff]
      %v4079 = vld [vmem:[%s55 + $0x388] sm:$0xff]
      %v4080 = vld [vmem:[%s55 + $0x390] sm:$0xff]
      %v4081 = vld [vmem:[%s55 + $0x398] sm:$0xff]
      %v4082 = vld [vmem:[%s55 + $0x3a0] sm:$0xff]
      %v4083 = vld [vmem:[%s55 + $0x3a8] sm:$0xff]
      %v4084 = vld [vmem:[%s55 + $0x3b0] sm:$0xff]
      %v4085 = vld [vmem:[%s55 + $0x3b8] sm:$0xff]
      %v4086 = vld [vmem:[%s55 + $0x3c0] sm:$0xff]
      %v4087 = vld [vmem:[%s55 + $0x3c8] sm:$0xff]
      %v4088 = vld [vmem:[%s55 + $0x3d0] sm:$0xff]
      %v4089 = vld [vmem:[%s55 + $0x3d8] sm:$0xff]
      %v4090 = vld [vmem:[%s55 + $0x3e0] sm:$0xff]
      %v4091 = vld [vmem:[%s55 + $0x3e8] sm:$0xff]
      %v4092 = vld [vmem:[%s55 + $0x3f0] sm:$0xff]
      %v4093 = vld [vmem:[%s55 + $0x3f8] sm:$0xff]
      %v4094 = vld [vmem:[%s55 + $0x400] sm:$0xff]
      %v4095 = vld [vmem:[%s55 + $0x408] sm:$0xff]
      %v4096 = vld [vmem:[%s55 + $0x410] sm:$0xff]
      %v4097 = vld [vmem:[%s55 + $0x418] sm:$0xff]
      %v4098 = vld [vmem:[%s55 + $0x420] sm:$0xff]
      %v4099 = vld [vmem:[%s55 + $0x428] sm:$0xff]
      %v4100 = vld [vmem:[%s55 + $0x430] sm:$0xff]
      %v4101 = vld [vmem:[%s55 + $0x438] sm:$0xff]
      %v4102 = vld [vmem:[%s55 + $0x440] sm:$0xff]
      %v4103 = vld [vmem:[%s55 + $0x448] sm:$0xff]
      %v4104 = vld [vmem:[%s55 + $0x450] sm:$0xff]
      %v4105 = vld [vmem:[%s55 + $0x458] sm:$0xff]
      %v4106 = vld [vmem:[%s55 + $0x460] sm:$0xff]
      %v4107 = vld [vmem:[%s55 + $0x468] sm:$0xff]
      %v4108 = vld [vmem:[%s55 + $0x470] sm:$0xff]
      %v4109 = vld [vmem:[%s55 + $0x478] sm:$0xff]
      %v4110 = vld [vmem:[%s55 + $0x480] sm:$0xff]
      %v4111 = vld [vmem:[%s55 + $0x488] sm:$0xff]
      %v4112 = vld [vmem:[%s55 + $0x490] sm:$0xff]
      %v4113 = vld [vmem:[%s55 + $0x498] sm:$0xff]
      %v4114 = vld [vmem:[%s55 + $0x4a0] sm:$0xff]
      %v4115 = vld [vmem:[%s55 + $0x4a8] sm:$0xff]
      %v4116 = vld [vmem:[%s55 + $0x4b0] sm:$0xff]
      %v4117 = vld [vmem:[%s55 + $0x4b8] sm:$0xff]
      %v4118 = vld [vmem:[%s55 + $0x4c0] sm:$0xff]
      %v4119 = vld [vmem:[%s55 + $0x4c8] sm:$0xff]
      %v4120 = vld [vmem:[%s55 + $0x4d0] sm:$0xff]
      %v4121 = vld [vmem:[%s55 + $0x4d8] sm:$0xff]
      %v4122 = vld [vmem:[%s55 + $0x4e0] sm:$0xff]
      %v4123 = vld [vmem:[%s55 + $0x4e8] sm:$0xff]
      %v4124 = vld [vmem:[%s55 + $0x4f0] sm:$0xff]
      %v4125 = vld [vmem:[%s55 + $0x4f8] sm:$0xff]
      %v4126 = vld [vmem:[%s55 + $0x500] sm:$0xff]
      %v4127 = vld [vmem:[%s55 + $0x508] sm:$0xff]
      %v4128 = vld [vmem:[%s55 + $0x510] sm:$0xff]
      %v4129 = vld [vmem:[%s55 + $0x518] sm:$0xff]
      %v4130 = vld [vmem:[%s55 + $0x520] sm:$0xff]
      %v4131 = vld [vmem:[%s55 + $0x528] sm:$0xff]
      %v4132 = vld [vmem:[%s55 + $0x530] sm:$0xff]
      %v4133 = vld [vmem:[%s55 + $0x538] sm:$0xff]
      %v4134 = vld [vmem:[%s55 + $0x540] sm:$0xff]
      %v4135 = vld [vmem:[%s55 + $0x548] sm:$0xff]
      %v4136 = vld [vmem:[%s55 + $0x550] sm:$0xff]
      %v4137 = vld [vmem:[%s55 + $0x558] sm:$0xff]
      %v4138 = vld [vmem:[%s55 + $0x560] sm:$0xff]
      %v4139 = vld [vmem:[%s55 + $0x568] sm:$0xff]
      %v4140 = vld [vmem:[%s55 + $0x570] sm:$0xff]
      %v4141 = vld [vmem:[%s55 + $0x578] sm:$0xff]
      %v4142 = vld [vmem:[%s55 + $0x580] sm:$0xff]
      %v4143 = vld [vmem:[%s55 + $0x588] sm:$0xff]
      %v4144 = vld [vmem:[%s55 + $0x590] sm:$0xff]
      %v4145 = vld [vmem:[%s55 + $0x598] sm:$0xff]
      %v4146 = vld [vmem:[%s55 + $0x5a0] sm:$0xff]
      %v4147 = vld [vmem:[%s55 + $0x5a8] sm:$0xff]
      %v4148 = vld [vmem:[%s55 + $0x5b0] sm:$0xff]
      %v4149 = vld [vmem:[%s55 + $0x5b8] sm:$0xff]
      %v4150 = vld [vmem:[%s55 + $0x5c0] sm:$0xff]
      %v4151 = vld [vmem:[%s55 + $0x5c8] sm:$0xff]
      %v4152 = vld [vmem:[%s55 + $0x5d0] sm:$0xff]
      %v4153 = vld [vmem:[%s55 + $0x5d8] sm:$0xff]
      %v4154 = vld [vmem:[%s55 + $0x5e0] sm:$0xff]
      %v4155 = vld [vmem:[%s55 + $0x5e8] sm:$0xff]
      %v4156 = vld [vmem:[%s55 + $0x5f0] sm:$0xff]
      %v4157 = vld [vmem:[%s55 + $0x5f8] sm:$0xff]
      %v4158 = vld [vmem:[%s55 + $0x600] sm:$0xff]
      %v4159 = vld [vmem:[%s55 + $0x608] sm:$0xff]
      %v4160 = vld [vmem:[%s55 + $0x610] sm:$0xff]
      %v4161 = vld [vmem:[%s55 + $0x618] sm:$0xff]
      %v4162 = vld [vmem:[%s55 + $0x620] sm:$0xff]
      %v4163 = vld [vmem:[%s55 + $0x628] sm:$0xff]
      %v4164 = vld [vmem:[%s55 + $0x630] sm:$0xff]
      %v4165 = vld [vmem:[%s55 + $0x638] sm:$0xff]
      %v4166 = vld [vmem:[%s55 + $0x640] sm:$0xff]
      %v4167 = vld [vmem:[%s55 + $0x648] sm:$0xff]
      %v4168 = vld [vmem:[%s55 + $0x650] sm:$0xff]
      %v4169 = vld [vmem:[%s55 + $0x658] sm:$0xff]
      %v4170 = vld [vmem:[%s55 + $0x660] sm:$0xff]
      %v4171 = vld [vmem:[%s55 + $0x668] sm:$0xff]
      %v4172 = vld [vmem:[%s55 + $0x670] sm:$0xff]
      %v4173 = vld [vmem:[%s55 + $0x678] sm:$0xff]
      %v4174 = vld [vmem:[%s55 + $0x680] sm:$0xff]
      %v4175 = vld [vmem:[%s55 + $0x688] sm:$0xff]
      %v4176 = vld [vmem:[%s55 + $0x690] sm:$0xff]
      %v4177 = vld [vmem:[%s55 + $0x698] sm:$0xff]
      %v4178 = vld [vmem:[%s55 + $0x6a0] sm:$0xff]
      %v4179 = vld [vmem:[%s55 + $0x6a8] sm:$0xff]
      %v4180 = vld [vmem:[%s55 + $0x6b0] sm:$0xff]
      %v4181 = vld [vmem:[%s55 + $0x6b8] sm:$0xff]
      %v4182 = vld [vmem:[%s55 + $0x6c0] sm:$0xff]
      %v4183 = vld [vmem:[%s55 + $0x6c8] sm:$0xff]
      %v4184 = vld [vmem:[%s55 + $0x6d0] sm:$0xff]
      %v4185 = vld [vmem:[%s55 + $0x6d8] sm:$0xff]
      %v4186 = vld [vmem:[%s55 + $0x6e0] sm:$0xff]
      %v4187 = vld [vmem:[%s55 + $0x6e8] sm:$0xff]
      %v4188 = vld [vmem:[%s55 + $0x6f0] sm:$0xff]
      %v4189 = vld [vmem:[%s55 + $0x6f8] sm:$0xff]
      %v4190 = vld [vmem:[%s55 + $0x700] sm:$0xff]
      %v4191 = vld [vmem:[%s55 + $0x708] sm:$0xff]
      %v4192 = vld [vmem:[%s55 + $0x710] sm:$0xff]
      %v4193 = vld [vmem:[%s55 + $0x718] sm:$0xff]
      %v4194 = vld [vmem:[%s55 + $0x720] sm:$0xff]
      %v4195 = vld [vmem:[%s55 + $0x728] sm:$0xff]
      %v4196 = vld [vmem:[%s55 + $0x730] sm:$0xff]
      %v4197 = vld [vmem:[%s55 + $0x738] sm:$0xff]
      %v4198 = vld [vmem:[%s55 + $0x740] sm:$0xff]
      %v4199 = vld [vmem:[%s55 + $0x748] sm:$0xff]
      %v4200 = vld [vmem:[%s55 + $0x750] sm:$0xff]
      %v4201 = vld [vmem:[%s55 + $0x758] sm:$0xff]
      %v4202 = vld [vmem:[%s55 + $0x760] sm:$0xff]
      %v4203 = vld [vmem:[%s55 + $0x768] sm:$0xff]
      %v4204 = vld [vmem:[%s55 + $0x770] sm:$0xff]
      %v4205 = vld [vmem:[%s55 + $0x778] sm:$0xff]
      %v4206 = vld [vmem:[%s55 + $0x780] sm:$0xff]
      %v4207 = vld [vmem:[%s55 + $0x788] sm:$0xff]
      %v4208 = vld [vmem:[%s55 + $0x790] sm:$0xff]
      %v4209 = vld [vmem:[%s55 + $0x798] sm:$0xff]
      %v4210 = vld [vmem:[%s55 + $0x7a0] sm:$0xff]
      %v4211 = vld [vmem:[%s55 + $0x7a8] sm:$0xff]
      %v4212 = vld [vmem:[%s55 + $0x7b0] sm:$0xff]
      %v4213 = vld [vmem:[%s55 + $0x7b8] sm:$0xff]
      %v4214 = vld [vmem:[%s55 + $0x7c0] sm:$0xff]
      %v4215 = vld [vmem:[%s55 + $0x7c8] sm:$0xff]
      %v4216 = vld [vmem:[%s55 + $0x7d0] sm:$0xff]
      %v4217 = vld [vmem:[%s55 + $0x7d8] sm:$0xff]
      %v4218 = vld [vmem:[%s55 + $0x7e0] sm:$0xff]
      %v4219 = vld [vmem:[%s55 + $0x7e8] sm:$0xff]
      %v4220 = vld [vmem:[%s55 + $0x7f0] sm:$0xff]
      %v4221 = vld [vmem:[%s55 + $0x7f8] sm:$0xff]
      %4222 = vmatpush.msra.mxu0 %v3996
      %4223 = vmatpush.msra.mxu0 %v3994
      %4224 = vmatpush.msra.mxu0 %v3992
      %4225 = vmatpush.msra.mxu0 %v3990
      %4226 = vmatpush.msra.mxu0 %v3988
      %4227 = vmatpush.msra.mxu0 %v3986
      %4228 = vmatpush.msra.mxu0 %v3984
      %4229 = vmatpush.msra.mxu0 %v3982
      %4230 = vmatpush.msra.mxu0 %v3980
      %4231 = vmatpush.msra.mxu0 %v3978
      %4232 = vmatpush.msra.mxu0 %v3976
      %4233 = vmatpush.msra.mxu0 %v3974
      %4234 = vmatpush.msra.mxu0 %v3972
      %4235 = vmatpush.msra.mxu0 %v3970
      %4236 = vmatpush.msra.mxu0 %v3968
      %4237 = vmatpush.msra.mxu0 %v3966
      %4238 = vmatmul.f32.gmra.mxu0 %v3950
      %v4239 = vpop.f32.mrf.mxu0
      %v4240 = vadd.f32 0.0, %v4239
      %4241 = vmatmul.f32.gmra.mxu0 %v3958
      %v4242 = vpop.f32.mrf.mxu0
      %v4243 = vadd.f32 0.0, %v4242
      %4244 = vdwg.mxu0
      %4245 = vmatpush.msra.mxu0 %v4028
      %4246 = vmatpush.msra.mxu0 %v4026
      %4247 = vmatpush.msra.mxu0 %v4024
      %4248 = vmatpush.msra.mxu0 %v4022
      %4249 = vmatpush.msra.mxu0 %v4020
      %4250 = vmatpush.msra.mxu0 %v4018
      %4251 = vmatpush.msra.mxu0 %v4016
      %4252 = vmatpush.msra.mxu0 %v4014
      %4253 = vmatpush.msra.mxu0 %v4012
      %4254 = vmatpush.msra.mxu0 %v4010
      %4255 = vmatpush.msra.mxu0 %v4008
      %4256 = vmatpush.msra.mxu0 %v4006
      %4257 = vmatpush.msra.mxu0 %v4004
      %4258 = vmatpush.msra.mxu0 %v4002
      %4259 = vmatpush.msra.mxu0 %v4000
      %4260 = vmatpush.msra.mxu0 %v3998
      %4261 = vmatmul.f32.gmra.mxu0 %v3951
      %v4262 = vpop.f32.mrf.mxu0
      %v4263 = vadd.f32 %v4240, %v4262
      %4264 = vmatmul.f32.gmra.mxu0 %v3959
      %v4265 = vpop.f32.mrf.mxu0
      %v4266 = vadd.f32 %v4243, %v4265
      %4267 = vdwg.mxu0
      %4268 = vmatpush.msra.mxu0 %v4060
      %4269 = vmatpush.msra.mxu0 %v4058
      %4270 = vmatpush.msra.mxu0 %v4056
      %4271 = vmatpush.msra.mxu0 %v4054
      %4272 = vmatpush.msra.mxu0 %v4052
      %4273 = vmatpush.msra.mxu0 %v4050
      %4274 = vmatpush.msra.mxu0 %v4048
      %4275 = vmatpush.msra.mxu0 %v4046
      %4276 = vmatpush.msra.mxu0 %v4044
      %4277 = vmatpush.msra.mxu0 %v4042
      %4278 = vmatpush.msra.mxu0 %v4040
      %4279 = vmatpush.msra.mxu0 %v4038
      %4280 = vmatpush.msra.mxu0 %v4036
      %4281 = vmatpush.msra.mxu0 %v4034
      %4282 = vmatpush.msra.mxu0 %v4032
      %4283 = vmatpush.msra.mxu0 %v4030
      %4284 = vmatmul.f32.gmra.mxu0 %v3952
      %v4285 = vpop.f32.mrf.mxu0
      %v4286 = vadd.f32 %v4263, %v4285
      %4287 = vmatmul.f32.gmra.mxu0 %v3960
      %v4288 = vpop.f32.mrf.mxu0
      %v4289 = vadd.f32 %v4266, %v4288
      %4290 = vdwg.mxu0
      %4291 = vmatpush.msra.mxu0 %v4092
      %4292 = vmatpush.msra.mxu0 %v4090
      %4293 = vmatpush.msra.mxu0 %v4088
      %4294 = vmatpush.msra.mxu0 %v4086
      %4295 = vmatpush.msra.mxu0 %v4084
      %4296 = vmatpush.msra.mxu0 %v4082
      %4297 = vmatpush.msra.mxu0 %v4080
      %4298 = vmatpush.msra.mxu0 %v4078
      %4299 = vmatpush.msra.mxu0 %v4076
      %4300 = vmatpush.msra.mxu0 %v4074
      %4301 = vmatpush.msra.mxu0 %v4072
      %4302 = vmatpush.msra.mxu0 %v4070
      %4303 = vmatpush.msra.mxu0 %v4068
      %4304 = vmatpush.msra.mxu0 %v4066
      %4305 = vmatpush.msra.mxu0 %v4064
      %4306 = vmatpush.msra.mxu0 %v4062
      %4307 = vmatmul.f32.gmra.mxu0 %v3953
      %v4308 = vpop.f32.mrf.mxu0
      %v4309 = vadd.f32 %v4286, %v4308
      %4310 = vmatmul.f32.gmra.mxu0 %v3961
      %v4311 = vpop.f32.mrf.mxu0
      %v4312 = vadd.f32 %v4289, %v4311
      %4313 = vdwg.mxu0
      %4314 = vmatpush.msra.mxu0 %v4124
      %4315 = vmatpush.msra.mxu0 %v4122
      %4316 = vmatpush.msra.mxu0 %v4120
      %4317 = vmatpush.msra.mxu0 %v4118
      %4318 = vmatpush.msra.mxu0 %v4116
      %4319 = vmatpush.msra.mxu0 %v4114
      %4320 = vmatpush.msra.mxu0 %v4112
      %4321 = vmatpush.msra.mxu0 %v4110
      %4322 = vmatpush.msra.mxu0 %v4108
      %4323 = vmatpush.msra.mxu0 %v4106
      %4324 = vmatpush.msra.mxu0 %v4104
      %4325 = vmatpush.msra.mxu0 %v4102
      %4326 = vmatpush.msra.mxu0 %v4100
      %4327 = vmatpush.msra.mxu0 %v4098
      %4328 = vmatpush.msra.mxu0 %v4096
      %4329 = vmatpush.msra.mxu0 %v4094
      %4330 = vmatmul.f32.gmra.mxu0 %v3954
      %v4331 = vpop.f32.mrf.mxu0
      %v4332 = vadd.f32 %v4309, %v4331
      %4333 = vmatmul.f32.gmra.mxu0 %v3962
      %v4334 = vpop.f32.mrf.mxu0
      %v4335 = vadd.f32 %v4312, %v4334
      %4336 = vdwg.mxu0
      %4337 = vmatpush.msra.mxu0 %v4156
      %4338 = vmatpush.msra.mxu0 %v4154
      %4339 = vmatpush.msra.mxu0 %v4152
      %4340 = vmatpush.msra.mxu0 %v4150
      %4341 = vmatpush.msra.mxu0 %v4148
      %4342 = vmatpush.msra.mxu0 %v4146
      %4343 = vmatpush.msra.mxu0 %v4144
      %4344 = vmatpush.msra.mxu0 %v4142
      %4345 = vmatpush.msra.mxu0 %v4140
      %4346 = vmatpush.msra.mxu0 %v4138
      %4347 = vmatpush.msra.mxu0 %v4136
      %4348 = vmatpush.msra.mxu0 %v4134
      %4349 = vmatpush.msra.mxu0 %v4132
      %4350 = vmatpush.msra.mxu0 %v4130
      %4351 = vmatpush.msra.mxu0 %v4128
      %4352 = vmatpush.msra.mxu0 %v4126
      %4353 = vmatmul.f32.gmra.mxu0 %v3955
      %v4354 = vpop.f32.mrf.mxu0
      %v4355 = vadd.f32 %v4332, %v4354
      %4356 = vmatmul.f32.gmra.mxu0 %v3963
      %v4357 = vpop.f32.mrf.mxu0
      %v4358 = vadd.f32 %v4335, %v4357
      %4359 = vdwg.mxu0
      %4360 = vmatpush.msra.mxu0 %v4188
      %4361 = vmatpush.msra.mxu0 %v4186
      %4362 = vmatpush.msra.mxu0 %v4184
      %4363 = vmatpush.msra.mxu0 %v4182
      %4364 = vmatpush.msra.mxu0 %v4180
      %4365 = vmatpush.msra.mxu0 %v4178
      %4366 = vmatpush.msra.mxu0 %v4176
      %4367 = vmatpush.msra.mxu0 %v4174
      %4368 = vmatpush.msra.mxu0 %v4172
      %4369 = vmatpush.msra.mxu0 %v4170
      %4370 = vmatpush.msra.mxu0 %v4168
      %4371 = vmatpush.msra.mxu0 %v4166
      %4372 = vmatpush.msra.mxu0 %v4164
      %4373 = vmatpush.msra.mxu0 %v4162
      %4374 = vmatpush.msra.mxu0 %v4160
      %4375 = vmatpush.msra.mxu0 %v4158
      %4376 = vmatmul.f32.gmra.mxu0 %v3956
      %v4377 = vpop.f32.mrf.mxu0
      %v4378 = vadd.f32 %v4355, %v4377
      %4379 = vmatmul.f32.gmra.mxu0 %v3964
      %v4380 = vpop.f32.mrf.mxu0
      %v4381 = vadd.f32 %v4358, %v4380
      %4382 = vdwg.mxu0
      %4383 = vmatpush.msra.mxu0 %v4220
      %4384 = vmatpush.msra.mxu0 %v4218
      %4385 = vmatpush.msra.mxu0 %v4216
      %4386 = vmatpush.msra.mxu0 %v4214
      %4387 = vmatpush.msra.mxu0 %v4212
      %4388 = vmatpush.msra.mxu0 %v4210
      %4389 = vmatpush.msra.mxu0 %v4208
      %4390 = vmatpush.msra.mxu0 %v4206
      %4391 = vmatpush.msra.mxu0 %v4204
      %4392 = vmatpush.msra.mxu0 %v4202
      %4393 = vmatpush.msra.mxu0 %v4200
      %4394 = vmatpush.msra.mxu0 %v4198
      %4395 = vmatpush.msra.mxu0 %v4196
      %4396 = vmatpush.msra.mxu0 %v4194
      %4397 = vmatpush.msra.mxu0 %v4192
      %4398 = vmatpush.msra.mxu0 %v4190
      %4399 = vmatmul.f32.gmra.mxu0 %v3957
      %v4400 = vpop.f32.mrf.mxu0
      %v4401 = vadd.f32 %v4378, %v4400
      %4402 = vmatmul.f32.gmra.mxu0 %v3965
      %v4403 = vpop.f32.mrf.mxu0
      %v4404 = vadd.f32 %v4381, %v4403
      %4405 = vdwg.mxu0
      %4406 = vmatpush.msra.mxu0 %v3997
      %4407 = vmatpush.msra.mxu0 %v3995
      %4408 = vmatpush.msra.mxu0 %v3993
      %4409 = vmatpush.msra.mxu0 %v3991
      %4410 = vmatpush.msra.mxu0 %v3989
      %4411 = vmatpush.msra.mxu0 %v3987
      %4412 = vmatpush.msra.mxu0 %v3985
      %4413 = vmatpush.msra.mxu0 %v3983
      %4414 = vmatpush.msra.mxu0 %v3981
      %4415 = vmatpush.msra.mxu0 %v3979
      %4416 = vmatpush.msra.mxu0 %v3977
      %4417 = vmatpush.msra.mxu0 %v3975
      %4418 = vmatpush.msra.mxu0 %v3973
      %4419 = vmatpush.msra.mxu0 %v3971
      %4420 = vmatpush.msra.mxu0 %v3969
      %4421 = vmatpush.msra.mxu0 %v3967
      %4422 = vmatmul.f32.gmra.mxu0 %v3950
      %v4423 = vpop.f32.mrf.mxu0
      %v4424 = vadd.f32 0.0, %v4423
      %4425 = vmatmul.f32.gmra.mxu0 %v3958
      %v4426 = vpop.f32.mrf.mxu0
      %v4427 = vadd.f32 0.0, %v4426
      %4428 = vdwg.mxu0
      %4429 = vmatpush.msra.mxu0 %v4029
      %4430 = vmatpush.msra.mxu0 %v4027
      %4431 = vmatpush.msra.mxu0 %v4025
      %4432 = vmatpush.msra.mxu0 %v4023
      %4433 = vmatpush.msra.mxu0 %v4021
      %4434 = vmatpush.msra.mxu0 %v4019
      %4435 = vmatpush.msra.mxu0 %v4017
      %4436 = vmatpush.msra.mxu0 %v4015
      %4437 = vmatpush.msra.mxu0 %v4013
      %4438 = vmatpush.msra.mxu0 %v4011
      %4439 = vmatpush.msra.mxu0 %v4009
      %4440 = vmatpush.msra.mxu0 %v4007
      %4441 = vmatpush.msra.mxu0 %v4005
      %4442 = vmatpush.msra.mxu0 %v4003
      %4443 = vmatpush.msra.mxu0 %v4001
      %4444 = vmatpush.msra.mxu0 %v3999
      %4445 = vmatmul.f32.gmra.mxu0 %v3951
      %v4446 = vpop.f32.mrf.mxu0
      %v4447 = vadd.f32 %v4424, %v4446
      %4448 = vmatmul.f32.gmra.mxu0 %v3959
      %v4449 = vpop.f32.mrf.mxu0
      %v4450 = vadd.f32 %v4427, %v4449
      %4451 = vdwg.mxu0
      %4452 = vmatpush.msra.mxu0 %v4061
      %4453 = vmatpush.msra.mxu0 %v4059
      %4454 = vmatpush.msra.mxu0 %v4057
      %4455 = vmatpush.msra.mxu0 %v4055
      %4456 = vmatpush.msra.mxu0 %v4053
      %4457 = vmatpush.msra.mxu0 %v4051
      %4458 = vmatpush.msra.mxu0 %v4049
      %4459 = vmatpush.msra.mxu0 %v4047
      %4460 = vmatpush.msra.mxu0 %v4045
      %4461 = vmatpush.msra.mxu0 %v4043
      %4462 = vmatpush.msra.mxu0 %v4041
      %4463 = vmatpush.msra.mxu0 %v4039
      %4464 = vmatpush.msra.mxu0 %v4037
      %4465 = vmatpush.msra.mxu0 %v4035
      %4466 = vmatpush.msra.mxu0 %v4033
      %4467 = vmatpush.msra.mxu0 %v4031
      %4468 = vmatmul.f32.gmra.mxu0 %v3952
      %v4469 = vpop.f32.mrf.mxu0
      %v4470 = vadd.f32 %v4447, %v4469
      %4471 = vmatmul.f32.gmra.mxu0 %v3960
      %v4472 = vpop.f32.mrf.mxu0
      %v4473 = vadd.f32 %v4450, %v4472
      %4474 = vdwg.mxu0
      %4475 = vmatpush.msra.mxu0 %v4093
      %4476 = vmatpush.msra.mxu0 %v4091
      %4477 = vmatpush.msra.mxu0 %v4089
      %4478 = vmatpush.msra.mxu0 %v4087
      %4479 = vmatpush.msra.mxu0 %v4085
      %4480 = vmatpush.msra.mxu0 %v4083
      %4481 = vmatpush.msra.mxu0 %v4081
      %4482 = vmatpush.msra.mxu0 %v4079
      %4483 = vmatpush.msra.mxu0 %v4077
      %4484 = vmatpush.msra.mxu0 %v4075
      %4485 = vmatpush.msra.mxu0 %v4073
      %4486 = vmatpush.msra.mxu0 %v4071
      %4487 = vmatpush.msra.mxu0 %v4069
      %4488 = vmatpush.msra.mxu0 %v4067
      %4489 = vmatpush.msra.mxu0 %v4065
      %4490 = vmatpush.msra.mxu0 %v4063
      %4491 = vmatmul.f32.gmra.mxu0 %v3953
      %v4492 = vpop.f32.mrf.mxu0
      %v4493 = vadd.f32 %v4470, %v4492
      %4494 = vmatmul.f32.gmra.mxu0 %v3961
      %v4495 = vpop.f32.mrf.mxu0
      %v4496 = vadd.f32 %v4473, %v4495
      %4497 = vdwg.mxu0
      %4498 = vmatpush.msra.mxu0 %v4125
      %4499 = vmatpush.msra.mxu0 %v4123
      %4500 = vmatpush.msra.mxu0 %v4121
      %4501 = vmatpush.msra.mxu0 %v4119
      %4502 = vmatpush.msra.mxu0 %v4117
      %4503 = vmatpush.msra.mxu0 %v4115
      %4504 = vmatpush.msra.mxu0 %v4113
      %4505 = vmatpush.msra.mxu0 %v4111
      %4506 = vmatpush.msra.mxu0 %v4109
      %4507 = vmatpush.msra.mxu0 %v4107
      %4508 = vmatpush.msra.mxu0 %v4105
      %4509 = vmatpush.msra.mxu0 %v4103
      %4510 = vmatpush.msra.mxu0 %v4101
      %4511 = vmatpush.msra.mxu0 %v4099
      %4512 = vmatpush.msra.mxu0 %v4097
      %4513 = vmatpush.msra.mxu0 %v4095
      %4514 = vmatmul.f32.gmra.mxu0 %v3954
      %v4515 = vpop.f32.mrf.mxu0
      %v4516 = vadd.f32 %v4493, %v4515
      %4517 = vmatmul.f32.gmra.mxu0 %v3962
      %v4518 = vpop.f32.mrf.mxu0
      %v4519 = vadd.f32 %v4496, %v4518
      %4520 = vdwg.mxu0
      %4521 = vmatpush.msra.mxu0 %v4157
      %4522 = vmatpush.msra.mxu0 %v4155
      %4523 = vmatpush.msra.mxu0 %v4153
      %4524 = vmatpush.msra.mxu0 %v4151
      %4525 = vmatpush.msra.mxu0 %v4149
      %4526 = vmatpush.msra.mxu0 %v4147
      %4527 = vmatpush.msra.mxu0 %v4145
      %4528 = vmatpush.msra.mxu0 %v4143
      %4529 = vmatpush.msra.mxu0 %v4141
      %4530 = vmatpush.msra.mxu0 %v4139
      %4531 = vmatpush.msra.mxu0 %v4137
      %4532 = vmatpush.msra.mxu0 %v4135
      %4533 = vmatpush.msra.mxu0 %v4133
      %4534 = vmatpush.msra.mxu0 %v4131
      %4535 = vmatpush.msra.mxu0 %v4129
      %4536 = vmatpush.msra.mxu0 %v4127
      %4537 = vmatmul.f32.gmra.mxu0 %v3955
      %v4538 = vpop.f32.mrf.mxu0
      %v4539 = vadd.f32 %v4516, %v4538
      %4540 = vmatmul.f32.gmra.mxu0 %v3963
      %v4541 = vpop.f32.mrf.mxu0
      %v4542 = vadd.f32 %v4519, %v4541
      %4543 = vdwg.mxu0
      %4544 = vmatpush.msra.mxu0 %v4189
      %4545 = vmatpush.msra.mxu0 %v4187
      %4546 = vmatpush.msra.mxu0 %v4185
      %4547 = vmatpush.msra.mxu0 %v4183
      %4548 = vmatpush.msra.mxu0 %v4181
      %4549 = vmatpush.msra.mxu0 %v4179
      %4550 = vmatpush.msra.mxu0 %v4177
      %4551 = vmatpush.msra.mxu0 %v4175
      %4552 = vmatpush.msra.mxu0 %v4173
      %4553 = vmatpush.msra.mxu0 %v4171
      %4554 = vmatpush.msra.mxu0 %v4169
      %4555 = vmatpush.msra.mxu0 %v4167
      %4556 = vmatpush.msra.mxu0 %v4165
      %4557 = vmatpush.msra.mxu0 %v4163
      %4558 = vmatpush.msra.mxu0 %v4161
      %4559 = vmatpush.msra.mxu0 %v4159
      %4560 = vmatmul.f32.gmra.mxu0 %v3956
      %v4561 = vpop.f32.mrf.mxu0
      %v4562 = vadd.f32 %v4539, %v4561
      %4563 = vmatmul.f32.gmra.mxu0 %v3964
      %v4564 = vpop.f32.mrf.mxu0
      %v4565 = vadd.f32 %v4542, %v4564
      %4566 = vdwg.mxu0
      %4567 = vmatpush.msra.mxu0 %v4221
      %4568 = vmatpush.msra.mxu0 %v4219
      %4569 = vmatpush.msra.mxu0 %v4217
      %4570 = vmatpush.msra.mxu0 %v4215
      %4571 = vmatpush.msra.mxu0 %v4213
      %4572 = vmatpush.msra.mxu0 %v4211
      %4573 = vmatpush.msra.mxu0 %v4209
      %4574 = vmatpush.msra.mxu0 %v4207
      %4575 = vmatpush.msra.mxu0 %v4205
      %4576 = vmatpush.msra.mxu0 %v4203
      %4577 = vmatpush.msra.mxu0 %v4201
      %4578 = vmatpush.msra.mxu0 %v4199
      %4579 = vmatpush.msra.mxu0 %v4197
      %4580 = vmatpush.msra.mxu0 %v4195
      %4581 = vmatpush.msra.mxu0 %v4193
      %4582 = vmatpush.msra.mxu0 %v4191
      %4583 = vmatmul.f32.gmra.mxu0 %v3957
      %v4584 = vpop.f32.mrf.mxu0
      %v4585 = vadd.f32 %v4562, %v4584
      %4586 = vmatmul.f32.gmra.mxu0 %v3965
      %v4587 = vpop.f32.mrf.mxu0
      %v4588 = vadd.f32 %v4565, %v4587
      %4589 = vdwg.mxu0
      %4590 = vmatpush.msra.mxu0 %v3996
      %4591 = vmatpush.msra.mxu0 %v3994
      %4592 = vmatpush.msra.mxu0 %v3992
      %4593 = vmatpush.msra.mxu0 %v3990
      %4594 = vmatpush.msra.mxu0 %v3988
      %4595 = vmatpush.msra.mxu0 %v3986
      %4596 = vmatpush.msra.mxu0 %v3984
      %4597 = vmatpush.msra.mxu0 %v3982
      %4598 = vmatpush.msra.mxu0 %v3980
      %4599 = vmatpush.msra.mxu0 %v3978
      %4600 = vmatpush.msra.mxu0 %v3976
      %4601 = vmatpush.msra.mxu0 %v3974
      %4602 = vmatpush.msra.mxu0 %v3972
      %4603 = vmatpush.msra.mxu0 %v3970
      %4604 = vmatpush.msra.mxu0 %v3968
      %4605 = vmatpush.msra.mxu0 %v3966
      %4606 = vmatmul.f32.gmra.mxu0 %v3488
      %v4607 = vpop.f32.mrf.mxu0
      %v4608 = vadd.f32 0.0, %v4607
      %4609 = vdwg.mxu0
      %4610 = vmatpush.msra.mxu0 %v4028
      %4611 = vmatpush.msra.mxu0 %v4026
      %4612 = vmatpush.msra.mxu0 %v4024
      %4613 = vmatpush.msra.mxu0 %v4022
      %4614 = vmatpush.msra.mxu0 %v4020
      %4615 = vmatpush.msra.mxu0 %v4018
      %4616 = vmatpush.msra.mxu0 %v4016
      %4617 = vmatpush.msra.mxu0 %v4014
      %4618 = vmatpush.msra.mxu0 %v4012
      %4619 = vmatpush.msra.mxu0 %v4010
      %4620 = vmatpush.msra.mxu0 %v4008
      %4621 = vmatpush.msra.mxu0 %v4006
      %4622 = vmatpush.msra.mxu0 %v4004
      %4623 = vmatpush.msra.mxu0 %v4002
      %4624 = vmatpush.msra.mxu0 %v4000
      %4625 = vmatpush.msra.mxu0 %v3998
      %4626 = vmatmul.f32.gmra.mxu0 %v3489
      %v4627 = vpop.f32.mrf.mxu0
      %v4628 = vadd.f32 %v4608, %v4627
      %4629 = vdwg.mxu0
      %4630 = vmatpush.msra.mxu0 %v4060
      %4631 = vmatpush.msra.mxu0 %v4058
      %4632 = vmatpush.msra.mxu0 %v4056
      %4633 = vmatpush.msra.mxu0 %v4054
      %4634 = vmatpush.msra.mxu0 %v4052
      %4635 = vmatpush.msra.mxu0 %v4050
      %4636 = vmatpush.msra.mxu0 %v4048
      %4637 = vmatpush.msra.mxu0 %v4046
      %4638 = vmatpush.msra.mxu0 %v4044
      %4639 = vmatpush.msra.mxu0 %v4042
      %4640 = vmatpush.msra.mxu0 %v4040
      %4641 = vmatpush.msra.mxu0 %v4038
      %4642 = vmatpush.msra.mxu0 %v4036
      %4643 = vmatpush.msra.mxu0 %v4034
      %4644 = vmatpush.msra.mxu0 %v4032
      %4645 = vmatpush.msra.mxu0 %v4030
      %4646 = vmatmul.f32.gmra.mxu0 %v3490
      %v4647 = vpop.f32.mrf.mxu0
      %v4648 = vadd.f32 %v4628, %v4647
      %4649 = vdwg.mxu0
      %4650 = vmatpush.msra.mxu0 %v4092
      %4651 = vmatpush.msra.mxu0 %v4090
      %4652 = vmatpush.msra.mxu0 %v4088
      %4653 = vmatpush.msra.mxu0 %v4086
      %4654 = vmatpush.msra.mxu0 %v4084
      %4655 = vmatpush.msra.mxu0 %v4082
      %4656 = vmatpush.msra.mxu0 %v4080
      %4657 = vmatpush.msra.mxu0 %v4078
      %4658 = vmatpush.msra.mxu0 %v4076
      %4659 = vmatpush.msra.mxu0 %v4074
      %4660 = vmatpush.msra.mxu0 %v4072
      %4661 = vmatpush.msra.mxu0 %v4070
      %4662 = vmatpush.msra.mxu0 %v4068
      %4663 = vmatpush.msra.mxu0 %v4066
      %4664 = vmatpush.msra.mxu0 %v4064
      %4665 = vmatpush.msra.mxu0 %v4062
      %4666 = vmatmul.f32.gmra.mxu0 %v3491
      %v4667 = vpop.f32.mrf.mxu0
      %v4668 = vadd.f32 %v4648, %v4667
      %4669 = vdwg.mxu0
      %4670 = vmatpush.msra.mxu0 %v4124
      %4671 = vmatpush.msra.mxu0 %v4122
      %4672 = vmatpush.msra.mxu0 %v4120
      %4673 = vmatpush.msra.mxu0 %v4118
      %4674 = vmatpush.msra.mxu0 %v4116
      %4675 = vmatpush.msra.mxu0 %v4114
      %4676 = vmatpush.msra.mxu0 %v4112
      %4677 = vmatpush.msra.mxu0 %v4110
      %4678 = vmatpush.msra.mxu0 %v4108
      %4679 = vmatpush.msra.mxu0 %v4106
      %4680 = vmatpush.msra.mxu0 %v4104
      %4681 = vmatpush.msra.mxu0 %v4102
      %4682 = vmatpush.msra.mxu0 %v4100
      %4683 = vmatpush.msra.mxu0 %v4098
      %4684 = vmatpush.msra.mxu0 %v4096
      %4685 = vmatpush.msra.mxu0 %v4094
      %4686 = vmatmul.f32.gmra.mxu0 %v3492
      %v4687 = vpop.f32.mrf.mxu0
      %v4688 = vadd.f32 %v4668, %v4687
      %4689 = vdwg.mxu0
      %4690 = vmatpush.msra.mxu0 %v4156
      %4691 = vmatpush.msra.mxu0 %v4154
      %4692 = vmatpush.msra.mxu0 %v4152
      %4693 = vmatpush.msra.mxu0 %v4150
      %4694 = vmatpush.msra.mxu0 %v4148
      %4695 = vmatpush.msra.mxu0 %v4146
      %4696 = vmatpush.msra.mxu0 %v4144
      %4697 = vmatpush.msra.mxu0 %v4142
      %4698 = vmatpush.msra.mxu0 %v4140
      %4699 = vmatpush.msra.mxu0 %v4138
      %4700 = vmatpush.msra.mxu0 %v4136
      %4701 = vmatpush.msra.mxu0 %v4134
      %4702 = vmatpush.msra.mxu0 %v4132
      %4703 = vmatpush.msra.mxu0 %v4130
      %4704 = vmatpush.msra.mxu0 %v4128
      %4705 = vmatpush.msra.mxu0 %v4126
      %4706 = vmatmul.f32.gmra.mxu0 %v3493
      %v4707 = vpop.f32.mrf.mxu0
      %v4708 = vadd.f32 %v4688, %v4707
      %4709 = vdwg.mxu0
      %4710 = vmatpush.msra.mxu0 %v4188
      %4711 = vmatpush.msra.mxu0 %v4186
      %4712 = vmatpush.msra.mxu0 %v4184
      %4713 = vmatpush.msra.mxu0 %v4182
      %4714 = vmatpush.msra.mxu0 %v4180
      %4715 = vmatpush.msra.mxu0 %v4178
      %4716 = vmatpush.msra.mxu0 %v4176
      %4717 = vmatpush.msra.mxu0 %v4174
      %4718 = vmatpush.msra.mxu0 %v4172
      %4719 = vmatpush.msra.mxu0 %v4170
      %4720 = vmatpush.msra.mxu0 %v4168
      %4721 = vmatpush.msra.mxu0 %v4166
      %4722 = vmatpush.msra.mxu0 %v4164
      %4723 = vmatpush.msra.mxu0 %v4162
      %4724 = vmatpush.msra.mxu0 %v4160
      %4725 = vmatpush.msra.mxu0 %v4158
      %4726 = vmatmul.f32.gmra.mxu0 %v3494
      %v4727 = vpop.f32.mrf.mxu0
      %v4728 = vadd.f32 %v4708, %v4727
      %4729 = vdwg.mxu0
      %4730 = vmatpush.msra.mxu0 %v4220
      %4731 = vmatpush.msra.mxu0 %v4218
      %4732 = vmatpush.msra.mxu0 %v4216
      %4733 = vmatpush.msra.mxu0 %v4214
      %4734 = vmatpush.msra.mxu0 %v4212
      %4735 = vmatpush.msra.mxu0 %v4210
      %4736 = vmatpush.msra.mxu0 %v4208
      %4737 = vmatpush.msra.mxu0 %v4206
      %4738 = vmatpush.msra.mxu0 %v4204
      %4739 = vmatpush.msra.mxu0 %v4202
      %4740 = vmatpush.msra.mxu0 %v4200
      %4741 = vmatpush.msra.mxu0 %v4198
      %4742 = vmatpush.msra.mxu0 %v4196
      %4743 = vmatpush.msra.mxu0 %v4194
      %4744 = vmatpush.msra.mxu0 %v4192
      %4745 = vmatpush.msra.mxu0 %v4190
      %4746 = vmatmul.f32.gmra.mxu0 %v3495
      %v4747 = vpop.f32.mrf.mxu0
      %v4748 = vadd.f32 %v4728, %v4747
      %4749 = vdwg.mxu0
      %4750 = vmatpush.msra.mxu0 %v3997
      %4751 = vmatpush.msra.mxu0 %v3995
      %4752 = vmatpush.msra.mxu0 %v3993
      %4753 = vmatpush.msra.mxu0 %v3991
      %4754 = vmatpush.msra.mxu0 %v3989
      %4755 = vmatpush.msra.mxu0 %v3987
      %4756 = vmatpush.msra.mxu0 %v3985
      %4757 = vmatpush.msra.mxu0 %v3983
      %4758 = vmatpush.msra.mxu0 %v3981
      %4759 = vmatpush.msra.mxu0 %v3979
      %4760 = vmatpush.msra.mxu0 %v3977
      %4761 = vmatpush.msra.mxu0 %v3975
      %4762 = vmatpush.msra.mxu0 %v3973
      %4763 = vmatpush.msra.mxu0 %v3971
      %4764 = vmatpush.msra.mxu0 %v3969
      %4765 = vmatpush.msra.mxu0 %v3967
      %4766 = vmatmul.f32.gmra.mxu0 %v3488
      %v4767 = vpop.f32.mrf.mxu0
      %v4768 = vadd.f32 0.0, %v4767
      %4769 = vdwg.mxu0
      %4770 = vmatpush.msra.mxu0 %v4029
      %4771 = vmatpush.msra.mxu0 %v4027
      %4772 = vmatpush.msra.mxu0 %v4025
      %4773 = vmatpush.msra.mxu0 %v4023
      %4774 = vmatpush.msra.mxu0 %v4021
      %4775 = vmatpush.msra.mxu0 %v4019
      %4776 = vmatpush.msra.mxu0 %v4017
      %4777 = vmatpush.msra.mxu0 %v4015
      %4778 = vmatpush.msra.mxu0 %v4013
      %4779 = vmatpush.msra.mxu0 %v4011
      %4780 = vmatpush.msra.mxu0 %v4009
      %4781 = vmatpush.msra.mxu0 %v4007
      %4782 = vmatpush.msra.mxu0 %v4005
      %4783 = vmatpush.msra.mxu0 %v4003
      %4784 = vmatpush.msra.mxu0 %v4001
      %4785 = vmatpush.msra.mxu0 %v3999
      %4786 = vmatmul.f32.gmra.mxu0 %v3489
      %v4787 = vpop.f32.mrf.mxu0
      %v4788 = vadd.f32 %v4768, %v4787
      %4789 = vdwg.mxu0
      %4790 = vmatpush.msra.mxu0 %v4061
      %4791 = vmatpush.msra.mxu0 %v4059
      %4792 = vmatpush.msra.mxu0 %v4057
      %4793 = vmatpush.msra.mxu0 %v4055
      %4794 = vmatpush.msra.mxu0 %v4053
      %4795 = vmatpush.msra.mxu0 %v4051
      %4796 = vmatpush.msra.mxu0 %v4049
      %4797 = vmatpush.msra.mxu0 %v4047
      %4798 = vmatpush.msra.mxu0 %v4045
      %4799 = vmatpush.msra.mxu0 %v4043
      %4800 = vmatpush.msra.mxu0 %v4041
      %4801 = vmatpush.msra.mxu0 %v4039
      %4802 = vmatpush.msra.mxu0 %v4037
      %4803 = vmatpush.msra.mxu0 %v4035
      %4804 = vmatpush.msra.mxu0 %v4033
      %4805 = vmatpush.msra.mxu0 %v4031
      %4806 = vmatmul.f32.gmra.mxu0 %v3490
      %v4807 = vpop.f32.mrf.mxu0
      %v4808 = vadd.f32 %v4788, %v4807
      %4809 = vdwg.mxu0
      %4810 = vmatpush.msra.mxu0 %v4093
      %4811 = vmatpush.msra.mxu0 %v4091
      %4812 = vmatpush.msra.mxu0 %v4089
      %4813 = vmatpush.msra.mxu0 %v4087
      %4814 = vmatpush.msra.mxu0 %v4085
      %4815 = vmatpush.msra.mxu0 %v4083
      %4816 = vmatpush.msra.mxu0 %v4081
      %4817 = vmatpush.msra.mxu0 %v4079
      %4818 = vmatpush.msra.mxu0 %v4077
      %4819 = vmatpush.msra.mxu0 %v4075
      %4820 = vmatpush.msra.mxu0 %v4073
      %4821 = vmatpush.msra.mxu0 %v4071
      %4822 = vmatpush.msra.mxu0 %v4069
      %4823 = vmatpush.msra.mxu0 %v4067
      %4824 = vmatpush.msra.mxu0 %v4065
      %4825 = vmatpush.msra.mxu0 %v4063
      %4826 = vmatmul.f32.gmra.mxu0 %v3491
      %v4827 = vpop.f32.mrf.mxu0
      %v4828 = vadd.f32 %v4808, %v4827
      %4829 = vdwg.mxu0
      %4830 = vmatpush.msra.mxu0 %v4125
      %4831 = vmatpush.msra.mxu0 %v4123
      %4832 = vmatpush.msra.mxu0 %v4121
      %4833 = vmatpush.msra.mxu0 %v4119
      %4834 = vmatpush.msra.mxu0 %v4117
      %4835 = vmatpush.msra.mxu0 %v4115
      %4836 = vmatpush.msra.mxu0 %v4113
      %4837 = vmatpush.msra.mxu0 %v4111
      %4838 = vmatpush.msra.mxu0 %v4109
      %4839 = vmatpush.msra.mxu0 %v4107
      %4840 = vmatpush.msra.mxu0 %v4105
      %4841 = vmatpush.msra.mxu0 %v4103
      %4842 = vmatpush.msra.mxu0 %v4101
      %4843 = vmatpush.msra.mxu0 %v4099
      %4844 = vmatpush.msra.mxu0 %v4097
      %4845 = vmatpush.msra.mxu0 %v4095
      %4846 = vmatmul.f32.gmra.mxu0 %v3492
      %v4847 = vpop.f32.mrf.mxu0
      %v4848 = vadd.f32 %v4828, %v4847
      %4849 = vdwg.mxu0
      %4850 = vmatpush.msra.mxu0 %v4157
      %4851 = vmatpush.msra.mxu0 %v4155
      %4852 = vmatpush.msra.mxu0 %v4153
      %4853 = vmatpush.msra.mxu0 %v4151
      %4854 = vmatpush.msra.mxu0 %v4149
      %4855 = vmatpush.msra.mxu0 %v4147
      %4856 = vmatpush.msra.mxu0 %v4145
      %4857 = vmatpush.msra.mxu0 %v4143
      %4858 = vmatpush.msra.mxu0 %v4141
      %4859 = vmatpush.msra.mxu0 %v4139
      %4860 = vmatpush.msra.mxu0 %v4137
      %4861 = vmatpush.msra.mxu0 %v4135
      %4862 = vmatpush.msra.mxu0 %v4133
      %4863 = vmatpush.msra.mxu0 %v4131
      %4864 = vmatpush.msra.mxu0 %v4129
      %4865 = vmatpush.msra.mxu0 %v4127
      %4866 = vmatmul.f32.gmra.mxu0 %v3493
      %v4867 = vpop.f32.mrf.mxu0
      %v4868 = vadd.f32 %v4848, %v4867
      %4869 = vdwg.mxu0
      %4870 = vmatpush.msra.mxu0 %v4189
      %4871 = vmatpush.msra.mxu0 %v4187
      %4872 = vmatpush.msra.mxu0 %v4185
      %4873 = vmatpush.msra.mxu0 %v4183
      %4874 = vmatpush.msra.mxu0 %v4181
      %4875 = vmatpush.msra.mxu0 %v4179
      %4876 = vmatpush.msra.mxu0 %v4177
      %4877 = vmatpush.msra.mxu0 %v4175
      %4878 = vmatpush.msra.mxu0 %v4173
      %4879 = vmatpush.msra.mxu0 %v4171
      %4880 = vmatpush.msra.mxu0 %v4169
      %4881 = vmatpush.msra.mxu0 %v4167
      %4882 = vmatpush.msra.mxu0 %v4165
      %4883 = vmatpush.msra.mxu0 %v4163
      %4884 = vmatpush.msra.mxu0 %v4161
      %4885 = vmatpush.msra.mxu0 %v4159
      %4886 = vmatmul.f32.gmra.mxu0 %v3494
      %v4887 = vpop.f32.mrf.mxu0
      %v4888 = vadd.f32 %v4868, %v4887
      %4889 = vdwg.mxu0
      %4890 = vmatpush.msra.mxu0 %v4221
      %4891 = vmatpush.msra.mxu0 %v4219
      %4892 = vmatpush.msra.mxu0 %v4217
      %4893 = vmatpush.msra.mxu0 %v4215
      %4894 = vmatpush.msra.mxu0 %v4213
      %4895 = vmatpush.msra.mxu0 %v4211
      %4896 = vmatpush.msra.mxu0 %v4209
      %4897 = vmatpush.msra.mxu0 %v4207
      %4898 = vmatpush.msra.mxu0 %v4205
      %4899 = vmatpush.msra.mxu0 %v4203
      %4900 = vmatpush.msra.mxu0 %v4201
      %4901 = vmatpush.msra.mxu0 %v4199
      %4902 = vmatpush.msra.mxu0 %v4197
      %4903 = vmatpush.msra.mxu0 %v4195
      %4904 = vmatpush.msra.mxu0 %v4193
      %4905 = vmatpush.msra.mxu0 %v4191
      %4906 = vmatmul.f32.gmra.mxu0 %v3495
      %v4907 = vpop.f32.mrf.mxu0
      %v4908 = vadd.f32 %v4888, %v4907
      %4909 = vdwg.mxu0
      %4910 = vrot.lane.b32.xlu0 %v4401, 17
      %v4911 = vpop.permute.xlu0 %4910
      %4912 = vrot.lane.b32.xlu0 %v4404, 17
      %v4913 = vpop.permute.xlu0 %4912
      %4914 = vrot.lane.b32.xlu0 %v4585, 17
      %v4915 = vpop.permute.xlu0 %4914
      %4916 = vrot.lane.b32.xlu0 %v4588, 17
      %v4917 = vpop.permute.xlu0 %4916
      %vm4918 = vcmp.lt.s32.totalorder %v1155, 17
      %v4919 = vsel %vm4918, %v4911, %v4915
      %v4920 = vsel %vm4918, %v4913, %v4917
      %v4921 = vsel %vm4918, %v4915, %v4911
      %v4922 = vsel %vm4918, %v4917, %v4913
      %v4924 = vperm.slane %v1044, 0
      %v4925 = vperm.slane %v1044, 1
      %v4928 = vmul.f32 %v4921, %v4924
      %v4929 = vmul.f32 %v4919, %v4925
      %v4930 = vmul.f32 %v4922, %v4924
      %v4931 = vmul.f32 %v4920, %v4925
      %4932 = vrot.lane.b32.xlu0 %v4401, 16
      %v4933 = vpop.permute.xlu0 %4932
      %4934 = vrot.lane.b32.xlu0 %v4404, 16
      %v4935 = vpop.permute.xlu0 %4934
      %4936 = vrot.lane.b32.xlu0 %v4585, 16
      %v4937 = vpop.permute.xlu0 %4936
      %4938 = vrot.lane.b32.xlu0 %v4588, 16
      %v4939 = vpop.permute.xlu0 %4938
      %vm4940 = vcmp.lt.s32.totalorder %v1155, 16
      %v4941 = vsel %vm4940, %v4933, %v4937
      %v4942 = vsel %vm4940, %v4935, %v4939
      %v4943 = vsel %vm4940, %v4937, %v4933
      %v4944 = vsel %vm4940, %v4939, %v4935
      %v4946 = vperm.slane %v1046, 0
      %v4947 = vperm.slane %v1046, 1
      %v4950 = vmul.f32 %v4943, %v4946
      %v4951 = vmul.f32 %v4941, %v4947
      %v4952 = vmul.f32 %v4944, %v4946
      %v4953 = vmul.f32 %v4942, %v4947
      %4954 = vrot.lane.b32.xlu0 %v4401, 15
      %v4955 = vpop.permute.xlu0 %4954
      %4956 = vrot.lane.b32.xlu0 %v4404, 15
      %v4957 = vpop.permute.xlu0 %4956
      %4958 = vrot.lane.b32.xlu0 %v4585, 15
      %v4959 = vpop.permute.xlu0 %4958
      %4960 = vrot.lane.b32.xlu0 %v4588, 15
      %v4961 = vpop.permute.xlu0 %4960
      %vm4962 = vcmp.lt.s32.totalorder %v1155, 15
      %v4963 = vsel %vm4962, %v4955, %v4959
      %v4964 = vsel %vm4962, %v4957, %v4961
      %v4965 = vsel %vm4962, %v4959, %v4955
      %v4966 = vsel %vm4962, %v4961, %v4957
      %v4968 = vperm.slane %v1048, 0
      %v4969 = vperm.slane %v1048, 1
      %v4972 = vmul.f32 %v4965, %v4968
      %v4973 = vmul.f32 %v4963, %v4969
      %v4974 = vmul.f32 %v4966, %v4968
      %v4975 = vmul.f32 %v4964, %v4969
      %4976 = vrot.lane.b32.xlu0 %v4401, 1
      %v4977 = vpop.permute.xlu0 %4976
      %4978 = vrot.lane.b32.xlu0 %v4404, 1
      %v4979 = vpop.permute.xlu0 %4978
      %4980 = vrot.lane.b32.xlu0 %v4585, 1
      %v4981 = vpop.permute.xlu0 %4980
      %4982 = vrot.lane.b32.xlu0 %v4588, 1
      %v4983 = vpop.permute.xlu0 %4982
      %v4984 = vsel %vm1306, %v4977, %v4981
      %v4985 = vsel %vm1306, %v4979, %v4983
      %v4986 = vsel %vm1306, %v4981, %v4977
      %v4987 = vsel %vm1306, %v4983, %v4979
      %v4989 = vperm.slane %v1050, 0
      %v4990 = vperm.slane %v1050, 1
      %v4993 = vmul.f32 %v4986, %v4989
      %v4994 = vmul.f32 %v4984, %v4990
      %v4995 = vmul.f32 %v4987, %v4989
      %v4996 = vmul.f32 %v4985, %v4990
      %4997 = vrot.lane.b32.xlu0 %v4401, 127
      %v4998 = vpop.permute.xlu0 %4997
      %4999 = vrot.lane.b32.xlu0 %v4404, 127
      %v5000 = vpop.permute.xlu0 %4999
      %5001 = vrot.lane.b32.xlu0 %v4585, 127
      %v5002 = vpop.permute.xlu0 %5001
      %5003 = vrot.lane.b32.xlu0 %v4588, 127
      %v5004 = vpop.permute.xlu0 %5003
      %v5005 = vsel %vm1356, %v4998, %v5002
      %v5006 = vsel %vm1356, %v5000, %v5004
      %v5007 = vsel %vm1356, %v5002, %v4998
      %v5008 = vsel %vm1356, %v5004, %v5000
      %v5010 = vperm.slane %v1052, 0
      %v5011 = vperm.slane %v1052, 1
      %v5014 = vmul.f32 %v5005, %v5010
      %v5015 = vmul.f32 %v5007, %v5011
      %v5016 = vmul.f32 %v5006, %v5010
      %v5017 = vmul.f32 %v5008, %v5011
      %5018 = vrot.lane.b32.xlu0 %v4401, 113
      %v5019 = vpop.permute.xlu0 %5018
      %5020 = vrot.lane.b32.xlu0 %v4404, 113
      %v5021 = vpop.permute.xlu0 %5020
      %5022 = vrot.lane.b32.xlu0 %v4585, 113
      %v5023 = vpop.permute.xlu0 %5022
      %5024 = vrot.lane.b32.xlu0 %v4588, 113
      %v5025 = vpop.permute.xlu0 %5024
      %vm5026 = vcmp.lt.s32.totalorder %v1155, 113
      %v5027 = vsel %vm5026, %v5019, %v5023
      %v5028 = vsel %vm5026, %v5021, %v5025
      %v5029 = vsel %vm5026, %v5023, %v5019
      %v5030 = vsel %vm5026, %v5025, %v5021
      %v5032 = vperm.slane %v1054, 0
      %v5033 = vperm.slane %v1054, 1
      %v5036 = vmul.f32 %v5027, %v5032
      %v5037 = vmul.f32 %v5029, %v5033
      %v5038 = vmul.f32 %v5028, %v5032
      %v5039 = vmul.f32 %v5030, %v5033
      %5040 = vrot.lane.b32.xlu0 %v4401, 112
      %v5041 = vpop.permute.xlu0 %5040
      %5042 = vrot.lane.b32.xlu0 %v4404, 112
      %v5043 = vpop.permute.xlu0 %5042
      %5044 = vrot.lane.b32.xlu0 %v4585, 112
      %v5045 = vpop.permute.xlu0 %5044
      %5046 = vrot.lane.b32.xlu0 %v4588, 112
      %v5047 = vpop.permute.xlu0 %5046
      %vm5048 = vcmp.lt.s32.totalorder %v1155, 112
      %v5049 = vsel %vm5048, %v5041, %v5045
      %v5050 = vsel %vm5048, %v5043, %v5047
      %v5051 = vsel %vm5048, %v5045, %v5041
      %v5052 = vsel %vm5048, %v5047, %v5043
      %v5054 = vperm.slane %v1056, 0
      %v5055 = vperm.slane %v1056, 1
      %v5058 = vmul.f32 %v5049, %v5054
      %v5059 = vmul.f32 %v5051, %v5055
      %v5060 = vmul.f32 %v5050, %v5054
      %v5061 = vmul.f32 %v5052, %v5055
      %5062 = vrot.lane.b32.xlu0 %v4401, 111
      %v5063 = vpop.permute.xlu0 %5062
      %5064 = vrot.lane.b32.xlu0 %v4404, 111
      %v5065 = vpop.permute.xlu0 %5064
      %5066 = vrot.lane.b32.xlu0 %v4585, 111
      %v5067 = vpop.permute.xlu0 %5066
      %5068 = vrot.lane.b32.xlu0 %v4588, 111
      %v5069 = vpop.permute.xlu0 %5068
      %vm5070 = vcmp.lt.s32.totalorder %v1155, 111
      %v5071 = vsel %vm5070, %v5063, %v5067
      %v5072 = vsel %vm5070, %v5065, %v5069
      %v5073 = vsel %vm5070, %v5067, %v5063
      %v5074 = vsel %vm5070, %v5069, %v5065
      %v5076 = vperm.slane %v1058, 0
      %v5077 = vperm.slane %v1058, 1
      %v5080 = vmul.f32 %v5071, %v5076
      %v5081 = vmul.f32 %v5073, %v5077
      %v5082 = vmul.f32 %v5072, %v5076
      %v5083 = vmul.f32 %v5074, %v5077
      %v5084 = vpack.c.bf16 %v4930, %v4928
      %v5085 = vpack.c.bf16 %v4931, %v4929
      %v5086 = vpack.c.bf16 %v4952, %v4950
      %v5087 = vpack.c.bf16 %v4953, %v4951
      %v5088 = vpack.c.bf16 %v4974, %v4972
      %v5089 = vpack.c.bf16 %v4975, %v4973
      %v5090 = vpack.c.bf16 %v4995, %v4993
      %v5091 = vpack.c.bf16 %v4996, %v4994
      %v5092 = vpack.c.bf16 %v4404, %v4401
      %v5093 = vpack.c.bf16 %v4588, %v4585
      %v5094 = vpack.c.bf16 %v5016, %v5014
      %v5095 = vpack.c.bf16 %v5017, %v5015
      %v5096 = vpack.c.bf16 %v5038, %v5036
      %v5097 = vpack.c.bf16 %v5039, %v5037
      %v5098 = vpack.c.bf16 %v5060, %v5058
      %v5099 = vpack.c.bf16 %v5061, %v5059
      %v5100 = vpack.c.bf16 %v5082, %v5080
      %v5101 = vpack.c.bf16 %v5083, %v5081
      %v5102 = vld [vmem:[%s27] sm:$0xff]
      %v5103 = vld [vmem:[%s27 + $0x8] sm:$0xff]
      %v5104 = vld [vmem:[%s29] sm:$0xff]
      %v5105 = vld [vmem:[%s29 + $0x8] sm:$0xff]
      %5107 = vset.pattern.permute.xlu0 0
      %5108 = vperm.xlu0 %5107, %v5104
      %v5109 = vpop.permute.xlu0 %5108
      %5112 = vset.pattern.permute.xlu0 0
      %5113 = vperm.xlu0 %5112, %v5105
      %v5114 = vpop.permute.xlu0 %5113
      %v5118 = vunpack.c.l.b16 %v5102
      %v5119 = vunpack.c.h.b16 %v5102
      %v5120 = vunpack.c.l.b16 %v5103
      %v5121 = vunpack.c.h.b16 %v5103
      %v5122 = vpack.c.b16 %v5120, %v5118
      %v5123 = vpack.c.b16 %v5121, %v5119
      %vm5125 = vcmask 130048
      %v5127 = vsel %vm5125, %v5123, 0
      %5129 = vmatpush.bf16.msra.mxu0 %v5098
      %5130 = vmatpush.bf16.msra.mxu0 %v5096
      %5131 = vmatpush.bf16.msra.mxu0 %v5094
      %5132 = vmatpush.bf16.msra.mxu0 %v5092
      %5133 = vmatpush.bf16.msra.mxu0 %v5090
      %5134 = vmatpush.bf16.msra.mxu0 %v5088
      %5135 = vmatpush.bf16.msra.mxu0 %v5086
      %5136 = vmatpush.bf16.msra.mxu0 %v5084
      %5137 = vmatmul.bf16.gmra.mxu0 %v5122
      %v5138 = vpop.f32.mrf.mxu0
      %v5139 = vadd.f32 %v5109, %v5138
      %v5140 = vpop.f32.mrf.mxu0
      %v5141 = vadd.f32 %v5114, %v5140
      %5142 = vdwg.mxu0
      %5143 = vmatpush.bf16.msra.mxu0 0
      %5144 = vmatpush.bf16.msra.mxu0 0
      %5145 = vmatpush.bf16.msra.mxu0 0
      %5146 = vmatpush.bf16.msra.mxu0 0
      %5147 = vmatpush.bf16.msra.mxu0 0
      %5148 = vmatpush.bf16.msra.mxu0 0
      %5149 = vmatpush.bf16.msra.mxu0 0
      %5150 = vmatpush.bf16.msra.mxu0 %v5100
      %5151 = vmatmul.bf16.gmra.mxu0 %v5127
      %v5152 = vpop.f32.mrf.mxu0
      %v5153 = vadd.f32 %v5139, %v5152
      %v5154 = vpop.f32.mrf.mxu0
      %v5155 = vadd.f32 %v5141, %v5154
      %5156 = vdwg.mxu0
      %5157 = vmatpush.bf16.msra.mxu0 %v5099
      %5158 = vmatpush.bf16.msra.mxu0 %v5097
      %5159 = vmatpush.bf16.msra.mxu0 %v5095
      %5160 = vmatpush.bf16.msra.mxu0 %v5093
      %5161 = vmatpush.bf16.msra.mxu0 %v5091
      %5162 = vmatpush.bf16.msra.mxu0 %v5089
      %5163 = vmatpush.bf16.msra.mxu0 %v5087
      %5164 = vmatpush.bf16.msra.mxu0 %v5085
      %5165 = vmatmul.bf16.gmra.mxu0 %v5122
      %v5166 = vpop.f32.mrf.mxu0
      %v5167 = vadd.f32 %v5109, %v5166
      %v5168 = vpop.f32.mrf.mxu0
      %v5169 = vadd.f32 %v5114, %v5168
      %5170 = vdwg.mxu0
      %5171 = vmatpush.bf16.msra.mxu0 0
      %5172 = vmatpush.bf16.msra.mxu0 0
      %5173 = vmatpush.bf16.msra.mxu0 0
      %5174 = vmatpush.bf16.msra.mxu0 0
      %5175 = vmatpush.bf16.msra.mxu0 0
      %5176 = vmatpush.bf16.msra.mxu0 0
      %5177 = vmatpush.bf16.msra.mxu0 0
      %5178 = vmatpush.bf16.msra.mxu0 %v5101
      %5179 = vmatmul.bf16.gmra.mxu0 %v5127
      %v5180 = vpop.f32.mrf.mxu0
      %v5181 = vadd.f32 %v5167, %v5180
      %v5182 = vpop.f32.mrf.mxu0
      %v5183 = vadd.f32 %v5169, %v5182
      %5184 = vdwg.mxu0
      %v5185 = vadd.f32 %v4748, %v5153
      %v5186 = vadd.f32 %v4908, %v5181
      %v5187 = vadd.f32 %v5155, 0.0
      %v5188 = vadd.f32 %v5183, 0.0
      %5189 = vrot.lane.b32.xlu0 %v5185, 17
      %v5190 = vpop.permute.xlu0 %5189
      %5191 = vrot.lane.b32.xlu0 %v5187, 17
      %v5192 = vpop.permute.xlu0 %5191
      %5193 = vrot.lane.b32.xlu0 %v5186, 17
      %v5194 = vpop.permute.xlu0 %5193
      %5195 = vrot.lane.b32.xlu0 %v5188, 17
      %v5196 = vpop.permute.xlu0 %5195
      %v5197 = vsel %vm4918, %v5190, %v5194
      %v5198 = vsel %vm4918, %v5192, %v5196
      %v5199 = vsel %vm4918, %v5194, %v5190
      %v5200 = vsel %vm4918, %v5196, %v5192
      %v5201 = vmul.f32 %v5199, %v4924
      %v5202 = vmul.f32 %v5197, %v4925
      %v5203 = vmul.f32 %v5200, %v4924
      %v5204 = vmul.f32 %v5198, %v4925
      %5205 = vrot.lane.b32.xlu0 %v5185, 16
      %v5206 = vpop.permute.xlu0 %5205
      %5207 = vrot.lane.b32.xlu0 %v5187, 16
      %v5208 = vpop.permute.xlu0 %5207
      %5209 = vrot.lane.b32.xlu0 %v5186, 16
      %v5210 = vpop.permute.xlu0 %5209
      %5211 = vrot.lane.b32.xlu0 %v5188, 16
      %v5212 = vpop.permute.xlu0 %5211
      %v5213 = vsel %vm4940, %v5206, %v5210
      %v5214 = vsel %vm4940, %v5208, %v5212
      %v5215 = vsel %vm4940, %v5210, %v5206
      %v5216 = vsel %vm4940, %v5212, %v5208
      %v5217 = vmul.f32 %v5215, %v4946
      %v5218 = vmul.f32 %v5213, %v4947
      %v5219 = vmul.f32 %v5216, %v4946
      %v5220 = vmul.f32 %v5214, %v4947
      %5221 = vrot.lane.b32.xlu0 %v5185, 15
      %v5222 = vpop.permute.xlu0 %5221
      %5223 = vrot.lane.b32.xlu0 %v5187, 15
      %v5224 = vpop.permute.xlu0 %5223
      %5225 = vrot.lane.b32.xlu0 %v5186, 15
      %v5226 = vpop.permute.xlu0 %5225
      %5227 = vrot.lane.b32.xlu0 %v5188, 15
      %v5228 = vpop.permute.xlu0 %5227
      %v5229 = vsel %vm4962, %v5222, %v5226
      %v5230 = vsel %vm4962, %v5224, %v5228
      %v5231 = vsel %vm4962, %v5226, %v5222
      %v5232 = vsel %vm4962, %v5228, %v5224
      %v5233 = vmul.f32 %v5231, %v4968
      %v5234 = vmul.f32 %v5229, %v4969
      %v5235 = vmul.f32 %v5232, %v4968
      %v5236 = vmul.f32 %v5230, %v4969
      %5237 = vrot.lane.b32.xlu0 %v5185, 1
      %v5238 = vpop.permute.xlu0 %5237
      %5239 = vrot.lane.b32.xlu0 %v5187, 1
      %v5240 = vpop.permute.xlu0 %5239
      %5241 = vrot.lane.b32.xlu0 %v5186, 1
      %v5242 = vpop.permute.xlu0 %5241
      %5243 = vrot.lane.b32.xlu0 %v5188, 1
      %v5244 = vpop.permute.xlu0 %5243
      %v5245 = vsel %vm1306, %v5238, %v5242
      %v5246 = vsel %vm1306, %v5240, %v5244
      %v5247 = vsel %vm1306, %v5242, %v5238
      %v5248 = vsel %vm1306, %v5244, %v5240
      %v5249 = vmul.f32 %v5247, %v4989
      %v5250 = vmul.f32 %v5245, %v4990
      %v5251 = vmul.f32 %v5248, %v4989
      %v5252 = vmul.f32 %v5246, %v4990
      %5253 = vrot.lane.b32.xlu0 %v5185, 127
      %v5254 = vpop.permute.xlu0 %5253
      %5255 = vrot.lane.b32.xlu0 %v5187, 127
      %v5256 = vpop.permute.xlu0 %5255
      %5257 = vrot.lane.b32.xlu0 %v5186, 127
      %v5258 = vpop.permute.xlu0 %5257
      %5259 = vrot.lane.b32.xlu0 %v5188, 127
      %v5260 = vpop.permute.xlu0 %5259
      %v5261 = vsel %vm1356, %v5254, %v5258
      %v5262 = vsel %vm1356, %v5256, %v5260
      %v5263 = vsel %vm1356, %v5258, %v5254
      %v5264 = vsel %vm1356, %v5260, %v5256
      %v5265 = vmul.f32 %v5261, %v5010
      %v5266 = vmul.f32 %v5263, %v5011
      %v5267 = vmul.f32 %v5262, %v5010
      %v5268 = vmul.f32 %v5264, %v5011
      %5269 = vrot.lane.b32.xlu0 %v5185, 113
      %v5270 = vpop.permute.xlu0 %5269
      %5271 = vrot.lane.b32.xlu0 %v5187, 113
      %v5272 = vpop.permute.xlu0 %5271
      %5273 = vrot.lane.b32.xlu0 %v5186, 113
      %v5274 = vpop.permute.xlu0 %5273
      %5275 = vrot.lane.b32.xlu0 %v5188, 113
      %v5276 = vpop.permute.xlu0 %5275
      %v5277 = vsel %vm5026, %v5270, %v5274
      %v5278 = vsel %vm5026, %v5272, %v5276
      %v5279 = vsel %vm5026, %v5274, %v5270
      %v5280 = vsel %vm5026, %v5276, %v5272
      %v5281 = vmul.f32 %v5277, %v5032
      %v5282 = vmul.f32 %v5279, %v5033
      %v5283 = vmul.f32 %v5278, %v5032
      %v5284 = vmul.f32 %v5280, %v5033
      %5285 = vrot.lane.b32.xlu0 %v5185, 112
      %v5286 = vpop.permute.xlu0 %5285
      %5287 = vrot.lane.b32.xlu0 %v5187, 112
      %v5288 = vpop.permute.xlu0 %5287
      %5289 = vrot.lane.b32.xlu0 %v5186, 112
      %v5290 = vpop.permute.xlu0 %5289
      %5291 = vrot.lane.b32.xlu0 %v5188, 112
      %v5292 = vpop.permute.xlu0 %5291
      %v5293 = vsel %vm5048, %v5286, %v5290
      %v5294 = vsel %vm5048, %v5288, %v5292
      %v5295 = vsel %vm5048, %v5290, %v5286
      %v5296 = vsel %vm5048, %v5292, %v5288
      %v5297 = vmul.f32 %v5293, %v5054
      %v5298 = vmul.f32 %v5295, %v5055
      %v5299 = vmul.f32 %v5294, %v5054
      %v5300 = vmul.f32 %v5296, %v5055
      %5301 = vrot.lane.b32.xlu0 %v5185, 111
      %v5302 = vpop.permute.xlu0 %5301
      %5303 = vrot.lane.b32.xlu0 %v5187, 111
      %v5304 = vpop.permute.xlu0 %5303
      %5305 = vrot.lane.b32.xlu0 %v5186, 111
      %v5306 = vpop.permute.xlu0 %5305
      %5307 = vrot.lane.b32.xlu0 %v5188, 111
      %v5308 = vpop.permute.xlu0 %5307
      %v5309 = vsel %vm5070, %v5302, %v5306
      %v5310 = vsel %vm5070, %v5304, %v5308
      %v5311 = vsel %vm5070, %v5306, %v5302
      %v5312 = vsel %vm5070, %v5308, %v5304
      %v5313 = vmul.f32 %v5309, %v5076
      %v5314 = vmul.f32 %v5311, %v5077
      %v5315 = vmul.f32 %v5310, %v5076
      %v5316 = vmul.f32 %v5312, %v5077
      %v5317 = vpack.c.bf16 %v5203, %v5201
      %v5318 = vpack.c.bf16 %v5204, %v5202
      %v5319 = vpack.c.bf16 %v5219, %v5217
      %v5320 = vpack.c.bf16 %v5220, %v5218
      %v5321 = vpack.c.bf16 %v5235, %v5233
      %v5322 = vpack.c.bf16 %v5236, %v5234
      %v5323 = vpack.c.bf16 %v5251, %v5249
      %v5324 = vpack.c.bf16 %v5252, %v5250
      %v5325 = vpack.c.bf16 %v5187, %v5185
      %v5326 = vpack.c.bf16 %v5188, %v5186
      %v5327 = vpack.c.bf16 %v5267, %v5265
      %v5328 = vpack.c.bf16 %v5268, %v5266
      %v5329 = vpack.c.bf16 %v5283, %v5281
      %v5330 = vpack.c.bf16 %v5284, %v5282
      %v5331 = vpack.c.bf16 %v5299, %v5297
      %v5332 = vpack.c.bf16 %v5300, %v5298
      %v5333 = vpack.c.bf16 %v5315, %v5313
      %v5334 = vpack.c.bf16 %v5316, %v5314
      %v5335 = vld [vmem:[%s31] sm:$0xff]
      %v5336 = vld [vmem:[%s31 + $0x8] sm:$0xff]
      %v5337 = vld [vmem:[%s33] sm:$0xff]
      %v5338 = vld [vmem:[%s33 + $0x8] sm:$0xff]
      %5340 = vset.pattern.permute.xlu0 0
      %5341 = vperm.xlu0 %5340, %v5337
      %v5342 = vpop.permute.xlu0 %5341
      %5345 = vset.pattern.permute.xlu0 0
      %5346 = vperm.xlu0 %5345, %v5338
      %v5347 = vpop.permute.xlu0 %5346
      %v5351 = vunpack.c.l.b16 %v5335
      %v5352 = vunpack.c.h.b16 %v5335
      %v5353 = vunpack.c.l.b16 %v5336
      %v5354 = vunpack.c.h.b16 %v5336
      %v5355 = vpack.c.b16 %v5353, %v5351
      %v5356 = vpack.c.b16 %v5354, %v5352
      %v5359 = vsel %vm5125, %v5356, 0
      %5361 = vmatpush.bf16.msra.mxu0 %v5331
      %5362 = vmatpush.bf16.msra.mxu0 %v5329
      %5363 = vmatpush.bf16.msra.mxu0 %v5327
      %5364 = vmatpush.bf16.msra.mxu0 %v5325
      %5365 = vmatpush.bf16.msra.mxu0 %v5323
      %5366 = vmatpush.bf16.msra.mxu0 %v5321
      %5367 = vmatpush.bf16.msra.mxu0 %v5319
      %5368 = vmatpush.bf16.msra.mxu0 %v5317
      %5369 = vmatmul.bf16.gmra.mxu0 %v5355
      %v5370 = vpop.f32.mrf.mxu0
      %v5371 = vadd.f32 %v5342, %v5370
      %v5372 = vpop.f32.mrf.mxu0
      %v5373 = vadd.f32 %v5347, %v5372
      %5374 = vdwg.mxu0
      %5375 = vmatpush.bf16.msra.mxu0 0
      %5376 = vmatpush.bf16.msra.mxu0 0
      %5377 = vmatpush.bf16.msra.mxu0 0
      %5378 = vmatpush.bf16.msra.mxu0 0
      %5379 = vmatpush.bf16.msra.mxu0 0
      %5380 = vmatpush.bf16.msra.mxu0 0
      %5381 = vmatpush.bf16.msra.mxu0 0
      %5382 = vmatpush.bf16.msra.mxu0 %v5333
      %5383 = vmatmul.bf16.gmra.mxu0 %v5359
      %v5384 = vpop.f32.mrf.mxu0
      %v5385 = vadd.f32 %v5371, %v5384
      %v5386 = vpop.f32.mrf.mxu0
      %v5387 = vadd.f32 %v5373, %v5386
      %5388 = vdwg.mxu0
      %5389 = vmatpush.bf16.msra.mxu0 %v5332
      %5390 = vmatpush.bf16.msra.mxu0 %v5330
      %5391 = vmatpush.bf16.msra.mxu0 %v5328
      %5392 = vmatpush.bf16.msra.mxu0 %v5326
      %5393 = vmatpush.bf16.msra.mxu0 %v5324
      %5394 = vmatpush.bf16.msra.mxu0 %v5322
      %5395 = vmatpush.bf16.msra.mxu0 %v5320
      %5396 = vmatpush.bf16.msra.mxu0 %v5318
      %5397 = vmatmul.bf16.gmra.mxu0 %v5355
      %v5398 = vpop.f32.mrf.mxu0
      %v5399 = vadd.f32 %v5342, %v5398
      %v5400 = vpop.f32.mrf.mxu0
      %v5401 = vadd.f32 %v5347, %v5400
      %5402 = vdwg.mxu0
      %5403 = vmatpush.bf16.msra.mxu0 0
      %5404 = vmatpush.bf16.msra.mxu0 0
      %5405 = vmatpush.bf16.msra.mxu0 0
      %5406 = vmatpush.bf16.msra.mxu0 0
      %5407 = vmatpush.bf16.msra.mxu0 0
      %5408 = vmatpush.bf16.msra.mxu0 0
      %5409 = vmatpush.bf16.msra.mxu0 0
      %5410 = vmatpush.bf16.msra.mxu0 %v5334
      %5411 = vmatmul.bf16.gmra.mxu0 %v5359
      %v5412 = vpop.f32.mrf.mxu0
      %v5413 = vadd.f32 %v5399, %v5412
      %v5414 = vpop.f32.mrf.mxu0
      %v5415 = vadd.f32 %v5401, %v5414
      %5416 = vdwg.mxu0
      %v5417 = vmax.f32 %v5385, 0.0
      %v5418 = vmax.f32 %v5413, 0.0
      %v5419 = vmax.f32 %v5387, 0.0
      %v5420 = vmax.f32 %v5415, 0.0
      %5421 = vrot.lane.b32.xlu0 %v5417, 17
      %v5422 = vpop.permute.xlu0 %5421
      %5423 = vrot.lane.b32.xlu0 %v5419, 17
      %v5424 = vpop.permute.xlu0 %5423
      %5425 = vrot.lane.b32.xlu0 %v5418, 17
      %v5426 = vpop.permute.xlu0 %5425
      %5427 = vrot.lane.b32.xlu0 %v5420, 17
      %v5428 = vpop.permute.xlu0 %5427
      %v5429 = vsel %vm4918, %v5422, %v5426
      %v5430 = vsel %vm4918, %v5424, %v5428
      %v5431 = vsel %vm4918, %v5426, %v5422
      %v5432 = vsel %vm4918, %v5428, %v5424
      %v5433 = vmul.f32 %v5431, %v4924
      %v5434 = vmul.f32 %v5429, %v4925
      %v5435 = vmul.f32 %v5432, %v4924
      %v5436 = vmul.f32 %v5430, %v4925
      %5437 = vrot.lane.b32.xlu0 %v5417, 16
      %v5438 = vpop.permute.xlu0 %5437
      %5439 = vrot.lane.b32.xlu0 %v5419, 16
      %v5440 = vpop.permute.xlu0 %5439
      %5441 = vrot.lane.b32.xlu0 %v5418, 16
      %v5442 = vpop.permute.xlu0 %5441
      %5443 = vrot.lane.b32.xlu0 %v5420, 16
      %v5444 = vpop.permute.xlu0 %5443
      %v5445 = vsel %vm4940, %v5438, %v5442
      %v5446 = vsel %vm4940, %v5440, %v5444
      %v5447 = vsel %vm4940, %v5442, %v5438
      %v5448 = vsel %vm4940, %v5444, %v5440
      %v5449 = vmul.f32 %v5447, %v4946
      %v5450 = vmul.f32 %v5445, %v4947
      %v5451 = vmul.f32 %v5448, %v4946
      %v5452 = vmul.f32 %v5446, %v4947
      %5453 = vrot.lane.b32.xlu0 %v5417, 15
      %v5454 = vpop.permute.xlu0 %5453
      %5455 = vrot.lane.b32.xlu0 %v5419, 15
      %v5456 = vpop.permute.xlu0 %5455
      %5457 = vrot.lane.b32.xlu0 %v5418, 15
      %v5458 = vpop.permute.xlu0 %5457
      %5459 = vrot.lane.b32.xlu0 %v5420, 15
      %v5460 = vpop.permute.xlu0 %5459
      %v5461 = vsel %vm4962, %v5454, %v5458
      %v5462 = vsel %vm4962, %v5456, %v5460
      %v5463 = vsel %vm4962, %v5458, %v5454
      %v5464 = vsel %vm4962, %v5460, %v5456
      %v5465 = vmul.f32 %v5463, %v4968
      %v5466 = vmul.f32 %v5461, %v4969
      %v5467 = vmul.f32 %v5464, %v4968
      %v5468 = vmul.f32 %v5462, %v4969
      %5469 = vrot.lane.b32.xlu0 %v5417, 1
      %v5470 = vpop.permute.xlu0 %5469
      %5471 = vrot.lane.b32.xlu0 %v5419, 1
      %v5472 = vpop.permute.xlu0 %5471
      %5473 = vrot.lane.b32.xlu0 %v5418, 1
      %v5474 = vpop.permute.xlu0 %5473
      %5475 = vrot.lane.b32.xlu0 %v5420, 1
      %v5476 = vpop.permute.xlu0 %5475
      %v5477 = vsel %vm1306, %v5470, %v5474
      %v5478 = vsel %vm1306, %v5472, %v5476
      %v5479 = vsel %vm1306, %v5474, %v5470
      %v5480 = vsel %vm1306, %v5476, %v5472
      %v5481 = vmul.f32 %v5479, %v4989
      %v5482 = vmul.f32 %v5477, %v4990
      %v5483 = vmul.f32 %v5480, %v4989
      %v5484 = vmul.f32 %v5478, %v4990
      %5485 = vrot.lane.b32.xlu0 %v5417, 127
      %v5486 = vpop.permute.xlu0 %5485
      %5487 = vrot.lane.b32.xlu0 %v5419, 127
      %v5488 = vpop.permute.xlu0 %5487
      %5489 = vrot.lane.b32.xlu0 %v5418, 127
      %v5490 = vpop.permute.xlu0 %5489
      %5491 = vrot.lane.b32.xlu0 %v5420, 127
      %v5492 = vpop.permute.xlu0 %5491
      %v5493 = vsel %vm1356, %v5486, %v5490
      %v5494 = vsel %vm1356, %v5488, %v5492
      %v5495 = vsel %vm1356, %v5490, %v5486
      %v5496 = vsel %vm1356, %v5492, %v5488
      %v5497 = vmul.f32 %v5493, %v5010
      %v5498 = vmul.f32 %v5495, %v5011
      %v5499 = vmul.f32 %v5494, %v5010
      %v5500 = vmul.f32 %v5496, %v5011
      %5501 = vrot.lane.b32.xlu0 %v5417, 113
      %v5502 = vpop.permute.xlu0 %5501
      %5503 = vrot.lane.b32.xlu0 %v5419, 113
      %v5504 = vpop.permute.xlu0 %5503
      %5505 = vrot.lane.b32.xlu0 %v5418, 113
      %v5506 = vpop.permute.xlu0 %5505
      %5507 = vrot.lane.b32.xlu0 %v5420, 113
      %v5508 = vpop.permute.xlu0 %5507
      %v5509 = vsel %vm5026, %v5502, %v5506
      %v5510 = vsel %vm5026, %v5504, %v5508
      %v5511 = vsel %vm5026, %v5506, %v5502
      %v5512 = vsel %vm5026, %v5508, %v5504
      %v5513 = vmul.f32 %v5509, %v5032
      %v5514 = vmul.f32 %v5511, %v5033
      %v5515 = vmul.f32 %v5510, %v5032
      %v5516 = vmul.f32 %v5512, %v5033
      %5517 = vrot.lane.b32.xlu0 %v5417, 112
      %v5518 = vpop.permute.xlu0 %5517
      %5519 = vrot.lane.b32.xlu0 %v5419, 112
      %v5520 = vpop.permute.xlu0 %5519
      %5521 = vrot.lane.b32.xlu0 %v5418, 112
      %v5522 = vpop.permute.xlu0 %5521
      %5523 = vrot.lane.b32.xlu0 %v5420, 112
      %v5524 = vpop.permute.xlu0 %5523
      %v5525 = vsel %vm5048, %v5518, %v5522
      %v5526 = vsel %vm5048, %v5520, %v5524
      %v5527 = vsel %vm5048, %v5522, %v5518
      %v5528 = vsel %vm5048, %v5524, %v5520
      %v5529 = vmul.f32 %v5525, %v5054
      %v5530 = vmul.f32 %v5527, %v5055
      %v5531 = vmul.f32 %v5526, %v5054
      %v5532 = vmul.f32 %v5528, %v5055
      %5533 = vrot.lane.b32.xlu0 %v5417, 111
      %v5534 = vpop.permute.xlu0 %5533
      %5535 = vrot.lane.b32.xlu0 %v5419, 111
      %v5536 = vpop.permute.xlu0 %5535
      %5537 = vrot.lane.b32.xlu0 %v5418, 111
      %v5538 = vpop.permute.xlu0 %5537
      %5539 = vrot.lane.b32.xlu0 %v5420, 111
      %v5540 = vpop.permute.xlu0 %5539
      %v5541 = vsel %vm5070, %v5534, %v5538
      %v5542 = vsel %vm5070, %v5536, %v5540
      %v5543 = vsel %vm5070, %v5538, %v5534
      %v5544 = vsel %vm5070, %v5540, %v5536
      %v5545 = vmul.f32 %v5541, %v5076
      %v5546 = vmul.f32 %v5543, %v5077
      %v5547 = vmul.f32 %v5542, %v5076
      %v5548 = vmul.f32 %v5544, %v5077
      %v5549 = vpack.c.bf16 %v5435, %v5433
      %v5550 = vpack.c.bf16 %v5436, %v5434
      %v5551 = vpack.c.bf16 %v5451, %v5449
      %v5552 = vpack.c.bf16 %v5452, %v5450
      %v5553 = vpack.c.bf16 %v5467, %v5465
      %v5554 = vpack.c.bf16 %v5468, %v5466
      %v5555 = vpack.c.bf16 %v5483, %v5481
      %v5556 = vpack.c.bf16 %v5484, %v5482
      %v5557 = vpack.c.bf16 %v5419, %v5417
      %v5558 = vpack.c.bf16 %v5420, %v5418
      %v5559 = vpack.c.bf16 %v5499, %v5497
      %v5560 = vpack.c.bf16 %v5500, %v5498
      %v5561 = vpack.c.bf16 %v5515, %v5513
      %v5562 = vpack.c.bf16 %v5516, %v5514
      %v5563 = vpack.c.bf16 %v5531, %v5529
      %v5564 = vpack.c.bf16 %v5532, %v5530
      %v5565 = vpack.c.bf16 %v5547, %v5545
      %v5566 = vpack.c.bf16 %v5548, %v5546
      %v5567 = vld [vmem:[%s35] sm:$0xff]
      %v5568 = vld [vmem:[%s35 + $0x8] sm:$0xff]
      %v5569 = vld [vmem:[%s37] sm:$0xff]
      %v5570 = vld [vmem:[%s37 + $0x8] sm:$0xff]
      %5572 = vset.pattern.permute.xlu0 0
      %5573 = vperm.xlu0 %5572, %v5569
      %v5574 = vpop.permute.xlu0 %5573
      %5577 = vset.pattern.permute.xlu0 0
      %5578 = vperm.xlu0 %5577, %v5570
      %v5579 = vpop.permute.xlu0 %5578
      %v5583 = vunpack.c.l.b16 %v5567
      %v5584 = vunpack.c.h.b16 %v5567
      %v5585 = vunpack.c.l.b16 %v5568
      %v5586 = vunpack.c.h.b16 %v5568
      %v5587 = vpack.c.b16 %v5585, %v5583
      %v5588 = vpack.c.b16 %v5586, %v5584
      %v5591 = vsel %vm5125, %v5588, 0
      %5593 = vmatpush.bf16.msra.mxu0 %v5563
      %5594 = vmatpush.bf16.msra.mxu0 %v5561
      %5595 = vmatpush.bf16.msra.mxu0 %v5559
      %5596 = vmatpush.bf16.msra.mxu0 %v5557
      %5597 = vmatpush.bf16.msra.mxu0 %v5555
      %5598 = vmatpush.bf16.msra.mxu0 %v5553
      %5599 = vmatpush.bf16.msra.mxu0 %v5551
      %5600 = vmatpush.bf16.msra.mxu0 %v5549
      %5601 = vmatmul.bf16.gmra.mxu0 %v5587
      %v5602 = vpop.f32.mrf.mxu0
      %v5603 = vadd.f32 %v5574, %v5602
      %v5604 = vpop.f32.mrf.mxu0
      %v5605 = vadd.f32 %v5579, %v5604
      %5606 = vdwg.mxu0
      %5607 = vmatpush.bf16.msra.mxu0 0
      %5608 = vmatpush.bf16.msra.mxu0 0
      %5609 = vmatpush.bf16.msra.mxu0 0
      %5610 = vmatpush.bf16.msra.mxu0 0
      %5611 = vmatpush.bf16.msra.mxu0 0
      %5612 = vmatpush.bf16.msra.mxu0 0
      %5613 = vmatpush.bf16.msra.mxu0 0
      %5614 = vmatpush.bf16.msra.mxu0 %v5565
      %5615 = vmatmul.bf16.gmra.mxu0 %v5591
      %v5616 = vpop.f32.mrf.mxu0
      %v5617 = vadd.f32 %v5603, %v5616
      %v5618 = vpop.f32.mrf.mxu0
      %v5619 = vadd.f32 %v5605, %v5618
      %5620 = vdwg.mxu0
      %5621 = vmatpush.bf16.msra.mxu0 %v5564
      %5622 = vmatpush.bf16.msra.mxu0 %v5562
      %5623 = vmatpush.bf16.msra.mxu0 %v5560
      %5624 = vmatpush.bf16.msra.mxu0 %v5558
      %5625 = vmatpush.bf16.msra.mxu0 %v5556
      %5626 = vmatpush.bf16.msra.mxu0 %v5554
      %5627 = vmatpush.bf16.msra.mxu0 %v5552
      %5628 = vmatpush.bf16.msra.mxu0 %v5550
      %5629 = vmatmul.bf16.gmra.mxu0 %v5587
      %v5630 = vpop.f32.mrf.mxu0
      %v5631 = vadd.f32 %v5574, %v5630
      %v5632 = vpop.f32.mrf.mxu0
      %v5633 = vadd.f32 %v5579, %v5632
      %5634 = vdwg.mxu0
      %5635 = vmatpush.bf16.msra.mxu0 0
      %5636 = vmatpush.bf16.msra.mxu0 0
      %5637 = vmatpush.bf16.msra.mxu0 0
      %5638 = vmatpush.bf16.msra.mxu0 0
      %5639 = vmatpush.bf16.msra.mxu0 0
      %5640 = vmatpush.bf16.msra.mxu0 0
      %5641 = vmatpush.bf16.msra.mxu0 0
      %5642 = vmatpush.bf16.msra.mxu0 %v5566
      %5643 = vmatmul.bf16.gmra.mxu0 %v5591
      %v5644 = vpop.f32.mrf.mxu0
      %v5645 = vadd.f32 %v5631, %v5644
      %v5646 = vpop.f32.mrf.mxu0
      %v5647 = vadd.f32 %v5633, %v5646
      %5648 = vdwg.mxu0
      %v5649 = vadd.f32 %v5185, %v5617
      %v5650 = vadd.f32 %v5186, %v5645
      %v5651 = vadd.f32 %v5187, %v5619
      %v5652 = vadd.f32 %v5188, %v5647
      %5653 = vrot.lane.b32.xlu0 %v5649, 17
      %v5654 = vpop.permute.xlu0 %5653
      %5655 = vrot.lane.b32.xlu0 %v5651, 17
      %v5656 = vpop.permute.xlu0 %5655
      %5657 = vrot.lane.b32.xlu0 %v5650, 17
      %v5658 = vpop.permute.xlu0 %5657
      %5659 = vrot.lane.b32.xlu0 %v5652, 17
      %v5660 = vpop.permute.xlu0 %5659
      %v5661 = vsel %vm4918, %v5654, %v5658
      %v5662 = vsel %vm4918, %v5656, %v5660
      %v5663 = vsel %vm4918, %v5658, %v5654
      %v5664 = vsel %vm4918, %v5660, %v5656
      %v5665 = vmul.f32 %v5663, %v4924
      %v5666 = vmul.f32 %v5661, %v4925
      %v5667 = vmul.f32 %v5664, %v4924
      %v5668 = vmul.f32 %v5662, %v4925
      %5669 = vrot.lane.b32.xlu0 %v5649, 16
      %v5670 = vpop.permute.xlu0 %5669
      %5671 = vrot.lane.b32.xlu0 %v5651, 16
      %v5672 = vpop.permute.xlu0 %5671
      %5673 = vrot.lane.b32.xlu0 %v5650, 16
      %v5674 = vpop.permute.xlu0 %5673
      %5675 = vrot.lane.b32.xlu0 %v5652, 16
      %v5676 = vpop.permute.xlu0 %5675
      %v5677 = vsel %vm4940, %v5670, %v5674
      %v5678 = vsel %vm4940, %v5672, %v5676
      %v5679 = vsel %vm4940, %v5674, %v5670
      %v5680 = vsel %vm4940, %v5676, %v5672
      %v5681 = vmul.f32 %v5679, %v4946
      %v5682 = vmul.f32 %v5677, %v4947
      %v5683 = vmul.f32 %v5680, %v4946
      %v5684 = vmul.f32 %v5678, %v4947
      %5685 = vrot.lane.b32.xlu0 %v5649, 15
      %v5686 = vpop.permute.xlu0 %5685
      %5687 = vrot.lane.b32.xlu0 %v5651, 15
      %v5688 = vpop.permute.xlu0 %5687
      %5689 = vrot.lane.b32.xlu0 %v5650, 15
      %v5690 = vpop.permute.xlu0 %5689
      %5691 = vrot.lane.b32.xlu0 %v5652, 15
      %v5692 = vpop.permute.xlu0 %5691
      %v5693 = vsel %vm4962, %v5686, %v5690
      %v5694 = vsel %vm4962, %v5688, %v5692
      %v5695 = vsel %vm4962, %v5690, %v5686
      %v5696 = vsel %vm4962, %v5692, %v5688
      %v5697 = vmul.f32 %v5695, %v4968
      %v5698 = vmul.f32 %v5693, %v4969
      %v5699 = vmul.f32 %v5696, %v4968
      %v5700 = vmul.f32 %v5694, %v4969
      %5701 = vrot.lane.b32.xlu0 %v5649, 1
      %v5702 = vpop.permute.xlu0 %5701
      %5703 = vrot.lane.b32.xlu0 %v5651, 1
      %v5704 = vpop.permute.xlu0 %5703
      %5705 = vrot.lane.b32.xlu0 %v5650, 1
      %v5706 = vpop.permute.xlu0 %5705
      %5707 = vrot.lane.b32.xlu0 %v5652, 1
      %v5708 = vpop.permute.xlu0 %5707
      %v5709 = vsel %vm1306, %v5702, %v5706
      %v5710 = vsel %vm1306, %v5704, %v5708
      %v5711 = vsel %vm1306, %v5706, %v5702
      %v5712 = vsel %vm1306, %v5708, %v5704
      %v5713 = vmul.f32 %v5711, %v4989
      %v5714 = vmul.f32 %v5709, %v4990
      %v5715 = vmul.f32 %v5712, %v4989
      %v5716 = vmul.f32 %v5710, %v4990
      %5717 = vrot.lane.b32.xlu0 %v5649, 127
      %v5718 = vpop.permute.xlu0 %5717
      %5719 = vrot.lane.b32.xlu0 %v5651, 127
      %v5720 = vpop.permute.xlu0 %5719
      %5721 = vrot.lane.b32.xlu0 %v5650, 127
      %v5722 = vpop.permute.xlu0 %5721
      %5723 = vrot.lane.b32.xlu0 %v5652, 127
      %v5724 = vpop.permute.xlu0 %5723
      %v5725 = vsel %vm1356, %v5718, %v5722
      %v5726 = vsel %vm1356, %v5720, %v5724
      %v5727 = vsel %vm1356, %v5722, %v5718
      %v5728 = vsel %vm1356, %v5724, %v5720
      %v5729 = vmul.f32 %v5725, %v5010
      %v5730 = vmul.f32 %v5727, %v5011
      %v5731 = vmul.f32 %v5726, %v5010
      %v5732 = vmul.f32 %v5728, %v5011
      %5733 = vrot.lane.b32.xlu0 %v5649, 113
      %v5734 = vpop.permute.xlu0 %5733
      %5735 = vrot.lane.b32.xlu0 %v5651, 113
      %v5736 = vpop.permute.xlu0 %5735
      %5737 = vrot.lane.b32.xlu0 %v5650, 113
      %v5738 = vpop.permute.xlu0 %5737
      %5739 = vrot.lane.b32.xlu0 %v5652, 113
      %v5740 = vpop.permute.xlu0 %5739
      %v5741 = vsel %vm5026, %v5734, %v5738
      %v5742 = vsel %vm5026, %v5736, %v5740
      %v5743 = vsel %vm5026, %v5738, %v5734
      %v5744 = vsel %vm5026, %v5740, %v5736
      %v5745 = vmul.f32 %v5741, %v5032
      %v5746 = vmul.f32 %v5743, %v5033
      %v5747 = vmul.f32 %v5742, %v5032
      %v5748 = vmul.f32 %v5744, %v5033
      %5749 = vrot.lane.b32.xlu0 %v5649, 112
      %v5750 = vpop.permute.xlu0 %5749
      %5751 = vrot.lane.b32.xlu0 %v5651, 112
      %v5752 = vpop.permute.xlu0 %5751
      %5753 = vrot.lane.b32.xlu0 %v5650, 112
      %v5754 = vpop.permute.xlu0 %5753
      %5755 = vrot.lane.b32.xlu0 %v5652, 112
      %v5756 = vpop.permute.xlu0 %5755
      %v5757 = vsel %vm5048, %v5750, %v5754
      %v5758 = vsel %vm5048, %v5752, %v5756
      %v5759 = vsel %vm5048, %v5754, %v5750
      %v5760 = vsel %vm5048, %v5756, %v5752
      %v5761 = vmul.f32 %v5757, %v5054
      %v5762 = vmul.f32 %v5759, %v5055
      %v5763 = vmul.f32 %v5758, %v5054
      %v5764 = vmul.f32 %v5760, %v5055
      %5765 = vrot.lane.b32.xlu0 %v5649, 111
      %v5766 = vpop.permute.xlu0 %5765
      %5767 = vrot.lane.b32.xlu0 %v5651, 111
      %v5768 = vpop.permute.xlu0 %5767
      %5769 = vrot.lane.b32.xlu0 %v5650, 111
      %v5770 = vpop.permute.xlu0 %5769
      %5771 = vrot.lane.b32.xlu0 %v5652, 111
      %v5772 = vpop.permute.xlu0 %5771
      %v5773 = vsel %vm5070, %v5766, %v5770
      %v5774 = vsel %vm5070, %v5768, %v5772
      %v5775 = vsel %vm5070, %v5770, %v5766
      %v5776 = vsel %vm5070, %v5772, %v5768
      %v5777 = vmul.f32 %v5773, %v5076
      %v5778 = vmul.f32 %v5775, %v5077
      %v5779 = vmul.f32 %v5774, %v5076
      %v5780 = vmul.f32 %v5776, %v5077
      %v5781 = vpack.c.bf16 %v5667, %v5665
      %v5782 = vpack.c.bf16 %v5668, %v5666
      %v5783 = vpack.c.bf16 %v5683, %v5681
      %v5784 = vpack.c.bf16 %v5684, %v5682
      %v5785 = vpack.c.bf16 %v5699, %v5697
      %v5786 = vpack.c.bf16 %v5700, %v5698
      %v5787 = vpack.c.bf16 %v5715, %v5713
      %v5788 = vpack.c.bf16 %v5716, %v5714
      %v5789 = vpack.c.bf16 %v5651, %v5649
      %v5790 = vpack.c.bf16 %v5652, %v5650
      %v5791 = vpack.c.bf16 %v5731, %v5729
      %v5792 = vpack.c.bf16 %v5732, %v5730
      %v5793 = vpack.c.bf16 %v5747, %v5745
      %v5794 = vpack.c.bf16 %v5748, %v5746
      %v5795 = vpack.c.bf16 %v5763, %v5761
      %v5796 = vpack.c.bf16 %v5764, %v5762
      %v5797 = vpack.c.bf16 %v5779, %v5777
      %v5798 = vpack.c.bf16 %v5780, %v5778
      %v5799 = vld [vmem:[%s39] sm:$0xff]
      %v5800 = vld [vmem:[%s39 + $0x8] sm:$0xff]
      %v5801 = vld [vmem:[%s39 + $0x10] sm:$0xff]
      %v5802 = vld [vmem:[%s39 + $0x18] sm:$0xff]
      %v5803 = vld [vmem:[%s41] sm:$0xff]
      %v5804 = vld [vmem:[%s41 + $0x8] sm:$0xff]
      %v5805 = vld [vmem:[%s41 + $0x10] sm:$0xff]
      %v5806 = vld [vmem:[%s41 + $0x18] sm:$0xff]
      %5808 = vset.pattern.permute.xlu0 0
      %5809 = vperm.xlu0 %5808, %v5803
      %v5810 = vpop.permute.xlu0 %5809
      %5813 = vset.pattern.permute.xlu0 0
      %5814 = vperm.xlu0 %5813, %v5804
      %v5815 = vpop.permute.xlu0 %5814
      %5818 = vset.pattern.permute.xlu0 0
      %5819 = vperm.xlu0 %5818, %v5805
      %v5820 = vpop.permute.xlu0 %5819
      %5823 = vset.pattern.permute.xlu0 0
      %5824 = vperm.xlu0 %5823, %v5806
      %v5825 = vpop.permute.xlu0 %5824
      %v5831 = vunpack.c.l.b16 %v5799
      %v5832 = vunpack.c.h.b16 %v5799
      %v5833 = vunpack.c.l.b16 %v5800
      %v5834 = vunpack.c.h.b16 %v5800
      %v5835 = vunpack.c.l.b16 %v5801
      %v5836 = vunpack.c.h.b16 %v5801
      %v5837 = vunpack.c.l.b16 %v5802
      %v5838 = vunpack.c.h.b16 %v5802
      %v5839 = vpack.c.b16 %v5833, %v5831
      %v5840 = vpack.c.b16 %v5834, %v5832
      %v5841 = vpack.c.b16 %v5837, %v5835
      %v5842 = vpack.c.b16 %v5838, %v5836
      %v5846 = vsel %vm5125, %v5840, 0
      %v5849 = vsel %vm5125, %v5842, 0
      %5851 = vmatpush.bf16.msra.mxu0 %v5795
      %5852 = vmatpush.bf16.msra.mxu0 %v5793
      %5853 = vmatpush.bf16.msra.mxu0 %v5791
      %5854 = vmatpush.bf16.msra.mxu0 %v5789
      %5855 = vmatpush.bf16.msra.mxu0 %v5787
      %5856 = vmatpush.bf16.msra.mxu0 %v5785
      %5857 = vmatpush.bf16.msra.mxu0 %v5783
      %5858 = vmatpush.bf16.msra.mxu0 %v5781
      %5859 = vmatmul.bf16.gmra.mxu0 %v5839
      %v5860 = vpop.f32.mrf.mxu0
      %v5861 = vadd.f32 %v5810, %v5860
      %v5862 = vpop.f32.mrf.mxu0
      %v5863 = vadd.f32 %v5815, %v5862
      %5864 = vmatmul.bf16.gmra.mxu0 %v5841
      %v5865 = vpop.f32.mrf.mxu0
      %v5866 = vadd.f32 %v5820, %v5865
      %v5867 = vpop.f32.mrf.mxu0
      %v5868 = vadd.f32 %v5825, %v5867
      %5869 = vdwg.mxu0
      %5870 = vmatpush.bf16.msra.mxu0 0
      %5871 = vmatpush.bf16.msra.mxu0 0
      %5872 = vmatpush.bf16.msra.mxu0 0
      %5873 = vmatpush.bf16.msra.mxu0 0
      %5874 = vmatpush.bf16.msra.mxu0 0
      %5875 = vmatpush.bf16.msra.mxu0 0
      %5876 = vmatpush.bf16.msra.mxu0 0
      %5877 = vmatpush.bf16.msra.mxu0 %v5797
      %5878 = vmatmul.bf16.gmra.mxu0 %v5846
      %v5879 = vpop.f32.mrf.mxu0
      %v5880 = vadd.f32 %v5861, %v5879
      %v5881 = vpop.f32.mrf.mxu0
      %v5882 = vadd.f32 %v5863, %v5881
      %5883 = vmatmul.bf16.gmra.mxu0 %v5849
      %v5884 = vpop.f32.mrf.mxu0
      %v5885 = vadd.f32 %v5866, %v5884
      %v5886 = vpop.f32.mrf.mxu0
      %v5887 = vadd.f32 %v5868, %v5886
      %5888 = vdwg.mxu0
      %5889 = vmatpush.bf16.msra.mxu0 %v5796
      %5890 = vmatpush.bf16.msra.mxu0 %v5794
      %5891 = vmatpush.bf16.msra.mxu0 %v5792
      %5892 = vmatpush.bf16.msra.mxu0 %v5790
      %5893 = vmatpush.bf16.msra.mxu0 %v5788
      %5894 = vmatpush.bf16.msra.mxu0 %v5786
      %5895 = vmatpush.bf16.msra.mxu0 %v5784
      %5896 = vmatpush.bf16.msra.mxu0 %v5782
      %5897 = vmatmul.bf16.gmra.mxu0 %v5839
      %v5898 = vpop.f32.mrf.mxu0
      %v5899 = vadd.f32 %v5810, %v5898
      %v5900 = vpop.f32.mrf.mxu0
      %v5901 = vadd.f32 %v5815, %v5900
      %5902 = vmatmul.bf16.gmra.mxu0 %v5841
      %v5903 = vpop.f32.mrf.mxu0
      %v5904 = vadd.f32 %v5820, %v5903
      %v5905 = vpop.f32.mrf.mxu0
      %v5906 = vadd.f32 %v5825, %v5905
      %5907 = vdwg.mxu0
      %5908 = vmatpush.bf16.msra.mxu0 0
      %5909 = vmatpush.bf16.msra.mxu0 0
      %5910 = vmatpush.bf16.msra.mxu0 0
      %5911 = vmatpush.bf16.msra.mxu0 0
      %5912 = vmatpush.bf16.msra.mxu0 0
      %5913 = vmatpush.bf16.msra.mxu0 0
      %5914 = vmatpush.bf16.msra.mxu0 0
      %5915 = vmatpush.bf16.msra.mxu0 %v5798
      %5916 = vmatmul.bf16.gmra.mxu0 %v5846
      %v5917 = vpop.f32.mrf.mxu0
      %v5918 = vadd.f32 %v5899, %v5917
      %v5919 = vpop.f32.mrf.mxu0
      %v5920 = vadd.f32 %v5901, %v5919
      %5921 = vmatmul.bf16.gmra.mxu0 %v5849
      %v5922 = vpop.f32.mrf.mxu0
      %v5923 = vadd.f32 %v5904, %v5922
      %v5924 = vpop.f32.mrf.mxu0
      %v5925 = vadd.f32 %v5906, %v5924
      %5926 = vdwg.mxu0
      %v5927 = vmax.f32 %v5880, 0.0
      %v5928 = vmax.f32 %v5918, 0.0
      %v5929 = vmax.f32 %v5882, 0.0
      %v5930 = vmax.f32 %v5920, 0.0
      %v5931 = vmax.f32 %v5885, 0.0
      %v5932 = vmax.f32 %v5923, 0.0
      %v5933 = vmax.f32 %v5887, 0.0
      %v5934 = vmax.f32 %v5925, 0.0
      %v5935 = vld [vmem:[%s57] sm:$0xff]
      %v5936 = vld [vmem:[%s57 + $0x8] sm:$0xff]
      %v5937 = vld [vmem:[%s57 + $0x10] sm:$0xff]
      %v5938 = vld [vmem:[%s57 + $0x18] sm:$0xff]
      %v5939 = vld [vmem:[%s57 + $0x20] sm:$0xff]
      %v5940 = vld [vmem:[%s57 + $0x28] sm:$0xff]
      %v5941 = vld [vmem:[%s57 + $0x30] sm:$0xff]
      %v5942 = vld [vmem:[%s57 + $0x38] sm:$0xff]
      %v5943 = vld [vmem:[%s57 + $0x40] sm:$0xff]
      %v5944 = vld [vmem:[%s57 + $0x48] sm:$0xff]
      %v5945 = vld [vmem:[%s57 + $0x50] sm:$0xff]
      %v5946 = vld [vmem:[%s57 + $0x58] sm:$0xff]
      %v5947 = vld [vmem:[%s57 + $0x60] sm:$0xff]
      %v5948 = vld [vmem:[%s57 + $0x68] sm:$0xff]
      %v5949 = vld [vmem:[%s57 + $0x70] sm:$0xff]
      %v5950 = vld [vmem:[%s57 + $0x78] sm:$0xff]
      %v5951 = vld [vmem:[%s57 + $0x80] sm:$0xff]
      %v5952 = vld [vmem:[%s57 + $0x88] sm:$0xff]
      %v5953 = vld [vmem:[%s57 + $0x90] sm:$0xff]
      %v5954 = vld [vmem:[%s57 + $0x98] sm:$0xff]
      %v5955 = vld [vmem:[%s57 + $0xa0] sm:$0xff]
      %v5956 = vld [vmem:[%s57 + $0xa8] sm:$0xff]
      %v5957 = vld [vmem:[%s57 + $0xb0] sm:$0xff]
      %v5958 = vld [vmem:[%s57 + $0xb8] sm:$0xff]
      %v5959 = vld [vmem:[%s57 + $0xc0] sm:$0xff]
      %v5960 = vld [vmem:[%s57 + $0xc8] sm:$0xff]
      %v5961 = vld [vmem:[%s57 + $0xd0] sm:$0xff]
      %v5962 = vld [vmem:[%s57 + $0xd8] sm:$0xff]
      %v5963 = vld [vmem:[%s57 + $0xe0] sm:$0xff]
      %v5964 = vld [vmem:[%s57 + $0xe8] sm:$0xff]
      %v5965 = vld [vmem:[%s57 + $0xf0] sm:$0xff]
      %v5966 = vld [vmem:[%s57 + $0xf8] sm:$0xff]
      %5967 = vmatpush.msra.mxu0 %v5950
      %5968 = vmatpush.msra.mxu0 %v5949
      %5969 = vmatpush.msra.mxu0 %v5948
      %5970 = vmatpush.msra.mxu0 %v5947
      %5971 = vmatpush.msra.mxu0 %v5946
      %5972 = vmatpush.msra.mxu0 %v5945
      %5973 = vmatpush.msra.mxu0 %v5944
      %5974 = vmatpush.msra.mxu0 %v5943
      %5975 = vmatpush.msra.mxu0 %v5942
      %5976 = vmatpush.msra.mxu0 %v5941
      %5977 = vmatpush.msra.mxu0 %v5940
      %5978 = vmatpush.msra.mxu0 %v5939
      %5979 = vmatpush.msra.mxu0 %v5938
      %5980 = vmatpush.msra.mxu0 %v5937
      %5981 = vmatpush.msra.mxu0 %v5936
      %5982 = vmatpush.msra.mxu0 %v5935
      %5983 = vmatmul.f32.gmra.mxu0 %v5927
      %v5984 = vpop.f32.mrf.mxu0
      %v5985 = vadd.f32 0.0, %v5984
      %5986 = vmatmul.f32.gmra.mxu0 %v5929
      %v5987 = vpop.f32.mrf.mxu0
      %v5988 = vadd.f32 0.0, %v5987
      %5989 = vmatmul.f32.gmra.mxu0 %v5931
      %v5990 = vpop.f32.mrf.mxu0
      %v5991 = vadd.f32 0.0, %v5990
      %5992 = vmatmul.f32.gmra.mxu0 %v5933
      %v5993 = vpop.f32.mrf.mxu0
      %v5994 = vadd.f32 0.0, %v5993
      %5995 = vdwg.mxu0
      %5996 = vmatpush.msra.mxu0 %v5966
      %5997 = vmatpush.msra.mxu0 %v5965
      %5998 = vmatpush.msra.mxu0 %v5964
      %5999 = vmatpush.msra.mxu0 %v5963
      %6000 = vmatpush.msra.mxu0 %v5962
      %6001 = vmatpush.msra.mxu0 %v5961
      %6002 = vmatpush.msra.mxu0 %v5960
      %6003 = vmatpush.msra.mxu0 %v5959
      %6004 = vmatpush.msra.mxu0 %v5958
      %6005 = vmatpush.msra.mxu0 %v5957
      %6006 = vmatpush.msra.mxu0 %v5956
      %6007 = vmatpush.msra.mxu0 %v5955
      %6008 = vmatpush.msra.mxu0 %v5954
      %6009 = vmatpush.msra.mxu0 %v5953
      %6010 = vmatpush.msra.mxu0 %v5952
      %6011 = vmatpush.msra.mxu0 %v5951
      %6012 = vmatmul.f32.gmra.mxu0 %v5928
      %v6013 = vpop.f32.mrf.mxu0
      %v6014 = vadd.f32 %v5985, %v6013
      %6015 = vmatmul.f32.gmra.mxu0 %v5930
      %v6016 = vpop.f32.mrf.mxu0
      %v6017 = vadd.f32 %v5988, %v6016
      %6018 = vmatmul.f32.gmra.mxu0 %v5932
      %v6019 = vpop.f32.mrf.mxu0
      %v6020 = vadd.f32 %v5991, %v6019
      %6021 = vmatmul.f32.gmra.mxu0 %v5934
      %v6022 = vpop.f32.mrf.mxu0
      %v6023 = vadd.f32 %v5994, %v6022
      %6024 = vdwg.mxu0
      %6025 = vmatpush.msra.mxu0 %v5950
      %6026 = vmatpush.msra.mxu0 %v5949
      %6027 = vmatpush.msra.mxu0 %v5948
      %6028 = vmatpush.msra.mxu0 %v5947
      %6029 = vmatpush.msra.mxu0 %v5946
      %6030 = vmatpush.msra.mxu0 %v5945
      %6031 = vmatpush.msra.mxu0 %v5944
      %6032 = vmatpush.msra.mxu0 %v5943
      %6033 = vmatpush.msra.mxu0 %v5942
      %6034 = vmatpush.msra.mxu0 %v5941
      %6035 = vmatpush.msra.mxu0 %v5940
      %6036 = vmatpush.msra.mxu0 %v5939
      %6037 = vmatpush.msra.mxu0 %v5938
      %6038 = vmatpush.msra.mxu0 %v5937
      %6039 = vmatpush.msra.mxu0 %v5936
      %6040 = vmatpush.msra.mxu0 %v5935
      %6041 = vmatmul.f32.gmra.mxu0 %v5649
      %v6042 = vpop.f32.mrf.mxu0
      %v6043 = vadd.f32 0.0, %v6042
      %6044 = vmatmul.f32.gmra.mxu0 %v5651
      %v6045 = vpop.f32.mrf.mxu0
      %v6046 = vadd.f32 0.0, %v6045
      %6047 = vdwg.mxu0
      %6048 = vmatpush.msra.mxu0 %v5966
      %6049 = vmatpush.msra.mxu0 %v5965
      %6050 = vmatpush.msra.mxu0 %v5964
      %6051 = vmatpush.msra.mxu0 %v5963
      %6052 = vmatpush.msra.mxu0 %v5962
      %6053 = vmatpush.msra.mxu0 %v5961
      %6054 = vmatpush.msra.mxu0 %v5960
      %6055 = vmatpush.msra.mxu0 %v5959
      %6056 = vmatpush.msra.mxu0 %v5958
      %6057 = vmatpush.msra.mxu0 %v5957
      %6058 = vmatpush.msra.mxu0 %v5956
      %6059 = vmatpush.msra.mxu0 %v5955
      %6060 = vmatpush.msra.mxu0 %v5954
      %6061 = vmatpush.msra.mxu0 %v5953
      %6062 = vmatpush.msra.mxu0 %v5952
      %6063 = vmatpush.msra.mxu0 %v5951
      %6064 = vmatmul.f32.gmra.mxu0 %v5650
      %v6065 = vpop.f32.mrf.mxu0
      %v6066 = vadd.f32 %v6043, %v6065
      %6067 = vmatmul.f32.gmra.mxu0 %v5652
      %v6068 = vpop.f32.mrf.mxu0
      %v6069 = vadd.f32 %v6046, %v6068
      %6070 = vdwg.mxu0
      %vm6071 = vcmask 523264
      %v6073 = vsel %vm6071, %v6014, 0
      %v6076 = vsel %vm6071, %v6017, 0
      %v6079 = vsel %vm6071, %v6020, 0
      %v6082 = vsel %vm6071, %v6023, 0
      %6084 = vmatpush.msra.mxu0 0.0
      %6085 = vmatpush.msra.mxu0 0.0
      %6086 = vmatpush.msra.mxu0 0.0
      %6087 = vmatpush.msra.mxu0 0.0
      %6088 = vmatpush.msra.mxu0 0.0
      %6089 = vmatpush.msra.mxu0 0.0
      %6090 = vmatpush.msra.mxu0 0.0
      %6091 = vmatpush.msra.mxu0 0.0
      %6092 = vmatpush.msra.mxu0 %v1066
      %6093 = vmatpush.msra.mxu0 %v1065
      %6094 = vmatpush.msra.mxu0 %v1064
      %6095 = vmatpush.msra.mxu0 %v1063
      %6096 = vmatpush.msra.mxu0 %v1062
      %6097 = vmatpush.msra.mxu0 %v1061
      %6098 = vmatpush.msra.mxu0 %v1060
      %6099 = vmatpush.msra.mxu0 %v1059
      %6100 = vmatmul.f32.gmra.mxu0 %v6073
      %v6101 = vpop.f32.mrf.mxu0
      %v6102 = vadd.f32 0.0, %v6101
      %6103 = vmatmul.f32.gmra.mxu0 %v6076
      %v6104 = vpop.f32.mrf.mxu0
      %v6105 = vadd.f32 0.0, %v6104
      %6106 = vmatmul.f32.gmra.mxu0 %v6079
      %v6107 = vpop.f32.mrf.mxu0
      %v6108 = vadd.f32 0.0, %v6107
      %6109 = vmatmul.f32.gmra.mxu0 %v6082
      %v6110 = vpop.f32.mrf.mxu0
      %v6111 = vadd.f32 0.0, %v6110
      %6112 = vdwg.mxu0
      %6113 = vmatpush.msra.mxu0 0.0
      %6114 = vmatpush.msra.mxu0 0.0
      %6115 = vmatpush.msra.mxu0 0.0
      %6116 = vmatpush.msra.mxu0 0.0
      %6117 = vmatpush.msra.mxu0 0.0
      %6118 = vmatpush.msra.mxu0 0.0
      %6119 = vmatpush.msra.mxu0 0.0
      %6120 = vmatpush.msra.mxu0 0.0
      %6121 = vmatpush.msra.mxu0 %v1075
      %6122 = vmatpush.msra.mxu0 %v1074
      %6123 = vmatpush.msra.mxu0 %v1073
      %6124 = vmatpush.msra.mxu0 %v1072
      %6125 = vmatpush.msra.mxu0 %v1071
      %6126 = vmatpush.msra.mxu0 %v1070
      %6127 = vmatpush.msra.mxu0 %v1069
      %6128 = vmatpush.msra.mxu0 %v1068
      %6129 = vmatmul.f32.gmra.mxu0 %v6073
      %v6130 = vpop.f32.mrf.mxu0
      %v6131 = vadd.f32 0.0, %v6130
      %6132 = vmatmul.f32.gmra.mxu0 %v6076
      %v6133 = vpop.f32.mrf.mxu0
      %v6134 = vadd.f32 0.0, %v6133
      %6135 = vmatmul.f32.gmra.mxu0 %v6079
      %v6136 = vpop.f32.mrf.mxu0
      %v6137 = vadd.f32 0.0, %v6136
      %6138 = vmatmul.f32.gmra.mxu0 %v6082
      %v6139 = vpop.f32.mrf.mxu0
      %v6140 = vadd.f32 0.0, %v6139
      %6141 = vdwg.mxu0
      %6142 = vmatpush.msra.mxu0 0.0
      %6143 = vmatpush.msra.mxu0 0.0
      %6144 = vmatpush.msra.mxu0 0.0
      %6145 = vmatpush.msra.mxu0 0.0
      %6146 = vmatpush.msra.mxu0 0.0
      %6147 = vmatpush.msra.mxu0 0.0
      %6148 = vmatpush.msra.mxu0 0.0
      %6149 = vmatpush.msra.mxu0 0.0
      %6150 = vmatpush.msra.mxu0 %v1084
      %6151 = vmatpush.msra.mxu0 %v1083
      %6152 = vmatpush.msra.mxu0 %v1082
      %6153 = vmatpush.msra.mxu0 %v1081
      %6154 = vmatpush.msra.mxu0 %v1080
      %6155 = vmatpush.msra.mxu0 %v1079
      %6156 = vmatpush.msra.mxu0 %v1078
      %6157 = vmatpush.msra.mxu0 %v1077
      %6158 = vmatmul.f32.gmra.mxu0 %v6073
      %v6159 = vpop.f32.mrf.mxu0
      %v6160 = vadd.f32 0.0, %v6159
      %6161 = vmatmul.f32.gmra.mxu0 %v6076
      %v6162 = vpop.f32.mrf.mxu0
      %v6163 = vadd.f32 0.0, %v6162
      %6164 = vmatmul.f32.gmra.mxu0 %v6079
      %v6165 = vpop.f32.mrf.mxu0
      %v6166 = vadd.f32 0.0, %v6165
      %6167 = vmatmul.f32.gmra.mxu0 %v6082
      %v6168 = vpop.f32.mrf.mxu0
      %v6169 = vadd.f32 0.0, %v6168
      %6170 = vdwg.mxu0
      %6171 = vmatpush.msra.mxu0 0.0
      %6172 = vmatpush.msra.mxu0 0.0
      %6173 = vmatpush.msra.mxu0 0.0
      %6174 = vmatpush.msra.mxu0 0.0
      %6175 = vmatpush.msra.mxu0 0.0
      %6176 = vmatpush.msra.mxu0 0.0
      %6177 = vmatpush.msra.mxu0 0.0
      %6178 = vmatpush.msra.mxu0 0.0
      %6179 = vmatpush.msra.mxu0 %v1093
      %6180 = vmatpush.msra.mxu0 %v1092
      %6181 = vmatpush.msra.mxu0 %v1091
      %6182 = vmatpush.msra.mxu0 %v1090
      %6183 = vmatpush.msra.mxu0 %v1089
      %6184 = vmatpush.msra.mxu0 %v1088
      %6185 = vmatpush.msra.mxu0 %v1087
      %6186 = vmatpush.msra.mxu0 %v1086
      %6187 = vmatmul.f32.gmra.mxu0 %v6073
      %v6188 = vpop.f32.mrf.mxu0
      %v6189 = vadd.f32 0.0, %v6188
      %6190 = vmatmul.f32.gmra.mxu0 %v6076
      %v6191 = vpop.f32.mrf.mxu0
      %v6192 = vadd.f32 0.0, %v6191
      %6193 = vmatmul.f32.gmra.mxu0 %v6079
      %v6194 = vpop.f32.mrf.mxu0
      %v6195 = vadd.f32 0.0, %v6194
      %6196 = vmatmul.f32.gmra.mxu0 %v6082
      %v6197 = vpop.f32.mrf.mxu0
      %v6198 = vadd.f32 0.0, %v6197
      %6199 = vdwg.mxu0
      %6200 = vmatpush.msra.mxu0 0.0
      %6201 = vmatpush.msra.mxu0 0.0
      %6202 = vmatpush.msra.mxu0 0.0
      %6203 = vmatpush.msra.mxu0 0.0
      %6204 = vmatpush.msra.mxu0 0.0
      %6205 = vmatpush.msra.mxu0 0.0
      %6206 = vmatpush.msra.mxu0 0.0
      %6207 = vmatpush.msra.mxu0 0.0
      %6208 = vmatpush.msra.mxu0 %v1102
      %6209 = vmatpush.msra.mxu0 %v1101
      %6210 = vmatpush.msra.mxu0 %v1100
      %6211 = vmatpush.msra.mxu0 %v1099
      %6212 = vmatpush.msra.mxu0 %v1098
      %6213 = vmatpush.msra.mxu0 %v1097
      %6214 = vmatpush.msra.mxu0 %v1096
      %6215 = vmatpush.msra.mxu0 %v1095
      %6216 = vmatmul.f32.gmra.mxu0 %v6073
      %v6217 = vpop.f32.mrf.mxu0
      %v6218 = vadd.f32 0.0, %v6217
      %6219 = vmatmul.f32.gmra.mxu0 %v6076
      %v6220 = vpop.f32.mrf.mxu0
      %v6221 = vadd.f32 0.0, %v6220
      %6222 = vmatmul.f32.gmra.mxu0 %v6079
      %v6223 = vpop.f32.mrf.mxu0
      %v6224 = vadd.f32 0.0, %v6223
      %6225 = vmatmul.f32.gmra.mxu0 %v6082
      %v6226 = vpop.f32.mrf.mxu0
      %v6227 = vadd.f32 0.0, %v6226
      %6228 = vdwg.mxu0
      %6229 = vmatpush.msra.mxu0 0.0
      %6230 = vmatpush.msra.mxu0 0.0
      %6231 = vmatpush.msra.mxu0 0.0
      %6232 = vmatpush.msra.mxu0 0.0
      %6233 = vmatpush.msra.mxu0 0.0
      %6234 = vmatpush.msra.mxu0 0.0
      %6235 = vmatpush.msra.mxu0 0.0
      %6236 = vmatpush.msra.mxu0 0.0
      %6237 = vmatpush.msra.mxu0 %v1111
      %6238 = vmatpush.msra.mxu0 %v1110
      %6239 = vmatpush.msra.mxu0 %v1109
      %6240 = vmatpush.msra.mxu0 %v1108
      %6241 = vmatpush.msra.mxu0 %v1107
      %6242 = vmatpush.msra.mxu0 %v1106
      %6243 = vmatpush.msra.mxu0 %v1105
      %6244 = vmatpush.msra.mxu0 %v1104
      %6245 = vmatmul.f32.gmra.mxu0 %v6073
      %v6246 = vpop.f32.mrf.mxu0
      %v6247 = vadd.f32 0.0, %v6246
      %6248 = vmatmul.f32.gmra.mxu0 %v6076
      %v6249 = vpop.f32.mrf.mxu0
      %v6250 = vadd.f32 0.0, %v6249
      %6251 = vmatmul.f32.gmra.mxu0 %v6079
      %v6252 = vpop.f32.mrf.mxu0
      %v6253 = vadd.f32 0.0, %v6252
      %6254 = vmatmul.f32.gmra.mxu0 %v6082
      %v6255 = vpop.f32.mrf.mxu0
      %v6256 = vadd.f32 0.0, %v6255
      %6257 = vdwg.mxu0
      %6258 = vmatpush.msra.mxu0 0.0
      %6259 = vmatpush.msra.mxu0 0.0
      %6260 = vmatpush.msra.mxu0 0.0
      %6261 = vmatpush.msra.mxu0 0.0
      %6262 = vmatpush.msra.mxu0 0.0
      %6263 = vmatpush.msra.mxu0 0.0
      %6264 = vmatpush.msra.mxu0 0.0
      %6265 = vmatpush.msra.mxu0 0.0
      %6266 = vmatpush.msra.mxu0 %v1120
      %6267 = vmatpush.msra.mxu0 %v1119
      %6268 = vmatpush.msra.mxu0 %v1118
      %6269 = vmatpush.msra.mxu0 %v1117
      %6270 = vmatpush.msra.mxu0 %v1116
      %6271 = vmatpush.msra.mxu0 %v1115
      %6272 = vmatpush.msra.mxu0 %v1114
      %6273 = vmatpush.msra.mxu0 %v1113
      %6274 = vmatmul.f32.gmra.mxu0 %v6073
      %v6275 = vpop.f32.mrf.mxu0
      %v6276 = vadd.f32 0.0, %v6275
      %6277 = vmatmul.f32.gmra.mxu0 %v6076
      %v6278 = vpop.f32.mrf.mxu0
      %v6279 = vadd.f32 0.0, %v6278
      %6280 = vmatmul.f32.gmra.mxu0 %v6079
      %v6281 = vpop.f32.mrf.mxu0
      %v6282 = vadd.f32 0.0, %v6281
      %6283 = vmatmul.f32.gmra.mxu0 %v6082
      %v6284 = vpop.f32.mrf.mxu0
      %v6285 = vadd.f32 0.0, %v6284
      %6286 = vdwg.mxu0
      %6287 = vmatpush.msra.mxu0 0.0
      %6288 = vmatpush.msra.mxu0 0.0
      %6289 = vmatpush.msra.mxu0 0.0
      %6290 = vmatpush.msra.mxu0 0.0
      %6291 = vmatpush.msra.mxu0 0.0
      %6292 = vmatpush.msra.mxu0 0.0
      %6293 = vmatpush.msra.mxu0 0.0
      %6294 = vmatpush.msra.mxu0 0.0
      %6295 = vmatpush.msra.mxu0 %v1129
      %6296 = vmatpush.msra.mxu0 %v1128
      %6297 = vmatpush.msra.mxu0 %v1127
      %6298 = vmatpush.msra.mxu0 %v1126
      %6299 = vmatpush.msra.mxu0 %v1125
      %6300 = vmatpush.msra.mxu0 %v1124
      %6301 = vmatpush.msra.mxu0 %v1123
      %6302 = vmatpush.msra.mxu0 %v1122
      %6303 = vmatmul.f32.gmra.mxu0 %v6073
      %v6304 = vpop.f32.mrf.mxu0
      %v6305 = vadd.f32 0.0, %v6304
      %6306 = vmatmul.f32.gmra.mxu0 %v6076
      %v6307 = vpop.f32.mrf.mxu0
      %v6308 = vadd.f32 0.0, %v6307
      %6309 = vmatmul.f32.gmra.mxu0 %v6079
      %v6310 = vpop.f32.mrf.mxu0
      %v6311 = vadd.f32 0.0, %v6310
      %6312 = vmatmul.f32.gmra.mxu0 %v6082
      %v6313 = vpop.f32.mrf.mxu0
      %v6314 = vadd.f32 0.0, %v6313
      %6315 = vdwg.mxu0
      %v6316 = vpack.c.bf16 %v6105, %v6102
      %v6317 = vpack.c.bf16 %v6111, %v6108
      %v6318 = vpack.c.bf16 %v6134, %v6131
      %v6319 = vpack.c.bf16 %v6140, %v6137
      %v6320 = vpack.c.bf16 %v6163, %v6160
      %v6321 = vpack.c.bf16 %v6169, %v6166
      %v6322 = vpack.c.bf16 %v6192, %v6189
      %v6323 = vpack.c.bf16 %v6198, %v6195
      %v6324 = vpack.c.bf16 %v6017, %v6014
      %v6325 = vpack.c.bf16 %v6023, %v6020
      %v6326 = vpack.c.bf16 %v6221, %v6218
      %v6327 = vpack.c.bf16 %v6227, %v6224
      %v6328 = vpack.c.bf16 %v6250, %v6247
      %v6329 = vpack.c.bf16 %v6256, %v6253
      %v6330 = vpack.c.bf16 %v6279, %v6276
      %v6331 = vpack.c.bf16 %v6285, %v6282
      %v6332 = vpack.c.bf16 %v6308, %v6305
      %v6333 = vpack.c.bf16 %v6314, %v6311
      %v6334 = vld [vmem:[%s43] sm:$0xff]
      %v6335 = vld [vmem:[%s43 + $0x8] sm:$0xf]
      %v6336 = vld [vmem:[%s43 + $0xc] sm:$0xff]
      %v6337 = vld [vmem:[%s43 + $0x14] sm:$0xf]
      %v6338 = vld [vmem:[%s43 + $0x18] sm:$0xff]
      %v6339 = vld [vmem:[%s43 + $0x20] sm:$0xf]
      %v6340 = vld [vmem:[%s43 + $0x24] sm:$0xff]
      %v6341 = vld [vmem:[%s43 + $0x2c] sm:$0xf]
      %v6342 = vld [vmem:[%s45] sm:$0xff]
      %v6343 = vld [vmem:[%s45 + $0x8] sm:$0xff]
      %v6344 = vld [vmem:[%s45 + $0x10] sm:$0xff]
      %v6345 = vld [vmem:[%s45 + $0x18] sm:$0xff]
      %6347 = vset.pattern.permute.xlu0 0
      %6348 = vperm.xlu0 %6347, %v6342
      %v6349 = vpop.permute.xlu0 %6348
      %6352 = vset.pattern.permute.xlu0 0
      %6353 = vperm.xlu0 %6352, %v6343
      %v6354 = vpop.permute.xlu0 %6353
      %6357 = vset.pattern.permute.xlu0 0
      %6358 = vperm.xlu0 %6357, %v6344
      %v6359 = vpop.permute.xlu0 %6358
      %6362 = vset.pattern.permute.xlu0 0
      %6363 = vperm.xlu0 %6362, %v6345
      %v6364 = vpop.permute.xlu0 %6363
      %v6374 = vunpack.c.l.b16 %v6334
      %v6375 = vunpack.c.h.b16 %v6334
      %v6376 = vunpack.c.l.b16 %v6335
      %v6377 = vunpack.c.l.b16 %v6336
      %v6378 = vunpack.c.h.b16 %v6336
      %v6379 = vunpack.c.l.b16 %v6337
      %v6380 = vunpack.c.l.b16 %v6338
      %v6381 = vunpack.c.h.b16 %v6338
      %v6382 = vunpack.c.l.b16 %v6339
      %v6383 = vunpack.c.l.b16 %v6340
      %v6384 = vunpack.c.h.b16 %v6340
      %v6385 = vunpack.c.l.b16 %v6341
      %v6386 = vpack.c.b16 %v6377, %v6374
      %v6387 = vpack.c.b16 %v6378, %v6375
      %v6388 = vpack.c.b16 %v6379, %v6376
      %v6389 = vpack.c.b16 %v6383, %v6380
      %v6390 = vpack.c.b16 %v6384, %v6381
      %v6391 = vpack.c.b16 %v6385, %v6382
      %vm6396 = vcmask 261120
      %v6398 = vsel %vm6396, %v6388, 0
      %v6401 = vsel %vm6396, %v6391, 0
      %6403 = vmatpush.bf16.msra.mxu0 %v6323
      %6404 = vmatpush.bf16.msra.mxu0 %v6322
      %6405 = vmatpush.bf16.msra.mxu0 %v6321
      %6406 = vmatpush.bf16.msra.mxu0 %v6320
      %6407 = vmatpush.bf16.msra.mxu0 %v6319
      %6408 = vmatpush.bf16.msra.mxu0 %v6318
      %6409 = vmatpush.bf16.msra.mxu0 %v6317
      %6410 = vmatpush.bf16.msra.mxu0 %v6316
      %6411 = vmatmul.bf16.gmra.mxu0 %v6386
      %v6412 = vpop.f32.mrf.mxu0
      %v6413 = vadd.f32 %v6349, %v6412
      %v6414 = vpop.f32.mrf.mxu0
      %v6415 = vadd.f32 %v6354, %v6414
      %6416 = vmatmul.bf16.gmra.mxu0 %v6389
      %v6417 = vpop.f32.mrf.mxu0
      %v6418 = vadd.f32 %v6359, %v6417
      %v6419 = vpop.f32.mrf.mxu0
      %v6420 = vadd.f32 %v6364, %v6419
      %6421 = vdwg.mxu0
      %6422 = vmatpush.bf16.msra.mxu0 %v6331
      %6423 = vmatpush.bf16.msra.mxu0 %v6330
      %6424 = vmatpush.bf16.msra.mxu0 %v6329
      %6425 = vmatpush.bf16.msra.mxu0 %v6328
      %6426 = vmatpush.bf16.msra.mxu0 %v6327
      %6427 = vmatpush.bf16.msra.mxu0 %v6326
      %6428 = vmatpush.bf16.msra.mxu0 %v6325
      %6429 = vmatpush.bf16.msra.mxu0 %v6324
      %6430 = vmatmul.bf16.gmra.mxu0 %v6387
      %v6431 = vpop.f32.mrf.mxu0
      %v6432 = vadd.f32 %v6413, %v6431
      %v6433 = vpop.f32.mrf.mxu0
      %v6434 = vadd.f32 %v6415, %v6433
      %6435 = vmatmul.bf16.gmra.mxu0 %v6390
      %v6436 = vpop.f32.mrf.mxu0
      %v6437 = vadd.f32 %v6418, %v6436
      %v6438 = vpop.f32.mrf.mxu0
      %v6439 = vadd.f32 %v6420, %v6438
      %6440 = vdwg.mxu0
      %6441 = vmatpush.bf16.msra.mxu0 0
      %6442 = vmatpush.bf16.msra.mxu0 0
      %6443 = vmatpush.bf16.msra.mxu0 0
      %6444 = vmatpush.bf16.msra.mxu0 0
      %6445 = vmatpush.bf16.msra.mxu0 0
      %6446 = vmatpush.bf16.msra.mxu0 0
      %6447 = vmatpush.bf16.msra.mxu0 %v6333
      %6448 = vmatpush.bf16.msra.mxu0 %v6332
      %6449 = vmatmul.bf16.gmra.mxu0 %v6398
      %v6450 = vpop.f32.mrf.mxu0
      %v6451 = vadd.f32 %v6432, %v6450
      %v6452 = vpop.f32.mrf.mxu0
      %v6453 = vadd.f32 %v6434, %v6452
      %6454 = vmatmul.bf16.gmra.mxu0 %v6401
      %v6455 = vpop.f32.mrf.mxu0
      %v6456 = vadd.f32 %v6437, %v6455
      %v6457 = vpop.f32.mrf.mxu0
      %v6458 = vadd.f32 %v6439, %v6457
      %6459 = vdwg.mxu0
      %v6460 = vadd.f32 %v6066, %v6451
      %v6461 = vadd.f32 %v6069, %v6453
      %v6462 = vadd.f32 %v6456, 0.0
      %v6463 = vadd.f32 %v6458, 0.0
      %v6465 = vsel %vm6071, %v6460, 0
      %v6468 = vsel %vm6071, %v6461, 0
      %v6471 = vsel %vm6071, %v6462, 0
      %v6474 = vsel %vm6071, %v6463, 0
      %6476 = vmatpush.msra.mxu0 0.0
      %6477 = vmatpush.msra.mxu0 0.0
      %6478 = vmatpush.msra.mxu0 0.0
      %6479 = vmatpush.msra.mxu0 0.0
      %6480 = vmatpush.msra.mxu0 0.0
      %6481 = vmatpush.msra.mxu0 0.0
      %6482 = vmatpush.msra.mxu0 0.0
      %6483 = vmatpush.msra.mxu0 0.0
      %6484 = vmatpush.msra.mxu0 %v1066
      %6485 = vmatpush.msra.mxu0 %v1065
      %6486 = vmatpush.msra.mxu0 %v1064
      %6487 = vmatpush.msra.mxu0 %v1063
      %6488 = vmatpush.msra.mxu0 %v1062
      %6489 = vmatpush.msra.mxu0 %v1061
      %6490 = vmatpush.msra.mxu0 %v1060
      %6491 = vmatpush.msra.mxu0 %v1059
      %6492 = vmatmul.f32.gmra.mxu0 %v6465
      %v6493 = vpop.f32.mrf.mxu0
      %v6494 = vadd.f32 0.0, %v6493
      %6495 = vmatmul.f32.gmra.mxu0 %v6468
      %v6496 = vpop.f32.mrf.mxu0
      %v6497 = vadd.f32 0.0, %v6496
      %6498 = vmatmul.f32.gmra.mxu0 %v6471
      %v6499 = vpop.f32.mrf.mxu0
      %v6500 = vadd.f32 0.0, %v6499
      %6501 = vmatmul.f32.gmra.mxu0 %v6474
      %v6502 = vpop.f32.mrf.mxu0
      %v6503 = vadd.f32 0.0, %v6502
      %6504 = vdwg.mxu0
      %6505 = vmatpush.msra.mxu0 0.0
      %6506 = vmatpush.msra.mxu0 0.0
      %6507 = vmatpush.msra.mxu0 0.0
      %6508 = vmatpush.msra.mxu0 0.0
      %6509 = vmatpush.msra.mxu0 0.0
      %6510 = vmatpush.msra.mxu0 0.0
      %6511 = vmatpush.msra.mxu0 0.0
      %6512 = vmatpush.msra.mxu0 0.0
      %6513 = vmatpush.msra.mxu0 %v1075
      %6514 = vmatpush.msra.mxu0 %v1074
      %6515 = vmatpush.msra.mxu0 %v1073
      %6516 = vmatpush.msra.mxu0 %v1072
      %6517 = vmatpush.msra.mxu0 %v1071
      %6518 = vmatpush.msra.mxu0 %v1070
      %6519 = vmatpush.msra.mxu0 %v1069
      %6520 = vmatpush.msra.mxu0 %v1068
      %6521 = vmatmul.f32.gmra.mxu0 %v6465
      %v6522 = vpop.f32.mrf.mxu0
      %v6523 = vadd.f32 0.0, %v6522
      %6524 = vmatmul.f32.gmra.mxu0 %v6468
      %v6525 = vpop.f32.mrf.mxu0
      %v6526 = vadd.f32 0.0, %v6525
      %6527 = vmatmul.f32.gmra.mxu0 %v6471
      %v6528 = vpop.f32.mrf.mxu0
      %v6529 = vadd.f32 0.0, %v6528
      %6530 = vmatmul.f32.gmra.mxu0 %v6474
      %v6531 = vpop.f32.mrf.mxu0
      %v6532 = vadd.f32 0.0, %v6531
      %6533 = vdwg.mxu0
      %6534 = vmatpush.msra.mxu0 0.0
      %6535 = vmatpush.msra.mxu0 0.0
      %6536 = vmatpush.msra.mxu0 0.0
      %6537 = vmatpush.msra.mxu0 0.0
      %6538 = vmatpush.msra.mxu0 0.0
      %6539 = vmatpush.msra.mxu0 0.0
      %6540 = vmatpush.msra.mxu0 0.0
      %6541 = vmatpush.msra.mxu0 0.0
      %6542 = vmatpush.msra.mxu0 %v1084
      %6543 = vmatpush.msra.mxu0 %v1083
      %6544 = vmatpush.msra.mxu0 %v1082
      %6545 = vmatpush.msra.mxu0 %v1081
      %6546 = vmatpush.msra.mxu0 %v1080
      %6547 = vmatpush.msra.mxu0 %v1079
      %6548 = vmatpush.msra.mxu0 %v1078
      %6549 = vmatpush.msra.mxu0 %v1077
      %6550 = vmatmul.f32.gmra.mxu0 %v6465
      %v6551 = vpop.f32.mrf.mxu0
      %v6552 = vadd.f32 0.0, %v6551
      %6553 = vmatmul.f32.gmra.mxu0 %v6468
      %v6554 = vpop.f32.mrf.mxu0
      %v6555 = vadd.f32 0.0, %v6554
      %6556 = vmatmul.f32.gmra.mxu0 %v6471
      %v6557 = vpop.f32.mrf.mxu0
      %v6558 = vadd.f32 0.0, %v6557
      %6559 = vmatmul.f32.gmra.mxu0 %v6474
      %v6560 = vpop.f32.mrf.mxu0
      %v6561 = vadd.f32 0.0, %v6560
      %6562 = vdwg.mxu0
      %6563 = vmatpush.msra.mxu0 0.0
      %6564 = vmatpush.msra.mxu0 0.0
      %6565 = vmatpush.msra.mxu0 0.0
      %6566 = vmatpush.msra.mxu0 0.0
      %6567 = vmatpush.msra.mxu0 0.0
      %6568 = vmatpush.msra.mxu0 0.0
      %6569 = vmatpush.msra.mxu0 0.0
      %6570 = vmatpush.msra.mxu0 0.0
      %6571 = vmatpush.msra.mxu0 %v1093
      %6572 = vmatpush.msra.mxu0 %v1092
      %6573 = vmatpush.msra.mxu0 %v1091
      %6574 = vmatpush.msra.mxu0 %v1090
      %6575 = vmatpush.msra.mxu0 %v1089
      %6576 = vmatpush.msra.mxu0 %v1088
      %6577 = vmatpush.msra.mxu0 %v1087
      %6578 = vmatpush.msra.mxu0 %v1086
      %6579 = vmatmul.f32.gmra.mxu0 %v6465
      %v6580 = vpop.f32.mrf.mxu0
      %v6581 = vadd.f32 0.0, %v6580
      %6582 = vmatmul.f32.gmra.mxu0 %v6468
      %v6583 = vpop.f32.mrf.mxu0
      %v6584 = vadd.f32 0.0, %v6583
      %6585 = vmatmul.f32.gmra.mxu0 %v6471
      %v6586 = vpop.f32.mrf.mxu0
      %v6587 = vadd.f32 0.0, %v6586
      %6588 = vmatmul.f32.gmra.mxu0 %v6474
      %v6589 = vpop.f32.mrf.mxu0
      %v6590 = vadd.f32 0.0, %v6589
      %6591 = vdwg.mxu0
      %6592 = vmatpush.msra.mxu0 0.0
      %6593 = vmatpush.msra.mxu0 0.0
      %6594 = vmatpush.msra.mxu0 0.0
      %6595 = vmatpush.msra.mxu0 0.0
      %6596 = vmatpush.msra.mxu0 0.0
      %6597 = vmatpush.msra.mxu0 0.0
      %6598 = vmatpush.msra.mxu0 0.0
      %6599 = vmatpush.msra.mxu0 0.0
      %6600 = vmatpush.msra.mxu0 %v1102
      %6601 = vmatpush.msra.mxu0 %v1101
      %6602 = vmatpush.msra.mxu0 %v1100
      %6603 = vmatpush.msra.mxu0 %v1099
      %6604 = vmatpush.msra.mxu0 %v1098
      %6605 = vmatpush.msra.mxu0 %v1097
      %6606 = vmatpush.msra.mxu0 %v1096
      %6607 = vmatpush.msra.mxu0 %v1095
      %6608 = vmatmul.f32.gmra.mxu0 %v6465
      %v6609 = vpop.f32.mrf.mxu0
      %v6610 = vadd.f32 0.0, %v6609
      %6611 = vmatmul.f32.gmra.mxu0 %v6468
      %v6612 = vpop.f32.mrf.mxu0
      %v6613 = vadd.f32 0.0, %v6612
      %6614 = vmatmul.f32.gmra.mxu0 %v6471
      %v6615 = vpop.f32.mrf.mxu0
      %v6616 = vadd.f32 0.0, %v6615
      %6617 = vmatmul.f32.gmra.mxu0 %v6474
      %v6618 = vpop.f32.mrf.mxu0
      %v6619 = vadd.f32 0.0, %v6618
      %6620 = vdwg.mxu0
      %6621 = vmatpush.msra.mxu0 0.0
      %6622 = vmatpush.msra.mxu0 0.0
      %6623 = vmatpush.msra.mxu0 0.0
      %6624 = vmatpush.msra.mxu0 0.0
      %6625 = vmatpush.msra.mxu0 0.0
      %6626 = vmatpush.msra.mxu0 0.0
      %6627 = vmatpush.msra.mxu0 0.0
      %6628 = vmatpush.msra.mxu0 0.0
      %6629 = vmatpush.msra.mxu0 %v1111
      %6630 = vmatpush.msra.mxu0 %v1110
      %6631 = vmatpush.msra.mxu0 %v1109
      %6632 = vmatpush.msra.mxu0 %v1108
      %6633 = vmatpush.msra.mxu0 %v1107
      %6634 = vmatpush.msra.mxu0 %v1106
      %6635 = vmatpush.msra.mxu0 %v1105
      %6636 = vmatpush.msra.mxu0 %v1104
      %6637 = vmatmul.f32.gmra.mxu0 %v6465
      %v6638 = vpop.f32.mrf.mxu0
      %v6639 = vadd.f32 0.0, %v6638
      %6640 = vmatmul.f32.gmra.mxu0 %v6468
      %v6641 = vpop.f32.mrf.mxu0
      %v6642 = vadd.f32 0.0, %v6641
      %6643 = vmatmul.f32.gmra.mxu0 %v6471
      %v6644 = vpop.f32.mrf.mxu0
      %v6645 = vadd.f32 0.0, %v6644
      %6646 = vmatmul.f32.gmra.mxu0 %v6474
      %v6647 = vpop.f32.mrf.mxu0
      %v6648 = vadd.f32 0.0, %v6647
      %6649 = vdwg.mxu0
      %6650 = vmatpush.msra.mxu0 0.0
      %6651 = vmatpush.msra.mxu0 0.0
      %6652 = vmatpush.msra.mxu0 0.0
      %6653 = vmatpush.msra.mxu0 0.0
      %6654 = vmatpush.msra.mxu0 0.0
      %6655 = vmatpush.msra.mxu0 0.0
      %6656 = vmatpush.msra.mxu0 0.0
      %6657 = vmatpush.msra.mxu0 0.0
      %6658 = vmatpush.msra.mxu0 %v1120
      %6659 = vmatpush.msra.mxu0 %v1119
      %6660 = vmatpush.msra.mxu0 %v1118
      %6661 = vmatpush.msra.mxu0 %v1117
      %6662 = vmatpush.msra.mxu0 %v1116
      %6663 = vmatpush.msra.mxu0 %v1115
      %6664 = vmatpush.msra.mxu0 %v1114
      %6665 = vmatpush.msra.mxu0 %v1113
      %6666 = vmatmul.f32.gmra.mxu0 %v6465
      %v6667 = vpop.f32.mrf.mxu0
      %v6668 = vadd.f32 0.0, %v6667
      %6669 = vmatmul.f32.gmra.mxu0 %v6468
      %v6670 = vpop.f32.mrf.mxu0
      %v6671 = vadd.f32 0.0, %v6670
      %6672 = vmatmul.f32.gmra.mxu0 %v6471
      %v6673 = vpop.f32.mrf.mxu0
      %v6674 = vadd.f32 0.0, %v6673
      %6675 = vmatmul.f32.gmra.mxu0 %v6474
      %v6676 = vpop.f32.mrf.mxu0
      %v6677 = vadd.f32 0.0, %v6676
      %6678 = vdwg.mxu0
      %6679 = vmatpush.msra.mxu0 0.0
      %6680 = vmatpush.msra.mxu0 0.0
      %6681 = vmatpush.msra.mxu0 0.0
      %6682 = vmatpush.msra.mxu0 0.0
      %6683 = vmatpush.msra.mxu0 0.0
      %6684 = vmatpush.msra.mxu0 0.0
      %6685 = vmatpush.msra.mxu0 0.0
      %6686 = vmatpush.msra.mxu0 0.0
      %6687 = vmatpush.msra.mxu0 %v1129
      %6688 = vmatpush.msra.mxu0 %v1128
      %6689 = vmatpush.msra.mxu0 %v1127
      %6690 = vmatpush.msra.mxu0 %v1126
      %6691 = vmatpush.msra.mxu0 %v1125
      %6692 = vmatpush.msra.mxu0 %v1124
      %6693 = vmatpush.msra.mxu0 %v1123
      %6694 = vmatpush.msra.mxu0 %v1122
      %6695 = vmatmul.f32.gmra.mxu0 %v6465
      %v6696 = vpop.f32.mrf.mxu0
      %v6697 = vadd.f32 0.0, %v6696
      %6698 = vmatmul.f32.gmra.mxu0 %v6468
      %v6699 = vpop.f32.mrf.mxu0
      %v6700 = vadd.f32 0.0, %v6699
      %6701 = vmatmul.f32.gmra.mxu0 %v6471
      %v6702 = vpop.f32.mrf.mxu0
      %v6703 = vadd.f32 0.0, %v6702
      %6704 = vmatmul.f32.gmra.mxu0 %v6474
      %v6705 = vpop.f32.mrf.mxu0
      %v6706 = vadd.f32 0.0, %v6705
      %6707 = vdwg.mxu0
      %v6708 = vpack.c.bf16 %v6497, %v6494
      %v6709 = vpack.c.bf16 %v6503, %v6500
      %v6710 = vpack.c.bf16 %v6526, %v6523
      %v6711 = vpack.c.bf16 %v6532, %v6529
      %v6712 = vpack.c.bf16 %v6555, %v6552
      %v6713 = vpack.c.bf16 %v6561, %v6558
      %v6714 = vpack.c.bf16 %v6584, %v6581
      %v6715 = vpack.c.bf16 %v6590, %v6587
      %v6716 = vpack.c.bf16 %v6461, %v6460
      %v6717 = vpack.c.bf16 %v6463, %v6462
      %v6718 = vpack.c.bf16 %v6613, %v6610
      %v6719 = vpack.c.bf16 %v6619, %v6616
      %v6720 = vpack.c.bf16 %v6642, %v6639
      %v6721 = vpack.c.bf16 %v6648, %v6645
      %v6722 = vpack.c.bf16 %v6671, %v6668
      %v6723 = vpack.c.bf16 %v6677, %v6674
      %v6724 = vpack.c.bf16 %v6700, %v6697
      %v6725 = vpack.c.bf16 %v6706, %v6703
      %v6726 = vld [vmem:[%s47] sm:$0xff]
      %v6727 = vld [vmem:[%s47 + $0x8] sm:$0xf]
      %v6728 = vld [vmem:[%s47 + $0xc] sm:$0xff]
      %v6729 = vld [vmem:[%s47 + $0x14] sm:$0xf]
      %v6730 = vld [vmem:[%s47 + $0x18] sm:$0xff]
      %v6731 = vld [vmem:[%s47 + $0x20] sm:$0xf]
      %v6732 = vld [vmem:[%s47 + $0x24] sm:$0xff]
      %v6733 = vld [vmem:[%s47 + $0x2c] sm:$0xf]
      %v6734 = vld [vmem:[%s49] sm:$0xff]
      %v6735 = vld [vmem:[%s49 + $0x8] sm:$0xff]
      %v6736 = vld [vmem:[%s49 + $0x10] sm:$0xff]
      %v6737 = vld [vmem:[%s49 + $0x18] sm:$0xff]
      %6739 = vset.pattern.permute.xlu0 0
      %6740 = vperm.xlu0 %6739, %v6734
      %v6741 = vpop.permute.xlu0 %6740
      %6744 = vset.pattern.permute.xlu0 0
      %6745 = vperm.xlu0 %6744, %v6735
      %v6746 = vpop.permute.xlu0 %6745
      %6749 = vset.pattern.permute.xlu0 0
      %6750 = vperm.xlu0 %6749, %v6736
      %v6751 = vpop.permute.xlu0 %6750
      %6754 = vset.pattern.permute.xlu0 0
      %6755 = vperm.xlu0 %6754, %v6737
      %v6756 = vpop.permute.xlu0 %6755
      %v6766 = vunpack.c.l.b16 %v6726
      %v6767 = vunpack.c.h.b16 %v6726
      %v6768 = vunpack.c.l.b16 %v6727
      %v6769 = vunpack.c.l.b16 %v6728
      %v6770 = vunpack.c.h.b16 %v6728
      %v6771 = vunpack.c.l.b16 %v6729
      %v6772 = vunpack.c.l.b16 %v6730
      %v6773 = vunpack.c.h.b16 %v6730
      %v6774 = vunpack.c.l.b16 %v6731
      %v6775 = vunpack.c.l.b16 %v6732
      %v6776 = vunpack.c.h.b16 %v6732
      %v6777 = vunpack.c.l.b16 %v6733
      %v6778 = vpack.c.b16 %v6769, %v6766
      %v6779 = vpack.c.b16 %v6770, %v6767
      %v6780 = vpack.c.b16 %v6771, %v6768
      %v6781 = vpack.c.b16 %v6775, %v6772
      %v6782 = vpack.c.b16 %v6776, %v6773
      %v6783 = vpack.c.b16 %v6777, %v6774
      %v6789 = vsel %vm6396, %v6780, 0
      %v6792 = vsel %vm6396, %v6783, 0
      %6794 = vmatpush.bf16.msra.mxu0 %v6715
      %6795 = vmatpush.bf16.msra.mxu0 %v6714
      %6796 = vmatpush.bf16.msra.mxu0 %v6713
      %6797 = vmatpush.bf16.msra.mxu0 %v6712
      %6798 = vmatpush.bf16.msra.mxu0 %v6711
      %6799 = vmatpush.bf16.msra.mxu0 %v6710
      %6800 = vmatpush.bf16.msra.mxu0 %v6709
      %6801 = vmatpush.bf16.msra.mxu0 %v6708
      %6802 = vmatmul.bf16.gmra.mxu0 %v6778
      %v6803 = vpop.f32.mrf.mxu0
      %v6804 = vadd.f32 %v6741, %v6803
      %v6805 = vpop.f32.mrf.mxu0
      %v6806 = vadd.f32 %v6746, %v6805
      %6807 = vmatmul.bf16.gmra.mxu0 %v6781
      %v6808 = vpop.f32.mrf.mxu0
      %v6809 = vadd.f32 %v6751, %v6808
      %v6810 = vpop.f32.mrf.mxu0
      %v6811 = vadd.f32 %v6756, %v6810
      %6812 = vdwg.mxu0
      %6813 = vmatpush.bf16.msra.mxu0 %v6723
      %6814 = vmatpush.bf16.msra.mxu0 %v6722
      %6815 = vmatpush.bf16.msra.mxu0 %v6721
      %6816 = vmatpush.bf16.msra.mxu0 %v6720
      %6817 = vmatpush.bf16.msra.mxu0 %v6719
      %6818 = vmatpush.bf16.msra.mxu0 %v6718
      %6819 = vmatpush.bf16.msra.mxu0 %v6717
      %6820 = vmatpush.bf16.msra.mxu0 %v6716
      %6821 = vmatmul.bf16.gmra.mxu0 %v6779
      %v6822 = vpop.f32.mrf.mxu0
      %v6823 = vadd.f32 %v6804, %v6822
      %v6824 = vpop.f32.mrf.mxu0
      %v6825 = vadd.f32 %v6806, %v6824
      %6826 = vmatmul.bf16.gmra.mxu0 %v6782
      %v6827 = vpop.f32.mrf.mxu0
      %v6828 = vadd.f32 %v6809, %v6827
      %v6829 = vpop.f32.mrf.mxu0
      %v6830 = vadd.f32 %v6811, %v6829
      %6831 = vdwg.mxu0
      %6832 = vmatpush.bf16.msra.mxu0 0
      %6833 = vmatpush.bf16.msra.mxu0 0
      %6834 = vmatpush.bf16.msra.mxu0 0
      %6835 = vmatpush.bf16.msra.mxu0 0
      %6836 = vmatpush.bf16.msra.mxu0 0
      %6837 = vmatpush.bf16.msra.mxu0 0
      %6838 = vmatpush.bf16.msra.mxu0 %v6725
      %6839 = vmatpush.bf16.msra.mxu0 %v6724
      %6840 = vmatmul.bf16.gmra.mxu0 %v6789
      %v6841 = vpop.f32.mrf.mxu0
      %v6842 = vadd.f32 %v6823, %v6841
      %v6843 = vpop.f32.mrf.mxu0
      %v6844 = vadd.f32 %v6825, %v6843
      %6845 = vmatmul.bf16.gmra.mxu0 %v6792
      %v6846 = vpop.f32.mrf.mxu0
      %v6847 = vadd.f32 %v6828, %v6846
      %v6848 = vpop.f32.mrf.mxu0
      %v6849 = vadd.f32 %v6830, %v6848
      %6850 = vdwg.mxu0
      %v6851 = vmax.f32 %v6842, 0.0
      %v6852 = vmax.f32 %v6844, 0.0
      %v6853 = vmax.f32 %v6847, 0.0
      %v6854 = vmax.f32 %v6849, 0.0
      %v6856 = vsel %vm6071, %v6851, 0
      %v6859 = vsel %vm6071, %v6852, 0
      %v6862 = vsel %vm6071, %v6853, 0
      %v6865 = vsel %vm6071, %v6854, 0
      %6867 = vmatpush.msra.mxu0 0.0
      %6868 = vmatpush.msra.mxu0 0.0
      %6869 = vmatpush.msra.mxu0 0.0
      %6870 = vmatpush.msra.mxu0 0.0
      %6871 = vmatpush.msra.mxu0 0.0
      %6872 = vmatpush.msra.mxu0 0.0
      %6873 = vmatpush.msra.mxu0 0.0
      %6874 = vmatpush.msra.mxu0 0.0
      %6875 = vmatpush.msra.mxu0 %v1066
      %6876 = vmatpush.msra.mxu0 %v1065
      %6877 = vmatpush.msra.mxu0 %v1064
      %6878 = vmatpush.msra.mxu0 %v1063
      %6879 = vmatpush.msra.mxu0 %v1062
      %6880 = vmatpush.msra.mxu0 %v1061
      %6881 = vmatpush.msra.mxu0 %v1060
      %6882 = vmatpush.msra.mxu0 %v1059
      %6883 = vmatmul.f32.gmra.mxu0 %v6856
      %v6884 = vpop.f32.mrf.mxu0
      %v6885 = vadd.f32 0.0, %v6884
      %6886 = vmatmul.f32.gmra.mxu0 %v6859
      %v6887 = vpop.f32.mrf.mxu0
      %v6888 = vadd.f32 0.0, %v6887
      %6889 = vmatmul.f32.gmra.mxu0 %v6862
      %v6890 = vpop.f32.mrf.mxu0
      %v6891 = vadd.f32 0.0, %v6890
      %6892 = vmatmul.f32.gmra.mxu0 %v6865
      %v6893 = vpop.f32.mrf.mxu0
      %v6894 = vadd.f32 0.0, %v6893
      %6895 = vdwg.mxu0
      %6896 = vmatpush.msra.mxu0 0.0
      %6897 = vmatpush.msra.mxu0 0.0
      %6898 = vmatpush.msra.mxu0 0.0
      %6899 = vmatpush.msra.mxu0 0.0
      %6900 = vmatpush.msra.mxu0 0.0
      %6901 = vmatpush.msra.mxu0 0.0
      %6902 = vmatpush.msra.mxu0 0.0
      %6903 = vmatpush.msra.mxu0 0.0
      %6904 = vmatpush.msra.mxu0 %v1075
      %6905 = vmatpush.msra.mxu0 %v1074
      %6906 = vmatpush.msra.mxu0 %v1073
      %6907 = vmatpush.msra.mxu0 %v1072
      %6908 = vmatpush.msra.mxu0 %v1071
      %6909 = vmatpush.msra.mxu0 %v1070
      %6910 = vmatpush.msra.mxu0 %v1069
      %6911 = vmatpush.msra.mxu0 %v1068
      %6912 = vmatmul.f32.gmra.mxu0 %v6856
      %v6913 = vpop.f32.mrf.mxu0
      %v6914 = vadd.f32 0.0, %v6913
      %6915 = vmatmul.f32.gmra.mxu0 %v6859
      %v6916 = vpop.f32.mrf.mxu0
      %v6917 = vadd.f32 0.0, %v6916
      %6918 = vmatmul.f32.gmra.mxu0 %v6862
      %v6919 = vpop.f32.mrf.mxu0
      %v6920 = vadd.f32 0.0, %v6919
      %6921 = vmatmul.f32.gmra.mxu0 %v6865
      %v6922 = vpop.f32.mrf.mxu0
      %v6923 = vadd.f32 0.0, %v6922
      %6924 = vdwg.mxu0
      %6925 = vmatpush.msra.mxu0 0.0
      %6926 = vmatpush.msra.mxu0 0.0
      %6927 = vmatpush.msra.mxu0 0.0
      %6928 = vmatpush.msra.mxu0 0.0
      %6929 = vmatpush.msra.mxu0 0.0
      %6930 = vmatpush.msra.mxu0 0.0
      %6931 = vmatpush.msra.mxu0 0.0
      %6932 = vmatpush.msra.mxu0 0.0
      %6933 = vmatpush.msra.mxu0 %v1084
      %6934 = vmatpush.msra.mxu0 %v1083
      %6935 = vmatpush.msra.mxu0 %v1082
      %6936 = vmatpush.msra.mxu0 %v1081
      %6937 = vmatpush.msra.mxu0 %v1080
      %6938 = vmatpush.msra.mxu0 %v1079
      %6939 = vmatpush.msra.mxu0 %v1078
      %6940 = vmatpush.msra.mxu0 %v1077
      %6941 = vmatmul.f32.gmra.mxu0 %v6856
      %v6942 = vpop.f32.mrf.mxu0
      %v6943 = vadd.f32 0.0, %v6942
      %6944 = vmatmul.f32.gmra.mxu0 %v6859
      %v6945 = vpop.f32.mrf.mxu0
      %v6946 = vadd.f32 0.0, %v6945
      %6947 = vmatmul.f32.gmra.mxu0 %v6862
      %v6948 = vpop.f32.mrf.mxu0
      %v6949 = vadd.f32 0.0, %v6948
      %6950 = vmatmul.f32.gmra.mxu0 %v6865
      %v6951 = vpop.f32.mrf.mxu0
      %v6952 = vadd.f32 0.0, %v6951
      %6953 = vdwg.mxu0
      %6954 = vmatpush.msra.mxu0 0.0
      %6955 = vmatpush.msra.mxu0 0.0
      %6956 = vmatpush.msra.mxu0 0.0
      %6957 = vmatpush.msra.mxu0 0.0
      %6958 = vmatpush.msra.mxu0 0.0
      %6959 = vmatpush.msra.mxu0 0.0
      %6960 = vmatpush.msra.mxu0 0.0
      %6961 = vmatpush.msra.mxu0 0.0
      %6962 = vmatpush.msra.mxu0 %v1093
      %6963 = vmatpush.msra.mxu0 %v1092
      %6964 = vmatpush.msra.mxu0 %v1091
      %6965 = vmatpush.msra.mxu0 %v1090
      %6966 = vmatpush.msra.mxu0 %v1089
      %6967 = vmatpush.msra.mxu0 %v1088
      %6968 = vmatpush.msra.mxu0 %v1087
      %6969 = vmatpush.msra.mxu0 %v1086
      %6970 = vmatmul.f32.gmra.mxu0 %v6856
      %v6971 = vpop.f32.mrf.mxu0
      %v6972 = vadd.f32 0.0, %v6971
      %6973 = vmatmul.f32.gmra.mxu0 %v6859
      %v6974 = vpop.f32.mrf.mxu0
      %v6975 = vadd.f32 0.0, %v6974
      %6976 = vmatmul.f32.gmra.mxu0 %v6862
      %v6977 = vpop.f32.mrf.mxu0
      %v6978 = vadd.f32 0.0, %v6977
      %6979 = vmatmul.f32.gmra.mxu0 %v6865
      %v6980 = vpop.f32.mrf.mxu0
      %v6981 = vadd.f32 0.0, %v6980
      %6982 = vdwg.mxu0
      %6983 = vmatpush.msra.mxu0 0.0
      %6984 = vmatpush.msra.mxu0 0.0
      %6985 = vmatpush.msra.mxu0 0.0
      %6986 = vmatpush.msra.mxu0 0.0
      %6987 = vmatpush.msra.mxu0 0.0
      %6988 = vmatpush.msra.mxu0 0.0
      %6989 = vmatpush.msra.mxu0 0.0
      %6990 = vmatpush.msra.mxu0 0.0
      %6991 = vmatpush.msra.mxu0 %v1102
      %6992 = vmatpush.msra.mxu0 %v1101
      %6993 = vmatpush.msra.mxu0 %v1100
      %6994 = vmatpush.msra.mxu0 %v1099
      %6995 = vmatpush.msra.mxu0 %v1098
      %6996 = vmatpush.msra.mxu0 %v1097
      %6997 = vmatpush.msra.mxu0 %v1096
      %6998 = vmatpush.msra.mxu0 %v1095
      %6999 = vmatmul.f32.gmra.mxu0 %v6856
      %v7000 = vpop.f32.mrf.mxu0
      %v7001 = vadd.f32 0.0, %v7000
      %7002 = vmatmul.f32.gmra.mxu0 %v6859
      %v7003 = vpop.f32.mrf.mxu0
      %v7004 = vadd.f32 0.0, %v7003
      %7005 = vmatmul.f32.gmra.mxu0 %v6862
      %v7006 = vpop.f32.mrf.mxu0
      %v7007 = vadd.f32 0.0, %v7006
      %7008 = vmatmul.f32.gmra.mxu0 %v6865
      %v7009 = vpop.f32.mrf.mxu0
      %v7010 = vadd.f32 0.0, %v7009
      %7011 = vdwg.mxu0
      %7012 = vmatpush.msra.mxu0 0.0
      %7013 = vmatpush.msra.mxu0 0.0
      %7014 = vmatpush.msra.mxu0 0.0
      %7015 = vmatpush.msra.mxu0 0.0
      %7016 = vmatpush.msra.mxu0 0.0
      %7017 = vmatpush.msra.mxu0 0.0
      %7018 = vmatpush.msra.mxu0 0.0
      %7019 = vmatpush.msra.mxu0 0.0
      %7020 = vmatpush.msra.mxu0 %v1111
      %7021 = vmatpush.msra.mxu0 %v1110
      %7022 = vmatpush.msra.mxu0 %v1109
      %7023 = vmatpush.msra.mxu0 %v1108
      %7024 = vmatpush.msra.mxu0 %v1107
      %7025 = vmatpush.msra.mxu0 %v1106
      %7026 = vmatpush.msra.mxu0 %v1105
      %7027 = vmatpush.msra.mxu0 %v1104
      %7028 = vmatmul.f32.gmra.mxu0 %v6856
      %v7029 = vpop.f32.mrf.mxu0
      %v7030 = vadd.f32 0.0, %v7029
      %7031 = vmatmul.f32.gmra.mxu0 %v6859
      %v7032 = vpop.f32.mrf.mxu0
      %v7033 = vadd.f32 0.0, %v7032
      %7034 = vmatmul.f32.gmra.mxu0 %v6862
      %v7035 = vpop.f32.mrf.mxu0
      %v7036 = vadd.f32 0.0, %v7035
      %7037 = vmatmul.f32.gmra.mxu0 %v6865
      %v7038 = vpop.f32.mrf.mxu0
      %v7039 = vadd.f32 0.0, %v7038
      %7040 = vdwg.mxu0
      %7041 = vmatpush.msra.mxu0 0.0
      %7042 = vmatpush.msra.mxu0 0.0
      %7043 = vmatpush.msra.mxu0 0.0
      %7044 = vmatpush.msra.mxu0 0.0
      %7045 = vmatpush.msra.mxu0 0.0
      %7046 = vmatpush.msra.mxu0 0.0
      %7047 = vmatpush.msra.mxu0 0.0
      %7048 = vmatpush.msra.mxu0 0.0
      %7049 = vmatpush.msra.mxu0 %v1120
      %7050 = vmatpush.msra.mxu0 %v1119
      %7051 = vmatpush.msra.mxu0 %v1118
      %7052 = vmatpush.msra.mxu0 %v1117
      %7053 = vmatpush.msra.mxu0 %v1116
      %7054 = vmatpush.msra.mxu0 %v1115
      %7055 = vmatpush.msra.mxu0 %v1114
      %7056 = vmatpush.msra.mxu0 %v1113
      %7057 = vmatmul.f32.gmra.mxu0 %v6856
      %v7058 = vpop.f32.mrf.mxu0
      %v7059 = vadd.f32 0.0, %v7058
      %7060 = vmatmul.f32.gmra.mxu0 %v6859
      %v7061 = vpop.f32.mrf.mxu0
      %v7062 = vadd.f32 0.0, %v7061
      %7063 = vmatmul.f32.gmra.mxu0 %v6862
      %v7064 = vpop.f32.mrf.mxu0
      %v7065 = vadd.f32 0.0, %v7064
      %7066 = vmatmul.f32.gmra.mxu0 %v6865
      %v7067 = vpop.f32.mrf.mxu0
      %v7068 = vadd.f32 0.0, %v7067
      %7069 = vdwg.mxu0
      %7070 = vmatpush.msra.mxu0 0.0
      %7071 = vmatpush.msra.mxu0 0.0
      %7072 = vmatpush.msra.mxu0 0.0
      %7073 = vmatpush.msra.mxu0 0.0
      %7074 = vmatpush.msra.mxu0 0.0
      %7075 = vmatpush.msra.mxu0 0.0
      %7076 = vmatpush.msra.mxu0 0.0
      %7077 = vmatpush.msra.mxu0 0.0
      %7078 = vmatpush.msra.mxu0 %v1129
      %7079 = vmatpush.msra.mxu0 %v1128
      %7080 = vmatpush.msra.mxu0 %v1127
      %7081 = vmatpush.msra.mxu0 %v1126
      %7082 = vmatpush.msra.mxu0 %v1125
      %7083 = vmatpush.msra.mxu0 %v1124
      %7084 = vmatpush.msra.mxu0 %v1123
      %7085 = vmatpush.msra.mxu0 %v1122
      %7086 = vmatmul.f32.gmra.mxu0 %v6856
      %v7087 = vpop.f32.mrf.mxu0
      %v7088 = vadd.f32 0.0, %v7087
      %7089 = vmatmul.f32.gmra.mxu0 %v6859
      %v7090 = vpop.f32.mrf.mxu0
      %v7091 = vadd.f32 0.0, %v7090
      %7092 = vmatmul.f32.gmra.mxu0 %v6862
      %v7093 = vpop.f32.mrf.mxu0
      %v7094 = vadd.f32 0.0, %v7093
      %7095 = vmatmul.f32.gmra.mxu0 %v6865
      %v7096 = vpop.f32.mrf.mxu0
      %v7097 = vadd.f32 0.0, %v7096
      %7098 = vdwg.mxu0
      %v7099 = vpack.c.bf16 %v6888, %v6885
      %v7100 = vpack.c.bf16 %v6894, %v6891
      %v7101 = vpack.c.bf16 %v6917, %v6914
      %v7102 = vpack.c.bf16 %v6923, %v6920
      %v7103 = vpack.c.bf16 %v6946, %v6943
      %v7104 = vpack.c.bf16 %v6952, %v6949
      %v7105 = vpack.c.bf16 %v6975, %v6972
      %v7106 = vpack.c.bf16 %v6981, %v6978
      %v7107 = vpack.c.bf16 %v6852, %v6851
      %v7108 = vpack.c.bf16 %v6854, %v6853
      %v7109 = vpack.c.bf16 %v7004, %v7001
      %v7110 = vpack.c.bf16 %v7010, %v7007
      %v7111 = vpack.c.bf16 %v7033, %v7030
      %v7112 = vpack.c.bf16 %v7039, %v7036
      %v7113 = vpack.c.bf16 %v7062, %v7059
      %v7114 = vpack.c.bf16 %v7068, %v7065
      %v7115 = vpack.c.bf16 %v7091, %v7088
      %v7116 = vpack.c.bf16 %v7097, %v7094
      %v7117 = vld [vmem:[%s51] sm:$0xff]
      %v7118 = vld [vmem:[%s51 + $0x8] sm:$0xf]
      %v7119 = vld [vmem:[%s51 + $0xc] sm:$0xff]
      %v7120 = vld [vmem:[%s51 + $0x14] sm:$0xf]
      %v7121 = vld [vmem:[%s51 + $0x18] sm:$0xff]
      %v7122 = vld [vmem:[%s51 + $0x20] sm:$0xf]
      %v7123 = vld [vmem:[%s51 + $0x24] sm:$0xff]
      %v7124 = vld [vmem:[%s51 + $0x2c] sm:$0xf]
      %v7125 = vld [vmem:[%s53] sm:$0xff]
      %v7126 = vld [vmem:[%s53 + $0x8] sm:$0xff]
      %v7127 = vld [vmem:[%s53 + $0x10] sm:$0xff]
      %v7128 = vld [vmem:[%s53 + $0x18] sm:$0xff]
      %7130 = vset.pattern.permute.xlu0 0
      %7131 = vperm.xlu0 %7130, %v7125
      %v7132 = vpop.permute.xlu0 %7131
      %7135 = vset.pattern.permute.xlu0 0
      %7136 = vperm.xlu0 %7135, %v7126
      %v7137 = vpop.permute.xlu0 %7136
      %7140 = vset.pattern.permute.xlu0 0
      %7141 = vperm.xlu0 %7140, %v7127
      %v7142 = vpop.permute.xlu0 %7141
      %7145 = vset.pattern.permute.xlu0 0
      %7146 = vperm.xlu0 %7145, %v7128
      %v7147 = vpop.permute.xlu0 %7146
      %v7157 = vunpack.c.l.b16 %v7117
      %v7158 = vunpack.c.h.b16 %v7117
      %v7159 = vunpack.c.l.b16 %v7118
      %v7160 = vunpack.c.l.b16 %v7119
      %v7161 = vunpack.c.h.b16 %v7119
      %v7162 = vunpack.c.l.b16 %v7120
      %v7163 = vunpack.c.l.b16 %v7121
      %v7164 = vunpack.c.h.b16 %v7121
      %v7165 = vunpack.c.l.b16 %v7122
      %v7166 = vunpack.c.l.b16 %v7123
      %v7167 = vunpack.c.h.b16 %v7123
      %v7168 = vunpack.c.l.b16 %v7124
      %v7169 = vpack.c.b16 %v7160, %v7157
      %v7170 = vpack.c.b16 %v7161, %v7158
      %v7171 = vpack.c.b16 %v7162, %v7159
      %v7172 = vpack.c.b16 %v7166, %v7163
      %v7173 = vpack.c.b16 %v7167, %v7164
      %v7174 = vpack.c.b16 %v7168, %v7165
      %v7180 = vsel %vm6396, %v7171, 0
      %v7183 = vsel %vm6396, %v7174, 0
      %7185 = vmatpush.bf16.msra.mxu0 %v7106
      %7186 = vmatpush.bf16.msra.mxu0 %v7105
      %7187 = vmatpush.bf16.msra.mxu0 %v7104
      %7188 = vmatpush.bf16.msra.mxu0 %v7103
      %7189 = vmatpush.bf16.msra.mxu0 %v7102
      %7190 = vmatpush.bf16.msra.mxu0 %v7101
      %7191 = vmatpush.bf16.msra.mxu0 %v7100
      %7192 = vmatpush.bf16.msra.mxu0 %v7099
      %7193 = vmatmul.bf16.gmra.mxu0 %v7169
      %v7194 = vpop.f32.mrf.mxu0
      %v7195 = vadd.f32 %v7132, %v7194
      %v7196 = vpop.f32.mrf.mxu0
      %v7197 = vadd.f32 %v7137, %v7196
      %7198 = vmatmul.bf16.gmra.mxu0 %v7172
      %v7199 = vpop.f32.mrf.mxu0
      %v7200 = vadd.f32 %v7142, %v7199
      %v7201 = vpop.f32.mrf.mxu0
      %v7202 = vadd.f32 %v7147, %v7201
      %7203 = vdwg.mxu0
      %7204 = vmatpush.bf16.msra.mxu0 %v7114
      %7205 = vmatpush.bf16.msra.mxu0 %v7113
      %7206 = vmatpush.bf16.msra.mxu0 %v7112
      %7207 = vmatpush.bf16.msra.mxu0 %v7111
      %7208 = vmatpush.bf16.msra.mxu0 %v7110
      %7209 = vmatpush.bf16.msra.mxu0 %v7109
      %7210 = vmatpush.bf16.msra.mxu0 %v7108
      %7211 = vmatpush.bf16.msra.mxu0 %v7107
      %7212 = vmatmul.bf16.gmra.mxu0 %v7170
      %v7213 = vpop.f32.mrf.mxu0
      %v7214 = vadd.f32 %v7195, %v7213
      %v7215 = vpop.f32.mrf.mxu0
      %v7216 = vadd.f32 %v7197, %v7215
      %7217 = vmatmul.bf16.gmra.mxu0 %v7173
      %v7218 = vpop.f32.mrf.mxu0
      %v7219 = vadd.f32 %v7200, %v7218
      %v7220 = vpop.f32.mrf.mxu0
      %v7221 = vadd.f32 %v7202, %v7220
      %7222 = vdwg.mxu0
      %7223 = vmatpush.bf16.msra.mxu0 0
      %7224 = vmatpush.bf16.msra.mxu0 0
      %7225 = vmatpush.bf16.msra.mxu0 0
      %7226 = vmatpush.bf16.msra.mxu0 0
      %7227 = vmatpush.bf16.msra.mxu0 0
      %7228 = vmatpush.bf16.msra.mxu0 0
      %7229 = vmatpush.bf16.msra.mxu0 %v7116
      %7230 = vmatpush.bf16.msra.mxu0 %v7115
      %7231 = vmatmul.bf16.gmra.mxu0 %v7180
      %v7232 = vpop.f32.mrf.mxu0
      %v7233 = vadd.f32 %v7214, %v7232
      %v7234 = vpop.f32.mrf.mxu0
      %v7235 = vadd.f32 %v7216, %v7234
      %7236 = vmatmul.bf16.gmra.mxu0 %v7183
      %v7237 = vpop.f32.mrf.mxu0
      %v7238 = vadd.f32 %v7219, %v7237
      %v7239 = vpop.f32.mrf.mxu0
      %v7240 = vadd.f32 %v7221, %v7239
      %7241 = vdwg.mxu0
      %v7242 = vadd.f32 %v6460, %v7233
      %v7243 = vadd.f32 %v6461, %v7235
      %v7244 = vadd.f32 %v6462, %v7238
      %v7245 = vadd.f32 %v6463, %v7240
      %v7246 = vsel %vm6071, %v7242, 0.0
      %7247 = vadd.xlane.f32.xlu0 %v7246
      %v7248 = vpop.xlane.xlu0 %7247
      %v7249 = vsel %vm6071, %v7243, 0.0
      %7250 = vadd.xlane.f32.xlu0 %v7249
      %v7251 = vpop.xlane.xlu0 %7250
      %v7252 = vsel %vm6071, %v7244, 0.0
      %7253 = vadd.xlane.f32.xlu0 %v7252
      %v7254 = vpop.xlane.xlu0 %7253
      %v7255 = vsel %vm6071, %v7245, 0.0
      %7256 = vadd.xlane.f32.xlu0 %v7255
      %v7257 = vpop.xlane.xlu0 %7256
      %v7258 = vmul.f32 %v7248, 0.015625
      %v7259 = vmul.f32 %v7251, 0.015625
      %v7260 = vmul.f32 %v7254, 0.015625
      %v7261 = vmul.f32 %v7257, 0.015625
      %v7262 = vmax.f32 %v7242, 0.0
      %v7263 = vmax.f32 %v7243, 0.0
      %v7264 = vmax.f32 %v7244, 0.0
      %v7265 = vmax.f32 %v7245, 0.0
      %v7266 = vsel %vm6071, %v7262, 0.0
      %7267 = vadd.xlane.f32.xlu0 %v7266
      %v7268 = vpop.xlane.xlu0 %7267
      %v7269 = vsel %vm6071, %v7263, 0.0
      %7270 = vadd.xlane.f32.xlu0 %v7269
      %v7271 = vpop.xlane.xlu0 %7270
      %v7272 = vsel %vm6071, %v7264, 0.0
      %7273 = vadd.xlane.f32.xlu0 %v7272
      %v7274 = vpop.xlane.xlu0 %7273
      %v7275 = vsel %vm6071, %v7265, 0.0
      %7276 = vadd.xlane.f32.xlu0 %v7275
      %v7277 = vpop.xlane.xlu0 %7276
      %v7278 = vmul.f32 %v7268, 0.015625
      %v7279 = vmul.f32 %v7271, 0.015625
      %v7280 = vmul.f32 %v7274, 0.015625
      %v7281 = vmul.f32 %v7277, 0.015625
      %vm7282 = vcmask 7168
      %7283 = vst.msk [vmem:[%s1022] sm:$0xff] %vm7282, %v7258
      %7284 = vst.msk [vmem:[%s1022 + $0x8] sm:$0xff] %vm7282, %v7259
      %7285 = vst.msk [vmem:[%s1022 + $0x10] sm:$0xff] %vm7282, %v7260
      %7286 = vst.msk [vmem:[%s1022 + $0x18] sm:$0xff] %vm7282, %v7261
      %7287 = vst.msk [vmem:[%s1027] sm:$0xff] %vm7282, %v7278
      %7288 = vst.msk [vmem:[%s1027 + $0x8] sm:$0xff] %vm7282, %v7279
      %7289 = vst.msk [vmem:[%s1027 + $0x10] sm:$0xff] %vm7282, %v7280
      %7290 = vst.msk [vmem:[%s1027 + $0x18] sm:$0xff] %vm7282, %v7281
      %p7291 = scmp.lt.s32.totalorder %s79, 1
      %s7292 = scalar_select %p7291, %s79, 1
      %s7293 = smul.addr %s7292, 4
      %s7294 = smul.addr %s7293, 8
      %s7295 = scalar_lea.vmem %s65, %s7294
      %p7296 = scmp.lt.s32.totalorder %s79, 1
      %s7297 = scalar_select %p7296, %s79, 1
      %s7298 = smul.addr %s7297, 4
      %s7299 = smul.addr %s7298, 8
      %s7300 = scalar_lea.vmem %s67, %s7299
      // Predicated region
      $region149: #{cifar_resnet_forward.1} parent=147 // pred_check
        %p7301 = pneg %p774
      $region150: #{cifar_resnet_forward.1} parent=147 // pred_check_branch
        %7303 = sbr.rel (%p7301) target = $region152
      $region151: #{cifar_resnet_forward.1} parent=147 // pred_region
        _
      $region152: #{cifar_resnet_forward.1} parent=147 // pred_fallthru
        _
      // Predicated region
      $region153: #{cifar_resnet_forward.1} parent=147 // pred_check
        %p7304 = pneg %p800
      $region154: #{cifar_resnet_forward.1} parent=147 // pred_check_branch
        %7306 = sbr.rel (%p7304) target = $region156
      $region155: #{cifar_resnet_forward.1} parent=147 // pred_region
        _
      $region156: #{cifar_resnet_forward.1} parent=147 // pred_fallthru
        _
    $region148: #{cifar_resnet_forward.1} parent=5 // pred_fallthru
      _
    %p7307 = scmp.le.s32.totalorder 2, %s74
    // Predicated region
    $region157: #{cifar_resnet_forward.1} parent=5 // pred_check
      %p7308 = pneg %p7307
    $region158: #{cifar_resnet_forward.1} parent=5 // pred_check_branch
      %7310 = sbr.rel (%p7308) target = $region160
    $region159: #{cifar_resnet_forward.1} parent=5 // pred_region
      %s7311 = ssub.s32 %s74, 2
      // Predicated region
      $region161: #{cifar_resnet_forward.1} parent=159 // pred_check
        %p7312 = pneg %p780
      $region162: #{cifar_resnet_forward.1} parent=159 // pred_check_branch
        %7314 = sbr.rel (%p7312) target = $region164
      $region163: #{cifar_resnet_forward.1} parent=159 // pred_region
        %p7315 = scmp.lt.s32.totalorder %s80, 1
        %s7316 = scalar_select %p7315, %s80, 1
        %s7317 = smul.addr %s7316, 4
        %s7318 = smul.addr %s7317, 8
        %s7319 = scalar_lea.vmem %s65, %s7318
      $region164: #{cifar_resnet_forward.1} parent=159 // pred_fallthru
        _
      // Predicated region
      $region165: #{cifar_resnet_forward.1} parent=159 // pred_check
        %p7320 = pneg %p806
      $region166: #{cifar_resnet_forward.1} parent=159 // pred_check_branch
        %7322 = sbr.rel (%p7320) target = $region168
      $region167: #{cifar_resnet_forward.1} parent=159 // pred_region
        %p7323 = scmp.lt.s32.totalorder %s80, 1
        %s7324 = scalar_select %p7323, %s80, 1
        %s7325 = smul.addr %s7324, 4
        %s7326 = smul.addr %s7325, 8
        %s7327 = scalar_lea.vmem %s67, %s7326
      $region168: #{cifar_resnet_forward.1} parent=159 // pred_fallthru
        _
    $region160: #{cifar_resnet_forward.1} parent=5 // pred_fallthru
      _
  $region6: #{cifar_resnet_forward.1} parent=0 // loop_footer
    %s78 = sadd.s32 1, %s74
  $region7: #{cifar_resnet_forward.1} parent=0 // loop_footer_branch
    %73 = sbr.rel target = $region3
  $region8: #{cifar_resnet_forward.1} parent=0 // loop_exit
    _

</llo_original>
